<compile_context>
chip_gen: v6e
topology: v6e:2x2x1
jax: 0.10.0
libtpu: 0.0.40
codegen_flags: <defaults>
</compile_context>

<pallas_src>
import functools

import jax
import jax.numpy as jnp
from jax import lax
from jax.experimental import pallas as pl
from jax.experimental.pallas import tpu as pltpu

C_MID = 192      # conv1 / conv1x3 / conv3x1 channels (fixed by the module)
CP = 256         # padded mid channels (256-lane aligned; pad lanes are zero)
C_CAT = 384      # concat([c1, c2_2]) channels (before padding)
C_OUT = 1792     # 'line' output channels; the residual add forces C_in == 1792


def _inception_resnet_c_kernel(x_ref, w1_ref, b1_ref, w13_ref, b13_ref,
                               w31_ref, b31_ref, wlt_ref, wlb_ref, bl_ref,
                               o_ref):
    NB, H, W, Cin = x_ref.shape
    M = NB * H * W
    f32, bf16 = jnp.float32, jnp.bfloat16
    dotf = functools.partial(jnp.dot, preferred_element_type=f32)

    # conv1 (1x1) + folded BatchNorm + ReLU.  (c1 == c2 in the torch forward:
    # the same conv1 module is applied to x twice, so compute it once.)
    xb = x_ref[...].astype(bf16).reshape(M, Cin)
    c1 = jnp.maximum(dotf(xb, w1_ref[...]) + b1_ref[...], 0.0)          # (M, CP) fp32
    c1b = c1.astype(bf16)

    # conv1x3 (padding (0,1)) as one K-stacked matmul: LHS = [c1[w-1], c1[w], c1[w+1]]
    # stacked on channels; the MXU sums the taps.  Out-of-range taps are zero rows.
    c1_4 = c1.reshape(NB, H, W, CP)
    zW = jnp.zeros((NB, H, 1, CP), f32)
    lhs13 = jnp.concatenate(
        [jnp.concatenate([zW, c1_4[:, :, :W - 1, :]], axis=2),   # tap kw=0: c1[w-1]
         c1_4,                                                   # tap kw=1: c1[w]
         jnp.concatenate([c1_4[:, :, 1:, :], zW], axis=2)],      # tap kw=2: c1[w+1]
        axis=-1).reshape(M, 3 * CP).astype(bf16)
    c2_1 = jnp.maximum(dotf(lhs13, w13_ref[...]) + b13_ref[...], 0.0)   # (M, CP)

    # conv3x1 (padding (1,0)): same trick, shifting along H.
    c2_1_4 = c2_1.reshape(NB, H, W, CP)
    zH = jnp.zeros((NB, 1, W, CP), f32)
    lhs31 = jnp.concatenate(
        [jnp.concatenate([zH, c2_1_4[:, :H - 1, :, :]], axis=1),  # tap kh=0: c[h-1]
         c2_1_4,                                                  # tap kh=1: c[h]
         jnp.concatenate([c2_1_4[:, 1:, :, :], zH], axis=1)],     # tap kh=2: c[h+1]
        axis=-1).reshape(M, 3 * CP).astype(bf16)
    c2_2 = jnp.maximum(dotf(lhs31, w31_ref[...]) + b31_ref[...], 0.0)   # (M, CP)

    # line = Conv1x1(concat([c1, c2_2], channel)) split into two matmuls (no concat
    # copy); then fp32 residual add + ReLU.  x is re-read here to keep its fp32
    # live range short.
    line = (dotf(c1b, wlt_ref[...]) + dotf(c2_2.astype(bf16), wlb_ref[...])
            + bl_ref[...])
    x = x_ref[...].astype(f32).reshape(M, Cin)
    o_ref[...] = jnp.maximum(x + line, 0.0).reshape(NB, H, W, Cin).astype(o_ref.dtype)


def _prep_params(params, eps=1e-5):
    """Fold BN (eval mode), re-layout to NHWC matmul weights, pad 192->256,
    stack the 1x3 / 3x1 taps along K (input rows), split the line weight over
    the concat halves, and cast weights to bf16."""
    scale = params['bn_gamma'] / jnp.sqrt(params['bn_var'] + eps)

    w1 = (params['w_conv1'][:, :, 0, 0] * scale[:, None]).T              # (Cin, 192)
    b1 = (params['b_conv1'] - params['bn_mean']) * scale + params['bn_beta']
    cin = w1.shape[0]
    w1p = jnp.zeros((cin, CP), jnp.float32).at[:, :C_MID].set(w1)
    b1p = jnp.zeros((1, CP), jnp.float32).at[0, :C_MID].set(b1)

    # conv1x3: torch weight (out, in, 1, 3) -> per-tap (in, out), K-stacked rows.
    w13 = jnp.transpose(params['w_13'][:, :, 0, :], (2, 1, 0))           # (3, in, out)
    w13p = jnp.zeros((3 * CP, CP), jnp.float32)
    for k in range(3):
        w13p = w13p.at[k * CP:k * CP + C_MID, :C_MID].set(w13[k])
    b13p = jnp.zeros((1, CP), jnp.float32).at[0, :C_MID].set(params['b_13'])

    # conv3x1: torch weight (out, in, 3, 1) -> per-tap (in, out), K-stacked rows.
    w31 = jnp.transpose(params['w_31'][:, :, :, 0], (2, 1, 0))           # (3, in, out)
    w31p = jnp.zeros((3 * CP, CP), jnp.float32)
    for k in range(3):
        w31p = w31p.at[k * CP:k * CP + C_MID, :C_MID].set(w31[k])
    b31p = jnp.zeros((1, CP), jnp.float32).at[0, :C_MID].set(params['b_31'])

    # line: split (384, 1792) over the concat halves (c1 rows / c2_2 rows).
    wl = params['w_line'][:, :, 0, 0].T                                  # (384, 1792)
    wlt = jnp.zeros((CP, C_OUT), jnp.float32).at[:C_MID, :].set(wl[:C_MID])
    wlb = jnp.zeros((CP, C_OUT), jnp.float32).at[:C_MID, :].set(wl[C_MID:])
    bl = params['b_line'][None, :]

    bf = lambda a: a.astype(jnp.bfloat16)
    return bf(w1p), b1p, bf(w13p), b13p, bf(w31p), b31p, bf(wlt), bf(wlb), bl


def _tiling_for_device(H, W, N):
    """Pick per-step batch tile (nb) and VMEM limit for the current TPU generation."""
    kind = ""
    try:
        kind = jax.devices()[0].device_kind.lower()
    except Exception:
        pass
    if any(g in kind for g in ("v4", "v5", "v6")):
        rows_target, vmem_limit = 1024, 100 * 1024 * 1024   # 128 MiB physical VMEM
    else:
        rows_target, vmem_limit = 512, 48 * 1024 * 1024     # v7x / unknown: 64 MiB/TC

    nb = max(1, min(N, rows_target // max(1, H * W)))
    if N >= 2:
        # Keep at least 2 grid steps so the "parallel" axis can shard across both
        # v7x TensorCores (no-op for large N where nb already hits the row target).
        nb = min(nb, pl.cdiv(N, 2))
    return nb, vmem_limit


def inception_resnet_c_nhwc(x_nhwc, params, out_dtype=None):
    """Forward pass, NHWC in / NHWC out (preferred: no layout round-trip).

    Pass bf16 activations to halve HBM traffic on memory-bound chips; the kernel
    keeps matmul accumulation and the residual add in fp32 regardless.
    """
    N, H, W, Cin = x_nhwc.shape
    assert Cin == C_OUT, "residual add (x + line) requires 1792 input channels"
    out_dtype = x_nhwc.dtype if out_dtype is None else out_dtype
    w1p, b1p, w13p, b13p, w31p, b31p, wlt, wlb, bl = _prep_params(params)

    nb, vmem_limit = _tiling_for_device(H, W, N)
    grid = (pl.cdiv(N, nb),)

    def wspec(shape):
        nd = len(shape)
        return pl.BlockSpec(shape, lambda n, _nd=nd: (0,) * _nd)

    out = pl.pallas_call(
        _inception_resnet_c_kernel,
        out_shape=jax.ShapeDtypeStruct((N, H, W, C_OUT), out_dtype),
        grid=grid,
        in_specs=[
            pl.BlockSpec((nb, H, W, Cin), lambda n: (n, 0, 0, 0)),
            wspec((Cin, CP)), wspec((1, CP)),
            wspec((3 * CP, CP)), wspec((1, CP)),
            wspec((3 * CP, CP)), wspec((1, CP)),
            wspec((CP, C_OUT)), wspec((CP, C_OUT)), wspec((1, C_OUT)),
        ],
        out_specs=pl.BlockSpec((nb, H, W, C_OUT), lambda n: (n, 0, 0, 0)),
        compiler_params=pltpu.CompilerParams(
            dimension_semantics=("parallel",),
            vmem_limit_bytes=vmem_limit),
    )(x_nhwc, w1p, b1p, w13p, b13p, w31p, b31p, wlt, wlb, bl)
    return out


def inception_resnet_c(x_nchw, params):
    """NCHW wrapper for PyTorch-layout parity: (N, 1792, H, W) -> (N, 1792, H, W).
    Production callers should use inception_resnet_c_nhwc directly (the two
    transposes here are full HBM round-trips outside the kernel)."""
    x_nhwc = jnp.transpose(x_nchw, (0, 2, 3, 1))
    out = inception_resnet_c_nhwc(x_nhwc, params, out_dtype=jnp.float32)
    return jnp.transpose(out, (0, 3, 1, 2))


def init_params(key, cin):
    ks = jax.random.split(key, 12)
    nrm = lambda k, shape, s: s * jax.random.normal(k, shape, jnp.float32)
    return {
        'w_conv1': nrm(ks[0], (C_MID, cin, 1, 1), 1.0 / float(cin) ** 0.5),
        'b_conv1': nrm(ks[1], (C_MID,), 0.1),
        'bn_gamma': 1.0 + nrm(ks[2], (C_MID,), 0.1),
        'bn_beta': nrm(ks[3], (C_MID,), 0.1),
        'bn_mean': nrm(ks[4], (C_MID,), 0.1),
        'bn_var': 1.0 + jnp.abs(nrm(ks[5], (C_MID,), 0.1)),
        'w_13': nrm(ks[6], (C_MID, C_MID, 1, 3), 1.0 / float(3 * C_MID) ** 0.5),
        'b_13': nrm(ks[7], (C_MID,), 0.1),
        'w_31': nrm(ks[8], (C_MID, C_MID, 3, 1), 1.0 / float(3 * C_MID) ** 0.5),
        'b_31': nrm(ks[9], (C_MID,), 0.1),
        'w_line': nrm(ks[10], (C_OUT, C_CAT, 1, 1), 1.0 / float(C_CAT) ** 0.5),
        'b_line': nrm(ks[11], (C_OUT,), 0.1),
    }


def ref_forward(x, p):
    """Pure-JAX NCHW reference matching the PyTorch forward (BN in eval mode)."""
    eps = 1e-5

    def conv(inp, w, b, pad):
        out = lax.conv_general_dilated(
            inp, w, window_strides=(1, 1), padding=pad,
            dimension_numbers=('NCHW', 'OIHW', 'NCHW'),
            precision=lax.Precision.HIGHEST)
        return out + b[None, :, None, None]

    c = conv(x, p['w_conv1'], p['b_conv1'], [(0, 0), (0, 0)])
    scale = (p['bn_gamma'] / jnp.sqrt(p['bn_var'] + eps))[None, :, None, None]
    c1 = jnp.maximum((c - p['bn_mean'][None, :, None, None]) * scale
                     + p['bn_beta'][None, :, None, None], 0.0)
    c2_1 = jnp.maximum(conv(c1, p['w_13'], p['b_13'], [(0, 0), (1, 1)]), 0.0)
    c2_2 = jnp.maximum(conv(c2_1, p['w_31'], p['b_31'], [(1, 1), (0, 0)]), 0.0)
    cat = jnp.concatenate([c1, c2_2], axis=1)
    line = conv(cat, p['w_line'], p['b_line'], [(0, 0), (0, 0)])
    return jnp.maximum(x + line, 0.0)


if __name__ == "__main__":
    key = jax.random.PRNGKey(0)
    kx, kp = jax.random.split(key)
    N, Cin, H, W = 2, C_OUT, 8, 8   # input channels must be 1792 (residual add)
    x = jax.random.normal(kx, (N, Cin, H, W), jnp.float32)
    params = init_params(kp, Cin)

    out = jax.block_until_ready(inception_resnet_c(x, params))
    ref = jax.block_until_ready(ref_forward(x, params))

    assert out.shape == (N, C_OUT, H, W)
    # bf16 MXU operands with fp32 accumulation: expect ~1e-2-level drift vs the
    # fp32 Precision.HIGHEST reference through the 1792-deep reductions.
    rel_err = float(jnp.max(jnp.abs(out - ref)) / (jnp.max(jnp.abs(ref)) + 1e-6))
    assert rel_err < 2e-2, f"kernel/reference mismatch: rel err {rel_err}"
    print("KERNEL_OK")
</pallas_src>

<mosaic_0001>
module attributes {stable_mosaic.version = 11 : i64} {
  func.func @_inception_resnet_c_kernel(%arg0: i32, %arg1: memref<1x8x8x1792xf32, #tpu.memory_space<vmem>>, %arg2: memref<1792x256xbf16, #tpu.memory_space<vmem>>, %arg3: memref<1x256xf32, #tpu.memory_space<vmem>>, %arg4: memref<768x256xbf16, #tpu.memory_space<vmem>>, %arg5: memref<1x256xf32, #tpu.memory_space<vmem>>, %arg6: memref<768x256xbf16, #tpu.memory_space<vmem>>, %arg7: memref<1x256xf32, #tpu.memory_space<vmem>>, %arg8: memref<256x1792xbf16, #tpu.memory_space<vmem>>, %arg9: memref<256x1792xbf16, #tpu.memory_space<vmem>>, %arg10: memref<1x1792xf32, #tpu.memory_space<vmem>>, %arg11: memref<1x8x8x1792xf32, #tpu.memory_space<vmem>>) attributes {dimension_semantics = [#tpu.dimension_semantics<parallel>], iteration_bounds = array<i64: 2>, scalar_prefetch = 0 : i64, scratch_operands = 0 : i64, tpu.core_type = #tpu.core_type<tc>, window_params = [{transform_indices = @transform_0, window_bounds = array<i64: 1, 8, 8, 1792>}, {pipeline_mode = #tpu.pipeline_mode<synchronous>, transform_indices = @transform_1, window_bounds = array<i64: 1792, 256>}, {pipeline_mode = #tpu.pipeline_mode<synchronous>, transform_indices = @transform_2, window_bounds = array<i64: 1, 256>}, {pipeline_mode = #tpu.pipeline_mode<synchronous>, transform_indices = @transform_3, window_bounds = array<i64: 768, 256>}, {pipeline_mode = #tpu.pipeline_mode<synchronous>, transform_indices = @transform_4, window_bounds = array<i64: 1, 256>}, {pipeline_mode = #tpu.pipeline_mode<synchronous>, transform_indices = @transform_5, window_bounds = array<i64: 768, 256>}, {pipeline_mode = #tpu.pipeline_mode<synchronous>, transform_indices = @transform_6, window_bounds = array<i64: 1, 256>}, {pipeline_mode = #tpu.pipeline_mode<synchronous>, transform_indices = @transform_7, window_bounds = array<i64: 256, 1792>}, {pipeline_mode = #tpu.pipeline_mode<synchronous>, transform_indices = @transform_8, window_bounds = array<i64: 256, 1792>}, {pipeline_mode = #tpu.pipeline_mode<synchronous>, transform_indices = @transform_9, window_bounds = array<i64: 1, 1792>}, {transform_indices = @transform_10, window_bounds = array<i64: 1, 8, 8, 1792>}]} {
    %c0 = arith.constant 0 : index
    %c0_0 = arith.constant 0 : index
    %c0_1 = arith.constant 0 : index
    %c0_2 = arith.constant 0 : index
    %0 = vector.load %arg1[%c0, %c0_0, %c0_1, %c0_2] : memref<1x8x8x1792xf32, #tpu.memory_space<vmem>>, vector<1x8x8x1792xf32>
    %1 = arith.truncf %0 : vector<1x8x8x1792xf32> to vector<1x8x8x1792xbf16>
    %2 = vector.shape_cast %1 : vector<1x8x8x1792xbf16> to vector<64x1792xbf16>
    %c0_3 = arith.constant 0 : index
    %c0_4 = arith.constant 0 : index
    %3 = vector.load %arg2[%c0_3, %c0_4] : memref<1792x256xbf16, #tpu.memory_space<vmem>>, vector<1792x256xbf16>
    %cst = arith.constant dense<0.000000e+00> : vector<64x256xf32>
    %4 = tpu.matmul %2, %3, %cst {dimension_numbers = #tpu.dot_dimension_numbers<[1], [0], [0], [1], [0, 0, 1, 1], [], []>} : vector<64x1792xbf16>, vector<1792x256xbf16>, vector<64x256xf32> -> vector<64x256xf32>
    %c0_5 = arith.constant 0 : index
    %c0_6 = arith.constant 0 : index
    %5 = vector.load %arg3[%c0_5, %c0_6] : memref<1x256xf32, #tpu.memory_space<vmem>>, vector<1x256xf32>
    %6 = vector.broadcast %5 : vector<1x256xf32> to vector<64x256xf32>
    %7 = arith.addf %4, %6 : vector<64x256xf32>
    %cst_7 = arith.constant 0.000000e+00 : f32
    %8 = vector.broadcast %cst_7 : f32 to vector<64x256xf32>
    %9 = arith.maximumf %7, %8 : vector<64x256xf32>
    %10 = arith.truncf %9 : vector<64x256xf32> to vector<64x256xbf16>
    %11 = vector.shape_cast %9 : vector<64x256xf32> to vector<1x8x8x256xf32>
    %cst_8 = arith.constant 0.000000e+00 : f32
    %12 = vector.broadcast %cst_8 : f32 to vector<1x8x1x256xf32>
    %13 = vector.extract_strided_slice %11 {offsets = [0, 0, 0, 0], sizes = [1, 8, 7, 256], strides = [1, 1, 1, 1]} : vector<1x8x8x256xf32> to vector<1x8x7x256xf32>
    %14 = tpu.concatenate %12, %13 in 2 : vector<1x8x1x256xf32>, vector<1x8x7x256xf32> -> vector<1x8x8x256xf32>
    %15 = vector.extract_strided_slice %11 {offsets = [0, 0, 1, 0], sizes = [1, 8, 7, 256], strides = [1, 1, 1, 1]} : vector<1x8x8x256xf32> to vector<1x8x7x256xf32>
    %16 = tpu.concatenate %15, %12 in 2 : vector<1x8x7x256xf32>, vector<1x8x1x256xf32> -> vector<1x8x8x256xf32>
    %17 = tpu.concatenate %14, %11, %16 in 3 : vector<1x8x8x256xf32>, vector<1x8x8x256xf32>, vector<1x8x8x256xf32> -> vector<1x8x8x768xf32>
    %18 = vector.shape_cast %17 : vector<1x8x8x768xf32> to vector<64x768xf32>
    %19 = arith.truncf %18 : vector<64x768xf32> to vector<64x768xbf16>
    %c0_9 = arith.constant 0 : index
    %c0_10 = arith.constant 0 : index
    %20 = vector.load %arg4[%c0_9, %c0_10] : memref<768x256xbf16, #tpu.memory_space<vmem>>, vector<768x256xbf16>
    %cst_11 = arith.constant dense<0.000000e+00> : vector<64x256xf32>
    %21 = tpu.matmul %19, %20, %cst_11 {dimension_numbers = #tpu.dot_dimension_numbers<[1], [0], [0], [1], [0, 0, 1, 1], [], []>} : vector<64x768xbf16>, vector<768x256xbf16>, vector<64x256xf32> -> vector<64x256xf32>
    %c0_12 = arith.constant 0 : index
    %c0_13 = arith.constant 0 : index
    %22 = vector.load %arg5[%c0_12, %c0_13] : memref<1x256xf32, #tpu.memory_space<vmem>>, vector<1x256xf32>
    %23 = vector.broadcast %22 : vector<1x256xf32> to vector<64x256xf32>
    %24 = arith.addf %21, %23 : vector<64x256xf32>
    %cst_14 = arith.constant 0.000000e+00 : f32
    %25 = vector.broadcast %cst_14 : f32 to vector<64x256xf32>
    %26 = arith.maximumf %24, %25 : vector<64x256xf32>
    %27 = vector.shape_cast %26 : vector<64x256xf32> to vector<1x8x8x256xf32>
    %cst_15 = arith.constant 0.000000e+00 : f32
    %28 = vector.broadcast %cst_15 : f32 to vector<1x1x8x256xf32>
    %29 = vector.extract_strided_slice %27 {offsets = [0, 0, 0, 0], sizes = [1, 7, 8, 256], strides = [1, 1, 1, 1]} : vector<1x8x8x256xf32> to vector<1x7x8x256xf32>
    %30 = tpu.concatenate %28, %29 in 1 : vector<1x1x8x256xf32>, vector<1x7x8x256xf32> -> vector<1x8x8x256xf32>
    %31 = vector.extract_strided_slice %27 {offsets = [0, 1, 0, 0], sizes = [1, 7, 8, 256], strides = [1, 1, 1, 1]} : vector<1x8x8x256xf32> to vector<1x7x8x256xf32>
    %32 = tpu.concatenate %31, %28 in 1 : vector<1x7x8x256xf32>, vector<1x1x8x256xf32> -> vector<1x8x8x256xf32>
    %33 = tpu.concatenate %30, %27, %32 in 3 : vector<1x8x8x256xf32>, vector<1x8x8x256xf32>, vector<1x8x8x256xf32> -> vector<1x8x8x768xf32>
    %34 = vector.shape_cast %33 : vector<1x8x8x768xf32> to vector<64x768xf32>
    %35 = arith.truncf %34 : vector<64x768xf32> to vector<64x768xbf16>
    %c0_16 = arith.constant 0 : index
    %c0_17 = arith.constant 0 : index
    %36 = vector.load %arg6[%c0_16, %c0_17] : memref<768x256xbf16, #tpu.memory_space<vmem>>, vector<768x256xbf16>
    %cst_18 = arith.constant dense<0.000000e+00> : vector<64x256xf32>
    %37 = tpu.matmul %35, %36, %cst_18 {dimension_numbers = #tpu.dot_dimension_numbers<[1], [0], [0], [1], [0, 0, 1, 1], [], []>} : vector<64x768xbf16>, vector<768x256xbf16>, vector<64x256xf32> -> vector<64x256xf32>
    %c0_19 = arith.constant 0 : index
    %c0_20 = arith.constant 0 : index
    %38 = vector.load %arg7[%c0_19, %c0_20] : memref<1x256xf32, #tpu.memory_space<vmem>>, vector<1x256xf32>
    %39 = vector.broadcast %38 : vector<1x256xf32> to vector<64x256xf32>
    %40 = arith.addf %37, %39 : vector<64x256xf32>
    %cst_21 = arith.constant 0.000000e+00 : f32
    %41 = vector.broadcast %cst_21 : f32 to vector<64x256xf32>
    %42 = arith.maximumf %40, %41 : vector<64x256xf32>
    %c0_22 = arith.constant 0 : index
    %c0_23 = arith.constant 0 : index
    %43 = vector.load %arg8[%c0_22, %c0_23] : memref<256x1792xbf16, #tpu.memory_space<vmem>>, vector<256x1792xbf16>
    %cst_24 = arith.constant dense<0.000000e+00> : vector<64x1792xf32>
    %44 = tpu.matmul %10, %43, %cst_24 {dimension_numbers = #tpu.dot_dimension_numbers<[1], [0], [0], [1], [0, 0, 1, 1], [], []>} : vector<64x256xbf16>, vector<256x1792xbf16>, vector<64x1792xf32> -> vector<64x1792xf32>
    %45 = arith.truncf %42 : vector<64x256xf32> to vector<64x256xbf16>
    %c0_25 = arith.constant 0 : index
    %c0_26 = arith.constant 0 : index
    %46 = vector.load %arg9[%c0_25, %c0_26] : memref<256x1792xbf16, #tpu.memory_space<vmem>>, vector<256x1792xbf16>
    %cst_27 = arith.constant dense<0.000000e+00> : vector<64x1792xf32>
    %47 = tpu.matmul %45, %46, %cst_27 {dimension_numbers = #tpu.dot_dimension_numbers<[1], [0], [0], [1], [0, 0, 1, 1], [], []>} : vector<64x256xbf16>, vector<256x1792xbf16>, vector<64x1792xf32> -> vector<64x1792xf32>
    %48 = arith.addf %44, %47 : vector<64x1792xf32>
    %c0_28 = arith.constant 0 : index
    %c0_29 = arith.constant 0 : index
    %49 = vector.load %arg10[%c0_28, %c0_29] : memref<1x1792xf32, #tpu.memory_space<vmem>>, vector<1x1792xf32>
    %50 = vector.broadcast %49 : vector<1x1792xf32> to vector<64x1792xf32>
    %51 = arith.addf %48, %50 : vector<64x1792xf32>
    %c0_30 = arith.constant 0 : index
    %c0_31 = arith.constant 0 : index
    %c0_32 = arith.constant 0 : index
    %c0_33 = arith.constant 0 : index
    %52 = vector.load %arg1[%c0_30, %c0_31, %c0_32, %c0_33] : memref<1x8x8x1792xf32, #tpu.memory_space<vmem>>, vector<1x8x8x1792xf32>
    %53 = vector.shape_cast %52 : vector<1x8x8x1792xf32> to vector<64x1792xf32>
    %54 = arith.addf %53, %51 : vector<64x1792xf32>
    %cst_34 = arith.constant 0.000000e+00 : f32
    %55 = vector.broadcast %cst_34 : f32 to vector<64x1792xf32>
    %56 = arith.maximumf %54, %55 : vector<64x1792xf32>
    %57 = vector.shape_cast %56 : vector<64x1792xf32> to vector<1x8x8x1792xf32>
    %c0_35 = arith.constant 0 : index
    %c0_36 = arith.constant 0 : index
    %c0_37 = arith.constant 0 : index
    %c0_38 = arith.constant 0 : index
    %58 = vector.load %arg11[%c0_35, %c0_36, %c0_37, %c0_38] : memref<1x8x8x1792xf32, #tpu.memory_space<vmem>>, vector<1x8x8x1792xf32>
    tpu.vector_store %arg11[%c0_35, %c0_36, %c0_37, %c0_38], %57 {strides = array<i32>} : memref<1x8x8x1792xf32, #tpu.memory_space<vmem>>, vector<1x8x8x1792xf32>,
    return
  }
  func.func @transform_0(%arg0: i32) -> (i32, i32, i32, i32) {
    %c0_i32 = arith.constant 0 : i32
    %c0_i32_0 = arith.constant 0 : i32
    %c0_i32_1 = arith.constant 0 : i32
    %c0_i32_2 = arith.constant 0 : i32
    return %arg0, %c0_i32, %c0_i32_0, %c0_i32_1 : i32, i32, i32, i32
  }
  func.func @transform_1(%arg0: i32) -> (i32, i32) {
    %c0_i32 = arith.constant 0 : i32
    %c0_i32_0 = arith.constant 0 : i32
    %c0_i32_1 = arith.constant 0 : i32
    return %c0_i32, %c0_i32_0 : i32, i32
  }
  func.func @transform_2(%arg0: i32) -> (i32, i32) {
    %c0_i32 = arith.constant 0 : i32
    %c0_i32_0 = arith.constant 0 : i32
    %c0_i32_1 = arith.constant 0 : i32
    return %c0_i32, %c0_i32_0 : i32, i32
  }
  func.func @transform_3(%arg0: i32) -> (i32, i32) {
    %c0_i32 = arith.constant 0 : i32
    %c0_i32_0 = arith.constant 0 : i32
    %c0_i32_1 = arith.constant 0 : i32
    return %c0_i32, %c0_i32_0 : i32, i32
  }
  func.func @transform_4(%arg0: i32) -> (i32, i32) {
    %c0_i32 = arith.constant 0 : i32
    %c0_i32_0 = arith.constant 0 : i32
    %c0_i32_1 = arith.constant 0 : i32
    return %c0_i32, %c0_i32_0 : i32, i32
  }
  func.func @transform_5(%arg0: i32) -> (i32, i32) {
    %c0_i32 = arith.constant 0 : i32
    %c0_i32_0 = arith.constant 0 : i32
    %c0_i32_1 = arith.constant 0 : i32
    return %c0_i32, %c0_i32_0 : i32, i32
  }
  func.func @transform_6(%arg0: i32) -> (i32, i32) {
    %c0_i32 = arith.constant 0 : i32
    %c0_i32_0 = arith.constant 0 : i32
    %c0_i32_1 = arith.constant 0 : i32
    return %c0_i32, %c0_i32_0 : i32, i32
  }
  func.func @transform_7(%arg0: i32) -> (i32, i32) {
    %c0_i32 = arith.constant 0 : i32
    %c0_i32_0 = arith.constant 0 : i32
    %c0_i32_1 = arith.constant 0 : i32
    return %c0_i32, %c0_i32_0 : i32, i32
  }
  func.func @transform_8(%arg0: i32) -> (i32, i32) {
    %c0_i32 = arith.constant 0 : i32
    %c0_i32_0 = arith.constant 0 : i32
    %c0_i32_1 = arith.constant 0 : i32
    return %c0_i32, %c0_i32_0 : i32, i32
  }
  func.func @transform_9(%arg0: i32) -> (i32, i32) {
    %c0_i32 = arith.constant 0 : i32
    %c0_i32_0 = arith.constant 0 : i32
    %c0_i32_1 = arith.constant 0 : i32
    return %c0_i32, %c0_i32_0 : i32, i32
  }
  func.func @transform_10(%arg0: i32) -> (i32, i32, i32, i32) {
    %c0_i32 = arith.constant 0 : i32
    %c0_i32_0 = arith.constant 0 : i32
    %c0_i32_1 = arith.constant 0 : i32
    %c0_i32_2 = arith.constant 0 : i32
    return %arg0, %c0_i32, %c0_i32_0, %c0_i32_1 : i32, i32, i32, i32
  }
}

</mosaic_0001>

<llo_original>
// kernel: tpu_custom_call.1
$region0: #{tpu_custom_call.1}
  #allocation0 [shape = 'u32[]', space=smem, size = 0x4, offset = 0x4, fixed_abs, tag = 'smem constant byte address 0x4 - core index']
  #allocation1 [shape = 'u32[144,128]{1,0:T(1,128)}', space=vmem, size = 0x12000, scoped, tag = 'internal scratch']
  %s0 = inlined_call_operand.hbm [shape: f32[2,8,8,1792], index: 0, kind: input, shape index: {}]
  %s1 = inlined_call_operand.hbm [shape: bf16[1792,256], index: 1, kind: input, shape index: {}]
  %s2 = inlined_call_operand.vmem [shape: f32[1,256], index: 2, kind: input, shape index: {}]
  %s3 = inlined_call_operand.hbm [shape: bf16[768,256], index: 3, kind: input, shape index: {}]
  %s4 = inlined_call_operand.hbm [shape: f32[1,256], index: 4, kind: input, shape index: {}]
  %s5 = inlined_call_operand.hbm [shape: bf16[768,256], index: 5, kind: input, shape index: {}]
  %s6 = inlined_call_operand.hbm [shape: f32[1,256], index: 6, kind: input, shape index: {}]
  %s7 = inlined_call_operand.hbm [shape: bf16[256,1792], index: 7, kind: input, shape index: {}]
  %s8 = inlined_call_operand.hbm [shape: bf16[256,1792], index: 8, kind: input, shape index: {}]
  %s9 = inlined_call_operand.vmem [shape: f32[1,1792], index: 9, kind: input, shape index: {}]
  %s10 = inlined_call_operand.hbm [shape: f32[2,8,8,1792], index: 10, kind: output, shape index: {}]
  %s11 = sld [smem:[#allocation0]]
  $region105: #{tpu_custom_call.1} parent=0
    _
  %s13 = ssub.s32 1, %s11
  %s14 = scalar_select 0, %s13, %s11
  $region1: #{tpu_custom_call.1} parent=0
    #allocation2 [shape = 'u8[917504]{0}', space=vmem, size = 0xe0000, scoped, tag = 'input window, operand 0']
    #allocation3 [shape = 's32[2]{0}', space=sflag, size = 0x8, scoped, tag = 'scoped memory for tpu_custom_call.1']
    #allocation4 [shape = 's32[2]{0}', space=sflag, size = 0x8, scoped, tag = 'scoped memory for tpu_custom_call.1']
    #allocation5 [shape = 'u8[917504]{0}', space=vmem, size = 0xe0000, scoped, tag = 'input window, operand 1, single buffered']
    #allocation6 [shape = 's32[1]{0}', space=sflag, size = 0x4, scoped, tag = 'scoped memory for tpu_custom_call.1']
    #allocation7 [shape = 'u8[393216]{0}', space=vmem, size = 0x60000, scoped, tag = 'input window, operand 3, single buffered']
    #allocation8 [shape = 'u8[1024]{0}', space=vmem, size = 0x400, scoped, tag = 'input window, operand 4, single buffered']
    #allocation9 [shape = 's32[1]{0}', space=sflag, size = 0x4, scoped, tag = 'scoped memory for tpu_custom_call.1']
    #allocation10 [shape = 'u8[393216]{0}', space=vmem, size = 0x60000, scoped, tag = 'input window, operand 5, single buffered']
    #allocation11 [shape = 'u8[1024]{0}', space=vmem, size = 0x400, scoped, tag = 'input window, operand 6, single buffered']
    #allocation12 [shape = 's32[1]{0}', space=sflag, size = 0x4, scoped, tag = 'scoped memory for tpu_custom_call.1']
    #allocation13 [shape = 'u8[917504]{0}', space=vmem, size = 0xe0000, scoped, tag = 'input window, operand 7, single buffered']
    #allocation14 [shape = 'u8[917504]{0}', space=vmem, size = 0xe0000, scoped, tag = 'input window, operand 8, single buffered']
    #allocation15 [shape = 's32[1]{0}', space=sflag, size = 0x4, scoped, tag = 'scoped memory for tpu_custom_call.1']
    #allocation16 [shape = 'u8[917504]{0}', space=vmem, size = 0xe0000, scoped, tag = 'output window, operand 0']
    %15 = vsyncpa [#allocation3], 0
    %s16 = scalar_lea.sflag [#allocation3], 1
    %17 = vsyncpa %s16, 0
    %18 = vsyncpa [#allocation6], 0
    %19 = vsyncpa [#allocation9], 0
    %20 = vsyncpa [#allocation12], 0
    %21 = vsyncpa [#allocation15], 0
    %22 = vsyncpa [#allocation4], 0
    %s23 = scalar_lea.sflag [#allocation4], 1
    %24 = vsyncpa %s23, 0
    loop: start=0, step=1, limit=4
    $region2: #{tpu_custom_call.1} parent=1 // loop_pre_header
      _
    $region3: #{tpu_custom_call.1} parent=1 // loop_header
      %s26 = sphi 0, %s30
      %p27 = scmp.ge.s32.totalorder %s26, 4
      %s36 = sphi 0, %s38
      %s39 = sphi 0, %s36
      %s40 = sphi 0, %s39
      %s56 = sphi 0, %s40
      %s60 = sphi 0, %s60
      %s62 = sphi 0, %s60
      %s63 = sphi 0, %s62
      %s77 = sphi 0, %s63
      %s81 = sphi 0, %s81
      %s83 = sphi 0, %s81
      %s84 = sphi 0, %s83
      %s98 = sphi 0, %s84
      %s102 = sphi 0, %s102
      %s104 = sphi 0, %s102
      %s105 = sphi 0, %s104
      %s119 = sphi 0, %s105
      %s123 = sphi 0, %s123
      %s125 = sphi 0, %s123
      %s126 = sphi 0, %s125
      %s140 = sphi 0, %s126
      %s144 = sphi 0, %s144
      %s146 = sphi 0, %s144
      %s147 = sphi 0, %s146
      %s161 = sphi 0, %s147
      %s165 = sphi 0, %s165
      %s167 = sphi 0, %s165
      %s168 = sphi 0, %s167
      %s182 = sphi 0, %s168
      %s186 = sphi 0, %s186
      %s188 = sphi 0, %s186
      %s189 = sphi 0, %s188
      %s203 = sphi 0, %s189
      %s207 = sphi 0, %s207
      %s209 = sphi 0, %s207
      %s210 = sphi 0, %s209
      %s224 = sphi 0, %s210
      %s228 = sphi 0, %s228
      %s230 = sphi 0, %s228
      %s231 = sphi 0, %s230
      %s245 = sphi 0, %s231
      %s251 = sphi 0, %s253
      %s254 = sphi 0, %s251
      %s255 = sphi 0, %s254
      %s271 = sphi 0, %s255
    $region4: #{tpu_custom_call.1} parent=1 // loop_header_branch
      %29 = sbr.rel (%p27) target = $region8
    $region5: #{tpu_custom_call.1} parent=1 // loop_body
      %s31 = ssub.s32 %s26, 1
      %s32 = ssub.s32 %s26, 2
      %s33 = sadd.s32 %s26, 1
      %s34 = ssub.s32 %s26, %s33
      %p35 = scmp.eq.s32.totalorder %s34, 0
      %s37 = sadd.s32 %s36, 1
      %s38 = scalar_select %p35, %s36, %s37
      %p41 = pneg %p35
      %p42 = scmp.eq.s32.totalorder %s26, 1
      %p43 = por %p41, %p42
      %p44 = scmp.ne.s32.totalorder %s36, %s39
      %p45 = scmp.eq.s32.totalorder %s26, 0
      %p46 = por %p44, %p45
      %p47 = scmp.ne.s32.totalorder %s36, %s39
      %p48 = scmp.eq.s32.totalorder %s31, 1
      %p49 = por %p47, %p48
      %p50 = scmp.ne.s32.totalorder %s39, %s40
      %p51 = scmp.eq.s32.totalorder %s31, 0
      %p52 = por %p50, %p51
      %p53 = scmp.ne.s32.totalorder %s39, %s40
      %p54 = scmp.eq.s32.totalorder %s32, 1
      %p55 = por %p53, %p54
      %p57 = scmp.ne.s32.totalorder %s40, %s56
      %p58 = scmp.eq.s32.totalorder %s32, 0
      %p59 = por %p57, %p58
      %s61 = sadd.s32 %s60, 1
      %p64 = scmp.eq.s32.totalorder %s26, 1
      %p65 = scmp.ne.s32.totalorder %s60, %s62
      %p66 = scmp.eq.s32.totalorder %s26, 0
      %p67 = por %p65, %p66
      %p68 = scmp.ne.s32.totalorder %s60, %s62
      %p69 = scmp.eq.s32.totalorder %s31, 1
      %p70 = por %p68, %p69
      %p71 = scmp.ne.s32.totalorder %s62, %s63
      %p72 = scmp.eq.s32.totalorder %s31, 0
      %p73 = por %p71, %p72
      %p74 = scmp.ne.s32.totalorder %s62, %s63
      %p75 = scmp.eq.s32.totalorder %s32, 1
      %p76 = por %p74, %p75
      %p78 = scmp.ne.s32.totalorder %s63, %s77
      %p79 = scmp.eq.s32.totalorder %s32, 0
      %p80 = por %p78, %p79
      %s82 = sadd.s32 %s81, 1
      %p85 = scmp.eq.s32.totalorder %s26, 1
      %p86 = scmp.ne.s32.totalorder %s81, %s83
      %p87 = scmp.eq.s32.totalorder %s26, 0
      %p88 = por %p86, %p87
      %p89 = scmp.ne.s32.totalorder %s81, %s83
      %p90 = scmp.eq.s32.totalorder %s31, 1
      %p91 = por %p89, %p90
      %p92 = scmp.ne.s32.totalorder %s83, %s84
      %p93 = scmp.eq.s32.totalorder %s31, 0
      %p94 = por %p92, %p93
      %p95 = scmp.ne.s32.totalorder %s83, %s84
      %p96 = scmp.eq.s32.totalorder %s32, 1
      %p97 = por %p95, %p96
      %p99 = scmp.ne.s32.totalorder %s84, %s98
      %p100 = scmp.eq.s32.totalorder %s32, 0
      %p101 = por %p99, %p100
      %s103 = sadd.s32 %s102, 1
      %p106 = scmp.eq.s32.totalorder %s26, 1
      %p107 = scmp.ne.s32.totalorder %s102, %s104
      %p108 = scmp.eq.s32.totalorder %s26, 0
      %p109 = por %p107, %p108
      %p110 = scmp.ne.s32.totalorder %s102, %s104
      %p111 = scmp.eq.s32.totalorder %s31, 1
      %p112 = por %p110, %p111
      %p113 = scmp.ne.s32.totalorder %s104, %s105
      %p114 = scmp.eq.s32.totalorder %s31, 0
      %p115 = por %p113, %p114
      %p116 = scmp.ne.s32.totalorder %s104, %s105
      %p117 = scmp.eq.s32.totalorder %s32, 1
      %p118 = por %p116, %p117
      %p120 = scmp.ne.s32.totalorder %s105, %s119
      %p121 = scmp.eq.s32.totalorder %s32, 0
      %p122 = por %p120, %p121
      %s124 = sadd.s32 %s123, 1
      %p127 = scmp.eq.s32.totalorder %s26, 1
      %p128 = scmp.ne.s32.totalorder %s123, %s125
      %p129 = scmp.eq.s32.totalorder %s26, 0
      %p130 = por %p128, %p129
      %p131 = scmp.ne.s32.totalorder %s123, %s125
      %p132 = scmp.eq.s32.totalorder %s31, 1
      %p133 = por %p131, %p132
      %p134 = scmp.ne.s32.totalorder %s125, %s126
      %p135 = scmp.eq.s32.totalorder %s31, 0
      %p136 = por %p134, %p135
      %p137 = scmp.ne.s32.totalorder %s125, %s126
      %p138 = scmp.eq.s32.totalorder %s32, 1
      %p139 = por %p137, %p138
      %p141 = scmp.ne.s32.totalorder %s126, %s140
      %p142 = scmp.eq.s32.totalorder %s32, 0
      %p143 = por %p141, %p142
      %s145 = sadd.s32 %s144, 1
      %p148 = scmp.eq.s32.totalorder %s26, 1
      %p149 = scmp.ne.s32.totalorder %s144, %s146
      %p150 = scmp.eq.s32.totalorder %s26, 0
      %p151 = por %p149, %p150
      %p152 = scmp.ne.s32.totalorder %s144, %s146
      %p153 = scmp.eq.s32.totalorder %s31, 1
      %p154 = por %p152, %p153
      %p155 = scmp.ne.s32.totalorder %s146, %s147
      %p156 = scmp.eq.s32.totalorder %s31, 0
      %p157 = por %p155, %p156
      %p158 = scmp.ne.s32.totalorder %s146, %s147
      %p159 = scmp.eq.s32.totalorder %s32, 1
      %p160 = por %p158, %p159
      %p162 = scmp.ne.s32.totalorder %s147, %s161
      %p163 = scmp.eq.s32.totalorder %s32, 0
      %p164 = por %p162, %p163
      %s166 = sadd.s32 %s165, 1
      %p169 = scmp.eq.s32.totalorder %s26, 1
      %p170 = scmp.ne.s32.totalorder %s165, %s167
      %p171 = scmp.eq.s32.totalorder %s26, 0
      %p172 = por %p170, %p171
      %p173 = scmp.ne.s32.totalorder %s165, %s167
      %p174 = scmp.eq.s32.totalorder %s31, 1
      %p175 = por %p173, %p174
      %p176 = scmp.ne.s32.totalorder %s167, %s168
      %p177 = scmp.eq.s32.totalorder %s31, 0
      %p178 = por %p176, %p177
      %p179 = scmp.ne.s32.totalorder %s167, %s168
      %p180 = scmp.eq.s32.totalorder %s32, 1
      %p181 = por %p179, %p180
      %p183 = scmp.ne.s32.totalorder %s168, %s182
      %p184 = scmp.eq.s32.totalorder %s32, 0
      %p185 = por %p183, %p184
      %s187 = sadd.s32 %s186, 1
      %p190 = scmp.eq.s32.totalorder %s26, 1
      %p191 = scmp.ne.s32.totalorder %s186, %s188
      %p192 = scmp.eq.s32.totalorder %s26, 0
      %p193 = por %p191, %p192
      %p194 = scmp.ne.s32.totalorder %s186, %s188
      %p195 = scmp.eq.s32.totalorder %s31, 1
      %p196 = por %p194, %p195
      %p197 = scmp.ne.s32.totalorder %s188, %s189
      %p198 = scmp.eq.s32.totalorder %s31, 0
      %p199 = por %p197, %p198
      %p200 = scmp.ne.s32.totalorder %s188, %s189
      %p201 = scmp.eq.s32.totalorder %s32, 1
      %p202 = por %p200, %p201
      %p204 = scmp.ne.s32.totalorder %s189, %s203
      %p205 = scmp.eq.s32.totalorder %s32, 0
      %p206 = por %p204, %p205
      %s208 = sadd.s32 %s207, 1
      %p211 = scmp.eq.s32.totalorder %s26, 1
      %p212 = scmp.ne.s32.totalorder %s207, %s209
      %p213 = scmp.eq.s32.totalorder %s26, 0
      %p214 = por %p212, %p213
      %p215 = scmp.ne.s32.totalorder %s207, %s209
      %p216 = scmp.eq.s32.totalorder %s31, 1
      %p217 = por %p215, %p216
      %p218 = scmp.ne.s32.totalorder %s209, %s210
      %p219 = scmp.eq.s32.totalorder %s31, 0
      %p220 = por %p218, %p219
      %p221 = scmp.ne.s32.totalorder %s209, %s210
      %p222 = scmp.eq.s32.totalorder %s32, 1
      %p223 = por %p221, %p222
      %p225 = scmp.ne.s32.totalorder %s210, %s224
      %p226 = scmp.eq.s32.totalorder %s32, 0
      %p227 = por %p225, %p226
      %s229 = sadd.s32 %s228, 1
      %p232 = scmp.eq.s32.totalorder %s26, 1
      %p233 = scmp.ne.s32.totalorder %s228, %s230
      %p234 = scmp.eq.s32.totalorder %s26, 0
      %p235 = por %p233, %p234
      %p236 = scmp.ne.s32.totalorder %s228, %s230
      %p237 = scmp.eq.s32.totalorder %s31, 1
      %p238 = por %p236, %p237
      %p239 = scmp.ne.s32.totalorder %s230, %s231
      %p240 = scmp.eq.s32.totalorder %s31, 0
      %p241 = por %p239, %p240
      %p242 = scmp.ne.s32.totalorder %s230, %s231
      %p243 = scmp.eq.s32.totalorder %s32, 1
      %p244 = por %p242, %p243
      %p246 = scmp.ne.s32.totalorder %s231, %s245
      %p247 = scmp.eq.s32.totalorder %s32, 0
      %p248 = por %p246, %p247
      %s249 = ssub.s32 %s26, %s33
      %p250 = scmp.eq.s32.totalorder %s249, 0
      %s252 = sadd.s32 %s251, 1
      %s253 = scalar_select %p250, %s251, %s252
      %p256 = pneg %p250
      %p257 = scmp.eq.s32.totalorder %s26, 1
      %p258 = por %p256, %p257
      %p259 = scmp.ne.s32.totalorder %s251, %s254
      %p260 = scmp.eq.s32.totalorder %s26, 0
      %p261 = por %p259, %p260
      %p262 = scmp.ne.s32.totalorder %s251, %s254
      %p263 = scmp.eq.s32.totalorder %s31, 1
      %p264 = por %p262, %p263
      %p265 = scmp.ne.s32.totalorder %s254, %s255
      %p266 = scmp.eq.s32.totalorder %s31, 0
      %p267 = por %p265, %p266
      %p268 = scmp.ne.s32.totalorder %s254, %s255
      %p269 = scmp.eq.s32.totalorder %s32, 1
      %p270 = por %p268, %p269
      %p272 = scmp.ne.s32.totalorder %s255, %s271
      %p273 = scmp.eq.s32.totalorder %s32, 0
      %p274 = por %p272, %p273
      %p275 = scmp.le.s32.totalorder 1, %s26
      %p276 = scmp.lt.s32.totalorder %s26, 3
      %p277 = pnand %p275, %p276
      %p278 = pneg %p277
      // Predicated region
      $region9: #{tpu_custom_call.1} parent=5 // pred_check
        _
      $region10: #{tpu_custom_call.1} parent=5 // pred_check_branch
        %280 = sbr.rel (%p277) target = $region12
      $region11: #{tpu_custom_call.1} parent=5 // pred_region
        %s281 = ssub.s32 %s26, 1
        // Predicated region
        $region13: #{tpu_custom_call.1} parent=11 // pred_check
          %p282 = pneg %p73
        $region14: #{tpu_custom_call.1} parent=11 // pred_check_branch
          %284 = sbr.rel (%p282) target = $region16
        $region15: #{tpu_custom_call.1} parent=11 // pred_region
          %s286 = ssub.s32 28672, 28672
          %287 = vsyncadd [#allocation6], %s286
          %s288 = sshll.u32 [#allocation5], 4
          %s289 = int_to_ptr.vmem [resolvable:$true] %s288
          %294 = dma.hbm_to_vmem [thread:$0]  %s1, 28672, %s289, [#allocation6], 128, 128, 8
        $region16: #{tpu_custom_call.1} parent=11 // pred_fallthru
          _
        // Predicated region
        $region17: #{tpu_custom_call.1} parent=11 // pred_check
          %p295 = pneg %p94
        $region18: #{tpu_custom_call.1} parent=11 // pred_check_branch
          %297 = sbr.rel (%p295) target = $region20
        $region19: #{tpu_custom_call.1} parent=11 // pred_region
          _
        $region20: #{tpu_custom_call.1} parent=11 // pred_fallthru
          _
        // Predicated region
        $region21: #{tpu_custom_call.1} parent=11 // pred_check
          %p298 = pneg %p115
        $region22: #{tpu_custom_call.1} parent=11 // pred_check_branch
          %300 = sbr.rel (%p298) target = $region24
        $region23: #{tpu_custom_call.1} parent=11 // pred_region
          %s302 = ssub.s32 12288, 12288
          %303 = vsyncadd [#allocation6], %s302
          %s304 = sshll.u32 [#allocation7], 4
          %s305 = int_to_ptr.vmem [resolvable:$true] %s304
          %310 = dma.hbm_to_vmem [thread:$0]  %s3, 12288, %s305, [#allocation6], 128, 128, 8
        $region24: #{tpu_custom_call.1} parent=11 // pred_fallthru
          _
        // Predicated region
        $region25: #{tpu_custom_call.1} parent=11 // pred_check
          %p311 = pneg %p136
        $region26: #{tpu_custom_call.1} parent=11 // pred_check_branch
          %313 = sbr.rel (%p311) target = $region28
        $region27: #{tpu_custom_call.1} parent=11 // pred_region
          %s315 = ssub.s32 32, 32
          %316 = vsyncadd [#allocation9], %s315
          %s318 = sshll.u32 [#allocation8], 4
          %s319 = int_to_ptr.vmem [resolvable:$true] %s318
          %321 = dma.hbm_to_vmem [thread:$0]  %s4, 32, %s319, [#allocation9]
        $region28: #{tpu_custom_call.1} parent=11 // pred_fallthru
          _
        // Predicated region
        $region29: #{tpu_custom_call.1} parent=11 // pred_check
          %p322 = pneg %p157
        $region30: #{tpu_custom_call.1} parent=11 // pred_check_branch
          %324 = sbr.rel (%p322) target = $region32
        $region31: #{tpu_custom_call.1} parent=11 // pred_region
          %s326 = ssub.s32 12288, 12288
          %327 = vsyncadd [#allocation9], %s326
          %s328 = sshll.u32 [#allocation10], 4
          %s329 = int_to_ptr.vmem [resolvable:$true] %s328
          %334 = dma.hbm_to_vmem [thread:$0]  %s5, 12288, %s329, [#allocation9], 128, 128, 8
        $region32: #{tpu_custom_call.1} parent=11 // pred_fallthru
          _
        // Predicated region
        $region33: #{tpu_custom_call.1} parent=11 // pred_check
          %p335 = pneg %p178
        $region34: #{tpu_custom_call.1} parent=11 // pred_check_branch
          %337 = sbr.rel (%p335) target = $region36
        $region35: #{tpu_custom_call.1} parent=11 // pred_region
          %s339 = ssub.s32 32, 32
          %340 = vsyncadd [#allocation12], %s339
          %s342 = sshll.u32 [#allocation11], 4
          %s343 = int_to_ptr.vmem [resolvable:$true] %s342
          %345 = dma.hbm_to_vmem [thread:$0]  %s6, 32, %s343, [#allocation12]
        $region36: #{tpu_custom_call.1} parent=11 // pred_fallthru
          _
        // Predicated region
        $region37: #{tpu_custom_call.1} parent=11 // pred_check
          %p346 = pneg %p199
        $region38: #{tpu_custom_call.1} parent=11 // pred_check_branch
          %348 = sbr.rel (%p346) target = $region40
        $region39: #{tpu_custom_call.1} parent=11 // pred_region
          %s350 = ssub.s32 28672, 28672
          %351 = vsyncadd [#allocation12], %s350
          %s352 = sshll.u32 [#allocation13], 4
          %s353 = int_to_ptr.vmem [resolvable:$true] %s352
          %358 = dma.hbm_to_vmem [thread:$0]  %s7, 28672, %s353, [#allocation12], 896, 896, 56
        $region40: #{tpu_custom_call.1} parent=11 // pred_fallthru
          _
        // Predicated region
        $region41: #{tpu_custom_call.1} parent=11 // pred_check
          %p359 = pneg %p220
        $region42: #{tpu_custom_call.1} parent=11 // pred_check_branch
          %361 = sbr.rel (%p359) target = $region44
        $region43: #{tpu_custom_call.1} parent=11 // pred_region
          %s363 = ssub.s32 28672, 28672
          %364 = vsyncadd [#allocation15], %s363
          %s365 = sshll.u32 [#allocation14], 4
          %s366 = int_to_ptr.vmem [resolvable:$true] %s365
          %371 = dma.hbm_to_vmem [thread:$0]  %s8, 28672, %s366, [#allocation15], 896, 896, 56
        $region44: #{tpu_custom_call.1} parent=11 // pred_fallthru
          _
        // Predicated region
        $region45: #{tpu_custom_call.1} parent=11 // pred_check
          %p372 = pneg %p241
        $region46: #{tpu_custom_call.1} parent=11 // pred_check_branch
          %374 = sbr.rel (%p372) target = $region48
        $region47: #{tpu_custom_call.1} parent=11 // pred_region
          _
        $region48: #{tpu_custom_call.1} parent=11 // pred_fallthru
          _
      $region12: #{tpu_custom_call.1} parent=5 // pred_fallthru
        _
      %p375 = scmp.lt.s32.totalorder %s26, 2
      // Predicated region
      $region49: #{tpu_custom_call.1} parent=5 // pred_check
        %p376 = pneg %p375
      $region50: #{tpu_custom_call.1} parent=5 // pred_check_branch
        %378 = sbr.rel (%p376) target = $region52
      $region51: #{tpu_custom_call.1} parent=5 // pred_region
        // Predicated region
        $region53: #{tpu_custom_call.1} parent=51 // pred_check
          %p379 = pneg %p46
        $region54: #{tpu_custom_call.1} parent=51 // pred_check_branch
          %381 = sbr.rel (%p379) target = $region56
        $region55: #{tpu_custom_call.1} parent=51 // pred_region
          %s382 = sand.u32 %s36, 1
          %s383 = scalar_lea.sflag [#allocation3], %s382
          %s384 = sand.u32 %s36, 1
          %s385 = smul.addr %s384, 896
          %s386 = scalar_lea.vmem [#allocation2], %s385
          %s388 = ssub.s32 14336, 14336
          %389 = vsyncadd %s383, %s388
          %s390 = smul.addr %s26, 112
          %s391 = smul.addr %s390, 128
          %s392 = scalar_lea.hbm %s0, %s391
          %s393 = sshll.u32 %s386, 4
          %s394 = int_to_ptr.vmem [resolvable:$true] %s393
          %399 = dma.hbm_to_vmem [thread:$0]  %s392, 14336, %s394, %s383, 1792, 1792, 112
        $region56: #{tpu_custom_call.1} parent=51 // pred_fallthru
          _
      $region52: #{tpu_custom_call.1} parent=5 // pred_fallthru
        _
      %p400 = scmp.le.s32.totalorder 1, %s26
      %p401 = scmp.lt.s32.totalorder %s26, 3
      %p402 = pnand %p400, %p401
      %p403 = pneg %p402
      // Predicated region
      $region57: #{tpu_custom_call.1} parent=5 // pred_check
        _
      $region58: #{tpu_custom_call.1} parent=5 // pred_check_branch
        %405 = sbr.rel (%p402) target = $region60
      $region59: #{tpu_custom_call.1} parent=5 // pred_region
        %s406 = ssub.s32 %s26, 1
        %s407 = sand.u32 %s39, 1
        %s408 = scalar_lea.sflag [#allocation3], %s407
        %s409 = sand.u32 %s39, 1
        %s410 = smul.addr %s409, 896
        %s411 = scalar_lea.vmem [#allocation2], %s410
        // Predicated region
        $region61: #{tpu_custom_call.1} parent=59 // pred_check
          %p412 = pneg %p52
        $region62: #{tpu_custom_call.1} parent=59 // pred_check_branch
          %414 = sbr.rel (%p412) target = $region64
        $region63: #{tpu_custom_call.1} parent=59 // pred_region
          %415 = dma.done %s408, 14336
        $region64: #{tpu_custom_call.1} parent=59 // pred_fallthru
          _
        // Predicated region
        $region65: #{tpu_custom_call.1} parent=59 // pred_check
          %p416 = pneg %p73
        $region66: #{tpu_custom_call.1} parent=59 // pred_check_branch
          %418 = sbr.rel (%p416) target = $region68
        $region67: #{tpu_custom_call.1} parent=59 // pred_region
          %419 = dma.done [#allocation6], 28672
        $region68: #{tpu_custom_call.1} parent=59 // pred_fallthru
          _
        // Predicated region
        $region69: #{tpu_custom_call.1} parent=59 // pred_check
          %p420 = pneg %p115
        $region70: #{tpu_custom_call.1} parent=59 // pred_check_branch
          %422 = sbr.rel (%p420) target = $region72
        $region71: #{tpu_custom_call.1} parent=59 // pred_region
          %423 = dma.done [#allocation6], 12288
        $region72: #{tpu_custom_call.1} parent=59 // pred_fallthru
          _
        // Predicated region
        $region73: #{tpu_custom_call.1} parent=59 // pred_check
          %p424 = pneg %p136
        $region74: #{tpu_custom_call.1} parent=59 // pred_check_branch
          %426 = sbr.rel (%p424) target = $region76
        $region75: #{tpu_custom_call.1} parent=59 // pred_region
          %427 = dma.done [#allocation9], 32
        $region76: #{tpu_custom_call.1} parent=59 // pred_fallthru
          _
        // Predicated region
        $region77: #{tpu_custom_call.1} parent=59 // pred_check
          %p428 = pneg %p157
        $region78: #{tpu_custom_call.1} parent=59 // pred_check_branch
          %430 = sbr.rel (%p428) target = $region80
        $region79: #{tpu_custom_call.1} parent=59 // pred_region
          %431 = dma.done [#allocation9], 12288
        $region80: #{tpu_custom_call.1} parent=59 // pred_fallthru
          _
        // Predicated region
        $region81: #{tpu_custom_call.1} parent=59 // pred_check
          %p432 = pneg %p178
        $region82: #{tpu_custom_call.1} parent=59 // pred_check_branch
          %434 = sbr.rel (%p432) target = $region84
        $region83: #{tpu_custom_call.1} parent=59 // pred_region
          %435 = dma.done [#allocation12], 32
        $region84: #{tpu_custom_call.1} parent=59 // pred_fallthru
          _
        // Predicated region
        $region85: #{tpu_custom_call.1} parent=59 // pred_check
          %p436 = pneg %p199
        $region86: #{tpu_custom_call.1} parent=59 // pred_check_branch
          %438 = sbr.rel (%p436) target = $region88
        $region87: #{tpu_custom_call.1} parent=59 // pred_region
          %439 = dma.done [#allocation12], 28672
        $region88: #{tpu_custom_call.1} parent=59 // pred_fallthru
          _
        // Predicated region
        $region89: #{tpu_custom_call.1} parent=59 // pred_check
          %p440 = pneg %p220
        $region90: #{tpu_custom_call.1} parent=59 // pred_check_branch
          %442 = sbr.rel (%p440) target = $region92
        $region91: #{tpu_custom_call.1} parent=59 // pred_region
          %443 = dma.done [#allocation15], 28672
        $region92: #{tpu_custom_call.1} parent=59 // pred_fallthru
          _
        %s444 = sand.u32 %s39, 1
        %s445 = scalar_lea.sflag [#allocation3], %s444
        %s446 = sand.u32 %s39, 1
        %s447 = smul.addr %s446, 896
        %s448 = scalar_lea.vmem [#allocation2], %s447
        %p449 = pneg %p52
        %p450 = pneg %p49
        %p451 = pneg %p73
        %p452 = pneg %p70
        %p453 = pneg %p94
        %p454 = pneg %p91
        %p455 = pneg %p115
        %p456 = pneg %p112
        %p457 = pneg %p136
        %p458 = pneg %p133
        %p459 = pneg %p157
        %p460 = pneg %p154
        %p461 = pneg %p178
        %p462 = pneg %p175
        %p463 = pneg %p199
        %p464 = pneg %p196
        %p465 = pneg %p220
        %p466 = pneg %p217
        %p467 = pneg %p241
        %p468 = pneg %p238
        %p469 = pneg %p267
        %p470 = pneg %p264
        %s471 = sand.u32 %s254, 1
        %s472 = scalar_lea.sflag [#allocation4], %s471
        %s473 = sand.u32 %s254, 1
        %s474 = smul.addr %s473, 896
        %s475 = scalar_lea.vmem [#allocation16], %s474
        %v476 = vld [vmem:[%s411] sm:$0xff]
        %v477 = vld [vmem:[%s411 + $0x8] sm:$0xff]
        %v478 = vld [vmem:[%s411 + $0x10] sm:$0xff]
        %v479 = vld [vmem:[%s411 + $0x18] sm:$0xff]
        %v480 = vld [vmem:[%s411 + $0x20] sm:$0xff]
        %v481 = vld [vmem:[%s411 + $0x28] sm:$0xff]
        %v482 = vld [vmem:[%s411 + $0x30] sm:$0xff]
        %v483 = vld [vmem:[%s411 + $0x38] sm:$0xff]
        %v484 = vld [vmem:[%s411 + $0x40] sm:$0xff]
        %v485 = vld [vmem:[%s411 + $0x48] sm:$0xff]
        %v486 = vld [vmem:[%s411 + $0x50] sm:$0xff]
        %v487 = vld [vmem:[%s411 + $0x58] sm:$0xff]
        %v488 = vld [vmem:[%s411 + $0x60] sm:$0xff]
        %v489 = vld [vmem:[%s411 + $0x68] sm:$0xff]
        %v490 = vld [vmem:[%s411 + $0x70] sm:$0xff]
        %v491 = vld [vmem:[%s411 + $0x78] sm:$0xff]
        %v492 = vld [vmem:[%s411 + $0x80] sm:$0xff]
        %v493 = vld [vmem:[%s411 + $0x88] sm:$0xff]
        %v494 = vld [vmem:[%s411 + $0x90] sm:$0xff]
        %v495 = vld [vmem:[%s411 + $0x98] sm:$0xff]
        %v496 = vld [vmem:[%s411 + $0xa0] sm:$0xff]
        %v497 = vld [vmem:[%s411 + $0xa8] sm:$0xff]
        %v498 = vld [vmem:[%s411 + $0xb0] sm:$0xff]
        %v499 = vld [vmem:[%s411 + $0xb8] sm:$0xff]
        %v500 = vld [vmem:[%s411 + $0xc0] sm:$0xff]
        %v501 = vld [vmem:[%s411 + $0xc8] sm:$0xff]
        %v502 = vld [vmem:[%s411 + $0xd0] sm:$0xff]
        %v503 = vld [vmem:[%s411 + $0xd8] sm:$0xff]
        %v504 = vld [vmem:[%s411 + $0xe0] sm:$0xff]
        %v505 = vld [vmem:[%s411 + $0xe8] sm:$0xff]
        %v506 = vld [vmem:[%s411 + $0xf0] sm:$0xff]
        %v507 = vld [vmem:[%s411 + $0xf8] sm:$0xff]
        %v508 = vld [vmem:[%s411 + $0x100] sm:$0xff]
        %v509 = vld [vmem:[%s411 + $0x108] sm:$0xff]
        %v510 = vld [vmem:[%s411 + $0x110] sm:$0xff]
        %v511 = vld [vmem:[%s411 + $0x118] sm:$0xff]
        %v512 = vld [vmem:[%s411 + $0x120] sm:$0xff]
        %v513 = vld [vmem:[%s411 + $0x128] sm:$0xff]
        %v514 = vld [vmem:[%s411 + $0x130] sm:$0xff]
        %v515 = vld [vmem:[%s411 + $0x138] sm:$0xff]
        %v516 = vld [vmem:[%s411 + $0x140] sm:$0xff]
        %v517 = vld [vmem:[%s411 + $0x148] sm:$0xff]
        %v518 = vld [vmem:[%s411 + $0x150] sm:$0xff]
        %v519 = vld [vmem:[%s411 + $0x158] sm:$0xff]
        %v520 = vld [vmem:[%s411 + $0x160] sm:$0xff]
        %v521 = vld [vmem:[%s411 + $0x168] sm:$0xff]
        %v522 = vld [vmem:[%s411 + $0x170] sm:$0xff]
        %v523 = vld [vmem:[%s411 + $0x178] sm:$0xff]
        %v524 = vld [vmem:[%s411 + $0x180] sm:$0xff]
        %v525 = vld [vmem:[%s411 + $0x188] sm:$0xff]
        %v526 = vld [vmem:[%s411 + $0x190] sm:$0xff]
        %v527 = vld [vmem:[%s411 + $0x198] sm:$0xff]
        %v528 = vld [vmem:[%s411 + $0x1a0] sm:$0xff]
        %v529 = vld [vmem:[%s411 + $0x1a8] sm:$0xff]
        %v530 = vld [vmem:[%s411 + $0x1b0] sm:$0xff]
        %v531 = vld [vmem:[%s411 + $0x1b8] sm:$0xff]
        %v532 = vld [vmem:[%s411 + $0x1c0] sm:$0xff]
        %v533 = vld [vmem:[%s411 + $0x1c8] sm:$0xff]
        %v534 = vld [vmem:[%s411 + $0x1d0] sm:$0xff]
        %v535 = vld [vmem:[%s411 + $0x1d8] sm:$0xff]
        %v536 = vld [vmem:[%s411 + $0x1e0] sm:$0xff]
        %v537 = vld [vmem:[%s411 + $0x1e8] sm:$0xff]
        %v538 = vld [vmem:[%s411 + $0x1f0] sm:$0xff]
        %v539 = vld [vmem:[%s411 + $0x1f8] sm:$0xff]
        %v540 = vld [vmem:[%s411 + $0x200] sm:$0xff]
        %v541 = vld [vmem:[%s411 + $0x208] sm:$0xff]
        %v542 = vld [vmem:[%s411 + $0x210] sm:$0xff]
        %v543 = vld [vmem:[%s411 + $0x218] sm:$0xff]
        %v544 = vld [vmem:[%s411 + $0x220] sm:$0xff]
        %v545 = vld [vmem:[%s411 + $0x228] sm:$0xff]
        %v546 = vld [vmem:[%s411 + $0x230] sm:$0xff]
        %v547 = vld [vmem:[%s411 + $0x238] sm:$0xff]
        %v548 = vld [vmem:[%s411 + $0x240] sm:$0xff]
        %v549 = vld [vmem:[%s411 + $0x248] sm:$0xff]
        %v550 = vld [vmem:[%s411 + $0x250] sm:$0xff]
        %v551 = vld [vmem:[%s411 + $0x258] sm:$0xff]
        %v552 = vld [vmem:[%s411 + $0x260] sm:$0xff]
        %v553 = vld [vmem:[%s411 + $0x268] sm:$0xff]
        %v554 = vld [vmem:[%s411 + $0x270] sm:$0xff]
        %v555 = vld [vmem:[%s411 + $0x278] sm:$0xff]
        %v556 = vld [vmem:[%s411 + $0x280] sm:$0xff]
        %v557 = vld [vmem:[%s411 + $0x288] sm:$0xff]
        %v558 = vld [vmem:[%s411 + $0x290] sm:$0xff]
        %v559 = vld [vmem:[%s411 + $0x298] sm:$0xff]
        %v560 = vld [vmem:[%s411 + $0x2a0] sm:$0xff]
        %v561 = vld [vmem:[%s411 + $0x2a8] sm:$0xff]
        %v562 = vld [vmem:[%s411 + $0x2b0] sm:$0xff]
        %v563 = vld [vmem:[%s411 + $0x2b8] sm:$0xff]
        %v564 = vld [vmem:[%s411 + $0x2c0] sm:$0xff]
        %v565 = vld [vmem:[%s411 + $0x2c8] sm:$0xff]
        %v566 = vld [vmem:[%s411 + $0x2d0] sm:$0xff]
        %v567 = vld [vmem:[%s411 + $0x2d8] sm:$0xff]
        %v568 = vld [vmem:[%s411 + $0x2e0] sm:$0xff]
        %v569 = vld [vmem:[%s411 + $0x2e8] sm:$0xff]
        %v570 = vld [vmem:[%s411 + $0x2f0] sm:$0xff]
        %v571 = vld [vmem:[%s411 + $0x2f8] sm:$0xff]
        %v572 = vld [vmem:[%s411 + $0x300] sm:$0xff]
        %v573 = vld [vmem:[%s411 + $0x308] sm:$0xff]
        %v574 = vld [vmem:[%s411 + $0x310] sm:$0xff]
        %v575 = vld [vmem:[%s411 + $0x318] sm:$0xff]
        %v576 = vld [vmem:[%s411 + $0x320] sm:$0xff]
        %v577 = vld [vmem:[%s411 + $0x328] sm:$0xff]
        %v578 = vld [vmem:[%s411 + $0x330] sm:$0xff]
        %v579 = vld [vmem:[%s411 + $0x338] sm:$0xff]
        %v580 = vld [vmem:[%s411 + $0x340] sm:$0xff]
        %v581 = vld [vmem:[%s411 + $0x348] sm:$0xff]
        %v582 = vld [vmem:[%s411 + $0x350] sm:$0xff]
        %v583 = vld [vmem:[%s411 + $0x358] sm:$0xff]
        %v584 = vld [vmem:[%s411 + $0x360] sm:$0xff]
        %v585 = vld [vmem:[%s411 + $0x368] sm:$0xff]
        %v586 = vld [vmem:[%s411 + $0x370] sm:$0xff]
        %v587 = vld [vmem:[%s411 + $0x378] sm:$0xff]
        %v588 = vpack.c.bf16 %v476, %v476
        %v589 = vpack.c.bf16 %v477, %v477
        %v590 = vpack.c.bf16 %v478, %v478
        %v591 = vpack.c.bf16 %v479, %v479
        %v592 = vpack.c.bf16 %v480, %v480
        %v593 = vpack.c.bf16 %v481, %v481
        %v594 = vpack.c.bf16 %v482, %v482
        %v595 = vpack.c.bf16 %v483, %v483
        %v596 = vpack.c.bf16 %v484, %v484
        %v597 = vpack.c.bf16 %v485, %v485
        %v598 = vpack.c.bf16 %v486, %v486
        %v599 = vpack.c.bf16 %v487, %v487
        %v600 = vpack.c.bf16 %v488, %v488
        %v601 = vpack.c.bf16 %v489, %v489
        %v602 = vpack.c.bf16 %v490, %v490
        %v603 = vpack.c.bf16 %v491, %v491
        %v604 = vpack.c.bf16 %v492, %v492
        %v605 = vpack.c.bf16 %v493, %v493
        %v606 = vpack.c.bf16 %v494, %v494
        %v607 = vpack.c.bf16 %v495, %v495
        %v608 = vpack.c.bf16 %v496, %v496
        %v609 = vpack.c.bf16 %v497, %v497
        %v610 = vpack.c.bf16 %v498, %v498
        %v611 = vpack.c.bf16 %v499, %v499
        %v612 = vpack.c.bf16 %v500, %v500
        %v613 = vpack.c.bf16 %v501, %v501
        %v614 = vpack.c.bf16 %v502, %v502
        %v615 = vpack.c.bf16 %v503, %v503
        %v616 = vpack.c.bf16 %v504, %v504
        %v617 = vpack.c.bf16 %v505, %v505
        %v618 = vpack.c.bf16 %v506, %v506
        %v619 = vpack.c.bf16 %v507, %v507
        %v620 = vpack.c.bf16 %v508, %v508
        %v621 = vpack.c.bf16 %v509, %v509
        %v622 = vpack.c.bf16 %v510, %v510
        %v623 = vpack.c.bf16 %v511, %v511
        %v624 = vpack.c.bf16 %v512, %v512
        %v625 = vpack.c.bf16 %v513, %v513
        %v626 = vpack.c.bf16 %v514, %v514
        %v627 = vpack.c.bf16 %v515, %v515
        %v628 = vpack.c.bf16 %v516, %v516
        %v629 = vpack.c.bf16 %v517, %v517
        %v630 = vpack.c.bf16 %v518, %v518
        %v631 = vpack.c.bf16 %v519, %v519
        %v632 = vpack.c.bf16 %v520, %v520
        %v633 = vpack.c.bf16 %v521, %v521
        %v634 = vpack.c.bf16 %v522, %v522
        %v635 = vpack.c.bf16 %v523, %v523
        %v636 = vpack.c.bf16 %v524, %v524
        %v637 = vpack.c.bf16 %v525, %v525
        %v638 = vpack.c.bf16 %v526, %v526
        %v639 = vpack.c.bf16 %v527, %v527
        %v640 = vpack.c.bf16 %v528, %v528
        %v641 = vpack.c.bf16 %v529, %v529
        %v642 = vpack.c.bf16 %v530, %v530
        %v643 = vpack.c.bf16 %v531, %v531
        %v644 = vpack.c.bf16 %v532, %v532
        %v645 = vpack.c.bf16 %v533, %v533
        %v646 = vpack.c.bf16 %v534, %v534
        %v647 = vpack.c.bf16 %v535, %v535
        %v648 = vpack.c.bf16 %v536, %v536
        %v649 = vpack.c.bf16 %v537, %v537
        %v650 = vpack.c.bf16 %v538, %v538
        %v651 = vpack.c.bf16 %v539, %v539
        %v652 = vpack.c.bf16 %v540, %v540
        %v653 = vpack.c.bf16 %v541, %v541
        %v654 = vpack.c.bf16 %v542, %v542
        %v655 = vpack.c.bf16 %v543, %v543
        %v656 = vpack.c.bf16 %v544, %v544
        %v657 = vpack.c.bf16 %v545, %v545
        %v658 = vpack.c.bf16 %v546, %v546
        %v659 = vpack.c.bf16 %v547, %v547
        %v660 = vpack.c.bf16 %v548, %v548
        %v661 = vpack.c.bf16 %v549, %v549
        %v662 = vpack.c.bf16 %v550, %v550
        %v663 = vpack.c.bf16 %v551, %v551
        %v664 = vpack.c.bf16 %v552, %v552
        %v665 = vpack.c.bf16 %v553, %v553
        %v666 = vpack.c.bf16 %v554, %v554
        %v667 = vpack.c.bf16 %v555, %v555
        %v668 = vpack.c.bf16 %v556, %v556
        %v669 = vpack.c.bf16 %v557, %v557
        %v670 = vpack.c.bf16 %v558, %v558
        %v671 = vpack.c.bf16 %v559, %v559
        %v672 = vpack.c.bf16 %v560, %v560
        %v673 = vpack.c.bf16 %v561, %v561
        %v674 = vpack.c.bf16 %v562, %v562
        %v675 = vpack.c.bf16 %v563, %v563
        %v676 = vpack.c.bf16 %v564, %v564
        %v677 = vpack.c.bf16 %v565, %v565
        %v678 = vpack.c.bf16 %v566, %v566
        %v679 = vpack.c.bf16 %v567, %v567
        %v680 = vpack.c.bf16 %v568, %v568
        %v681 = vpack.c.bf16 %v569, %v569
        %v682 = vpack.c.bf16 %v570, %v570
        %v683 = vpack.c.bf16 %v571, %v571
        %v684 = vpack.c.bf16 %v572, %v572
        %v685 = vpack.c.bf16 %v573, %v573
        %v686 = vpack.c.bf16 %v574, %v574
        %v687 = vpack.c.bf16 %v575, %v575
        %v688 = vpack.c.bf16 %v576, %v576
        %v689 = vpack.c.bf16 %v577, %v577
        %v690 = vpack.c.bf16 %v578, %v578
        %v691 = vpack.c.bf16 %v579, %v579
        %v692 = vpack.c.bf16 %v580, %v580
        %v693 = vpack.c.bf16 %v581, %v581
        %v694 = vpack.c.bf16 %v582, %v582
        %v695 = vpack.c.bf16 %v583, %v583
        %v696 = vpack.c.bf16 %v584, %v584
        %v697 = vpack.c.bf16 %v585, %v585
        %v698 = vpack.c.bf16 %v586, %v586
        %v699 = vpack.c.bf16 %v587, %v587
        %v812 = vunpack.c.l.b16 %v588
        %v813 = vunpack.c.l.b16 %v589
        %v814 = vunpack.c.l.b16 %v590
        %v815 = vunpack.c.l.b16 %v591
        %v816 = vunpack.c.l.b16 %v592
        %v817 = vunpack.c.l.b16 %v593
        %v818 = vunpack.c.l.b16 %v594
        %v819 = vunpack.c.l.b16 %v595
        %v820 = vunpack.c.l.b16 %v596
        %v821 = vunpack.c.l.b16 %v597
        %v822 = vunpack.c.l.b16 %v598
        %v823 = vunpack.c.l.b16 %v599
        %v824 = vunpack.c.l.b16 %v600
        %v825 = vunpack.c.l.b16 %v601
        %v826 = vunpack.c.l.b16 %v602
        %v827 = vunpack.c.l.b16 %v603
        %v828 = vunpack.c.l.b16 %v604
        %v829 = vunpack.c.l.b16 %v605
        %v830 = vunpack.c.l.b16 %v606
        %v831 = vunpack.c.l.b16 %v607
        %v832 = vunpack.c.l.b16 %v608
        %v833 = vunpack.c.l.b16 %v609
        %v834 = vunpack.c.l.b16 %v610
        %v835 = vunpack.c.l.b16 %v611
        %v836 = vunpack.c.l.b16 %v612
        %v837 = vunpack.c.l.b16 %v613
        %v838 = vunpack.c.l.b16 %v614
        %v839 = vunpack.c.l.b16 %v615
        %v840 = vunpack.c.l.b16 %v616
        %v841 = vunpack.c.l.b16 %v617
        %v842 = vunpack.c.l.b16 %v618
        %v843 = vunpack.c.l.b16 %v619
        %v844 = vunpack.c.l.b16 %v620
        %v845 = vunpack.c.l.b16 %v621
        %v846 = vunpack.c.l.b16 %v622
        %v847 = vunpack.c.l.b16 %v623
        %v848 = vunpack.c.l.b16 %v624
        %v849 = vunpack.c.l.b16 %v625
        %v850 = vunpack.c.l.b16 %v626
        %v851 = vunpack.c.l.b16 %v627
        %v852 = vunpack.c.l.b16 %v628
        %v853 = vunpack.c.l.b16 %v629
        %v854 = vunpack.c.l.b16 %v630
        %v855 = vunpack.c.l.b16 %v631
        %v856 = vunpack.c.l.b16 %v632
        %v857 = vunpack.c.l.b16 %v633
        %v858 = vunpack.c.l.b16 %v634
        %v859 = vunpack.c.l.b16 %v635
        %v860 = vunpack.c.l.b16 %v636
        %v861 = vunpack.c.l.b16 %v637
        %v862 = vunpack.c.l.b16 %v638
        %v863 = vunpack.c.l.b16 %v639
        %v864 = vunpack.c.l.b16 %v640
        %v865 = vunpack.c.l.b16 %v641
        %v866 = vunpack.c.l.b16 %v642
        %v867 = vunpack.c.l.b16 %v643
        %v868 = vunpack.c.l.b16 %v644
        %v869 = vunpack.c.l.b16 %v645
        %v870 = vunpack.c.l.b16 %v646
        %v871 = vunpack.c.l.b16 %v647
        %v872 = vunpack.c.l.b16 %v648
        %v873 = vunpack.c.l.b16 %v649
        %v874 = vunpack.c.l.b16 %v650
        %v875 = vunpack.c.l.b16 %v651
        %v876 = vunpack.c.l.b16 %v652
        %v877 = vunpack.c.l.b16 %v653
        %v878 = vunpack.c.l.b16 %v654
        %v879 = vunpack.c.l.b16 %v655
        %v880 = vunpack.c.l.b16 %v656
        %v881 = vunpack.c.l.b16 %v657
        %v882 = vunpack.c.l.b16 %v658
        %v883 = vunpack.c.l.b16 %v659
        %v884 = vunpack.c.l.b16 %v660
        %v885 = vunpack.c.l.b16 %v661
        %v886 = vunpack.c.l.b16 %v662
        %v887 = vunpack.c.l.b16 %v663
        %v888 = vunpack.c.l.b16 %v664
        %v889 = vunpack.c.l.b16 %v665
        %v890 = vunpack.c.l.b16 %v666
        %v891 = vunpack.c.l.b16 %v667
        %v892 = vunpack.c.l.b16 %v668
        %v893 = vunpack.c.l.b16 %v669
        %v894 = vunpack.c.l.b16 %v670
        %v895 = vunpack.c.l.b16 %v671
        %v896 = vunpack.c.l.b16 %v672
        %v897 = vunpack.c.l.b16 %v673
        %v898 = vunpack.c.l.b16 %v674
        %v899 = vunpack.c.l.b16 %v675
        %v900 = vunpack.c.l.b16 %v676
        %v901 = vunpack.c.l.b16 %v677
        %v902 = vunpack.c.l.b16 %v678
        %v903 = vunpack.c.l.b16 %v679
        %v904 = vunpack.c.l.b16 %v680
        %v905 = vunpack.c.l.b16 %v681
        %v906 = vunpack.c.l.b16 %v682
        %v907 = vunpack.c.l.b16 %v683
        %v908 = vunpack.c.l.b16 %v684
        %v909 = vunpack.c.l.b16 %v685
        %v910 = vunpack.c.l.b16 %v686
        %v911 = vunpack.c.l.b16 %v687
        %v912 = vunpack.c.l.b16 %v688
        %v913 = vunpack.c.l.b16 %v689
        %v914 = vunpack.c.l.b16 %v690
        %v915 = vunpack.c.l.b16 %v691
        %v916 = vunpack.c.l.b16 %v692
        %v917 = vunpack.c.l.b16 %v693
        %v918 = vunpack.c.l.b16 %v694
        %v919 = vunpack.c.l.b16 %v695
        %v920 = vunpack.c.l.b16 %v696
        %v921 = vunpack.c.l.b16 %v697
        %v922 = vunpack.c.l.b16 %v698
        %v923 = vunpack.c.l.b16 %v699
        %v924 = vld [vmem:[#allocation5] sm:$0xff]
        %v925 = vld [vmem:[#allocation5 + $0x8] sm:$0xff]
        %v926 = vld [vmem:[#allocation5 + $0x10] sm:$0xff]
        %v927 = vld [vmem:[#allocation5 + $0x18] sm:$0xff]
        %v928 = vld [vmem:[#allocation5 + $0x20] sm:$0xff]
        %v929 = vld [vmem:[#allocation5 + $0x28] sm:$0xff]
        %v930 = vld [vmem:[#allocation5 + $0x30] sm:$0xff]
        %v931 = vld [vmem:[#allocation5 + $0x38] sm:$0xff]
        %v932 = vld [vmem:[#allocation5 + $0x40] sm:$0xff]
        %v933 = vld [vmem:[#allocation5 + $0x48] sm:$0xff]
        %v934 = vld [vmem:[#allocation5 + $0x50] sm:$0xff]
        %v935 = vld [vmem:[#allocation5 + $0x58] sm:$0xff]
        %v936 = vld [vmem:[#allocation5 + $0x60] sm:$0xff]
        %v937 = vld [vmem:[#allocation5 + $0x68] sm:$0xff]
        %v938 = vld [vmem:[#allocation5 + $0x70] sm:$0xff]
        %v939 = vld [vmem:[#allocation5 + $0x78] sm:$0xff]
        %v940 = vld [vmem:[#allocation5 + $0x80] sm:$0xff]
        %v941 = vld [vmem:[#allocation5 + $0x88] sm:$0xff]
        %v942 = vld [vmem:[#allocation5 + $0x90] sm:$0xff]
        %v943 = vld [vmem:[#allocation5 + $0x98] sm:$0xff]
        %v944 = vld [vmem:[#allocation5 + $0xa0] sm:$0xff]
        %v945 = vld [vmem:[#allocation5 + $0xa8] sm:$0xff]
        %v946 = vld [vmem:[#allocation5 + $0xb0] sm:$0xff]
        %v947 = vld [vmem:[#allocation5 + $0xb8] sm:$0xff]
        %v948 = vld [vmem:[#allocation5 + $0xc0] sm:$0xff]
        %v949 = vld [vmem:[#allocation5 + $0xc8] sm:$0xff]
        %v950 = vld [vmem:[#allocation5 + $0xd0] sm:$0xff]
        %v951 = vld [vmem:[#allocation5 + $0xd8] sm:$0xff]
        %v952 = vld [vmem:[#allocation5 + $0xe0] sm:$0xff]
        %v953 = vld [vmem:[#allocation5 + $0xe8] sm:$0xff]
        %v954 = vld [vmem:[#allocation5 + $0xf0] sm:$0xff]
        %v955 = vld [vmem:[#allocation5 + $0xf8] sm:$0xff]
        %v956 = vld [vmem:[#allocation5 + $0x100] sm:$0xff]
        %v957 = vld [vmem:[#allocation5 + $0x108] sm:$0xff]
        %v958 = vld [vmem:[#allocation5 + $0x110] sm:$0xff]
        %v959 = vld [vmem:[#allocation5 + $0x118] sm:$0xff]
        %v960 = vld [vmem:[#allocation5 + $0x120] sm:$0xff]
        %v961 = vld [vmem:[#allocation5 + $0x128] sm:$0xff]
        %v962 = vld [vmem:[#allocation5 + $0x130] sm:$0xff]
        %v963 = vld [vmem:[#allocation5 + $0x138] sm:$0xff]
        %v964 = vld [vmem:[#allocation5 + $0x140] sm:$0xff]
        %v965 = vld [vmem:[#allocation5 + $0x148] sm:$0xff]
        %v966 = vld [vmem:[#allocation5 + $0x150] sm:$0xff]
        %v967 = vld [vmem:[#allocation5 + $0x158] sm:$0xff]
        %v968 = vld [vmem:[#allocation5 + $0x160] sm:$0xff]
        %v969 = vld [vmem:[#allocation5 + $0x168] sm:$0xff]
        %v970 = vld [vmem:[#allocation5 + $0x170] sm:$0xff]
        %v971 = vld [vmem:[#allocation5 + $0x178] sm:$0xff]
        %v972 = vld [vmem:[#allocation5 + $0x180] sm:$0xff]
        %v973 = vld [vmem:[#allocation5 + $0x188] sm:$0xff]
        %v974 = vld [vmem:[#allocation5 + $0x190] sm:$0xff]
        %v975 = vld [vmem:[#allocation5 + $0x198] sm:$0xff]
        %v976 = vld [vmem:[#allocation5 + $0x1a0] sm:$0xff]
        %v977 = vld [vmem:[#allocation5 + $0x1a8] sm:$0xff]
        %v978 = vld [vmem:[#allocation5 + $0x1b0] sm:$0xff]
        %v979 = vld [vmem:[#allocation5 + $0x1b8] sm:$0xff]
        %v980 = vld [vmem:[#allocation5 + $0x1c0] sm:$0xff]
        %v981 = vld [vmem:[#allocation5 + $0x1c8] sm:$0xff]
        %v982 = vld [vmem:[#allocation5 + $0x1d0] sm:$0xff]
        %v983 = vld [vmem:[#allocation5 + $0x1d8] sm:$0xff]
        %v984 = vld [vmem:[#allocation5 + $0x1e0] sm:$0xff]
        %v985 = vld [vmem:[#allocation5 + $0x1e8] sm:$0xff]
        %v986 = vld [vmem:[#allocation5 + $0x1f0] sm:$0xff]
        %v987 = vld [vmem:[#allocation5 + $0x1f8] sm:$0xff]
        %v988 = vld [vmem:[#allocation5 + $0x200] sm:$0xff]
        %v989 = vld [vmem:[#allocation5 + $0x208] sm:$0xff]
        %v990 = vld [vmem:[#allocation5 + $0x210] sm:$0xff]
        %v991 = vld [vmem:[#allocation5 + $0x218] sm:$0xff]
        %v992 = vld [vmem:[#allocation5 + $0x220] sm:$0xff]
        %v993 = vld [vmem:[#allocation5 + $0x228] sm:$0xff]
        %v994 = vld [vmem:[#allocation5 + $0x230] sm:$0xff]
        %v995 = vld [vmem:[#allocation5 + $0x238] sm:$0xff]
        %v996 = vld [vmem:[#allocation5 + $0x240] sm:$0xff]
        %v997 = vld [vmem:[#allocation5 + $0x248] sm:$0xff]
        %v998 = vld [vmem:[#allocation5 + $0x250] sm:$0xff]
        %v999 = vld [vmem:[#allocation5 + $0x258] sm:$0xff]
        %v1000 = vld [vmem:[#allocation5 + $0x260] sm:$0xff]
        %v1001 = vld [vmem:[#allocation5 + $0x268] sm:$0xff]
        %v1002 = vld [vmem:[#allocation5 + $0x270] sm:$0xff]
        %v1003 = vld [vmem:[#allocation5 + $0x278] sm:$0xff]
        %v1004 = vld [vmem:[#allocation5 + $0x280] sm:$0xff]
        %v1005 = vld [vmem:[#allocation5 + $0x288] sm:$0xff]
        %v1006 = vld [vmem:[#allocation5 + $0x290] sm:$0xff]
        %v1007 = vld [vmem:[#allocation5 + $0x298] sm:$0xff]
        %v1008 = vld [vmem:[#allocation5 + $0x2a0] sm:$0xff]
        %v1009 = vld [vmem:[#allocation5 + $0x2a8] sm:$0xff]
        %v1010 = vld [vmem:[#allocation5 + $0x2b0] sm:$0xff]
        %v1011 = vld [vmem:[#allocation5 + $0x2b8] sm:$0xff]
        %v1012 = vld [vmem:[#allocation5 + $0x2c0] sm:$0xff]
        %v1013 = vld [vmem:[#allocation5 + $0x2c8] sm:$0xff]
        %v1014 = vld [vmem:[#allocation5 + $0x2d0] sm:$0xff]
        %v1015 = vld [vmem:[#allocation5 + $0x2d8] sm:$0xff]
        %v1016 = vld [vmem:[#allocation5 + $0x2e0] sm:$0xff]
        %v1017 = vld [vmem:[#allocation5 + $0x2e8] sm:$0xff]
        %v1018 = vld [vmem:[#allocation5 + $0x2f0] sm:$0xff]
        %v1019 = vld [vmem:[#allocation5 + $0x2f8] sm:$0xff]
        %v1020 = vld [vmem:[#allocation5 + $0x300] sm:$0xff]
        %v1021 = vld [vmem:[#allocation5 + $0x308] sm:$0xff]
        %v1022 = vld [vmem:[#allocation5 + $0x310] sm:$0xff]
        %v1023 = vld [vmem:[#allocation5 + $0x318] sm:$0xff]
        %v1024 = vld [vmem:[#allocation5 + $0x320] sm:$0xff]
        %v1025 = vld [vmem:[#allocation5 + $0x328] sm:$0xff]
        %v1026 = vld [vmem:[#allocation5 + $0x330] sm:$0xff]
        %v1027 = vld [vmem:[#allocation5 + $0x338] sm:$0xff]
        %v1028 = vld [vmem:[#allocation5 + $0x340] sm:$0xff]
        %v1029 = vld [vmem:[#allocation5 + $0x348] sm:$0xff]
        %v1030 = vld [vmem:[#allocation5 + $0x350] sm:$0xff]
        %v1031 = vld [vmem:[#allocation5 + $0x358] sm:$0xff]
        %v1032 = vld [vmem:[#allocation5 + $0x360] sm:$0xff]
        %v1033 = vld [vmem:[#allocation5 + $0x368] sm:$0xff]
        %v1034 = vld [vmem:[#allocation5 + $0x370] sm:$0xff]
        %v1035 = vld [vmem:[#allocation5 + $0x378] sm:$0xff]
        %v1036 = vld [vmem:[#allocation5 + $0x380] sm:$0xff]
        %v1037 = vld [vmem:[#allocation5 + $0x388] sm:$0xff]
        %v1038 = vld [vmem:[#allocation5 + $0x390] sm:$0xff]
        %v1039 = vld [vmem:[#allocation5 + $0x398] sm:$0xff]
        %v1040 = vld [vmem:[#allocation5 + $0x3a0] sm:$0xff]
        %v1041 = vld [vmem:[#allocation5 + $0x3a8] sm:$0xff]
        %v1042 = vld [vmem:[#allocation5 + $0x3b0] sm:$0xff]
        %v1043 = vld [vmem:[#allocation5 + $0x3b8] sm:$0xff]
        %v1044 = vld [vmem:[#allocation5 + $0x3c0] sm:$0xff]
        %v1045 = vld [vmem:[#allocation5 + $0x3c8] sm:$0xff]
        %v1046 = vld [vmem:[#allocation5 + $0x3d0] sm:$0xff]
        %v1047 = vld [vmem:[#allocation5 + $0x3d8] sm:$0xff]
        %v1048 = vld [vmem:[#allocation5 + $0x3e0] sm:$0xff]
        %v1049 = vld [vmem:[#allocation5 + $0x3e8] sm:$0xff]
        %v1050 = vld [vmem:[#allocation5 + $0x3f0] sm:$0xff]
        %v1051 = vld [vmem:[#allocation5 + $0x3f8] sm:$0xff]
        %v1052 = vld [vmem:[#allocation5 + $0x400] sm:$0xff]
        %v1053 = vld [vmem:[#allocation5 + $0x408] sm:$0xff]
        %v1054 = vld [vmem:[#allocation5 + $0x410] sm:$0xff]
        %v1055 = vld [vmem:[#allocation5 + $0x418] sm:$0xff]
        %v1056 = vld [vmem:[#allocation5 + $0x420] sm:$0xff]
        %v1057 = vld [vmem:[#allocation5 + $0x428] sm:$0xff]
        %v1058 = vld [vmem:[#allocation5 + $0x430] sm:$0xff]
        %v1059 = vld [vmem:[#allocation5 + $0x438] sm:$0xff]
        %v1060 = vld [vmem:[#allocation5 + $0x440] sm:$0xff]
        %v1061 = vld [vmem:[#allocation5 + $0x448] sm:$0xff]
        %v1062 = vld [vmem:[#allocation5 + $0x450] sm:$0xff]
        %v1063 = vld [vmem:[#allocation5 + $0x458] sm:$0xff]
        %v1064 = vld [vmem:[#allocation5 + $0x460] sm:$0xff]
        %v1065 = vld [vmem:[#allocation5 + $0x468] sm:$0xff]
        %v1066 = vld [vmem:[#allocation5 + $0x470] sm:$0xff]
        %v1067 = vld [vmem:[#allocation5 + $0x478] sm:$0xff]
        %v1068 = vld [vmem:[#allocation5 + $0x480] sm:$0xff]
        %v1069 = vld [vmem:[#allocation5 + $0x488] sm:$0xff]
        %v1070 = vld [vmem:[#allocation5 + $0x490] sm:$0xff]
        %v1071 = vld [vmem:[#allocation5 + $0x498] sm:$0xff]
        %v1072 = vld [vmem:[#allocation5 + $0x4a0] sm:$0xff]
        %v1073 = vld [vmem:[#allocation5 + $0x4a8] sm:$0xff]
        %v1074 = vld [vmem:[#allocation5 + $0x4b0] sm:$0xff]
        %v1075 = vld [vmem:[#allocation5 + $0x4b8] sm:$0xff]
        %v1076 = vld [vmem:[#allocation5 + $0x4c0] sm:$0xff]
        %v1077 = vld [vmem:[#allocation5 + $0x4c8] sm:$0xff]
        %v1078 = vld [vmem:[#allocation5 + $0x4d0] sm:$0xff]
        %v1079 = vld [vmem:[#allocation5 + $0x4d8] sm:$0xff]
        %v1080 = vld [vmem:[#allocation5 + $0x4e0] sm:$0xff]
        %v1081 = vld [vmem:[#allocation5 + $0x4e8] sm:$0xff]
        %v1082 = vld [vmem:[#allocation5 + $0x4f0] sm:$0xff]
        %v1083 = vld [vmem:[#allocation5 + $0x4f8] sm:$0xff]
        %v1084 = vld [vmem:[#allocation5 + $0x500] sm:$0xff]
        %v1085 = vld [vmem:[#allocation5 + $0x508] sm:$0xff]
        %v1086 = vld [vmem:[#allocation5 + $0x510] sm:$0xff]
        %v1087 = vld [vmem:[#allocation5 + $0x518] sm:$0xff]
        %v1088 = vld [vmem:[#allocation5 + $0x520] sm:$0xff]
        %v1089 = vld [vmem:[#allocation5 + $0x528] sm:$0xff]
        %v1090 = vld [vmem:[#allocation5 + $0x530] sm:$0xff]
        %v1091 = vld [vmem:[#allocation5 + $0x538] sm:$0xff]
        %v1092 = vld [vmem:[#allocation5 + $0x540] sm:$0xff]
        %v1093 = vld [vmem:[#allocation5 + $0x548] sm:$0xff]
        %v1094 = vld [vmem:[#allocation5 + $0x550] sm:$0xff]
        %v1095 = vld [vmem:[#allocation5 + $0x558] sm:$0xff]
        %v1096 = vld [vmem:[#allocation5 + $0x560] sm:$0xff]
        %v1097 = vld [vmem:[#allocation5 + $0x568] sm:$0xff]
        %v1098 = vld [vmem:[#allocation5 + $0x570] sm:$0xff]
        %v1099 = vld [vmem:[#allocation5 + $0x578] sm:$0xff]
        %v1100 = vld [vmem:[#allocation5 + $0x580] sm:$0xff]
        %v1101 = vld [vmem:[#allocation5 + $0x588] sm:$0xff]
        %v1102 = vld [vmem:[#allocation5 + $0x590] sm:$0xff]
        %v1103 = vld [vmem:[#allocation5 + $0x598] sm:$0xff]
        %v1104 = vld [vmem:[#allocation5 + $0x5a0] sm:$0xff]
        %v1105 = vld [vmem:[#allocation5 + $0x5a8] sm:$0xff]
        %v1106 = vld [vmem:[#allocation5 + $0x5b0] sm:$0xff]
        %v1107 = vld [vmem:[#allocation5 + $0x5b8] sm:$0xff]
        %v1108 = vld [vmem:[#allocation5 + $0x5c0] sm:$0xff]
        %v1109 = vld [vmem:[#allocation5 + $0x5c8] sm:$0xff]
        %v1110 = vld [vmem:[#allocation5 + $0x5d0] sm:$0xff]
        %v1111 = vld [vmem:[#allocation5 + $0x5d8] sm:$0xff]
        %v1112 = vld [vmem:[#allocation5 + $0x5e0] sm:$0xff]
        %v1113 = vld [vmem:[#allocation5 + $0x5e8] sm:$0xff]
        %v1114 = vld [vmem:[#allocation5 + $0x5f0] sm:$0xff]
        %v1115 = vld [vmem:[#allocation5 + $0x5f8] sm:$0xff]
        %v1116 = vld [vmem:[#allocation5 + $0x600] sm:$0xff]
        %v1117 = vld [vmem:[#allocation5 + $0x608] sm:$0xff]
        %v1118 = vld [vmem:[#allocation5 + $0x610] sm:$0xff]
        %v1119 = vld [vmem:[#allocation5 + $0x618] sm:$0xff]
        %v1120 = vld [vmem:[#allocation5 + $0x620] sm:$0xff]
        %v1121 = vld [vmem:[#allocation5 + $0x628] sm:$0xff]
        %v1122 = vld [vmem:[#allocation5 + $0x630] sm:$0xff]
        %v1123 = vld [vmem:[#allocation5 + $0x638] sm:$0xff]
        %v1124 = vld [vmem:[#allocation5 + $0x640] sm:$0xff]
        %v1125 = vld [vmem:[#allocation5 + $0x648] sm:$0xff]
        %v1126 = vld [vmem:[#allocation5 + $0x650] sm:$0xff]
        %v1127 = vld [vmem:[#allocation5 + $0x658] sm:$0xff]
        %v1128 = vld [vmem:[#allocation5 + $0x660] sm:$0xff]
        %v1129 = vld [vmem:[#allocation5 + $0x668] sm:$0xff]
        %v1130 = vld [vmem:[#allocation5 + $0x670] sm:$0xff]
        %v1131 = vld [vmem:[#allocation5 + $0x678] sm:$0xff]
        %v1132 = vld [vmem:[#allocation5 + $0x680] sm:$0xff]
        %v1133 = vld [vmem:[#allocation5 + $0x688] sm:$0xff]
        %v1134 = vld [vmem:[#allocation5 + $0x690] sm:$0xff]
        %v1135 = vld [vmem:[#allocation5 + $0x698] sm:$0xff]
        %v1136 = vld [vmem:[#allocation5 + $0x6a0] sm:$0xff]
        %v1137 = vld [vmem:[#allocation5 + $0x6a8] sm:$0xff]
        %v1138 = vld [vmem:[#allocation5 + $0x6b0] sm:$0xff]
        %v1139 = vld [vmem:[#allocation5 + $0x6b8] sm:$0xff]
        %v1140 = vld [vmem:[#allocation5 + $0x6c0] sm:$0xff]
        %v1141 = vld [vmem:[#allocation5 + $0x6c8] sm:$0xff]
        %v1142 = vld [vmem:[#allocation5 + $0x6d0] sm:$0xff]
        %v1143 = vld [vmem:[#allocation5 + $0x6d8] sm:$0xff]
        %v1144 = vld [vmem:[#allocation5 + $0x6e0] sm:$0xff]
        %v1145 = vld [vmem:[#allocation5 + $0x6e8] sm:$0xff]
        %v1146 = vld [vmem:[#allocation5 + $0x6f0] sm:$0xff]
        %v1147 = vld [vmem:[#allocation5 + $0x6f8] sm:$0xff]
        %v1148 = vld [vmem:[%s2] sm:$0x3]
        %v1150 = vlaneseq
        %v1151 = vshrl.u32 %v1150, 7
        %v1152 = vsub.s32 0, %v1151
        %v1153 = vrot.slane %v1148, %v1152
        %v1154 = vlaneseq
        %v1155 = vshrl.u32 %v1154, 7
        %v1156 = vsub.s32 1, %v1155
        %v1157 = vrot.slane %v1148, %v1156
        %v1160 = vpack.c.b16 %v826, %v812
        %v1161 = vpack.c.b16 %v827, %v813
        %v1162 = vpack.c.b16 %v828, %v814
        %v1163 = vpack.c.b16 %v829, %v815
        %v1164 = vpack.c.b16 %v830, %v816
        %v1165 = vpack.c.b16 %v831, %v817
        %v1166 = vpack.c.b16 %v832, %v818
        %v1167 = vpack.c.b16 %v833, %v819
        %v1168 = vpack.c.b16 %v834, %v820
        %v1169 = vpack.c.b16 %v835, %v821
        %v1170 = vpack.c.b16 %v836, %v822
        %v1171 = vpack.c.b16 %v837, %v823
        %v1172 = vpack.c.b16 %v838, %v824
        %v1173 = vpack.c.b16 %v839, %v825
        %v1174 = vpack.c.b16 %v854, %v840
        %v1175 = vpack.c.b16 %v855, %v841
        %v1176 = vpack.c.b16 %v856, %v842
        %v1177 = vpack.c.b16 %v857, %v843
        %v1178 = vpack.c.b16 %v858, %v844
        %v1179 = vpack.c.b16 %v859, %v845
        %v1180 = vpack.c.b16 %v860, %v846
        %v1181 = vpack.c.b16 %v861, %v847
        %v1182 = vpack.c.b16 %v862, %v848
        %v1183 = vpack.c.b16 %v863, %v849
        %v1184 = vpack.c.b16 %v864, %v850
        %v1185 = vpack.c.b16 %v865, %v851
        %v1186 = vpack.c.b16 %v866, %v852
        %v1187 = vpack.c.b16 %v867, %v853
        %v1188 = vpack.c.b16 %v882, %v868
        %v1189 = vpack.c.b16 %v883, %v869
        %v1190 = vpack.c.b16 %v884, %v870
        %v1191 = vpack.c.b16 %v885, %v871
        %v1192 = vpack.c.b16 %v886, %v872
        %v1193 = vpack.c.b16 %v887, %v873
        %v1194 = vpack.c.b16 %v888, %v874
        %v1195 = vpack.c.b16 %v889, %v875
        %v1196 = vpack.c.b16 %v890, %v876
        %v1197 = vpack.c.b16 %v891, %v877
        %v1198 = vpack.c.b16 %v892, %v878
        %v1199 = vpack.c.b16 %v893, %v879
        %v1200 = vpack.c.b16 %v894, %v880
        %v1201 = vpack.c.b16 %v895, %v881
        %v1202 = vpack.c.b16 %v910, %v896
        %v1203 = vpack.c.b16 %v911, %v897
        %v1204 = vpack.c.b16 %v912, %v898
        %v1205 = vpack.c.b16 %v913, %v899
        %v1206 = vpack.c.b16 %v914, %v900
        %v1207 = vpack.c.b16 %v915, %v901
        %v1208 = vpack.c.b16 %v916, %v902
        %v1209 = vpack.c.b16 %v917, %v903
        %v1210 = vpack.c.b16 %v918, %v904
        %v1211 = vpack.c.b16 %v919, %v905
        %v1212 = vpack.c.b16 %v920, %v906
        %v1213 = vpack.c.b16 %v921, %v907
        %v1214 = vpack.c.b16 %v922, %v908
        %v1215 = vpack.c.b16 %v923, %v909
        %v1496 = vunpack.c.l.b16 %v924
        %v1497 = vunpack.c.h.b16 %v924
        %v1498 = vunpack.c.l.b16 %v925
        %v1499 = vunpack.c.h.b16 %v925
        %v1500 = vunpack.c.l.b16 %v926
        %v1501 = vunpack.c.h.b16 %v926
        %v1502 = vunpack.c.l.b16 %v927
        %v1503 = vunpack.c.h.b16 %v927
        %v1504 = vunpack.c.l.b16 %v928
        %v1505 = vunpack.c.h.b16 %v928
        %v1506 = vunpack.c.l.b16 %v929
        %v1507 = vunpack.c.h.b16 %v929
        %v1508 = vunpack.c.l.b16 %v930
        %v1509 = vunpack.c.h.b16 %v930
        %v1510 = vunpack.c.l.b16 %v931
        %v1511 = vunpack.c.h.b16 %v931
        %v1512 = vunpack.c.l.b16 %v932
        %v1513 = vunpack.c.h.b16 %v932
        %v1514 = vunpack.c.l.b16 %v933
        %v1515 = vunpack.c.h.b16 %v933
        %v1516 = vunpack.c.l.b16 %v934
        %v1517 = vunpack.c.h.b16 %v934
        %v1518 = vunpack.c.l.b16 %v935
        %v1519 = vunpack.c.h.b16 %v935
        %v1520 = vunpack.c.l.b16 %v936
        %v1521 = vunpack.c.h.b16 %v936
        %v1522 = vunpack.c.l.b16 %v937
        %v1523 = vunpack.c.h.b16 %v937
        %v1524 = vunpack.c.l.b16 %v938
        %v1525 = vunpack.c.h.b16 %v938
        %v1526 = vunpack.c.l.b16 %v939
        %v1527 = vunpack.c.h.b16 %v939
        %v1528 = vunpack.c.l.b16 %v940
        %v1529 = vunpack.c.h.b16 %v940
        %v1530 = vunpack.c.l.b16 %v941
        %v1531 = vunpack.c.h.b16 %v941
        %v1532 = vunpack.c.l.b16 %v942
        %v1533 = vunpack.c.h.b16 %v942
        %v1534 = vunpack.c.l.b16 %v943
        %v1535 = vunpack.c.h.b16 %v943
        %v1536 = vunpack.c.l.b16 %v944
        %v1537 = vunpack.c.h.b16 %v944
        %v1538 = vunpack.c.l.b16 %v945
        %v1539 = vunpack.c.h.b16 %v945
        %v1540 = vunpack.c.l.b16 %v946
        %v1541 = vunpack.c.h.b16 %v946
        %v1542 = vunpack.c.l.b16 %v947
        %v1543 = vunpack.c.h.b16 %v947
        %v1544 = vunpack.c.l.b16 %v948
        %v1545 = vunpack.c.h.b16 %v948
        %v1546 = vunpack.c.l.b16 %v949
        %v1547 = vunpack.c.h.b16 %v949
        %v1548 = vunpack.c.l.b16 %v950
        %v1549 = vunpack.c.h.b16 %v950
        %v1550 = vunpack.c.l.b16 %v951
        %v1551 = vunpack.c.h.b16 %v951
        %v1552 = vunpack.c.l.b16 %v952
        %v1553 = vunpack.c.h.b16 %v952
        %v1554 = vunpack.c.l.b16 %v953
        %v1555 = vunpack.c.h.b16 %v953
        %v1556 = vunpack.c.l.b16 %v954
        %v1557 = vunpack.c.h.b16 %v954
        %v1558 = vunpack.c.l.b16 %v955
        %v1559 = vunpack.c.h.b16 %v955
        %v1560 = vunpack.c.l.b16 %v956
        %v1561 = vunpack.c.h.b16 %v956
        %v1562 = vunpack.c.l.b16 %v957
        %v1563 = vunpack.c.h.b16 %v957
        %v1564 = vunpack.c.l.b16 %v958
        %v1565 = vunpack.c.h.b16 %v958
        %v1566 = vunpack.c.l.b16 %v959
        %v1567 = vunpack.c.h.b16 %v959
        %v1568 = vunpack.c.l.b16 %v960
        %v1569 = vunpack.c.h.b16 %v960
        %v1570 = vunpack.c.l.b16 %v961
        %v1571 = vunpack.c.h.b16 %v961
        %v1572 = vunpack.c.l.b16 %v962
        %v1573 = vunpack.c.h.b16 %v962
        %v1574 = vunpack.c.l.b16 %v963
        %v1575 = vunpack.c.h.b16 %v963
        %v1576 = vunpack.c.l.b16 %v964
        %v1577 = vunpack.c.h.b16 %v964
        %v1578 = vunpack.c.l.b16 %v965
        %v1579 = vunpack.c.h.b16 %v965
        %v1580 = vunpack.c.l.b16 %v966
        %v1581 = vunpack.c.h.b16 %v966
        %v1582 = vunpack.c.l.b16 %v967
        %v1583 = vunpack.c.h.b16 %v967
        %v1584 = vunpack.c.l.b16 %v968
        %v1585 = vunpack.c.h.b16 %v968
        %v1586 = vunpack.c.l.b16 %v969
        %v1587 = vunpack.c.h.b16 %v969
        %v1588 = vunpack.c.l.b16 %v970
        %v1589 = vunpack.c.h.b16 %v970
        %v1590 = vunpack.c.l.b16 %v971
        %v1591 = vunpack.c.h.b16 %v971
        %v1592 = vunpack.c.l.b16 %v972
        %v1593 = vunpack.c.h.b16 %v972
        %v1594 = vunpack.c.l.b16 %v973
        %v1595 = vunpack.c.h.b16 %v973
        %v1596 = vunpack.c.l.b16 %v974
        %v1597 = vunpack.c.h.b16 %v974
        %v1598 = vunpack.c.l.b16 %v975
        %v1599 = vunpack.c.h.b16 %v975
        %v1600 = vunpack.c.l.b16 %v976
        %v1601 = vunpack.c.h.b16 %v976
        %v1602 = vunpack.c.l.b16 %v977
        %v1603 = vunpack.c.h.b16 %v977
        %v1604 = vunpack.c.l.b16 %v978
        %v1605 = vunpack.c.h.b16 %v978
        %v1606 = vunpack.c.l.b16 %v979
        %v1607 = vunpack.c.h.b16 %v979
        %v1608 = vunpack.c.l.b16 %v980
        %v1609 = vunpack.c.h.b16 %v980
        %v1610 = vunpack.c.l.b16 %v981
        %v1611 = vunpack.c.h.b16 %v981
        %v1612 = vunpack.c.l.b16 %v982
        %v1613 = vunpack.c.h.b16 %v982
        %v1614 = vunpack.c.l.b16 %v983
        %v1615 = vunpack.c.h.b16 %v983
        %v1616 = vunpack.c.l.b16 %v984
        %v1617 = vunpack.c.h.b16 %v984
        %v1618 = vunpack.c.l.b16 %v985
        %v1619 = vunpack.c.h.b16 %v985
        %v1620 = vunpack.c.l.b16 %v986
        %v1621 = vunpack.c.h.b16 %v986
        %v1622 = vunpack.c.l.b16 %v987
        %v1623 = vunpack.c.h.b16 %v987
        %v1624 = vunpack.c.l.b16 %v988
        %v1625 = vunpack.c.h.b16 %v988
        %v1626 = vunpack.c.l.b16 %v989
        %v1627 = vunpack.c.h.b16 %v989
        %v1628 = vunpack.c.l.b16 %v990
        %v1629 = vunpack.c.h.b16 %v990
        %v1630 = vunpack.c.l.b16 %v991
        %v1631 = vunpack.c.h.b16 %v991
        %v1632 = vunpack.c.l.b16 %v992
        %v1633 = vunpack.c.h.b16 %v992
        %v1634 = vunpack.c.l.b16 %v993
        %v1635 = vunpack.c.h.b16 %v993
        %v1636 = vunpack.c.l.b16 %v994
        %v1637 = vunpack.c.h.b16 %v994
        %v1638 = vunpack.c.l.b16 %v995
        %v1639 = vunpack.c.h.b16 %v995
        %v1640 = vunpack.c.l.b16 %v996
        %v1641 = vunpack.c.h.b16 %v996
        %v1642 = vunpack.c.l.b16 %v997
        %v1643 = vunpack.c.h.b16 %v997
        %v1644 = vunpack.c.l.b16 %v998
        %v1645 = vunpack.c.h.b16 %v998
        %v1646 = vunpack.c.l.b16 %v999
        %v1647 = vunpack.c.h.b16 %v999
        %v1648 = vunpack.c.l.b16 %v1000
        %v1649 = vunpack.c.h.b16 %v1000
        %v1650 = vunpack.c.l.b16 %v1001
        %v1651 = vunpack.c.h.b16 %v1001
        %v1652 = vunpack.c.l.b16 %v1002
        %v1653 = vunpack.c.h.b16 %v1002
        %v1654 = vunpack.c.l.b16 %v1003
        %v1655 = vunpack.c.h.b16 %v1003
        %v1656 = vunpack.c.l.b16 %v1004
        %v1657 = vunpack.c.h.b16 %v1004
        %v1658 = vunpack.c.l.b16 %v1005
        %v1659 = vunpack.c.h.b16 %v1005
        %v1660 = vunpack.c.l.b16 %v1006
        %v1661 = vunpack.c.h.b16 %v1006
        %v1662 = vunpack.c.l.b16 %v1007
        %v1663 = vunpack.c.h.b16 %v1007
        %v1664 = vunpack.c.l.b16 %v1008
        %v1665 = vunpack.c.h.b16 %v1008
        %v1666 = vunpack.c.l.b16 %v1009
        %v1667 = vunpack.c.h.b16 %v1009
        %v1668 = vunpack.c.l.b16 %v1010
        %v1669 = vunpack.c.h.b16 %v1010
        %v1670 = vunpack.c.l.b16 %v1011
        %v1671 = vunpack.c.h.b16 %v1011
        %v1672 = vunpack.c.l.b16 %v1012
        %v1673 = vunpack.c.h.b16 %v1012
        %v1674 = vunpack.c.l.b16 %v1013
        %v1675 = vunpack.c.h.b16 %v1013
        %v1676 = vunpack.c.l.b16 %v1014
        %v1677 = vunpack.c.h.b16 %v1014
        %v1678 = vunpack.c.l.b16 %v1015
        %v1679 = vunpack.c.h.b16 %v1015
        %v1680 = vunpack.c.l.b16 %v1016
        %v1681 = vunpack.c.h.b16 %v1016
        %v1682 = vunpack.c.l.b16 %v1017
        %v1683 = vunpack.c.h.b16 %v1017
        %v1684 = vunpack.c.l.b16 %v1018
        %v1685 = vunpack.c.h.b16 %v1018
        %v1686 = vunpack.c.l.b16 %v1019
        %v1687 = vunpack.c.h.b16 %v1019
        %v1688 = vunpack.c.l.b16 %v1020
        %v1689 = vunpack.c.h.b16 %v1020
        %v1690 = vunpack.c.l.b16 %v1021
        %v1691 = vunpack.c.h.b16 %v1021
        %v1692 = vunpack.c.l.b16 %v1022
        %v1693 = vunpack.c.h.b16 %v1022
        %v1694 = vunpack.c.l.b16 %v1023
        %v1695 = vunpack.c.h.b16 %v1023
        %v1696 = vunpack.c.l.b16 %v1024
        %v1697 = vunpack.c.h.b16 %v1024
        %v1698 = vunpack.c.l.b16 %v1025
        %v1699 = vunpack.c.h.b16 %v1025
        %v1700 = vunpack.c.l.b16 %v1026
        %v1701 = vunpack.c.h.b16 %v1026
        %v1702 = vunpack.c.l.b16 %v1027
        %v1703 = vunpack.c.h.b16 %v1027
        %v1704 = vunpack.c.l.b16 %v1028
        %v1705 = vunpack.c.h.b16 %v1028
        %v1706 = vunpack.c.l.b16 %v1029
        %v1707 = vunpack.c.h.b16 %v1029
        %v1708 = vunpack.c.l.b16 %v1030
        %v1709 = vunpack.c.h.b16 %v1030
        %v1710 = vunpack.c.l.b16 %v1031
        %v1711 = vunpack.c.h.b16 %v1031
        %v1712 = vunpack.c.l.b16 %v1032
        %v1713 = vunpack.c.h.b16 %v1032
        %v1714 = vunpack.c.l.b16 %v1033
        %v1715 = vunpack.c.h.b16 %v1033
        %v1716 = vunpack.c.l.b16 %v1034
        %v1717 = vunpack.c.h.b16 %v1034
        %v1718 = vunpack.c.l.b16 %v1035
        %v1719 = vunpack.c.h.b16 %v1035
        %v1720 = vunpack.c.l.b16 %v1036
        %v1721 = vunpack.c.h.b16 %v1036
        %v1722 = vunpack.c.l.b16 %v1037
        %v1723 = vunpack.c.h.b16 %v1037
        %v1724 = vunpack.c.l.b16 %v1038
        %v1725 = vunpack.c.h.b16 %v1038
        %v1726 = vunpack.c.l.b16 %v1039
        %v1727 = vunpack.c.h.b16 %v1039
        %v1728 = vunpack.c.l.b16 %v1040
        %v1729 = vunpack.c.h.b16 %v1040
        %v1730 = vunpack.c.l.b16 %v1041
        %v1731 = vunpack.c.h.b16 %v1041
        %v1732 = vunpack.c.l.b16 %v1042
        %v1733 = vunpack.c.h.b16 %v1042
        %v1734 = vunpack.c.l.b16 %v1043
        %v1735 = vunpack.c.h.b16 %v1043
        %v1736 = vunpack.c.l.b16 %v1044
        %v1737 = vunpack.c.h.b16 %v1044
        %v1738 = vunpack.c.l.b16 %v1045
        %v1739 = vunpack.c.h.b16 %v1045
        %v1740 = vunpack.c.l.b16 %v1046
        %v1741 = vunpack.c.h.b16 %v1046
        %v1742 = vunpack.c.l.b16 %v1047
        %v1743 = vunpack.c.h.b16 %v1047
        %v1744 = vunpack.c.l.b16 %v1048
        %v1745 = vunpack.c.h.b16 %v1048
        %v1746 = vunpack.c.l.b16 %v1049
        %v1747 = vunpack.c.h.b16 %v1049
        %v1748 = vunpack.c.l.b16 %v1050
        %v1749 = vunpack.c.h.b16 %v1050
        %v1750 = vunpack.c.l.b16 %v1051
        %v1751 = vunpack.c.h.b16 %v1051
        %v1752 = vunpack.c.l.b16 %v1052
        %v1753 = vunpack.c.h.b16 %v1052
        %v1754 = vunpack.c.l.b16 %v1053
        %v1755 = vunpack.c.h.b16 %v1053
        %v1756 = vunpack.c.l.b16 %v1054
        %v1757 = vunpack.c.h.b16 %v1054
        %v1758 = vunpack.c.l.b16 %v1055
        %v1759 = vunpack.c.h.b16 %v1055
        %v1760 = vunpack.c.l.b16 %v1056
        %v1761 = vunpack.c.h.b16 %v1056
        %v1762 = vunpack.c.l.b16 %v1057
        %v1763 = vunpack.c.h.b16 %v1057
        %v1764 = vunpack.c.l.b16 %v1058
        %v1765 = vunpack.c.h.b16 %v1058
        %v1766 = vunpack.c.l.b16 %v1059
        %v1767 = vunpack.c.h.b16 %v1059
        %v1768 = vunpack.c.l.b16 %v1060
        %v1769 = vunpack.c.h.b16 %v1060
        %v1770 = vunpack.c.l.b16 %v1061
        %v1771 = vunpack.c.h.b16 %v1061
        %v1772 = vunpack.c.l.b16 %v1062
        %v1773 = vunpack.c.h.b16 %v1062
        %v1774 = vunpack.c.l.b16 %v1063
        %v1775 = vunpack.c.h.b16 %v1063
        %v1776 = vunpack.c.l.b16 %v1064
        %v1777 = vunpack.c.h.b16 %v1064
        %v1778 = vunpack.c.l.b16 %v1065
        %v1779 = vunpack.c.h.b16 %v1065
        %v1780 = vunpack.c.l.b16 %v1066
        %v1781 = vunpack.c.h.b16 %v1066
        %v1782 = vunpack.c.l.b16 %v1067
        %v1783 = vunpack.c.h.b16 %v1067
        %v1784 = vunpack.c.l.b16 %v1068
        %v1785 = vunpack.c.h.b16 %v1068
        %v1786 = vunpack.c.l.b16 %v1069
        %v1787 = vunpack.c.h.b16 %v1069
        %v1788 = vunpack.c.l.b16 %v1070
        %v1789 = vunpack.c.h.b16 %v1070
        %v1790 = vunpack.c.l.b16 %v1071
        %v1791 = vunpack.c.h.b16 %v1071
        %v1792 = vunpack.c.l.b16 %v1072
        %v1793 = vunpack.c.h.b16 %v1072
        %v1794 = vunpack.c.l.b16 %v1073
        %v1795 = vunpack.c.h.b16 %v1073
        %v1796 = vunpack.c.l.b16 %v1074
        %v1797 = vunpack.c.h.b16 %v1074
        %v1798 = vunpack.c.l.b16 %v1075
        %v1799 = vunpack.c.h.b16 %v1075
        %v1800 = vunpack.c.l.b16 %v1076
        %v1801 = vunpack.c.h.b16 %v1076
        %v1802 = vunpack.c.l.b16 %v1077
        %v1803 = vunpack.c.h.b16 %v1077
        %v1804 = vunpack.c.l.b16 %v1078
        %v1805 = vunpack.c.h.b16 %v1078
        %v1806 = vunpack.c.l.b16 %v1079
        %v1807 = vunpack.c.h.b16 %v1079
        %v1808 = vunpack.c.l.b16 %v1080
        %v1809 = vunpack.c.h.b16 %v1080
        %v1810 = vunpack.c.l.b16 %v1081
        %v1811 = vunpack.c.h.b16 %v1081
        %v1812 = vunpack.c.l.b16 %v1082
        %v1813 = vunpack.c.h.b16 %v1082
        %v1814 = vunpack.c.l.b16 %v1083
        %v1815 = vunpack.c.h.b16 %v1083
        %v1816 = vunpack.c.l.b16 %v1084
        %v1817 = vunpack.c.h.b16 %v1084
        %v1818 = vunpack.c.l.b16 %v1085
        %v1819 = vunpack.c.h.b16 %v1085
        %v1820 = vunpack.c.l.b16 %v1086
        %v1821 = vunpack.c.h.b16 %v1086
        %v1822 = vunpack.c.l.b16 %v1087
        %v1823 = vunpack.c.h.b16 %v1087
        %v1824 = vunpack.c.l.b16 %v1088
        %v1825 = vunpack.c.h.b16 %v1088
        %v1826 = vunpack.c.l.b16 %v1089
        %v1827 = vunpack.c.h.b16 %v1089
        %v1828 = vunpack.c.l.b16 %v1090
        %v1829 = vunpack.c.h.b16 %v1090
        %v1830 = vunpack.c.l.b16 %v1091
        %v1831 = vunpack.c.h.b16 %v1091
        %v1832 = vunpack.c.l.b16 %v1092
        %v1833 = vunpack.c.h.b16 %v1092
        %v1834 = vunpack.c.l.b16 %v1093
        %v1835 = vunpack.c.h.b16 %v1093
        %v1836 = vunpack.c.l.b16 %v1094
        %v1837 = vunpack.c.h.b16 %v1094
        %v1838 = vunpack.c.l.b16 %v1095
        %v1839 = vunpack.c.h.b16 %v1095
        %v1840 = vunpack.c.l.b16 %v1096
        %v1841 = vunpack.c.h.b16 %v1096
        %v1842 = vunpack.c.l.b16 %v1097
        %v1843 = vunpack.c.h.b16 %v1097
        %v1844 = vunpack.c.l.b16 %v1098
        %v1845 = vunpack.c.h.b16 %v1098
        %v1846 = vunpack.c.l.b16 %v1099
        %v1847 = vunpack.c.h.b16 %v1099
        %v1848 = vunpack.c.l.b16 %v1100
        %v1849 = vunpack.c.h.b16 %v1100
        %v1850 = vunpack.c.l.b16 %v1101
        %v1851 = vunpack.c.h.b16 %v1101
        %v1852 = vunpack.c.l.b16 %v1102
        %v1853 = vunpack.c.h.b16 %v1102
        %v1854 = vunpack.c.l.b16 %v1103
        %v1855 = vunpack.c.h.b16 %v1103
        %v1856 = vunpack.c.l.b16 %v1104
        %v1857 = vunpack.c.h.b16 %v1104
        %v1858 = vunpack.c.l.b16 %v1105
        %v1859 = vunpack.c.h.b16 %v1105
        %v1860 = vunpack.c.l.b16 %v1106
        %v1861 = vunpack.c.h.b16 %v1106
        %v1862 = vunpack.c.l.b16 %v1107
        %v1863 = vunpack.c.h.b16 %v1107
        %v1864 = vunpack.c.l.b16 %v1108
        %v1865 = vunpack.c.h.b16 %v1108
        %v1866 = vunpack.c.l.b16 %v1109
        %v1867 = vunpack.c.h.b16 %v1109
        %v1868 = vunpack.c.l.b16 %v1110
        %v1869 = vunpack.c.h.b16 %v1110
        %v1870 = vunpack.c.l.b16 %v1111
        %v1871 = vunpack.c.h.b16 %v1111
        %v1872 = vunpack.c.l.b16 %v1112
        %v1873 = vunpack.c.h.b16 %v1112
        %v1874 = vunpack.c.l.b16 %v1113
        %v1875 = vunpack.c.h.b16 %v1113
        %v1876 = vunpack.c.l.b16 %v1114
        %v1877 = vunpack.c.h.b16 %v1114
        %v1878 = vunpack.c.l.b16 %v1115
        %v1879 = vunpack.c.h.b16 %v1115
        %v1880 = vunpack.c.l.b16 %v1116
        %v1881 = vunpack.c.h.b16 %v1116
        %v1882 = vunpack.c.l.b16 %v1117
        %v1883 = vunpack.c.h.b16 %v1117
        %v1884 = vunpack.c.l.b16 %v1118
        %v1885 = vunpack.c.h.b16 %v1118
        %v1886 = vunpack.c.l.b16 %v1119
        %v1887 = vunpack.c.h.b16 %v1119
        %v1888 = vunpack.c.l.b16 %v1120
        %v1889 = vunpack.c.h.b16 %v1120
        %v1890 = vunpack.c.l.b16 %v1121
        %v1891 = vunpack.c.h.b16 %v1121
        %v1892 = vunpack.c.l.b16 %v1122
        %v1893 = vunpack.c.h.b16 %v1122
        %v1894 = vunpack.c.l.b16 %v1123
        %v1895 = vunpack.c.h.b16 %v1123
        %v1896 = vunpack.c.l.b16 %v1124
        %v1897 = vunpack.c.h.b16 %v1124
        %v1898 = vunpack.c.l.b16 %v1125
        %v1899 = vunpack.c.h.b16 %v1125
        %v1900 = vunpack.c.l.b16 %v1126
        %v1901 = vunpack.c.h.b16 %v1126
        %v1902 = vunpack.c.l.b16 %v1127
        %v1903 = vunpack.c.h.b16 %v1127
        %v1904 = vunpack.c.l.b16 %v1128
        %v1905 = vunpack.c.h.b16 %v1128
        %v1906 = vunpack.c.l.b16 %v1129
        %v1907 = vunpack.c.h.b16 %v1129
        %v1908 = vunpack.c.l.b16 %v1130
        %v1909 = vunpack.c.h.b16 %v1130
        %v1910 = vunpack.c.l.b16 %v1131
        %v1911 = vunpack.c.h.b16 %v1131
        %v1912 = vunpack.c.l.b16 %v1132
        %v1913 = vunpack.c.h.b16 %v1132
        %v1914 = vunpack.c.l.b16 %v1133
        %v1915 = vunpack.c.h.b16 %v1133
        %v1916 = vunpack.c.l.b16 %v1134
        %v1917 = vunpack.c.h.b16 %v1134
        %v1918 = vunpack.c.l.b16 %v1135
        %v1919 = vunpack.c.h.b16 %v1135
        %v1920 = vunpack.c.l.b16 %v1136
        %v1921 = vunpack.c.h.b16 %v1136
        %v1922 = vunpack.c.l.b16 %v1137
        %v1923 = vunpack.c.h.b16 %v1137
        %v1924 = vunpack.c.l.b16 %v1138
        %v1925 = vunpack.c.h.b16 %v1138
        %v1926 = vunpack.c.l.b16 %v1139
        %v1927 = vunpack.c.h.b16 %v1139
        %v1928 = vunpack.c.l.b16 %v1140
        %v1929 = vunpack.c.h.b16 %v1140
        %v1930 = vunpack.c.l.b16 %v1141
        %v1931 = vunpack.c.h.b16 %v1141
        %v1932 = vunpack.c.l.b16 %v1142
        %v1933 = vunpack.c.h.b16 %v1142
        %v1934 = vunpack.c.l.b16 %v1143
        %v1935 = vunpack.c.h.b16 %v1143
        %v1936 = vunpack.c.l.b16 %v1144
        %v1937 = vunpack.c.h.b16 %v1144
        %v1938 = vunpack.c.l.b16 %v1145
        %v1939 = vunpack.c.h.b16 %v1145
        %v1940 = vunpack.c.l.b16 %v1146
        %v1941 = vunpack.c.h.b16 %v1146
        %v1942 = vunpack.c.l.b16 %v1147
        %v1943 = vunpack.c.h.b16 %v1147
        %v1944 = vpack.c.b16 %v1498, %v1496
        %v1945 = vpack.c.b16 %v1499, %v1497
        %v1946 = vpack.c.b16 %v1502, %v1500
        %v1947 = vpack.c.b16 %v1503, %v1501
        %v1948 = vpack.c.b16 %v1506, %v1504
        %v1949 = vpack.c.b16 %v1507, %v1505
        %v1950 = vpack.c.b16 %v1510, %v1508
        %v1951 = vpack.c.b16 %v1511, %v1509
        %v1952 = vpack.c.b16 %v1514, %v1512
        %v1953 = vpack.c.b16 %v1515, %v1513
        %v1954 = vpack.c.b16 %v1518, %v1516
        %v1955 = vpack.c.b16 %v1519, %v1517
        %v1956 = vpack.c.b16 %v1522, %v1520
        %v1957 = vpack.c.b16 %v1523, %v1521
        %v1958 = vpack.c.b16 %v1526, %v1524
        %v1959 = vpack.c.b16 %v1527, %v1525
        %v1960 = vpack.c.b16 %v1530, %v1528
        %v1961 = vpack.c.b16 %v1531, %v1529
        %v1962 = vpack.c.b16 %v1534, %v1532
        %v1963 = vpack.c.b16 %v1535, %v1533
        %v1964 = vpack.c.b16 %v1538, %v1536
        %v1965 = vpack.c.b16 %v1539, %v1537
        %v1966 = vpack.c.b16 %v1542, %v1540
        %v1967 = vpack.c.b16 %v1543, %v1541
        %v1968 = vpack.c.b16 %v1546, %v1544
        %v1969 = vpack.c.b16 %v1547, %v1545
        %v1970 = vpack.c.b16 %v1550, %v1548
        %v1971 = vpack.c.b16 %v1551, %v1549
        %v1972 = vpack.c.b16 %v1554, %v1552
        %v1973 = vpack.c.b16 %v1555, %v1553
        %v1974 = vpack.c.b16 %v1558, %v1556
        %v1975 = vpack.c.b16 %v1559, %v1557
        %v1976 = vpack.c.b16 %v1562, %v1560
        %v1977 = vpack.c.b16 %v1563, %v1561
        %v1978 = vpack.c.b16 %v1566, %v1564
        %v1979 = vpack.c.b16 %v1567, %v1565
        %v1980 = vpack.c.b16 %v1570, %v1568
        %v1981 = vpack.c.b16 %v1571, %v1569
        %v1982 = vpack.c.b16 %v1574, %v1572
        %v1983 = vpack.c.b16 %v1575, %v1573
        %v1984 = vpack.c.b16 %v1578, %v1576
        %v1985 = vpack.c.b16 %v1579, %v1577
        %v1986 = vpack.c.b16 %v1582, %v1580
        %v1987 = vpack.c.b16 %v1583, %v1581
        %v1988 = vpack.c.b16 %v1586, %v1584
        %v1989 = vpack.c.b16 %v1587, %v1585
        %v1990 = vpack.c.b16 %v1590, %v1588
        %v1991 = vpack.c.b16 %v1591, %v1589
        %v1992 = vpack.c.b16 %v1594, %v1592
        %v1993 = vpack.c.b16 %v1595, %v1593
        %v1994 = vpack.c.b16 %v1598, %v1596
        %v1995 = vpack.c.b16 %v1599, %v1597
        %v1996 = vpack.c.b16 %v1602, %v1600
        %v1997 = vpack.c.b16 %v1603, %v1601
        %v1998 = vpack.c.b16 %v1606, %v1604
        %v1999 = vpack.c.b16 %v1607, %v1605
        %v2000 = vpack.c.b16 %v1610, %v1608
        %v2001 = vpack.c.b16 %v1611, %v1609
        %v2002 = vpack.c.b16 %v1614, %v1612
        %v2003 = vpack.c.b16 %v1615, %v1613
        %v2004 = vpack.c.b16 %v1618, %v1616
        %v2005 = vpack.c.b16 %v1619, %v1617
        %v2006 = vpack.c.b16 %v1622, %v1620
        %v2007 = vpack.c.b16 %v1623, %v1621
        %v2008 = vpack.c.b16 %v1626, %v1624
        %v2009 = vpack.c.b16 %v1627, %v1625
        %v2010 = vpack.c.b16 %v1630, %v1628
        %v2011 = vpack.c.b16 %v1631, %v1629
        %v2012 = vpack.c.b16 %v1634, %v1632
        %v2013 = vpack.c.b16 %v1635, %v1633
        %v2014 = vpack.c.b16 %v1638, %v1636
        %v2015 = vpack.c.b16 %v1639, %v1637
        %v2016 = vpack.c.b16 %v1642, %v1640
        %v2017 = vpack.c.b16 %v1643, %v1641
        %v2018 = vpack.c.b16 %v1646, %v1644
        %v2019 = vpack.c.b16 %v1647, %v1645
        %v2020 = vpack.c.b16 %v1650, %v1648
        %v2021 = vpack.c.b16 %v1651, %v1649
        %v2022 = vpack.c.b16 %v1654, %v1652
        %v2023 = vpack.c.b16 %v1655, %v1653
        %v2024 = vpack.c.b16 %v1658, %v1656
        %v2025 = vpack.c.b16 %v1659, %v1657
        %v2026 = vpack.c.b16 %v1662, %v1660
        %v2027 = vpack.c.b16 %v1663, %v1661
        %v2028 = vpack.c.b16 %v1666, %v1664
        %v2029 = vpack.c.b16 %v1667, %v1665
        %v2030 = vpack.c.b16 %v1670, %v1668
        %v2031 = vpack.c.b16 %v1671, %v1669
        %v2032 = vpack.c.b16 %v1674, %v1672
        %v2033 = vpack.c.b16 %v1675, %v1673
        %v2034 = vpack.c.b16 %v1678, %v1676
        %v2035 = vpack.c.b16 %v1679, %v1677
        %v2036 = vpack.c.b16 %v1682, %v1680
        %v2037 = vpack.c.b16 %v1683, %v1681
        %v2038 = vpack.c.b16 %v1686, %v1684
        %v2039 = vpack.c.b16 %v1687, %v1685
        %v2040 = vpack.c.b16 %v1690, %v1688
        %v2041 = vpack.c.b16 %v1691, %v1689
        %v2042 = vpack.c.b16 %v1694, %v1692
        %v2043 = vpack.c.b16 %v1695, %v1693
        %v2044 = vpack.c.b16 %v1698, %v1696
        %v2045 = vpack.c.b16 %v1699, %v1697
        %v2046 = vpack.c.b16 %v1702, %v1700
        %v2047 = vpack.c.b16 %v1703, %v1701
        %v2048 = vpack.c.b16 %v1706, %v1704
        %v2049 = vpack.c.b16 %v1707, %v1705
        %v2050 = vpack.c.b16 %v1710, %v1708
        %v2051 = vpack.c.b16 %v1711, %v1709
        %v2052 = vpack.c.b16 %v1714, %v1712
        %v2053 = vpack.c.b16 %v1715, %v1713
        %v2054 = vpack.c.b16 %v1718, %v1716
        %v2055 = vpack.c.b16 %v1719, %v1717
        %v2056 = vpack.c.b16 %v1722, %v1720
        %v2057 = vpack.c.b16 %v1723, %v1721
        %v2058 = vpack.c.b16 %v1726, %v1724
        %v2059 = vpack.c.b16 %v1727, %v1725
        %v2060 = vpack.c.b16 %v1730, %v1728
        %v2061 = vpack.c.b16 %v1731, %v1729
        %v2062 = vpack.c.b16 %v1734, %v1732
        %v2063 = vpack.c.b16 %v1735, %v1733
        %v2064 = vpack.c.b16 %v1738, %v1736
        %v2065 = vpack.c.b16 %v1739, %v1737
        %v2066 = vpack.c.b16 %v1742, %v1740
        %v2067 = vpack.c.b16 %v1743, %v1741
        %v2068 = vpack.c.b16 %v1746, %v1744
        %v2069 = vpack.c.b16 %v1747, %v1745
        %v2070 = vpack.c.b16 %v1750, %v1748
        %v2071 = vpack.c.b16 %v1751, %v1749
        %v2072 = vpack.c.b16 %v1754, %v1752
        %v2073 = vpack.c.b16 %v1755, %v1753
        %v2074 = vpack.c.b16 %v1758, %v1756
        %v2075 = vpack.c.b16 %v1759, %v1757
        %v2076 = vpack.c.b16 %v1762, %v1760
        %v2077 = vpack.c.b16 %v1763, %v1761
        %v2078 = vpack.c.b16 %v1766, %v1764
        %v2079 = vpack.c.b16 %v1767, %v1765
        %v2080 = vpack.c.b16 %v1770, %v1768
        %v2081 = vpack.c.b16 %v1771, %v1769
        %v2082 = vpack.c.b16 %v1774, %v1772
        %v2083 = vpack.c.b16 %v1775, %v1773
        %v2084 = vpack.c.b16 %v1778, %v1776
        %v2085 = vpack.c.b16 %v1779, %v1777
        %v2086 = vpack.c.b16 %v1782, %v1780
        %v2087 = vpack.c.b16 %v1783, %v1781
        %v2088 = vpack.c.b16 %v1786, %v1784
        %v2089 = vpack.c.b16 %v1787, %v1785
        %v2090 = vpack.c.b16 %v1790, %v1788
        %v2091 = vpack.c.b16 %v1791, %v1789
        %v2092 = vpack.c.b16 %v1794, %v1792
        %v2093 = vpack.c.b16 %v1795, %v1793
        %v2094 = vpack.c.b16 %v1798, %v1796
        %v2095 = vpack.c.b16 %v1799, %v1797
        %v2096 = vpack.c.b16 %v1802, %v1800
        %v2097 = vpack.c.b16 %v1803, %v1801
        %v2098 = vpack.c.b16 %v1806, %v1804
        %v2099 = vpack.c.b16 %v1807, %v1805
        %v2100 = vpack.c.b16 %v1810, %v1808
        %v2101 = vpack.c.b16 %v1811, %v1809
        %v2102 = vpack.c.b16 %v1814, %v1812
        %v2103 = vpack.c.b16 %v1815, %v1813
        %v2104 = vpack.c.b16 %v1818, %v1816
        %v2105 = vpack.c.b16 %v1819, %v1817
        %v2106 = vpack.c.b16 %v1822, %v1820
        %v2107 = vpack.c.b16 %v1823, %v1821
        %v2108 = vpack.c.b16 %v1826, %v1824
        %v2109 = vpack.c.b16 %v1827, %v1825
        %v2110 = vpack.c.b16 %v1830, %v1828
        %v2111 = vpack.c.b16 %v1831, %v1829
        %v2112 = vpack.c.b16 %v1834, %v1832
        %v2113 = vpack.c.b16 %v1835, %v1833
        %v2114 = vpack.c.b16 %v1838, %v1836
        %v2115 = vpack.c.b16 %v1839, %v1837
        %v2116 = vpack.c.b16 %v1842, %v1840
        %v2117 = vpack.c.b16 %v1843, %v1841
        %v2118 = vpack.c.b16 %v1846, %v1844
        %v2119 = vpack.c.b16 %v1847, %v1845
        %v2120 = vpack.c.b16 %v1850, %v1848
        %v2121 = vpack.c.b16 %v1851, %v1849
        %v2122 = vpack.c.b16 %v1854, %v1852
        %v2123 = vpack.c.b16 %v1855, %v1853
        %v2124 = vpack.c.b16 %v1858, %v1856
        %v2125 = vpack.c.b16 %v1859, %v1857
        %v2126 = vpack.c.b16 %v1862, %v1860
        %v2127 = vpack.c.b16 %v1863, %v1861
        %v2128 = vpack.c.b16 %v1866, %v1864
        %v2129 = vpack.c.b16 %v1867, %v1865
        %v2130 = vpack.c.b16 %v1870, %v1868
        %v2131 = vpack.c.b16 %v1871, %v1869
        %v2132 = vpack.c.b16 %v1874, %v1872
        %v2133 = vpack.c.b16 %v1875, %v1873
        %v2134 = vpack.c.b16 %v1878, %v1876
        %v2135 = vpack.c.b16 %v1879, %v1877
        %v2136 = vpack.c.b16 %v1882, %v1880
        %v2137 = vpack.c.b16 %v1883, %v1881
        %v2138 = vpack.c.b16 %v1886, %v1884
        %v2139 = vpack.c.b16 %v1887, %v1885
        %v2140 = vpack.c.b16 %v1890, %v1888
        %v2141 = vpack.c.b16 %v1891, %v1889
        %v2142 = vpack.c.b16 %v1894, %v1892
        %v2143 = vpack.c.b16 %v1895, %v1893
        %v2144 = vpack.c.b16 %v1898, %v1896
        %v2145 = vpack.c.b16 %v1899, %v1897
        %v2146 = vpack.c.b16 %v1902, %v1900
        %v2147 = vpack.c.b16 %v1903, %v1901
        %v2148 = vpack.c.b16 %v1906, %v1904
        %v2149 = vpack.c.b16 %v1907, %v1905
        %v2150 = vpack.c.b16 %v1910, %v1908
        %v2151 = vpack.c.b16 %v1911, %v1909
        %v2152 = vpack.c.b16 %v1914, %v1912
        %v2153 = vpack.c.b16 %v1915, %v1913
        %v2154 = vpack.c.b16 %v1918, %v1916
        %v2155 = vpack.c.b16 %v1919, %v1917
        %v2156 = vpack.c.b16 %v1922, %v1920
        %v2157 = vpack.c.b16 %v1923, %v1921
        %v2158 = vpack.c.b16 %v1926, %v1924
        %v2159 = vpack.c.b16 %v1927, %v1925
        %v2160 = vpack.c.b16 %v1930, %v1928
        %v2161 = vpack.c.b16 %v1931, %v1929
        %v2162 = vpack.c.b16 %v1934, %v1932
        %v2163 = vpack.c.b16 %v1935, %v1933
        %v2164 = vpack.c.b16 %v1938, %v1936
        %v2165 = vpack.c.b16 %v1939, %v1937
        %v2166 = vpack.c.b16 %v1942, %v1940
        %v2167 = vpack.c.b16 %v1943, %v1941
        %2392 = vmatprep.subr.bf16.mxu0 %v1959
        %2393 = vmatpush1.bf16.msra.mxu0 %v1958
        %2394 = vmatprep.subr.bf16.mxu0 %v1957
        %2395 = vmatpush1.bf16.msra.mxu0 %v1956
        %2396 = vmatprep.subr.bf16.mxu0 %v1955
        %2397 = vmatpush1.bf16.msra.mxu0 %v1954
        %2398 = vmatprep.subr.bf16.mxu0 %v1953
        %2399 = vmatpush1.bf16.msra.mxu0 %v1952
        %2400 = vmatprep.subr.bf16.mxu0 %v1951
        %2401 = vmatpush1.bf16.msra.mxu0 %v1950
        %2402 = vmatprep.subr.bf16.mxu0 %v1949
        %2403 = vmatpush1.bf16.msra.mxu0 %v1948
        %2404 = vmatprep.subr.bf16.mxu0 %v1947
        %2405 = vmatpush1.bf16.msra.mxu0 %v1946
        %2406 = vmatprep.subr.bf16.mxu0 %v1945
        %2407 = vmatpush1.bf16.msra.mxu0 %v1944
        %2408 = vmatprep.subr.bf16.mxu0 %v1975
        %2409 = vmatpush2.bf16.msra.mxu0 %v1974
        %2410 = vmatprep.subr.bf16.mxu0 %v1973
        %2411 = vmatpush2.bf16.msra.mxu0 %v1972
        %2412 = vmatprep.subr.bf16.mxu0 %v1971
        %2413 = vmatpush2.bf16.msra.mxu0 %v1970
        %2414 = vmatprep.subr.bf16.mxu0 %v1969
        %2415 = vmatpush2.bf16.msra.mxu0 %v1968
        %2416 = vmatprep.subr.bf16.mxu0 %v1967
        %2417 = vmatpush2.bf16.msra.mxu0 %v1966
        %2418 = vmatprep.subr.bf16.mxu0 %v1965
        %2419 = vmatpush2.bf16.msra.mxu0 %v1964
        %2420 = vmatprep.subr.bf16.mxu0 %v1963
        %2421 = vmatpush2.bf16.msra.mxu0 %v1962
        %2422 = vmatprep.subr.bf16.mxu0 %v1961
        %2423 = vmatpush2.bf16.msra.mxu0 %v1960
        %2424 = vmatprep.mubr.bf16.mxu0 %v1161
        %2425 = vmatmul.mubr.bf16.gmra.mxu0 %v1160
        %v2426 = vpop.f32.mrf.mxu0
        %v2427 = vadd.f32 %v1153, %v2426
        %v2428 = vpop.f32.mrf.mxu0
        %v2429 = vadd.f32 %v1157, %v2428
        %v2430 = vpop.f32.mrf.mxu0
        %v2431 = vadd.f32 %v1153, %v2430
        %v2432 = vpop.f32.mrf.mxu0
        %v2433 = vadd.f32 %v1157, %v2432
        %2434 = vmatprep.mubr.bf16.mxu0 %v1175
        %2435 = vmatmul.mubr.bf16.gmra.mxu0 %v1174
        %v2436 = vpop.f32.mrf.mxu0
        %v2437 = vadd.f32 %v1153, %v2436
        %v2438 = vpop.f32.mrf.mxu0
        %v2439 = vadd.f32 %v1157, %v2438
        %v2440 = vpop.f32.mrf.mxu0
        %v2441 = vadd.f32 %v1153, %v2440
        %v2442 = vpop.f32.mrf.mxu0
        %v2443 = vadd.f32 %v1157, %v2442
        %2444 = vmatprep.mubr.bf16.mxu0 %v1189
        %2445 = vmatmul.mubr.bf16.gmra.mxu0 %v1188
        %v2446 = vpop.f32.mrf.mxu0
        %v2447 = vadd.f32 %v1153, %v2446
        %v2448 = vpop.f32.mrf.mxu0
        %v2449 = vadd.f32 %v1157, %v2448
        %v2450 = vpop.f32.mrf.mxu0
        %v2451 = vadd.f32 %v1153, %v2450
        %v2452 = vpop.f32.mrf.mxu0
        %v2453 = vadd.f32 %v1157, %v2452
        %2454 = vmatprep.mubr.bf16.mxu0 %v1203
        %2455 = vmatmul.mubr.bf16.gmra.mxu0 %v1202
        %v2456 = vpop.f32.mrf.mxu0
        %v2457 = vadd.f32 %v1153, %v2456
        %v2458 = vpop.f32.mrf.mxu0
        %v2459 = vadd.f32 %v1157, %v2458
        %v2460 = vpop.f32.mrf.mxu0
        %v2461 = vadd.f32 %v1153, %v2460
        %v2462 = vpop.f32.mrf.mxu0
        %v2463 = vadd.f32 %v1157, %v2462
        %2464 = vdwg.mxu0
        %2465 = vmatprep.subr.bf16.mxu0 %v1991
        %2466 = vmatpush1.bf16.msra.mxu0 %v1990
        %2467 = vmatprep.subr.bf16.mxu0 %v1989
        %2468 = vmatpush1.bf16.msra.mxu0 %v1988
        %2469 = vmatprep.subr.bf16.mxu0 %v1987
        %2470 = vmatpush1.bf16.msra.mxu0 %v1986
        %2471 = vmatprep.subr.bf16.mxu0 %v1985
        %2472 = vmatpush1.bf16.msra.mxu0 %v1984
        %2473 = vmatprep.subr.bf16.mxu0 %v1983
        %2474 = vmatpush1.bf16.msra.mxu0 %v1982
        %2475 = vmatprep.subr.bf16.mxu0 %v1981
        %2476 = vmatpush1.bf16.msra.mxu0 %v1980
        %2477 = vmatprep.subr.bf16.mxu0 %v1979
        %2478 = vmatpush1.bf16.msra.mxu0 %v1978
        %2479 = vmatprep.subr.bf16.mxu0 %v1977
        %2480 = vmatpush1.bf16.msra.mxu0 %v1976
        %2481 = vmatprep.subr.bf16.mxu0 %v2007
        %2482 = vmatpush2.bf16.msra.mxu0 %v2006
        %2483 = vmatprep.subr.bf16.mxu0 %v2005
        %2484 = vmatpush2.bf16.msra.mxu0 %v2004
        %2485 = vmatprep.subr.bf16.mxu0 %v2003
        %2486 = vmatpush2.bf16.msra.mxu0 %v2002
        %2487 = vmatprep.subr.bf16.mxu0 %v2001
        %2488 = vmatpush2.bf16.msra.mxu0 %v2000
        %2489 = vmatprep.subr.bf16.mxu0 %v1999
        %2490 = vmatpush2.bf16.msra.mxu0 %v1998
        %2491 = vmatprep.subr.bf16.mxu0 %v1997
        %2492 = vmatpush2.bf16.msra.mxu0 %v1996
        %2493 = vmatprep.subr.bf16.mxu0 %v1995
        %2494 = vmatpush2.bf16.msra.mxu0 %v1994
        %2495 = vmatprep.subr.bf16.mxu0 %v1993
        %2496 = vmatpush2.bf16.msra.mxu0 %v1992
        %2497 = vmatprep.mubr.bf16.mxu0 %v1163
        %2498 = vmatmul.mubr.bf16.gmra.mxu0 %v1162
        %v2499 = vpop.f32.mrf.mxu0
        %v2500 = vadd.f32 %v2427, %v2499
        %v2501 = vpop.f32.mrf.mxu0
        %v2502 = vadd.f32 %v2429, %v2501
        %v2503 = vpop.f32.mrf.mxu0
        %v2504 = vadd.f32 %v2431, %v2503
        %v2505 = vpop.f32.mrf.mxu0
        %v2506 = vadd.f32 %v2433, %v2505
        %2507 = vmatprep.mubr.bf16.mxu0 %v1177
        %2508 = vmatmul.mubr.bf16.gmra.mxu0 %v1176
        %v2509 = vpop.f32.mrf.mxu0
        %v2510 = vadd.f32 %v2437, %v2509
        %v2511 = vpop.f32.mrf.mxu0
        %v2512 = vadd.f32 %v2439, %v2511
        %v2513 = vpop.f32.mrf.mxu0
        %v2514 = vadd.f32 %v2441, %v2513
        %v2515 = vpop.f32.mrf.mxu0
        %v2516 = vadd.f32 %v2443, %v2515
        %2517 = vmatprep.mubr.bf16.mxu0 %v1191
        %2518 = vmatmul.mubr.bf16.gmra.mxu0 %v1190
        %v2519 = vpop.f32.mrf.mxu0
        %v2520 = vadd.f32 %v2447, %v2519
        %v2521 = vpop.f32.mrf.mxu0
        %v2522 = vadd.f32 %v2449, %v2521
        %v2523 = vpop.f32.mrf.mxu0
        %v2524 = vadd.f32 %v2451, %v2523
        %v2525 = vpop.f32.mrf.mxu0
        %v2526 = vadd.f32 %v2453, %v2525
        %2527 = vmatprep.mubr.bf16.mxu0 %v1205
        %2528 = vmatmul.mubr.bf16.gmra.mxu0 %v1204
        %v2529 = vpop.f32.mrf.mxu0
        %v2530 = vadd.f32 %v2457, %v2529
        %v2531 = vpop.f32.mrf.mxu0
        %v2532 = vadd.f32 %v2459, %v2531
        %v2533 = vpop.f32.mrf.mxu0
        %v2534 = vadd.f32 %v2461, %v2533
        %v2535 = vpop.f32.mrf.mxu0
        %v2536 = vadd.f32 %v2463, %v2535
        %2537 = vdwg.mxu0
        %2538 = vmatprep.subr.bf16.mxu0 %v2023
        %2539 = vmatpush1.bf16.msra.mxu0 %v2022
        %2540 = vmatprep.subr.bf16.mxu0 %v2021
        %2541 = vmatpush1.bf16.msra.mxu0 %v2020
        %2542 = vmatprep.subr.bf16.mxu0 %v2019
        %2543 = vmatpush1.bf16.msra.mxu0 %v2018
        %2544 = vmatprep.subr.bf16.mxu0 %v2017
        %2545 = vmatpush1.bf16.msra.mxu0 %v2016
        %2546 = vmatprep.subr.bf16.mxu0 %v2015
        %2547 = vmatpush1.bf16.msra.mxu0 %v2014
        %2548 = vmatprep.subr.bf16.mxu0 %v2013
        %2549 = vmatpush1.bf16.msra.mxu0 %v2012
        %2550 = vmatprep.subr.bf16.mxu0 %v2011
        %2551 = vmatpush1.bf16.msra.mxu0 %v2010
        %2552 = vmatprep.subr.bf16.mxu0 %v2009
        %2553 = vmatpush1.bf16.msra.mxu0 %v2008
        %2554 = vmatprep.subr.bf16.mxu0 %v2039
        %2555 = vmatpush2.bf16.msra.mxu0 %v2038
        %2556 = vmatprep.subr.bf16.mxu0 %v2037
        %2557 = vmatpush2.bf16.msra.mxu0 %v2036
        %2558 = vmatprep.subr.bf16.mxu0 %v2035
        %2559 = vmatpush2.bf16.msra.mxu0 %v2034
        %2560 = vmatprep.subr.bf16.mxu0 %v2033
        %2561 = vmatpush2.bf16.msra.mxu0 %v2032
        %2562 = vmatprep.subr.bf16.mxu0 %v2031
        %2563 = vmatpush2.bf16.msra.mxu0 %v2030
        %2564 = vmatprep.subr.bf16.mxu0 %v2029
        %2565 = vmatpush2.bf16.msra.mxu0 %v2028
        %2566 = vmatprep.subr.bf16.mxu0 %v2027
        %2567 = vmatpush2.bf16.msra.mxu0 %v2026
        %2568 = vmatprep.subr.bf16.mxu0 %v2025
        %2569 = vmatpush2.bf16.msra.mxu0 %v2024
        %2570 = vmatprep.mubr.bf16.mxu0 %v1165
        %2571 = vmatmul.mubr.bf16.gmra.mxu0 %v1164
        %v2572 = vpop.f32.mrf.mxu0
        %v2573 = vadd.f32 %v2500, %v2572
        %v2574 = vpop.f32.mrf.mxu0
        %v2575 = vadd.f32 %v2502, %v2574
        %v2576 = vpop.f32.mrf.mxu0
        %v2577 = vadd.f32 %v2504, %v2576
        %v2578 = vpop.f32.mrf.mxu0
        %v2579 = vadd.f32 %v2506, %v2578
        %2580 = vmatprep.mubr.bf16.mxu0 %v1179
        %2581 = vmatmul.mubr.bf16.gmra.mxu0 %v1178
        %v2582 = vpop.f32.mrf.mxu0
        %v2583 = vadd.f32 %v2510, %v2582
        %v2584 = vpop.f32.mrf.mxu0
        %v2585 = vadd.f32 %v2512, %v2584
        %v2586 = vpop.f32.mrf.mxu0
        %v2587 = vadd.f32 %v2514, %v2586
        %v2588 = vpop.f32.mrf.mxu0
        %v2589 = vadd.f32 %v2516, %v2588
        %2590 = vmatprep.mubr.bf16.mxu0 %v1193
        %2591 = vmatmul.mubr.bf16.gmra.mxu0 %v1192
        %v2592 = vpop.f32.mrf.mxu0
        %v2593 = vadd.f32 %v2520, %v2592
        %v2594 = vpop.f32.mrf.mxu0
        %v2595 = vadd.f32 %v2522, %v2594
        %v2596 = vpop.f32.mrf.mxu0
        %v2597 = vadd.f32 %v2524, %v2596
        %v2598 = vpop.f32.mrf.mxu0
        %v2599 = vadd.f32 %v2526, %v2598
        %2600 = vmatprep.mubr.bf16.mxu0 %v1207
        %2601 = vmatmul.mubr.bf16.gmra.mxu0 %v1206
        %v2602 = vpop.f32.mrf.mxu0
        %v2603 = vadd.f32 %v2530, %v2602
        %v2604 = vpop.f32.mrf.mxu0
        %v2605 = vadd.f32 %v2532, %v2604
        %v2606 = vpop.f32.mrf.mxu0
        %v2607 = vadd.f32 %v2534, %v2606
        %v2608 = vpop.f32.mrf.mxu0
        %v2609 = vadd.f32 %v2536, %v2608
        %2610 = vdwg.mxu0
        %2611 = vmatprep.subr.bf16.mxu0 %v2055
        %2612 = vmatpush1.bf16.msra.mxu0 %v2054
        %2613 = vmatprep.subr.bf16.mxu0 %v2053
        %2614 = vmatpush1.bf16.msra.mxu0 %v2052
        %2615 = vmatprep.subr.bf16.mxu0 %v2051
        %2616 = vmatpush1.bf16.msra.mxu0 %v2050
        %2617 = vmatprep.subr.bf16.mxu0 %v2049
        %2618 = vmatpush1.bf16.msra.mxu0 %v2048
        %2619 = vmatprep.subr.bf16.mxu0 %v2047
        %2620 = vmatpush1.bf16.msra.mxu0 %v2046
        %2621 = vmatprep.subr.bf16.mxu0 %v2045
        %2622 = vmatpush1.bf16.msra.mxu0 %v2044
        %2623 = vmatprep.subr.bf16.mxu0 %v2043
        %2624 = vmatpush1.bf16.msra.mxu0 %v2042
        %2625 = vmatprep.subr.bf16.mxu0 %v2041
        %2626 = vmatpush1.bf16.msra.mxu0 %v2040
        %2627 = vmatprep.subr.bf16.mxu0 %v2071
        %2628 = vmatpush2.bf16.msra.mxu0 %v2070
        %2629 = vmatprep.subr.bf16.mxu0 %v2069
        %2630 = vmatpush2.bf16.msra.mxu0 %v2068
        %2631 = vmatprep.subr.bf16.mxu0 %v2067
        %2632 = vmatpush2.bf16.msra.mxu0 %v2066
        %2633 = vmatprep.subr.bf16.mxu0 %v2065
        %2634 = vmatpush2.bf16.msra.mxu0 %v2064
        %2635 = vmatprep.subr.bf16.mxu0 %v2063
        %2636 = vmatpush2.bf16.msra.mxu0 %v2062
        %2637 = vmatprep.subr.bf16.mxu0 %v2061
        %2638 = vmatpush2.bf16.msra.mxu0 %v2060
        %2639 = vmatprep.subr.bf16.mxu0 %v2059
        %2640 = vmatpush2.bf16.msra.mxu0 %v2058
        %2641 = vmatprep.subr.bf16.mxu0 %v2057
        %2642 = vmatpush2.bf16.msra.mxu0 %v2056
        %2643 = vmatprep.mubr.bf16.mxu0 %v1167
        %2644 = vmatmul.mubr.bf16.gmra.mxu0 %v1166
        %v2645 = vpop.f32.mrf.mxu0
        %v2646 = vadd.f32 %v2573, %v2645
        %v2647 = vpop.f32.mrf.mxu0
        %v2648 = vadd.f32 %v2575, %v2647
        %v2649 = vpop.f32.mrf.mxu0
        %v2650 = vadd.f32 %v2577, %v2649
        %v2651 = vpop.f32.mrf.mxu0
        %v2652 = vadd.f32 %v2579, %v2651
        %2653 = vmatprep.mubr.bf16.mxu0 %v1181
        %2654 = vmatmul.mubr.bf16.gmra.mxu0 %v1180
        %v2655 = vpop.f32.mrf.mxu0
        %v2656 = vadd.f32 %v2583, %v2655
        %v2657 = vpop.f32.mrf.mxu0
        %v2658 = vadd.f32 %v2585, %v2657
        %v2659 = vpop.f32.mrf.mxu0
        %v2660 = vadd.f32 %v2587, %v2659
        %v2661 = vpop.f32.mrf.mxu0
        %v2662 = vadd.f32 %v2589, %v2661
        %2663 = vmatprep.mubr.bf16.mxu0 %v1195
        %2664 = vmatmul.mubr.bf16.gmra.mxu0 %v1194
        %v2665 = vpop.f32.mrf.mxu0
        %v2666 = vadd.f32 %v2593, %v2665
        %v2667 = vpop.f32.mrf.mxu0
        %v2668 = vadd.f32 %v2595, %v2667
        %v2669 = vpop.f32.mrf.mxu0
        %v2670 = vadd.f32 %v2597, %v2669
        %v2671 = vpop.f32.mrf.mxu0
        %v2672 = vadd.f32 %v2599, %v2671
        %2673 = vmatprep.mubr.bf16.mxu0 %v1209
        %2674 = vmatmul.mubr.bf16.gmra.mxu0 %v1208
        %v2675 = vpop.f32.mrf.mxu0
        %v2676 = vadd.f32 %v2603, %v2675
        %v2677 = vpop.f32.mrf.mxu0
        %v2678 = vadd.f32 %v2605, %v2677
        %v2679 = vpop.f32.mrf.mxu0
        %v2680 = vadd.f32 %v2607, %v2679
        %v2681 = vpop.f32.mrf.mxu0
        %v2682 = vadd.f32 %v2609, %v2681
        %2683 = vdwg.mxu0
        %2684 = vmatprep.subr.bf16.mxu0 %v2087
        %2685 = vmatpush1.bf16.msra.mxu0 %v2086
        %2686 = vmatprep.subr.bf16.mxu0 %v2085
        %2687 = vmatpush1.bf16.msra.mxu0 %v2084
        %2688 = vmatprep.subr.bf16.mxu0 %v2083
        %2689 = vmatpush1.bf16.msra.mxu0 %v2082
        %2690 = vmatprep.subr.bf16.mxu0 %v2081
        %2691 = vmatpush1.bf16.msra.mxu0 %v2080
        %2692 = vmatprep.subr.bf16.mxu0 %v2079
        %2693 = vmatpush1.bf16.msra.mxu0 %v2078
        %2694 = vmatprep.subr.bf16.mxu0 %v2077
        %2695 = vmatpush1.bf16.msra.mxu0 %v2076
        %2696 = vmatprep.subr.bf16.mxu0 %v2075
        %2697 = vmatpush1.bf16.msra.mxu0 %v2074
        %2698 = vmatprep.subr.bf16.mxu0 %v2073
        %2699 = vmatpush1.bf16.msra.mxu0 %v2072
        %2700 = vmatprep.subr.bf16.mxu0 %v2103
        %2701 = vmatpush2.bf16.msra.mxu0 %v2102
        %2702 = vmatprep.subr.bf16.mxu0 %v2101
        %2703 = vmatpush2.bf16.msra.mxu0 %v2100
        %2704 = vmatprep.subr.bf16.mxu0 %v2099
        %2705 = vmatpush2.bf16.msra.mxu0 %v2098
        %2706 = vmatprep.subr.bf16.mxu0 %v2097
        %2707 = vmatpush2.bf16.msra.mxu0 %v2096
        %2708 = vmatprep.subr.bf16.mxu0 %v2095
        %2709 = vmatpush2.bf16.msra.mxu0 %v2094
        %2710 = vmatprep.subr.bf16.mxu0 %v2093
        %2711 = vmatpush2.bf16.msra.mxu0 %v2092
        %2712 = vmatprep.subr.bf16.mxu0 %v2091
        %2713 = vmatpush2.bf16.msra.mxu0 %v2090
        %2714 = vmatprep.subr.bf16.mxu0 %v2089
        %2715 = vmatpush2.bf16.msra.mxu0 %v2088
        %2716 = vmatprep.mubr.bf16.mxu0 %v1169
        %2717 = vmatmul.mubr.bf16.gmra.mxu0 %v1168
        %v2718 = vpop.f32.mrf.mxu0
        %v2719 = vadd.f32 %v2646, %v2718
        %v2720 = vpop.f32.mrf.mxu0
        %v2721 = vadd.f32 %v2648, %v2720
        %v2722 = vpop.f32.mrf.mxu0
        %v2723 = vadd.f32 %v2650, %v2722
        %v2724 = vpop.f32.mrf.mxu0
        %v2725 = vadd.f32 %v2652, %v2724
        %2726 = vmatprep.mubr.bf16.mxu0 %v1183
        %2727 = vmatmul.mubr.bf16.gmra.mxu0 %v1182
        %v2728 = vpop.f32.mrf.mxu0
        %v2729 = vadd.f32 %v2656, %v2728
        %v2730 = vpop.f32.mrf.mxu0
        %v2731 = vadd.f32 %v2658, %v2730
        %v2732 = vpop.f32.mrf.mxu0
        %v2733 = vadd.f32 %v2660, %v2732
        %v2734 = vpop.f32.mrf.mxu0
        %v2735 = vadd.f32 %v2662, %v2734
        %2736 = vmatprep.mubr.bf16.mxu0 %v1197
        %2737 = vmatmul.mubr.bf16.gmra.mxu0 %v1196
        %v2738 = vpop.f32.mrf.mxu0
        %v2739 = vadd.f32 %v2666, %v2738
        %v2740 = vpop.f32.mrf.mxu0
        %v2741 = vadd.f32 %v2668, %v2740
        %v2742 = vpop.f32.mrf.mxu0
        %v2743 = vadd.f32 %v2670, %v2742
        %v2744 = vpop.f32.mrf.mxu0
        %v2745 = vadd.f32 %v2672, %v2744
        %2746 = vmatprep.mubr.bf16.mxu0 %v1211
        %2747 = vmatmul.mubr.bf16.gmra.mxu0 %v1210
        %v2748 = vpop.f32.mrf.mxu0
        %v2749 = vadd.f32 %v2676, %v2748
        %v2750 = vpop.f32.mrf.mxu0
        %v2751 = vadd.f32 %v2678, %v2750
        %v2752 = vpop.f32.mrf.mxu0
        %v2753 = vadd.f32 %v2680, %v2752
        %v2754 = vpop.f32.mrf.mxu0
        %v2755 = vadd.f32 %v2682, %v2754
        %2756 = vdwg.mxu0
        %2757 = vmatprep.subr.bf16.mxu0 %v2119
        %2758 = vmatpush1.bf16.msra.mxu0 %v2118
        %2759 = vmatprep.subr.bf16.mxu0 %v2117
        %2760 = vmatpush1.bf16.msra.mxu0 %v2116
        %2761 = vmatprep.subr.bf16.mxu0 %v2115
        %2762 = vmatpush1.bf16.msra.mxu0 %v2114
        %2763 = vmatprep.subr.bf16.mxu0 %v2113
        %2764 = vmatpush1.bf16.msra.mxu0 %v2112
        %2765 = vmatprep.subr.bf16.mxu0 %v2111
        %2766 = vmatpush1.bf16.msra.mxu0 %v2110
        %2767 = vmatprep.subr.bf16.mxu0 %v2109
        %2768 = vmatpush1.bf16.msra.mxu0 %v2108
        %2769 = vmatprep.subr.bf16.mxu0 %v2107
        %2770 = vmatpush1.bf16.msra.mxu0 %v2106
        %2771 = vmatprep.subr.bf16.mxu0 %v2105
        %2772 = vmatpush1.bf16.msra.mxu0 %v2104
        %2773 = vmatprep.subr.bf16.mxu0 %v2135
        %2774 = vmatpush2.bf16.msra.mxu0 %v2134
        %2775 = vmatprep.subr.bf16.mxu0 %v2133
        %2776 = vmatpush2.bf16.msra.mxu0 %v2132
        %2777 = vmatprep.subr.bf16.mxu0 %v2131
        %2778 = vmatpush2.bf16.msra.mxu0 %v2130
        %2779 = vmatprep.subr.bf16.mxu0 %v2129
        %2780 = vmatpush2.bf16.msra.mxu0 %v2128
        %2781 = vmatprep.subr.bf16.mxu0 %v2127
        %2782 = vmatpush2.bf16.msra.mxu0 %v2126
        %2783 = vmatprep.subr.bf16.mxu0 %v2125
        %2784 = vmatpush2.bf16.msra.mxu0 %v2124
        %2785 = vmatprep.subr.bf16.mxu0 %v2123
        %2786 = vmatpush2.bf16.msra.mxu0 %v2122
        %2787 = vmatprep.subr.bf16.mxu0 %v2121
        %2788 = vmatpush2.bf16.msra.mxu0 %v2120
        %2789 = vmatprep.mubr.bf16.mxu0 %v1171
        %2790 = vmatmul.mubr.bf16.gmra.mxu0 %v1170
        %v2791 = vpop.f32.mrf.mxu0
        %v2792 = vadd.f32 %v2719, %v2791
        %v2793 = vpop.f32.mrf.mxu0
        %v2794 = vadd.f32 %v2721, %v2793
        %v2795 = vpop.f32.mrf.mxu0
        %v2796 = vadd.f32 %v2723, %v2795
        %v2797 = vpop.f32.mrf.mxu0
        %v2798 = vadd.f32 %v2725, %v2797
        %2799 = vmatprep.mubr.bf16.mxu0 %v1185
        %2800 = vmatmul.mubr.bf16.gmra.mxu0 %v1184
        %v2801 = vpop.f32.mrf.mxu0
        %v2802 = vadd.f32 %v2729, %v2801
        %v2803 = vpop.f32.mrf.mxu0
        %v2804 = vadd.f32 %v2731, %v2803
        %v2805 = vpop.f32.mrf.mxu0
        %v2806 = vadd.f32 %v2733, %v2805
        %v2807 = vpop.f32.mrf.mxu0
        %v2808 = vadd.f32 %v2735, %v2807
        %2809 = vmatprep.mubr.bf16.mxu0 %v1199
        %2810 = vmatmul.mubr.bf16.gmra.mxu0 %v1198
        %v2811 = vpop.f32.mrf.mxu0
        %v2812 = vadd.f32 %v2739, %v2811
        %v2813 = vpop.f32.mrf.mxu0
        %v2814 = vadd.f32 %v2741, %v2813
        %v2815 = vpop.f32.mrf.mxu0
        %v2816 = vadd.f32 %v2743, %v2815
        %v2817 = vpop.f32.mrf.mxu0
        %v2818 = vadd.f32 %v2745, %v2817
        %2819 = vmatprep.mubr.bf16.mxu0 %v1213
        %2820 = vmatmul.mubr.bf16.gmra.mxu0 %v1212
        %v2821 = vpop.f32.mrf.mxu0
        %v2822 = vadd.f32 %v2749, %v2821
        %v2823 = vpop.f32.mrf.mxu0
        %v2824 = vadd.f32 %v2751, %v2823
        %v2825 = vpop.f32.mrf.mxu0
        %v2826 = vadd.f32 %v2753, %v2825
        %v2827 = vpop.f32.mrf.mxu0
        %v2828 = vadd.f32 %v2755, %v2827
        %2829 = vdwg.mxu0
        %2830 = vmatprep.subr.bf16.mxu0 %v2151
        %2831 = vmatpush1.bf16.msra.mxu0 %v2150
        %2832 = vmatprep.subr.bf16.mxu0 %v2149
        %2833 = vmatpush1.bf16.msra.mxu0 %v2148
        %2834 = vmatprep.subr.bf16.mxu0 %v2147
        %2835 = vmatpush1.bf16.msra.mxu0 %v2146
        %2836 = vmatprep.subr.bf16.mxu0 %v2145
        %2837 = vmatpush1.bf16.msra.mxu0 %v2144
        %2838 = vmatprep.subr.bf16.mxu0 %v2143
        %2839 = vmatpush1.bf16.msra.mxu0 %v2142
        %2840 = vmatprep.subr.bf16.mxu0 %v2141
        %2841 = vmatpush1.bf16.msra.mxu0 %v2140
        %2842 = vmatprep.subr.bf16.mxu0 %v2139
        %2843 = vmatpush1.bf16.msra.mxu0 %v2138
        %2844 = vmatprep.subr.bf16.mxu0 %v2137
        %2845 = vmatpush1.bf16.msra.mxu0 %v2136
        %2846 = vmatprep.subr.bf16.mxu0 %v2167
        %2847 = vmatpush2.bf16.msra.mxu0 %v2166
        %2848 = vmatprep.subr.bf16.mxu0 %v2165
        %2849 = vmatpush2.bf16.msra.mxu0 %v2164
        %2850 = vmatprep.subr.bf16.mxu0 %v2163
        %2851 = vmatpush2.bf16.msra.mxu0 %v2162
        %2852 = vmatprep.subr.bf16.mxu0 %v2161
        %2853 = vmatpush2.bf16.msra.mxu0 %v2160
        %2854 = vmatprep.subr.bf16.mxu0 %v2159
        %2855 = vmatpush2.bf16.msra.mxu0 %v2158
        %2856 = vmatprep.subr.bf16.mxu0 %v2157
        %2857 = vmatpush2.bf16.msra.mxu0 %v2156
        %2858 = vmatprep.subr.bf16.mxu0 %v2155
        %2859 = vmatpush2.bf16.msra.mxu0 %v2154
        %2860 = vmatprep.subr.bf16.mxu0 %v2153
        %2861 = vmatpush2.bf16.msra.mxu0 %v2152
        %2862 = vmatprep.mubr.bf16.mxu0 %v1173
        %2863 = vmatmul.mubr.bf16.gmra.mxu0 %v1172
        %v2864 = vpop.f32.mrf.mxu0
        %v2865 = vadd.f32 %v2792, %v2864
        %v2866 = vpop.f32.mrf.mxu0
        %v2867 = vadd.f32 %v2794, %v2866
        %v2868 = vpop.f32.mrf.mxu0
        %v2869 = vadd.f32 %v2796, %v2868
        %v2870 = vpop.f32.mrf.mxu0
        %v2871 = vadd.f32 %v2798, %v2870
        %2872 = vmatprep.mubr.bf16.mxu0 %v1187
        %2873 = vmatmul.mubr.bf16.gmra.mxu0 %v1186
        %v2874 = vpop.f32.mrf.mxu0
        %v2875 = vadd.f32 %v2802, %v2874
        %v2876 = vpop.f32.mrf.mxu0
        %v2877 = vadd.f32 %v2804, %v2876
        %v2878 = vpop.f32.mrf.mxu0
        %v2879 = vadd.f32 %v2806, %v2878
        %v2880 = vpop.f32.mrf.mxu0
        %v2881 = vadd.f32 %v2808, %v2880
        %2882 = vmatprep.mubr.bf16.mxu0 %v1201
        %2883 = vmatmul.mubr.bf16.gmra.mxu0 %v1200
        %v2884 = vpop.f32.mrf.mxu0
        %v2885 = vadd.f32 %v2812, %v2884
        %v2886 = vpop.f32.mrf.mxu0
        %v2887 = vadd.f32 %v2814, %v2886
        %v2888 = vpop.f32.mrf.mxu0
        %v2889 = vadd.f32 %v2816, %v2888
        %v2890 = vpop.f32.mrf.mxu0
        %v2891 = vadd.f32 %v2818, %v2890
        %2892 = vmatprep.mubr.bf16.mxu0 %v1215
        %2893 = vmatmul.mubr.bf16.gmra.mxu0 %v1214
        %v2894 = vpop.f32.mrf.mxu0
        %v2895 = vadd.f32 %v2822, %v2894
        %v2896 = vpop.f32.mrf.mxu0
        %v2897 = vadd.f32 %v2824, %v2896
        %v2898 = vpop.f32.mrf.mxu0
        %v2899 = vadd.f32 %v2826, %v2898
        %v2900 = vpop.f32.mrf.mxu0
        %v2901 = vadd.f32 %v2828, %v2900
        %2902 = vdwg.mxu0
        %v2903 = vmax.f32 %v2865, 0.0
        %v2904 = vmax.f32 %v2867, 0.0
        %v2905 = vmax.f32 %v2869, 0.0
        %v2906 = vmax.f32 %v2871, 0.0
        %v2907 = vmax.f32 %v2875, 0.0
        %v2908 = vmax.f32 %v2877, 0.0
        %v2909 = vmax.f32 %v2879, 0.0
        %v2910 = vmax.f32 %v2881, 0.0
        %v2911 = vmax.f32 %v2885, 0.0
        %v2912 = vmax.f32 %v2887, 0.0
        %v2913 = vmax.f32 %v2889, 0.0
        %v2914 = vmax.f32 %v2891, 0.0
        %v2915 = vmax.f32 %v2895, 0.0
        %v2916 = vmax.f32 %v2897, 0.0
        %v2917 = vmax.f32 %v2899, 0.0
        %v2918 = vmax.f32 %v2901, 0.0
        %v2919 = vpack.c.bf16 %v2905, %v2903
        %v2920 = vpack.c.bf16 %v2906, %v2904
        %v2921 = vpack.c.bf16 %v2909, %v2907
        %v2922 = vpack.c.bf16 %v2910, %v2908
        %v2923 = vpack.c.bf16 %v2913, %v2911
        %v2924 = vpack.c.bf16 %v2914, %v2912
        %v2925 = vpack.c.bf16 %v2917, %v2915
        %v2926 = vpack.c.bf16 %v2918, %v2916
        %v2943 = vrot.slane %v2903, 7
        %v2944 = vrot.slane %v2904, 7
        %v2945 = vrot.slane %v2905, 7
        %v2946 = vrot.slane %v2906, 7
        %v2947 = vrot.slane %v2907, 7
        %v2948 = vrot.slane %v2908, 7
        %v2949 = vrot.slane %v2909, 7
        %v2950 = vrot.slane %v2910, 7
        %v2951 = vrot.slane %v2911, 7
        %v2952 = vrot.slane %v2912, 7
        %v2953 = vrot.slane %v2913, 7
        %v2954 = vrot.slane %v2914, 7
        %v2955 = vrot.slane %v2915, 7
        %v2956 = vrot.slane %v2916, 7
        %v2957 = vrot.slane %v2917, 7
        %v2958 = vrot.slane %v2918, 7
        %vm2975 = vcmask 1040384
        %v2976 = vsel %vm2975, 0.0, %v2943
        %v2977 = vsel %vm2975, 0.0, %v2944
        %v2978 = vsel %vm2975, 0.0, %v2945
        %v2979 = vsel %vm2975, 0.0, %v2946
        %v2980 = vsel %vm2975, 0.0, %v2947
        %v2981 = vsel %vm2975, 0.0, %v2948
        %v2982 = vsel %vm2975, 0.0, %v2949
        %v2983 = vsel %vm2975, 0.0, %v2950
        %v2984 = vsel %vm2975, 0.0, %v2951
        %v2985 = vsel %vm2975, 0.0, %v2952
        %v2986 = vsel %vm2975, 0.0, %v2953
        %v2987 = vsel %vm2975, 0.0, %v2954
        %v2988 = vsel %vm2975, 0.0, %v2955
        %v2989 = vsel %vm2975, 0.0, %v2956
        %v2990 = vsel %vm2975, 0.0, %v2957
        %v2991 = vsel %vm2975, 0.0, %v2958
        %v2992 = vrot.slane %v2903, 1
        %v2993 = vrot.slane %v2904, 1
        %v2994 = vrot.slane %v2905, 1
        %v2995 = vrot.slane %v2906, 1
        %v2996 = vrot.slane %v2907, 1
        %v2997 = vrot.slane %v2908, 1
        %v2998 = vrot.slane %v2909, 1
        %v2999 = vrot.slane %v2910, 1
        %v3000 = vrot.slane %v2911, 1
        %v3001 = vrot.slane %v2912, 1
        %v3002 = vrot.slane %v2913, 1
        %v3003 = vrot.slane %v2914, 1
        %v3004 = vrot.slane %v2915, 1
        %v3005 = vrot.slane %v2916, 1
        %v3006 = vrot.slane %v2917, 1
        %v3007 = vrot.slane %v2918, 1
        %vm3024 = vcmask 1046528
        %v3025 = vsel %vm3024, %v2992, 0.0
        %v3026 = vsel %vm3024, %v2993, 0.0
        %v3027 = vsel %vm3024, %v2994, 0.0
        %v3028 = vsel %vm3024, %v2995, 0.0
        %v3029 = vsel %vm3024, %v2996, 0.0
        %v3030 = vsel %vm3024, %v2997, 0.0
        %v3031 = vsel %vm3024, %v2998, 0.0
        %v3032 = vsel %vm3024, %v2999, 0.0
        %v3033 = vsel %vm3024, %v3000, 0.0
        %v3034 = vsel %vm3024, %v3001, 0.0
        %v3035 = vsel %vm3024, %v3002, 0.0
        %v3036 = vsel %vm3024, %v3003, 0.0
        %v3037 = vsel %vm3024, %v3004, 0.0
        %v3038 = vsel %vm3024, %v3005, 0.0
        %v3039 = vsel %vm3024, %v3006, 0.0
        %v3040 = vsel %vm3024, %v3007, 0.0
        %v3041 = vpack.c.bf16 %v2978, %v2976
        %v3042 = vpack.c.bf16 %v2979, %v2977
        %v3043 = vpack.c.bf16 %v3027, %v3025
        %v3044 = vpack.c.bf16 %v3028, %v3026
        %v3045 = vpack.c.bf16 %v2982, %v2980
        %v3046 = vpack.c.bf16 %v2983, %v2981
        %v3047 = vpack.c.bf16 %v3031, %v3029
        %v3048 = vpack.c.bf16 %v3032, %v3030
        %v3049 = vpack.c.bf16 %v2986, %v2984
        %v3050 = vpack.c.bf16 %v2987, %v2985
        %v3051 = vpack.c.bf16 %v3035, %v3033
        %v3052 = vpack.c.bf16 %v3036, %v3034
        %v3053 = vpack.c.bf16 %v2990, %v2988
        %v3054 = vpack.c.bf16 %v2991, %v2989
        %v3055 = vpack.c.bf16 %v3039, %v3037
        %v3056 = vpack.c.bf16 %v3040, %v3038
        %v3057 = vld [vmem:[#allocation7] sm:$0xff]
        %v3058 = vld [vmem:[#allocation7 + $0x8] sm:$0xff]
        %v3059 = vld [vmem:[#allocation7 + $0x10] sm:$0xff]
        %v3060 = vld [vmem:[#allocation7 + $0x18] sm:$0xff]
        %v3061 = vld [vmem:[#allocation7 + $0x20] sm:$0xff]
        %v3062 = vld [vmem:[#allocation7 + $0x28] sm:$0xff]
        %v3063 = vld [vmem:[#allocation7 + $0x30] sm:$0xff]
        %v3064 = vld [vmem:[#allocation7 + $0x38] sm:$0xff]
        %v3065 = vld [vmem:[#allocation7 + $0x40] sm:$0xff]
        %v3066 = vld [vmem:[#allocation7 + $0x48] sm:$0xff]
        %v3067 = vld [vmem:[#allocation7 + $0x50] sm:$0xff]
        %v3068 = vld [vmem:[#allocation7 + $0x58] sm:$0xff]
        %v3069 = vld [vmem:[#allocation7 + $0x60] sm:$0xff]
        %v3070 = vld [vmem:[#allocation7 + $0x68] sm:$0xff]
        %v3071 = vld [vmem:[#allocation7 + $0x70] sm:$0xff]
        %v3072 = vld [vmem:[#allocation7 + $0x78] sm:$0xff]
        %v3073 = vld [vmem:[#allocation7 + $0x80] sm:$0xff]
        %v3074 = vld [vmem:[#allocation7 + $0x88] sm:$0xff]
        %v3075 = vld [vmem:[#allocation7 + $0x90] sm:$0xff]
        %v3076 = vld [vmem:[#allocation7 + $0x98] sm:$0xff]
        %v3077 = vld [vmem:[#allocation7 + $0xa0] sm:$0xff]
        %v3078 = vld [vmem:[#allocation7 + $0xa8] sm:$0xff]
        %v3079 = vld [vmem:[#allocation7 + $0xb0] sm:$0xff]
        %v3080 = vld [vmem:[#allocation7 + $0xb8] sm:$0xff]
        %v3081 = vld [vmem:[#allocation7 + $0xc0] sm:$0xff]
        %v3082 = vld [vmem:[#allocation7 + $0xc8] sm:$0xff]
        %v3083 = vld [vmem:[#allocation7 + $0xd0] sm:$0xff]
        %v3084 = vld [vmem:[#allocation7 + $0xd8] sm:$0xff]
        %v3085 = vld [vmem:[#allocation7 + $0xe0] sm:$0xff]
        %v3086 = vld [vmem:[#allocation7 + $0xe8] sm:$0xff]
        %v3087 = vld [vmem:[#allocation7 + $0xf0] sm:$0xff]
        %v3088 = vld [vmem:[#allocation7 + $0xf8] sm:$0xff]
        %v3089 = vld [vmem:[#allocation7 + $0x100] sm:$0xff]
        %v3090 = vld [vmem:[#allocation7 + $0x108] sm:$0xff]
        %v3091 = vld [vmem:[#allocation7 + $0x110] sm:$0xff]
        %v3092 = vld [vmem:[#allocation7 + $0x118] sm:$0xff]
        %v3093 = vld [vmem:[#allocation7 + $0x120] sm:$0xff]
        %v3094 = vld [vmem:[#allocation7 + $0x128] sm:$0xff]
        %v3095 = vld [vmem:[#allocation7 + $0x130] sm:$0xff]
        %v3096 = vld [vmem:[#allocation7 + $0x138] sm:$0xff]
        %v3097 = vld [vmem:[#allocation7 + $0x140] sm:$0xff]
        %v3098 = vld [vmem:[#allocation7 + $0x148] sm:$0xff]
        %v3099 = vld [vmem:[#allocation7 + $0x150] sm:$0xff]
        %v3100 = vld [vmem:[#allocation7 + $0x158] sm:$0xff]
        %v3101 = vld [vmem:[#allocation7 + $0x160] sm:$0xff]
        %v3102 = vld [vmem:[#allocation7 + $0x168] sm:$0xff]
        %v3103 = vld [vmem:[#allocation7 + $0x170] sm:$0xff]
        %v3104 = vld [vmem:[#allocation7 + $0x178] sm:$0xff]
        %v3105 = vld [vmem:[#allocation7 + $0x180] sm:$0xff]
        %v3106 = vld [vmem:[#allocation7 + $0x188] sm:$0xff]
        %v3107 = vld [vmem:[#allocation7 + $0x190] sm:$0xff]
        %v3108 = vld [vmem:[#allocation7 + $0x198] sm:$0xff]
        %v3109 = vld [vmem:[#allocation7 + $0x1a0] sm:$0xff]
        %v3110 = vld [vmem:[#allocation7 + $0x1a8] sm:$0xff]
        %v3111 = vld [vmem:[#allocation7 + $0x1b0] sm:$0xff]
        %v3112 = vld [vmem:[#allocation7 + $0x1b8] sm:$0xff]
        %v3113 = vld [vmem:[#allocation7 + $0x1c0] sm:$0xff]
        %v3114 = vld [vmem:[#allocation7 + $0x1c8] sm:$0xff]
        %v3115 = vld [vmem:[#allocation7 + $0x1d0] sm:$0xff]
        %v3116 = vld [vmem:[#allocation7 + $0x1d8] sm:$0xff]
        %v3117 = vld [vmem:[#allocation7 + $0x1e0] sm:$0xff]
        %v3118 = vld [vmem:[#allocation7 + $0x1e8] sm:$0xff]
        %v3119 = vld [vmem:[#allocation7 + $0x1f0] sm:$0xff]
        %v3120 = vld [vmem:[#allocation7 + $0x1f8] sm:$0xff]
        %v3121 = vld [vmem:[#allocation7 + $0x200] sm:$0xff]
        %v3122 = vld [vmem:[#allocation7 + $0x208] sm:$0xff]
        %v3123 = vld [vmem:[#allocation7 + $0x210] sm:$0xff]
        %v3124 = vld [vmem:[#allocation7 + $0x218] sm:$0xff]
        %v3125 = vld [vmem:[#allocation7 + $0x220] sm:$0xff]
        %v3126 = vld [vmem:[#allocation7 + $0x228] sm:$0xff]
        %v3127 = vld [vmem:[#allocation7 + $0x230] sm:$0xff]
        %v3128 = vld [vmem:[#allocation7 + $0x238] sm:$0xff]
        %v3129 = vld [vmem:[#allocation7 + $0x240] sm:$0xff]
        %v3130 = vld [vmem:[#allocation7 + $0x248] sm:$0xff]
        %v3131 = vld [vmem:[#allocation7 + $0x250] sm:$0xff]
        %v3132 = vld [vmem:[#allocation7 + $0x258] sm:$0xff]
        %v3133 = vld [vmem:[#allocation7 + $0x260] sm:$0xff]
        %v3134 = vld [vmem:[#allocation7 + $0x268] sm:$0xff]
        %v3135 = vld [vmem:[#allocation7 + $0x270] sm:$0xff]
        %v3136 = vld [vmem:[#allocation7 + $0x278] sm:$0xff]
        %v3137 = vld [vmem:[#allocation7 + $0x280] sm:$0xff]
        %v3138 = vld [vmem:[#allocation7 + $0x288] sm:$0xff]
        %v3139 = vld [vmem:[#allocation7 + $0x290] sm:$0xff]
        %v3140 = vld [vmem:[#allocation7 + $0x298] sm:$0xff]
        %v3141 = vld [vmem:[#allocation7 + $0x2a0] sm:$0xff]
        %v3142 = vld [vmem:[#allocation7 + $0x2a8] sm:$0xff]
        %v3143 = vld [vmem:[#allocation7 + $0x2b0] sm:$0xff]
        %v3144 = vld [vmem:[#allocation7 + $0x2b8] sm:$0xff]
        %v3145 = vld [vmem:[#allocation7 + $0x2c0] sm:$0xff]
        %v3146 = vld [vmem:[#allocation7 + $0x2c8] sm:$0xff]
        %v3147 = vld [vmem:[#allocation7 + $0x2d0] sm:$0xff]
        %v3148 = vld [vmem:[#allocation7 + $0x2d8] sm:$0xff]
        %v3149 = vld [vmem:[#allocation7 + $0x2e0] sm:$0xff]
        %v3150 = vld [vmem:[#allocation7 + $0x2e8] sm:$0xff]
        %v3151 = vld [vmem:[#allocation7 + $0x2f0] sm:$0xff]
        %v3152 = vld [vmem:[#allocation7 + $0x2f8] sm:$0xff]
        %v3153 = vld [vmem:[#allocation8] sm:$0x3]
        %v3155 = vlaneseq
        %v3156 = vshrl.u32 %v3155, 7
        %v3157 = vsub.s32 0, %v3156
        %v3158 = vrot.slane %v3153, %v3157
        %v3159 = vlaneseq
        %v3160 = vshrl.u32 %v3159, 7
        %v3161 = vsub.s32 1, %v3160
        %v3162 = vrot.slane %v3153, %v3161
        %v3261 = vunpack.c.l.b16 %v3057
        %v3262 = vunpack.c.h.b16 %v3057
        %v3263 = vunpack.c.l.b16 %v3058
        %v3264 = vunpack.c.h.b16 %v3058
        %v3265 = vunpack.c.l.b16 %v3059
        %v3266 = vunpack.c.h.b16 %v3059
        %v3267 = vunpack.c.l.b16 %v3060
        %v3268 = vunpack.c.h.b16 %v3060
        %v3269 = vunpack.c.l.b16 %v3061
        %v3270 = vunpack.c.h.b16 %v3061
        %v3271 = vunpack.c.l.b16 %v3062
        %v3272 = vunpack.c.h.b16 %v3062
        %v3273 = vunpack.c.l.b16 %v3063
        %v3274 = vunpack.c.h.b16 %v3063
        %v3275 = vunpack.c.l.b16 %v3064
        %v3276 = vunpack.c.h.b16 %v3064
        %v3277 = vunpack.c.l.b16 %v3065
        %v3278 = vunpack.c.h.b16 %v3065
        %v3279 = vunpack.c.l.b16 %v3066
        %v3280 = vunpack.c.h.b16 %v3066
        %v3281 = vunpack.c.l.b16 %v3067
        %v3282 = vunpack.c.h.b16 %v3067
        %v3283 = vunpack.c.l.b16 %v3068
        %v3284 = vunpack.c.h.b16 %v3068
        %v3285 = vunpack.c.l.b16 %v3069
        %v3286 = vunpack.c.h.b16 %v3069
        %v3287 = vunpack.c.l.b16 %v3070
        %v3288 = vunpack.c.h.b16 %v3070
        %v3289 = vunpack.c.l.b16 %v3071
        %v3290 = vunpack.c.h.b16 %v3071
        %v3291 = vunpack.c.l.b16 %v3072
        %v3292 = vunpack.c.h.b16 %v3072
        %v3293 = vunpack.c.l.b16 %v3073
        %v3294 = vunpack.c.h.b16 %v3073
        %v3295 = vunpack.c.l.b16 %v3074
        %v3296 = vunpack.c.h.b16 %v3074
        %v3297 = vunpack.c.l.b16 %v3075
        %v3298 = vunpack.c.h.b16 %v3075
        %v3299 = vunpack.c.l.b16 %v3076
        %v3300 = vunpack.c.h.b16 %v3076
        %v3301 = vunpack.c.l.b16 %v3077
        %v3302 = vunpack.c.h.b16 %v3077
        %v3303 = vunpack.c.l.b16 %v3078
        %v3304 = vunpack.c.h.b16 %v3078
        %v3305 = vunpack.c.l.b16 %v3079
        %v3306 = vunpack.c.h.b16 %v3079
        %v3307 = vunpack.c.l.b16 %v3080
        %v3308 = vunpack.c.h.b16 %v3080
        %v3309 = vunpack.c.l.b16 %v3081
        %v3310 = vunpack.c.h.b16 %v3081
        %v3311 = vunpack.c.l.b16 %v3082
        %v3312 = vunpack.c.h.b16 %v3082
        %v3313 = vunpack.c.l.b16 %v3083
        %v3314 = vunpack.c.h.b16 %v3083
        %v3315 = vunpack.c.l.b16 %v3084
        %v3316 = vunpack.c.h.b16 %v3084
        %v3317 = vunpack.c.l.b16 %v3085
        %v3318 = vunpack.c.h.b16 %v3085
        %v3319 = vunpack.c.l.b16 %v3086
        %v3320 = vunpack.c.h.b16 %v3086
        %v3321 = vunpack.c.l.b16 %v3087
        %v3322 = vunpack.c.h.b16 %v3087
        %v3323 = vunpack.c.l.b16 %v3088
        %v3324 = vunpack.c.h.b16 %v3088
        %v3325 = vunpack.c.l.b16 %v3089
        %v3326 = vunpack.c.h.b16 %v3089
        %v3327 = vunpack.c.l.b16 %v3090
        %v3328 = vunpack.c.h.b16 %v3090
        %v3329 = vunpack.c.l.b16 %v3091
        %v3330 = vunpack.c.h.b16 %v3091
        %v3331 = vunpack.c.l.b16 %v3092
        %v3332 = vunpack.c.h.b16 %v3092
        %v3333 = vunpack.c.l.b16 %v3093
        %v3334 = vunpack.c.h.b16 %v3093
        %v3335 = vunpack.c.l.b16 %v3094
        %v3336 = vunpack.c.h.b16 %v3094
        %v3337 = vunpack.c.l.b16 %v3095
        %v3338 = vunpack.c.h.b16 %v3095
        %v3339 = vunpack.c.l.b16 %v3096
        %v3340 = vunpack.c.h.b16 %v3096
        %v3341 = vunpack.c.l.b16 %v3097
        %v3342 = vunpack.c.h.b16 %v3097
        %v3343 = vunpack.c.l.b16 %v3098
        %v3344 = vunpack.c.h.b16 %v3098
        %v3345 = vunpack.c.l.b16 %v3099
        %v3346 = vunpack.c.h.b16 %v3099
        %v3347 = vunpack.c.l.b16 %v3100
        %v3348 = vunpack.c.h.b16 %v3100
        %v3349 = vunpack.c.l.b16 %v3101
        %v3350 = vunpack.c.h.b16 %v3101
        %v3351 = vunpack.c.l.b16 %v3102
        %v3352 = vunpack.c.h.b16 %v3102
        %v3353 = vunpack.c.l.b16 %v3103
        %v3354 = vunpack.c.h.b16 %v3103
        %v3355 = vunpack.c.l.b16 %v3104
        %v3356 = vunpack.c.h.b16 %v3104
        %v3357 = vunpack.c.l.b16 %v3105
        %v3358 = vunpack.c.h.b16 %v3105
        %v3359 = vunpack.c.l.b16 %v3106
        %v3360 = vunpack.c.h.b16 %v3106
        %v3361 = vunpack.c.l.b16 %v3107
        %v3362 = vunpack.c.h.b16 %v3107
        %v3363 = vunpack.c.l.b16 %v3108
        %v3364 = vunpack.c.h.b16 %v3108
        %v3365 = vunpack.c.l.b16 %v3109
        %v3366 = vunpack.c.h.b16 %v3109
        %v3367 = vunpack.c.l.b16 %v3110
        %v3368 = vunpack.c.h.b16 %v3110
        %v3369 = vunpack.c.l.b16 %v3111
        %v3370 = vunpack.c.h.b16 %v3111
        %v3371 = vunpack.c.l.b16 %v3112
        %v3372 = vunpack.c.h.b16 %v3112
        %v3373 = vunpack.c.l.b16 %v3113
        %v3374 = vunpack.c.h.b16 %v3113
        %v3375 = vunpack.c.l.b16 %v3114
        %v3376 = vunpack.c.h.b16 %v3114
        %v3377 = vunpack.c.l.b16 %v3115
        %v3378 = vunpack.c.h.b16 %v3115
        %v3379 = vunpack.c.l.b16 %v3116
        %v3380 = vunpack.c.h.b16 %v3116
        %v3381 = vunpack.c.l.b16 %v3117
        %v3382 = vunpack.c.h.b16 %v3117
        %v3383 = vunpack.c.l.b16 %v3118
        %v3384 = vunpack.c.h.b16 %v3118
        %v3385 = vunpack.c.l.b16 %v3119
        %v3386 = vunpack.c.h.b16 %v3119
        %v3387 = vunpack.c.l.b16 %v3120
        %v3388 = vunpack.c.h.b16 %v3120
        %v3389 = vunpack.c.l.b16 %v3121
        %v3390 = vunpack.c.h.b16 %v3121
        %v3391 = vunpack.c.l.b16 %v3122
        %v3392 = vunpack.c.h.b16 %v3122
        %v3393 = vunpack.c.l.b16 %v3123
        %v3394 = vunpack.c.h.b16 %v3123
        %v3395 = vunpack.c.l.b16 %v3124
        %v3396 = vunpack.c.h.b16 %v3124
        %v3397 = vunpack.c.l.b16 %v3125
        %v3398 = vunpack.c.h.b16 %v3125
        %v3399 = vunpack.c.l.b16 %v3126
        %v3400 = vunpack.c.h.b16 %v3126
        %v3401 = vunpack.c.l.b16 %v3127
        %v3402 = vunpack.c.h.b16 %v3127
        %v3403 = vunpack.c.l.b16 %v3128
        %v3404 = vunpack.c.h.b16 %v3128
        %v3405 = vunpack.c.l.b16 %v3129
        %v3406 = vunpack.c.h.b16 %v3129
        %v3407 = vunpack.c.l.b16 %v3130
        %v3408 = vunpack.c.h.b16 %v3130
        %v3409 = vunpack.c.l.b16 %v3131
        %v3410 = vunpack.c.h.b16 %v3131
        %v3411 = vunpack.c.l.b16 %v3132
        %v3412 = vunpack.c.h.b16 %v3132
        %v3413 = vunpack.c.l.b16 %v3133
        %v3414 = vunpack.c.h.b16 %v3133
        %v3415 = vunpack.c.l.b16 %v3134
        %v3416 = vunpack.c.h.b16 %v3134
        %v3417 = vunpack.c.l.b16 %v3135
        %v3418 = vunpack.c.h.b16 %v3135
        %v3419 = vunpack.c.l.b16 %v3136
        %v3420 = vunpack.c.h.b16 %v3136
        %v3421 = vunpack.c.l.b16 %v3137
        %v3422 = vunpack.c.h.b16 %v3137
        %v3423 = vunpack.c.l.b16 %v3138
        %v3424 = vunpack.c.h.b16 %v3138
        %v3425 = vunpack.c.l.b16 %v3139
        %v3426 = vunpack.c.h.b16 %v3139
        %v3427 = vunpack.c.l.b16 %v3140
        %v3428 = vunpack.c.h.b16 %v3140
        %v3429 = vunpack.c.l.b16 %v3141
        %v3430 = vunpack.c.h.b16 %v3141
        %v3431 = vunpack.c.l.b16 %v3142
        %v3432 = vunpack.c.h.b16 %v3142
        %v3433 = vunpack.c.l.b16 %v3143
        %v3434 = vunpack.c.h.b16 %v3143
        %v3435 = vunpack.c.l.b16 %v3144
        %v3436 = vunpack.c.h.b16 %v3144
        %v3437 = vunpack.c.l.b16 %v3145
        %v3438 = vunpack.c.h.b16 %v3145
        %v3439 = vunpack.c.l.b16 %v3146
        %v3440 = vunpack.c.h.b16 %v3146
        %v3441 = vunpack.c.l.b16 %v3147
        %v3442 = vunpack.c.h.b16 %v3147
        %v3443 = vunpack.c.l.b16 %v3148
        %v3444 = vunpack.c.h.b16 %v3148
        %v3445 = vunpack.c.l.b16 %v3149
        %v3446 = vunpack.c.h.b16 %v3149
        %v3447 = vunpack.c.l.b16 %v3150
        %v3448 = vunpack.c.h.b16 %v3150
        %v3449 = vunpack.c.l.b16 %v3151
        %v3450 = vunpack.c.h.b16 %v3151
        %v3451 = vunpack.c.l.b16 %v3152
        %v3452 = vunpack.c.h.b16 %v3152
        %v3453 = vpack.c.b16 %v3263, %v3261
        %v3454 = vpack.c.b16 %v3264, %v3262
        %v3455 = vpack.c.b16 %v3267, %v3265
        %v3456 = vpack.c.b16 %v3268, %v3266
        %v3457 = vpack.c.b16 %v3271, %v3269
        %v3458 = vpack.c.b16 %v3272, %v3270
        %v3459 = vpack.c.b16 %v3275, %v3273
        %v3460 = vpack.c.b16 %v3276, %v3274
        %v3461 = vpack.c.b16 %v3279, %v3277
        %v3462 = vpack.c.b16 %v3280, %v3278
        %v3463 = vpack.c.b16 %v3283, %v3281
        %v3464 = vpack.c.b16 %v3284, %v3282
        %v3465 = vpack.c.b16 %v3287, %v3285
        %v3466 = vpack.c.b16 %v3288, %v3286
        %v3467 = vpack.c.b16 %v3291, %v3289
        %v3468 = vpack.c.b16 %v3292, %v3290
        %v3469 = vpack.c.b16 %v3295, %v3293
        %v3470 = vpack.c.b16 %v3296, %v3294
        %v3471 = vpack.c.b16 %v3299, %v3297
        %v3472 = vpack.c.b16 %v3300, %v3298
        %v3473 = vpack.c.b16 %v3303, %v3301
        %v3474 = vpack.c.b16 %v3304, %v3302
        %v3475 = vpack.c.b16 %v3307, %v3305
        %v3476 = vpack.c.b16 %v3308, %v3306
        %v3477 = vpack.c.b16 %v3311, %v3309
        %v3478 = vpack.c.b16 %v3312, %v3310
        %v3479 = vpack.c.b16 %v3315, %v3313
        %v3480 = vpack.c.b16 %v3316, %v3314
        %v3481 = vpack.c.b16 %v3319, %v3317
        %v3482 = vpack.c.b16 %v3320, %v3318
        %v3483 = vpack.c.b16 %v3323, %v3321
        %v3484 = vpack.c.b16 %v3324, %v3322
        %v3485 = vpack.c.b16 %v3327, %v3325
        %v3486 = vpack.c.b16 %v3328, %v3326
        %v3487 = vpack.c.b16 %v3331, %v3329
        %v3488 = vpack.c.b16 %v3332, %v3330
        %v3489 = vpack.c.b16 %v3335, %v3333
        %v3490 = vpack.c.b16 %v3336, %v3334
        %v3491 = vpack.c.b16 %v3339, %v3337
        %v3492 = vpack.c.b16 %v3340, %v3338
        %v3493 = vpack.c.b16 %v3343, %v3341
        %v3494 = vpack.c.b16 %v3344, %v3342
        %v3495 = vpack.c.b16 %v3347, %v3345
        %v3496 = vpack.c.b16 %v3348, %v3346
        %v3497 = vpack.c.b16 %v3351, %v3349
        %v3498 = vpack.c.b16 %v3352, %v3350
        %v3499 = vpack.c.b16 %v3355, %v3353
        %v3500 = vpack.c.b16 %v3356, %v3354
        %v3501 = vpack.c.b16 %v3359, %v3357
        %v3502 = vpack.c.b16 %v3360, %v3358
        %v3503 = vpack.c.b16 %v3363, %v3361
        %v3504 = vpack.c.b16 %v3364, %v3362
        %v3505 = vpack.c.b16 %v3367, %v3365
        %v3506 = vpack.c.b16 %v3368, %v3366
        %v3507 = vpack.c.b16 %v3371, %v3369
        %v3508 = vpack.c.b16 %v3372, %v3370
        %v3509 = vpack.c.b16 %v3375, %v3373
        %v3510 = vpack.c.b16 %v3376, %v3374
        %v3511 = vpack.c.b16 %v3379, %v3377
        %v3512 = vpack.c.b16 %v3380, %v3378
        %v3513 = vpack.c.b16 %v3383, %v3381
        %v3514 = vpack.c.b16 %v3384, %v3382
        %v3515 = vpack.c.b16 %v3387, %v3385
        %v3516 = vpack.c.b16 %v3388, %v3386
        %v3517 = vpack.c.b16 %v3391, %v3389
        %v3518 = vpack.c.b16 %v3392, %v3390
        %v3519 = vpack.c.b16 %v3395, %v3393
        %v3520 = vpack.c.b16 %v3396, %v3394
        %v3521 = vpack.c.b16 %v3399, %v3397
        %v3522 = vpack.c.b16 %v3400, %v3398
        %v3523 = vpack.c.b16 %v3403, %v3401
        %v3524 = vpack.c.b16 %v3404, %v3402
        %v3525 = vpack.c.b16 %v3407, %v3405
        %v3526 = vpack.c.b16 %v3408, %v3406
        %v3527 = vpack.c.b16 %v3411, %v3409
        %v3528 = vpack.c.b16 %v3412, %v3410
        %v3529 = vpack.c.b16 %v3415, %v3413
        %v3530 = vpack.c.b16 %v3416, %v3414
        %v3531 = vpack.c.b16 %v3419, %v3417
        %v3532 = vpack.c.b16 %v3420, %v3418
        %v3533 = vpack.c.b16 %v3423, %v3421
        %v3534 = vpack.c.b16 %v3424, %v3422
        %v3535 = vpack.c.b16 %v3427, %v3425
        %v3536 = vpack.c.b16 %v3428, %v3426
        %v3537 = vpack.c.b16 %v3431, %v3429
        %v3538 = vpack.c.b16 %v3432, %v3430
        %v3539 = vpack.c.b16 %v3435, %v3433
        %v3540 = vpack.c.b16 %v3436, %v3434
        %v3541 = vpack.c.b16 %v3439, %v3437
        %v3542 = vpack.c.b16 %v3440, %v3438
        %v3543 = vpack.c.b16 %v3443, %v3441
        %v3544 = vpack.c.b16 %v3444, %v3442
        %v3545 = vpack.c.b16 %v3447, %v3445
        %v3546 = vpack.c.b16 %v3448, %v3446
        %v3547 = vpack.c.b16 %v3451, %v3449
        %v3548 = vpack.c.b16 %v3452, %v3450
        %3645 = vmatprep.subr.bf16.mxu0 %v3468
        %3646 = vmatpush1.bf16.msra.mxu0 %v3467
        %3647 = vmatprep.subr.bf16.mxu0 %v3466
        %3648 = vmatpush1.bf16.msra.mxu0 %v3465
        %3649 = vmatprep.subr.bf16.mxu0 %v3464
        %3650 = vmatpush1.bf16.msra.mxu0 %v3463
        %3651 = vmatprep.subr.bf16.mxu0 %v3462
        %3652 = vmatpush1.bf16.msra.mxu0 %v3461
        %3653 = vmatprep.subr.bf16.mxu0 %v3460
        %3654 = vmatpush1.bf16.msra.mxu0 %v3459
        %3655 = vmatprep.subr.bf16.mxu0 %v3458
        %3656 = vmatpush1.bf16.msra.mxu0 %v3457
        %3657 = vmatprep.subr.bf16.mxu0 %v3456
        %3658 = vmatpush1.bf16.msra.mxu0 %v3455
        %3659 = vmatprep.subr.bf16.mxu0 %v3454
        %3660 = vmatpush1.bf16.msra.mxu0 %v3453
        %3661 = vmatprep.subr.bf16.mxu0 %v3484
        %3662 = vmatpush2.bf16.msra.mxu0 %v3483
        %3663 = vmatprep.subr.bf16.mxu0 %v3482
        %3664 = vmatpush2.bf16.msra.mxu0 %v3481
        %3665 = vmatprep.subr.bf16.mxu0 %v3480
        %3666 = vmatpush2.bf16.msra.mxu0 %v3479
        %3667 = vmatprep.subr.bf16.mxu0 %v3478
        %3668 = vmatpush2.bf16.msra.mxu0 %v3477
        %3669 = vmatprep.subr.bf16.mxu0 %v3476
        %3670 = vmatpush2.bf16.msra.mxu0 %v3475
        %3671 = vmatprep.subr.bf16.mxu0 %v3474
        %3672 = vmatpush2.bf16.msra.mxu0 %v3473
        %3673 = vmatprep.subr.bf16.mxu0 %v3472
        %3674 = vmatpush2.bf16.msra.mxu0 %v3471
        %3675 = vmatprep.subr.bf16.mxu0 %v3470
        %3676 = vmatpush2.bf16.msra.mxu0 %v3469
        %3677 = vmatprep.mubr.bf16.mxu0 %v3042
        %3678 = vmatmul.mubr.bf16.gmra.mxu0 %v3041
        %v3679 = vpop.f32.mrf.mxu0
        %v3680 = vadd.f32 %v3158, %v3679
        %v3681 = vpop.f32.mrf.mxu0
        %v3682 = vadd.f32 %v3162, %v3681
        %v3683 = vpop.f32.mrf.mxu0
        %v3684 = vadd.f32 %v3158, %v3683
        %v3685 = vpop.f32.mrf.mxu0
        %v3686 = vadd.f32 %v3162, %v3685
        %3687 = vmatprep.mubr.bf16.mxu0 %v3046
        %3688 = vmatmul.mubr.bf16.gmra.mxu0 %v3045
        %v3689 = vpop.f32.mrf.mxu0
        %v3690 = vadd.f32 %v3158, %v3689
        %v3691 = vpop.f32.mrf.mxu0
        %v3692 = vadd.f32 %v3162, %v3691
        %v3693 = vpop.f32.mrf.mxu0
        %v3694 = vadd.f32 %v3158, %v3693
        %v3695 = vpop.f32.mrf.mxu0
        %v3696 = vadd.f32 %v3162, %v3695
        %3697 = vmatprep.mubr.bf16.mxu0 %v3050
        %3698 = vmatmul.mubr.bf16.gmra.mxu0 %v3049
        %v3699 = vpop.f32.mrf.mxu0
        %v3700 = vadd.f32 %v3158, %v3699
        %v3701 = vpop.f32.mrf.mxu0
        %v3702 = vadd.f32 %v3162, %v3701
        %v3703 = vpop.f32.mrf.mxu0
        %v3704 = vadd.f32 %v3158, %v3703
        %v3705 = vpop.f32.mrf.mxu0
        %v3706 = vadd.f32 %v3162, %v3705
        %3707 = vmatprep.mubr.bf16.mxu0 %v3054
        %3708 = vmatmul.mubr.bf16.gmra.mxu0 %v3053
        %v3709 = vpop.f32.mrf.mxu0
        %v3710 = vadd.f32 %v3158, %v3709
        %v3711 = vpop.f32.mrf.mxu0
        %v3712 = vadd.f32 %v3162, %v3711
        %v3713 = vpop.f32.mrf.mxu0
        %v3714 = vadd.f32 %v3158, %v3713
        %v3715 = vpop.f32.mrf.mxu0
        %v3716 = vadd.f32 %v3162, %v3715
        %3717 = vdwg.mxu0
        %3718 = vmatprep.subr.bf16.mxu0 %v3500
        %3719 = vmatpush1.bf16.msra.mxu0 %v3499
        %3720 = vmatprep.subr.bf16.mxu0 %v3498
        %3721 = vmatpush1.bf16.msra.mxu0 %v3497
        %3722 = vmatprep.subr.bf16.mxu0 %v3496
        %3723 = vmatpush1.bf16.msra.mxu0 %v3495
        %3724 = vmatprep.subr.bf16.mxu0 %v3494
        %3725 = vmatpush1.bf16.msra.mxu0 %v3493
        %3726 = vmatprep.subr.bf16.mxu0 %v3492
        %3727 = vmatpush1.bf16.msra.mxu0 %v3491
        %3728 = vmatprep.subr.bf16.mxu0 %v3490
        %3729 = vmatpush1.bf16.msra.mxu0 %v3489
        %3730 = vmatprep.subr.bf16.mxu0 %v3488
        %3731 = vmatpush1.bf16.msra.mxu0 %v3487
        %3732 = vmatprep.subr.bf16.mxu0 %v3486
        %3733 = vmatpush1.bf16.msra.mxu0 %v3485
        %3734 = vmatprep.subr.bf16.mxu0 %v3516
        %3735 = vmatpush2.bf16.msra.mxu0 %v3515
        %3736 = vmatprep.subr.bf16.mxu0 %v3514
        %3737 = vmatpush2.bf16.msra.mxu0 %v3513
        %3738 = vmatprep.subr.bf16.mxu0 %v3512
        %3739 = vmatpush2.bf16.msra.mxu0 %v3511
        %3740 = vmatprep.subr.bf16.mxu0 %v3510
        %3741 = vmatpush2.bf16.msra.mxu0 %v3509
        %3742 = vmatprep.subr.bf16.mxu0 %v3508
        %3743 = vmatpush2.bf16.msra.mxu0 %v3507
        %3744 = vmatprep.subr.bf16.mxu0 %v3506
        %3745 = vmatpush2.bf16.msra.mxu0 %v3505
        %3746 = vmatprep.subr.bf16.mxu0 %v3504
        %3747 = vmatpush2.bf16.msra.mxu0 %v3503
        %3748 = vmatprep.subr.bf16.mxu0 %v3502
        %3749 = vmatpush2.bf16.msra.mxu0 %v3501
        %3750 = vmatprep.mubr.bf16.mxu0 %v2920
        %3751 = vmatmul.mubr.bf16.gmra.mxu0 %v2919
        %v3752 = vpop.f32.mrf.mxu0
        %v3753 = vadd.f32 %v3680, %v3752
        %v3754 = vpop.f32.mrf.mxu0
        %v3755 = vadd.f32 %v3682, %v3754
        %v3756 = vpop.f32.mrf.mxu0
        %v3757 = vadd.f32 %v3684, %v3756
        %v3758 = vpop.f32.mrf.mxu0
        %v3759 = vadd.f32 %v3686, %v3758
        %3760 = vmatprep.mubr.bf16.mxu0 %v2922
        %3761 = vmatmul.mubr.bf16.gmra.mxu0 %v2921
        %v3762 = vpop.f32.mrf.mxu0
        %v3763 = vadd.f32 %v3690, %v3762
        %v3764 = vpop.f32.mrf.mxu0
        %v3765 = vadd.f32 %v3692, %v3764
        %v3766 = vpop.f32.mrf.mxu0
        %v3767 = vadd.f32 %v3694, %v3766
        %v3768 = vpop.f32.mrf.mxu0
        %v3769 = vadd.f32 %v3696, %v3768
        %3770 = vmatprep.mubr.bf16.mxu0 %v2924
        %3771 = vmatmul.mubr.bf16.gmra.mxu0 %v2923
        %v3772 = vpop.f32.mrf.mxu0
        %v3773 = vadd.f32 %v3700, %v3772
        %v3774 = vpop.f32.mrf.mxu0
        %v3775 = vadd.f32 %v3702, %v3774
        %v3776 = vpop.f32.mrf.mxu0
        %v3777 = vadd.f32 %v3704, %v3776
        %v3778 = vpop.f32.mrf.mxu0
        %v3779 = vadd.f32 %v3706, %v3778
        %3780 = vmatprep.mubr.bf16.mxu0 %v2926
        %3781 = vmatmul.mubr.bf16.gmra.mxu0 %v2925
        %v3782 = vpop.f32.mrf.mxu0
        %v3783 = vadd.f32 %v3710, %v3782
        %v3784 = vpop.f32.mrf.mxu0
        %v3785 = vadd.f32 %v3712, %v3784
        %v3786 = vpop.f32.mrf.mxu0
        %v3787 = vadd.f32 %v3714, %v3786
        %v3788 = vpop.f32.mrf.mxu0
        %v3789 = vadd.f32 %v3716, %v3788
        %3790 = vdwg.mxu0
        %3791 = vmatprep.subr.bf16.mxu0 %v3532
        %3792 = vmatpush1.bf16.msra.mxu0 %v3531
        %3793 = vmatprep.subr.bf16.mxu0 %v3530
        %3794 = vmatpush1.bf16.msra.mxu0 %v3529
        %3795 = vmatprep.subr.bf16.mxu0 %v3528
        %3796 = vmatpush1.bf16.msra.mxu0 %v3527
        %3797 = vmatprep.subr.bf16.mxu0 %v3526
        %3798 = vmatpush1.bf16.msra.mxu0 %v3525
        %3799 = vmatprep.subr.bf16.mxu0 %v3524
        %3800 = vmatpush1.bf16.msra.mxu0 %v3523
        %3801 = vmatprep.subr.bf16.mxu0 %v3522
        %3802 = vmatpush1.bf16.msra.mxu0 %v3521
        %3803 = vmatprep.subr.bf16.mxu0 %v3520
        %3804 = vmatpush1.bf16.msra.mxu0 %v3519
        %3805 = vmatprep.subr.bf16.mxu0 %v3518
        %3806 = vmatpush1.bf16.msra.mxu0 %v3517
        %3807 = vmatprep.subr.bf16.mxu0 %v3548
        %3808 = vmatpush2.bf16.msra.mxu0 %v3547
        %3809 = vmatprep.subr.bf16.mxu0 %v3546
        %3810 = vmatpush2.bf16.msra.mxu0 %v3545
        %3811 = vmatprep.subr.bf16.mxu0 %v3544
        %3812 = vmatpush2.bf16.msra.mxu0 %v3543
        %3813 = vmatprep.subr.bf16.mxu0 %v3542
        %3814 = vmatpush2.bf16.msra.mxu0 %v3541
        %3815 = vmatprep.subr.bf16.mxu0 %v3540
        %3816 = vmatpush2.bf16.msra.mxu0 %v3539
        %3817 = vmatprep.subr.bf16.mxu0 %v3538
        %3818 = vmatpush2.bf16.msra.mxu0 %v3537
        %3819 = vmatprep.subr.bf16.mxu0 %v3536
        %3820 = vmatpush2.bf16.msra.mxu0 %v3535
        %3821 = vmatprep.subr.bf16.mxu0 %v3534
        %3822 = vmatpush2.bf16.msra.mxu0 %v3533
        %3823 = vmatprep.mubr.bf16.mxu0 %v3044
        %3824 = vmatmul.mubr.bf16.gmra.mxu0 %v3043
        %v3825 = vpop.f32.mrf.mxu0
        %v3826 = vadd.f32 %v3753, %v3825
        %v3827 = vpop.f32.mrf.mxu0
        %v3828 = vadd.f32 %v3755, %v3827
        %v3829 = vpop.f32.mrf.mxu0
        %v3830 = vadd.f32 %v3757, %v3829
        %v3831 = vpop.f32.mrf.mxu0
        %v3832 = vadd.f32 %v3759, %v3831
        %3833 = vmatprep.mubr.bf16.mxu0 %v3048
        %3834 = vmatmul.mubr.bf16.gmra.mxu0 %v3047
        %v3835 = vpop.f32.mrf.mxu0
        %v3836 = vadd.f32 %v3763, %v3835
        %v3837 = vpop.f32.mrf.mxu0
        %v3838 = vadd.f32 %v3765, %v3837
        %v3839 = vpop.f32.mrf.mxu0
        %v3840 = vadd.f32 %v3767, %v3839
        %v3841 = vpop.f32.mrf.mxu0
        %v3842 = vadd.f32 %v3769, %v3841
        %3843 = vmatprep.mubr.bf16.mxu0 %v3052
        %3844 = vmatmul.mubr.bf16.gmra.mxu0 %v3051
        %v3845 = vpop.f32.mrf.mxu0
        %v3846 = vadd.f32 %v3773, %v3845
        %v3847 = vpop.f32.mrf.mxu0
        %v3848 = vadd.f32 %v3775, %v3847
        %v3849 = vpop.f32.mrf.mxu0
        %v3850 = vadd.f32 %v3777, %v3849
        %v3851 = vpop.f32.mrf.mxu0
        %v3852 = vadd.f32 %v3779, %v3851
        %3853 = vmatprep.mubr.bf16.mxu0 %v3056
        %3854 = vmatmul.mubr.bf16.gmra.mxu0 %v3055
        %v3855 = vpop.f32.mrf.mxu0
        %v3856 = vadd.f32 %v3783, %v3855
        %v3857 = vpop.f32.mrf.mxu0
        %v3858 = vadd.f32 %v3785, %v3857
        %v3859 = vpop.f32.mrf.mxu0
        %v3860 = vadd.f32 %v3787, %v3859
        %v3861 = vpop.f32.mrf.mxu0
        %v3862 = vadd.f32 %v3789, %v3861
        %3863 = vdwg.mxu0
        %v3864 = vmax.f32 %v3826, 0.0
        %v3865 = vmax.f32 %v3828, 0.0
        %v3866 = vmax.f32 %v3830, 0.0
        %v3867 = vmax.f32 %v3832, 0.0
        %v3868 = vmax.f32 %v3836, 0.0
        %v3869 = vmax.f32 %v3838, 0.0
        %v3870 = vmax.f32 %v3840, 0.0
        %v3871 = vmax.f32 %v3842, 0.0
        %v3872 = vmax.f32 %v3846, 0.0
        %v3873 = vmax.f32 %v3848, 0.0
        %v3874 = vmax.f32 %v3850, 0.0
        %v3875 = vmax.f32 %v3852, 0.0
        %v3876 = vmax.f32 %v3856, 0.0
        %v3877 = vmax.f32 %v3858, 0.0
        %v3878 = vmax.f32 %v3860, 0.0
        %v3879 = vmax.f32 %v3862, 0.0
        %v3880 = vpack.c.bf16 %v3864, 0.0
        %v3881 = vpack.c.bf16 %v3865, 0.0
        %v3882 = vpack.c.bf16 %v3866, %v3864
        %v3883 = vpack.c.bf16 %v3867, %v3865
        %v3884 = vpack.c.bf16 %v3868, %v3866
        %v3885 = vpack.c.bf16 %v3869, %v3867
        %v3886 = vpack.c.bf16 %v3870, %v3868
        %v3887 = vpack.c.bf16 %v3871, %v3869
        %v3888 = vpack.c.bf16 %v3872, %v3870
        %v3889 = vpack.c.bf16 %v3873, %v3871
        %v3890 = vpack.c.bf16 %v3874, %v3872
        %v3891 = vpack.c.bf16 %v3875, %v3873
        %v3892 = vpack.c.bf16 %v3876, %v3874
        %v3893 = vpack.c.bf16 %v3877, %v3875
        %v3894 = vpack.c.bf16 %v3878, %v3876
        %v3895 = vpack.c.bf16 %v3879, %v3877
        %v3896 = vpack.c.bf16 0.0, %v3878
        %v3897 = vpack.c.bf16 0.0, %v3879
        %v3898 = vld [vmem:[#allocation10] sm:$0xff]
        %v3899 = vld [vmem:[#allocation10 + $0x8] sm:$0xff]
        %v3900 = vld [vmem:[#allocation10 + $0x10] sm:$0xff]
        %v3901 = vld [vmem:[#allocation10 + $0x18] sm:$0xff]
        %v3902 = vld [vmem:[#allocation10 + $0x20] sm:$0xff]
        %v3903 = vld [vmem:[#allocation10 + $0x28] sm:$0xff]
        %v3904 = vld [vmem:[#allocation10 + $0x30] sm:$0xff]
        %v3905 = vld [vmem:[#allocation10 + $0x38] sm:$0xff]
        %v3906 = vld [vmem:[#allocation10 + $0x40] sm:$0xff]
        %v3907 = vld [vmem:[#allocation10 + $0x48] sm:$0xff]
        %v3908 = vld [vmem:[#allocation10 + $0x50] sm:$0xff]
        %v3909 = vld [vmem:[#allocation10 + $0x58] sm:$0xff]
        %v3910 = vld [vmem:[#allocation10 + $0x60] sm:$0xff]
        %v3911 = vld [vmem:[#allocation10 + $0x68] sm:$0xff]
        %v3912 = vld [vmem:[#allocation10 + $0x70] sm:$0xff]
        %v3913 = vld [vmem:[#allocation10 + $0x78] sm:$0xff]
        %v3914 = vld [vmem:[#allocation10 + $0x80] sm:$0xff]
        %v3915 = vld [vmem:[#allocation10 + $0x88] sm:$0xff]
        %v3916 = vld [vmem:[#allocation10 + $0x90] sm:$0xff]
        %v3917 = vld [vmem:[#allocation10 + $0x98] sm:$0xff]
        %v3918 = vld [vmem:[#allocation10 + $0xa0] sm:$0xff]
        %v3919 = vld [vmem:[#allocation10 + $0xa8] sm:$0xff]
        %v3920 = vld [vmem:[#allocation10 + $0xb0] sm:$0xff]
        %v3921 = vld [vmem:[#allocation10 + $0xb8] sm:$0xff]
        %v3922 = vld [vmem:[#allocation10 + $0xc0] sm:$0xff]
        %v3923 = vld [vmem:[#allocation10 + $0xc8] sm:$0xff]
        %v3924 = vld [vmem:[#allocation10 + $0xd0] sm:$0xff]
        %v3925 = vld [vmem:[#allocation10 + $0xd8] sm:$0xff]
        %v3926 = vld [vmem:[#allocation10 + $0xe0] sm:$0xff]
        %v3927 = vld [vmem:[#allocation10 + $0xe8] sm:$0xff]
        %v3928 = vld [vmem:[#allocation10 + $0xf0] sm:$0xff]
        %v3929 = vld [vmem:[#allocation10 + $0xf8] sm:$0xff]
        %v3930 = vld [vmem:[#allocation10 + $0x100] sm:$0xff]
        %v3931 = vld [vmem:[#allocation10 + $0x108] sm:$0xff]
        %v3932 = vld [vmem:[#allocation10 + $0x110] sm:$0xff]
        %v3933 = vld [vmem:[#allocation10 + $0x118] sm:$0xff]
        %v3934 = vld [vmem:[#allocation10 + $0x120] sm:$0xff]
        %v3935 = vld [vmem:[#allocation10 + $0x128] sm:$0xff]
        %v3936 = vld [vmem:[#allocation10 + $0x130] sm:$0xff]
        %v3937 = vld [vmem:[#allocation10 + $0x138] sm:$0xff]
        %v3938 = vld [vmem:[#allocation10 + $0x140] sm:$0xff]
        %v3939 = vld [vmem:[#allocation10 + $0x148] sm:$0xff]
        %v3940 = vld [vmem:[#allocation10 + $0x150] sm:$0xff]
        %v3941 = vld [vmem:[#allocation10 + $0x158] sm:$0xff]
        %v3942 = vld [vmem:[#allocation10 + $0x160] sm:$0xff]
        %v3943 = vld [vmem:[#allocation10 + $0x168] sm:$0xff]
        %v3944 = vld [vmem:[#allocation10 + $0x170] sm:$0xff]
        %v3945 = vld [vmem:[#allocation10 + $0x178] sm:$0xff]
        %v3946 = vld [vmem:[#allocation10 + $0x180] sm:$0xff]
        %v3947 = vld [vmem:[#allocation10 + $0x188] sm:$0xff]
        %v3948 = vld [vmem:[#allocation10 + $0x190] sm:$0xff]
        %v3949 = vld [vmem:[#allocation10 + $0x198] sm:$0xff]
        %v3950 = vld [vmem:[#allocation10 + $0x1a0] sm:$0xff]
        %v3951 = vld [vmem:[#allocation10 + $0x1a8] sm:$0xff]
        %v3952 = vld [vmem:[#allocation10 + $0x1b0] sm:$0xff]
        %v3953 = vld [vmem:[#allocation10 + $0x1b8] sm:$0xff]
        %v3954 = vld [vmem:[#allocation10 + $0x1c0] sm:$0xff]
        %v3955 = vld [vmem:[#allocation10 + $0x1c8] sm:$0xff]
        %v3956 = vld [vmem:[#allocation10 + $0x1d0] sm:$0xff]
        %v3957 = vld [vmem:[#allocation10 + $0x1d8] sm:$0xff]
        %v3958 = vld [vmem:[#allocation10 + $0x1e0] sm:$0xff]
        %v3959 = vld [vmem:[#allocation10 + $0x1e8] sm:$0xff]
        %v3960 = vld [vmem:[#allocation10 + $0x1f0] sm:$0xff]
        %v3961 = vld [vmem:[#allocation10 + $0x1f8] sm:$0xff]
        %v3962 = vld [vmem:[#allocation10 + $0x200] sm:$0xff]
        %v3963 = vld [vmem:[#allocation10 + $0x208] sm:$0xff]
        %v3964 = vld [vmem:[#allocation10 + $0x210] sm:$0xff]
        %v3965 = vld [vmem:[#allocation10 + $0x218] sm:$0xff]
        %v3966 = vld [vmem:[#allocation10 + $0x220] sm:$0xff]
        %v3967 = vld [vmem:[#allocation10 + $0x228] sm:$0xff]
        %v3968 = vld [vmem:[#allocation10 + $0x230] sm:$0xff]
        %v3969 = vld [vmem:[#allocation10 + $0x238] sm:$0xff]
        %v3970 = vld [vmem:[#allocation10 + $0x240] sm:$0xff]
        %v3971 = vld [vmem:[#allocation10 + $0x248] sm:$0xff]
        %v3972 = vld [vmem:[#allocation10 + $0x250] sm:$0xff]
        %v3973 = vld [vmem:[#allocation10 + $0x258] sm:$0xff]
        %v3974 = vld [vmem:[#allocation10 + $0x260] sm:$0xff]
        %v3975 = vld [vmem:[#allocation10 + $0x268] sm:$0xff]
        %v3976 = vld [vmem:[#allocation10 + $0x270] sm:$0xff]
        %v3977 = vld [vmem:[#allocation10 + $0x278] sm:$0xff]
        %v3978 = vld [vmem:[#allocation10 + $0x280] sm:$0xff]
        %v3979 = vld [vmem:[#allocation10 + $0x288] sm:$0xff]
        %v3980 = vld [vmem:[#allocation10 + $0x290] sm:$0xff]
        %v3981 = vld [vmem:[#allocation10 + $0x298] sm:$0xff]
        %v3982 = vld [vmem:[#allocation10 + $0x2a0] sm:$0xff]
        %v3983 = vld [vmem:[#allocation10 + $0x2a8] sm:$0xff]
        %v3984 = vld [vmem:[#allocation10 + $0x2b0] sm:$0xff]
        %v3985 = vld [vmem:[#allocation10 + $0x2b8] sm:$0xff]
        %v3986 = vld [vmem:[#allocation10 + $0x2c0] sm:$0xff]
        %v3987 = vld [vmem:[#allocation10 + $0x2c8] sm:$0xff]
        %v3988 = vld [vmem:[#allocation10 + $0x2d0] sm:$0xff]
        %v3989 = vld [vmem:[#allocation10 + $0x2d8] sm:$0xff]
        %v3990 = vld [vmem:[#allocation10 + $0x2e0] sm:$0xff]
        %v3991 = vld [vmem:[#allocation10 + $0x2e8] sm:$0xff]
        %v3992 = vld [vmem:[#allocation10 + $0x2f0] sm:$0xff]
        %v3993 = vld [vmem:[#allocation10 + $0x2f8] sm:$0xff]
        %v3994 = vld [vmem:[#allocation11] sm:$0x3]
        %v3996 = vlaneseq
        %v3997 = vshrl.u32 %v3996, 7
        %v3998 = vsub.s32 0, %v3997
        %v3999 = vrot.slane %v3994, %v3998
        %v4000 = vlaneseq
        %v4001 = vshrl.u32 %v4000, 7
        %v4002 = vsub.s32 1, %v4001
        %v4003 = vrot.slane %v3994, %v4002
        %v4102 = vunpack.c.l.b16 %v3898
        %v4103 = vunpack.c.h.b16 %v3898
        %v4104 = vunpack.c.l.b16 %v3899
        %v4105 = vunpack.c.h.b16 %v3899
        %v4106 = vunpack.c.l.b16 %v3900
        %v4107 = vunpack.c.h.b16 %v3900
        %v4108 = vunpack.c.l.b16 %v3901
        %v4109 = vunpack.c.h.b16 %v3901
        %v4110 = vunpack.c.l.b16 %v3902
        %v4111 = vunpack.c.h.b16 %v3902
        %v4112 = vunpack.c.l.b16 %v3903
        %v4113 = vunpack.c.h.b16 %v3903
        %v4114 = vunpack.c.l.b16 %v3904
        %v4115 = vunpack.c.h.b16 %v3904
        %v4116 = vunpack.c.l.b16 %v3905
        %v4117 = vunpack.c.h.b16 %v3905
        %v4118 = vunpack.c.l.b16 %v3906
        %v4119 = vunpack.c.h.b16 %v3906
        %v4120 = vunpack.c.l.b16 %v3907
        %v4121 = vunpack.c.h.b16 %v3907
        %v4122 = vunpack.c.l.b16 %v3908
        %v4123 = vunpack.c.h.b16 %v3908
        %v4124 = vunpack.c.l.b16 %v3909
        %v4125 = vunpack.c.h.b16 %v3909
        %v4126 = vunpack.c.l.b16 %v3910
        %v4127 = vunpack.c.h.b16 %v3910
        %v4128 = vunpack.c.l.b16 %v3911
        %v4129 = vunpack.c.h.b16 %v3911
        %v4130 = vunpack.c.l.b16 %v3912
        %v4131 = vunpack.c.h.b16 %v3912
        %v4132 = vunpack.c.l.b16 %v3913
        %v4133 = vunpack.c.h.b16 %v3913
        %v4134 = vunpack.c.l.b16 %v3914
        %v4135 = vunpack.c.h.b16 %v3914
        %v4136 = vunpack.c.l.b16 %v3915
        %v4137 = vunpack.c.h.b16 %v3915
        %v4138 = vunpack.c.l.b16 %v3916
        %v4139 = vunpack.c.h.b16 %v3916
        %v4140 = vunpack.c.l.b16 %v3917
        %v4141 = vunpack.c.h.b16 %v3917
        %v4142 = vunpack.c.l.b16 %v3918
        %v4143 = vunpack.c.h.b16 %v3918
        %v4144 = vunpack.c.l.b16 %v3919
        %v4145 = vunpack.c.h.b16 %v3919
        %v4146 = vunpack.c.l.b16 %v3920
        %v4147 = vunpack.c.h.b16 %v3920
        %v4148 = vunpack.c.l.b16 %v3921
        %v4149 = vunpack.c.h.b16 %v3921
        %v4150 = vunpack.c.l.b16 %v3922
        %v4151 = vunpack.c.h.b16 %v3922
        %v4152 = vunpack.c.l.b16 %v3923
        %v4153 = vunpack.c.h.b16 %v3923
        %v4154 = vunpack.c.l.b16 %v3924
        %v4155 = vunpack.c.h.b16 %v3924
        %v4156 = vunpack.c.l.b16 %v3925
        %v4157 = vunpack.c.h.b16 %v3925
        %v4158 = vunpack.c.l.b16 %v3926
        %v4159 = vunpack.c.h.b16 %v3926
        %v4160 = vunpack.c.l.b16 %v3927
        %v4161 = vunpack.c.h.b16 %v3927
        %v4162 = vunpack.c.l.b16 %v3928
        %v4163 = vunpack.c.h.b16 %v3928
        %v4164 = vunpack.c.l.b16 %v3929
        %v4165 = vunpack.c.h.b16 %v3929
        %v4166 = vunpack.c.l.b16 %v3930
        %v4167 = vunpack.c.h.b16 %v3930
        %v4168 = vunpack.c.l.b16 %v3931
        %v4169 = vunpack.c.h.b16 %v3931
        %v4170 = vunpack.c.l.b16 %v3932
        %v4171 = vunpack.c.h.b16 %v3932
        %v4172 = vunpack.c.l.b16 %v3933
        %v4173 = vunpack.c.h.b16 %v3933
        %v4174 = vunpack.c.l.b16 %v3934
        %v4175 = vunpack.c.h.b16 %v3934
        %v4176 = vunpack.c.l.b16 %v3935
        %v4177 = vunpack.c.h.b16 %v3935
        %v4178 = vunpack.c.l.b16 %v3936
        %v4179 = vunpack.c.h.b16 %v3936
        %v4180 = vunpack.c.l.b16 %v3937
        %v4181 = vunpack.c.h.b16 %v3937
        %v4182 = vunpack.c.l.b16 %v3938
        %v4183 = vunpack.c.h.b16 %v3938
        %v4184 = vunpack.c.l.b16 %v3939
        %v4185 = vunpack.c.h.b16 %v3939
        %v4186 = vunpack.c.l.b16 %v3940
        %v4187 = vunpack.c.h.b16 %v3940
        %v4188 = vunpack.c.l.b16 %v3941
        %v4189 = vunpack.c.h.b16 %v3941
        %v4190 = vunpack.c.l.b16 %v3942
        %v4191 = vunpack.c.h.b16 %v3942
        %v4192 = vunpack.c.l.b16 %v3943
        %v4193 = vunpack.c.h.b16 %v3943
        %v4194 = vunpack.c.l.b16 %v3944
        %v4195 = vunpack.c.h.b16 %v3944
        %v4196 = vunpack.c.l.b16 %v3945
        %v4197 = vunpack.c.h.b16 %v3945
        %v4198 = vunpack.c.l.b16 %v3946
        %v4199 = vunpack.c.h.b16 %v3946
        %v4200 = vunpack.c.l.b16 %v3947
        %v4201 = vunpack.c.h.b16 %v3947
        %v4202 = vunpack.c.l.b16 %v3948
        %v4203 = vunpack.c.h.b16 %v3948
        %v4204 = vunpack.c.l.b16 %v3949
        %v4205 = vunpack.c.h.b16 %v3949
        %v4206 = vunpack.c.l.b16 %v3950
        %v4207 = vunpack.c.h.b16 %v3950
        %v4208 = vunpack.c.l.b16 %v3951
        %v4209 = vunpack.c.h.b16 %v3951
        %v4210 = vunpack.c.l.b16 %v3952
        %v4211 = vunpack.c.h.b16 %v3952
        %v4212 = vunpack.c.l.b16 %v3953
        %v4213 = vunpack.c.h.b16 %v3953
        %v4214 = vunpack.c.l.b16 %v3954
        %v4215 = vunpack.c.h.b16 %v3954
        %v4216 = vunpack.c.l.b16 %v3955
        %v4217 = vunpack.c.h.b16 %v3955
        %v4218 = vunpack.c.l.b16 %v3956
        %v4219 = vunpack.c.h.b16 %v3956
        %v4220 = vunpack.c.l.b16 %v3957
        %v4221 = vunpack.c.h.b16 %v3957
        %v4222 = vunpack.c.l.b16 %v3958
        %v4223 = vunpack.c.h.b16 %v3958
        %v4224 = vunpack.c.l.b16 %v3959
        %v4225 = vunpack.c.h.b16 %v3959
        %v4226 = vunpack.c.l.b16 %v3960
        %v4227 = vunpack.c.h.b16 %v3960
        %v4228 = vunpack.c.l.b16 %v3961
        %v4229 = vunpack.c.h.b16 %v3961
        %v4230 = vunpack.c.l.b16 %v3962
        %v4231 = vunpack.c.h.b16 %v3962
        %v4232 = vunpack.c.l.b16 %v3963
        %v4233 = vunpack.c.h.b16 %v3963
        %v4234 = vunpack.c.l.b16 %v3964
        %v4235 = vunpack.c.h.b16 %v3964
        %v4236 = vunpack.c.l.b16 %v3965
        %v4237 = vunpack.c.h.b16 %v3965
        %v4238 = vunpack.c.l.b16 %v3966
        %v4239 = vunpack.c.h.b16 %v3966
        %v4240 = vunpack.c.l.b16 %v3967
        %v4241 = vunpack.c.h.b16 %v3967
        %v4242 = vunpack.c.l.b16 %v3968
        %v4243 = vunpack.c.h.b16 %v3968
        %v4244 = vunpack.c.l.b16 %v3969
        %v4245 = vunpack.c.h.b16 %v3969
        %v4246 = vunpack.c.l.b16 %v3970
        %v4247 = vunpack.c.h.b16 %v3970
        %v4248 = vunpack.c.l.b16 %v3971
        %v4249 = vunpack.c.h.b16 %v3971
        %v4250 = vunpack.c.l.b16 %v3972
        %v4251 = vunpack.c.h.b16 %v3972
        %v4252 = vunpack.c.l.b16 %v3973
        %v4253 = vunpack.c.h.b16 %v3973
        %v4254 = vunpack.c.l.b16 %v3974
        %v4255 = vunpack.c.h.b16 %v3974
        %v4256 = vunpack.c.l.b16 %v3975
        %v4257 = vunpack.c.h.b16 %v3975
        %v4258 = vunpack.c.l.b16 %v3976
        %v4259 = vunpack.c.h.b16 %v3976
        %v4260 = vunpack.c.l.b16 %v3977
        %v4261 = vunpack.c.h.b16 %v3977
        %v4262 = vunpack.c.l.b16 %v3978
        %v4263 = vunpack.c.h.b16 %v3978
        %v4264 = vunpack.c.l.b16 %v3979
        %v4265 = vunpack.c.h.b16 %v3979
        %v4266 = vunpack.c.l.b16 %v3980
        %v4267 = vunpack.c.h.b16 %v3980
        %v4268 = vunpack.c.l.b16 %v3981
        %v4269 = vunpack.c.h.b16 %v3981
        %v4270 = vunpack.c.l.b16 %v3982
        %v4271 = vunpack.c.h.b16 %v3982
        %v4272 = vunpack.c.l.b16 %v3983
        %v4273 = vunpack.c.h.b16 %v3983
        %v4274 = vunpack.c.l.b16 %v3984
        %v4275 = vunpack.c.h.b16 %v3984
        %v4276 = vunpack.c.l.b16 %v3985
        %v4277 = vunpack.c.h.b16 %v3985
        %v4278 = vunpack.c.l.b16 %v3986
        %v4279 = vunpack.c.h.b16 %v3986
        %v4280 = vunpack.c.l.b16 %v3987
        %v4281 = vunpack.c.h.b16 %v3987
        %v4282 = vunpack.c.l.b16 %v3988
        %v4283 = vunpack.c.h.b16 %v3988
        %v4284 = vunpack.c.l.b16 %v3989
        %v4285 = vunpack.c.h.b16 %v3989
        %v4286 = vunpack.c.l.b16 %v3990
        %v4287 = vunpack.c.h.b16 %v3990
        %v4288 = vunpack.c.l.b16 %v3991
        %v4289 = vunpack.c.h.b16 %v3991
        %v4290 = vunpack.c.l.b16 %v3992
        %v4291 = vunpack.c.h.b16 %v3992
        %v4292 = vunpack.c.l.b16 %v3993
        %v4293 = vunpack.c.h.b16 %v3993
        %v4294 = vpack.c.b16 %v4104, %v4102
        %v4295 = vpack.c.b16 %v4105, %v4103
        %v4296 = vpack.c.b16 %v4108, %v4106
        %v4297 = vpack.c.b16 %v4109, %v4107
        %v4298 = vpack.c.b16 %v4112, %v4110
        %v4299 = vpack.c.b16 %v4113, %v4111
        %v4300 = vpack.c.b16 %v4116, %v4114
        %v4301 = vpack.c.b16 %v4117, %v4115
        %v4302 = vpack.c.b16 %v4120, %v4118
        %v4303 = vpack.c.b16 %v4121, %v4119
        %v4304 = vpack.c.b16 %v4124, %v4122
        %v4305 = vpack.c.b16 %v4125, %v4123
        %v4306 = vpack.c.b16 %v4128, %v4126
        %v4307 = vpack.c.b16 %v4129, %v4127
        %v4308 = vpack.c.b16 %v4132, %v4130
        %v4309 = vpack.c.b16 %v4133, %v4131
        %v4310 = vpack.c.b16 %v4136, %v4134
        %v4311 = vpack.c.b16 %v4137, %v4135
        %v4312 = vpack.c.b16 %v4140, %v4138
        %v4313 = vpack.c.b16 %v4141, %v4139
        %v4314 = vpack.c.b16 %v4144, %v4142
        %v4315 = vpack.c.b16 %v4145, %v4143
        %v4316 = vpack.c.b16 %v4148, %v4146
        %v4317 = vpack.c.b16 %v4149, %v4147
        %v4318 = vpack.c.b16 %v4152, %v4150
        %v4319 = vpack.c.b16 %v4153, %v4151
        %v4320 = vpack.c.b16 %v4156, %v4154
        %v4321 = vpack.c.b16 %v4157, %v4155
        %v4322 = vpack.c.b16 %v4160, %v4158
        %v4323 = vpack.c.b16 %v4161, %v4159
        %v4324 = vpack.c.b16 %v4164, %v4162
        %v4325 = vpack.c.b16 %v4165, %v4163
        %v4326 = vpack.c.b16 %v4168, %v4166
        %v4327 = vpack.c.b16 %v4169, %v4167
        %v4328 = vpack.c.b16 %v4172, %v4170
        %v4329 = vpack.c.b16 %v4173, %v4171
        %v4330 = vpack.c.b16 %v4176, %v4174
        %v4331 = vpack.c.b16 %v4177, %v4175
        %v4332 = vpack.c.b16 %v4180, %v4178
        %v4333 = vpack.c.b16 %v4181, %v4179
        %v4334 = vpack.c.b16 %v4184, %v4182
        %v4335 = vpack.c.b16 %v4185, %v4183
        %v4336 = vpack.c.b16 %v4188, %v4186
        %v4337 = vpack.c.b16 %v4189, %v4187
        %v4338 = vpack.c.b16 %v4192, %v4190
        %v4339 = vpack.c.b16 %v4193, %v4191
        %v4340 = vpack.c.b16 %v4196, %v4194
        %v4341 = vpack.c.b16 %v4197, %v4195
        %v4342 = vpack.c.b16 %v4200, %v4198
        %v4343 = vpack.c.b16 %v4201, %v4199
        %v4344 = vpack.c.b16 %v4204, %v4202
        %v4345 = vpack.c.b16 %v4205, %v4203
        %v4346 = vpack.c.b16 %v4208, %v4206
        %v4347 = vpack.c.b16 %v4209, %v4207
        %v4348 = vpack.c.b16 %v4212, %v4210
        %v4349 = vpack.c.b16 %v4213, %v4211
        %v4350 = vpack.c.b16 %v4216, %v4214
        %v4351 = vpack.c.b16 %v4217, %v4215
        %v4352 = vpack.c.b16 %v4220, %v4218
        %v4353 = vpack.c.b16 %v4221, %v4219
        %v4354 = vpack.c.b16 %v4224, %v4222
        %v4355 = vpack.c.b16 %v4225, %v4223
        %v4356 = vpack.c.b16 %v4228, %v4226
        %v4357 = vpack.c.b16 %v4229, %v4227
        %v4358 = vpack.c.b16 %v4232, %v4230
        %v4359 = vpack.c.b16 %v4233, %v4231
        %v4360 = vpack.c.b16 %v4236, %v4234
        %v4361 = vpack.c.b16 %v4237, %v4235
        %v4362 = vpack.c.b16 %v4240, %v4238
        %v4363 = vpack.c.b16 %v4241, %v4239
        %v4364 = vpack.c.b16 %v4244, %v4242
        %v4365 = vpack.c.b16 %v4245, %v4243
        %v4366 = vpack.c.b16 %v4248, %v4246
        %v4367 = vpack.c.b16 %v4249, %v4247
        %v4368 = vpack.c.b16 %v4252, %v4250
        %v4369 = vpack.c.b16 %v4253, %v4251
        %v4370 = vpack.c.b16 %v4256, %v4254
        %v4371 = vpack.c.b16 %v4257, %v4255
        %v4372 = vpack.c.b16 %v4260, %v4258
        %v4373 = vpack.c.b16 %v4261, %v4259
        %v4374 = vpack.c.b16 %v4264, %v4262
        %v4375 = vpack.c.b16 %v4265, %v4263
        %v4376 = vpack.c.b16 %v4268, %v4266
        %v4377 = vpack.c.b16 %v4269, %v4267
        %v4378 = vpack.c.b16 %v4272, %v4270
        %v4379 = vpack.c.b16 %v4273, %v4271
        %v4380 = vpack.c.b16 %v4276, %v4274
        %v4381 = vpack.c.b16 %v4277, %v4275
        %v4382 = vpack.c.b16 %v4280, %v4278
        %v4383 = vpack.c.b16 %v4281, %v4279
        %v4384 = vpack.c.b16 %v4284, %v4282
        %v4385 = vpack.c.b16 %v4285, %v4283
        %v4386 = vpack.c.b16 %v4288, %v4286
        %v4387 = vpack.c.b16 %v4289, %v4287
        %v4388 = vpack.c.b16 %v4292, %v4290
        %v4389 = vpack.c.b16 %v4293, %v4291
        %4486 = vmatprep.subr.bf16.mxu0 %v4309
        %4487 = vmatpush1.bf16.msra.mxu0 %v4308
        %4488 = vmatprep.subr.bf16.mxu0 %v4307
        %4489 = vmatpush1.bf16.msra.mxu0 %v4306
        %4490 = vmatprep.subr.bf16.mxu0 %v4305
        %4491 = vmatpush1.bf16.msra.mxu0 %v4304
        %4492 = vmatprep.subr.bf16.mxu0 %v4303
        %4493 = vmatpush1.bf16.msra.mxu0 %v4302
        %4494 = vmatprep.subr.bf16.mxu0 %v4301
        %4495 = vmatpush1.bf16.msra.mxu0 %v4300
        %4496 = vmatprep.subr.bf16.mxu0 %v4299
        %4497 = vmatpush1.bf16.msra.mxu0 %v4298
        %4498 = vmatprep.subr.bf16.mxu0 %v4297
        %4499 = vmatpush1.bf16.msra.mxu0 %v4296
        %4500 = vmatprep.subr.bf16.mxu0 %v4295
        %4501 = vmatpush1.bf16.msra.mxu0 %v4294
        %4502 = vmatprep.subr.bf16.mxu0 %v4325
        %4503 = vmatpush2.bf16.msra.mxu0 %v4324
        %4504 = vmatprep.subr.bf16.mxu0 %v4323
        %4505 = vmatpush2.bf16.msra.mxu0 %v4322
        %4506 = vmatprep.subr.bf16.mxu0 %v4321
        %4507 = vmatpush2.bf16.msra.mxu0 %v4320
        %4508 = vmatprep.subr.bf16.mxu0 %v4319
        %4509 = vmatpush2.bf16.msra.mxu0 %v4318
        %4510 = vmatprep.subr.bf16.mxu0 %v4317
        %4511 = vmatpush2.bf16.msra.mxu0 %v4316
        %4512 = vmatprep.subr.bf16.mxu0 %v4315
        %4513 = vmatpush2.bf16.msra.mxu0 %v4314
        %4514 = vmatprep.subr.bf16.mxu0 %v4313
        %4515 = vmatpush2.bf16.msra.mxu0 %v4312
        %4516 = vmatprep.subr.bf16.mxu0 %v4311
        %4517 = vmatpush2.bf16.msra.mxu0 %v4310
        %4518 = vmatprep.mubr.bf16.mxu0 %v3881
        %4519 = vmatmul.mubr.bf16.gmra.mxu0 %v3880
        %v4520 = vpop.f32.mrf.mxu0
        %v4521 = vadd.f32 %v3999, %v4520
        %v4522 = vpop.f32.mrf.mxu0
        %v4523 = vadd.f32 %v4003, %v4522
        %v4524 = vpop.f32.mrf.mxu0
        %v4525 = vadd.f32 %v3999, %v4524
        %v4526 = vpop.f32.mrf.mxu0
        %v4527 = vadd.f32 %v4003, %v4526
        %4528 = vmatprep.mubr.bf16.mxu0 %v3885
        %4529 = vmatmul.mubr.bf16.gmra.mxu0 %v3884
        %v4530 = vpop.f32.mrf.mxu0
        %v4531 = vadd.f32 %v3999, %v4530
        %v4532 = vpop.f32.mrf.mxu0
        %v4533 = vadd.f32 %v4003, %v4532
        %v4534 = vpop.f32.mrf.mxu0
        %v4535 = vadd.f32 %v3999, %v4534
        %v4536 = vpop.f32.mrf.mxu0
        %v4537 = vadd.f32 %v4003, %v4536
        %4538 = vmatprep.mubr.bf16.mxu0 %v3889
        %4539 = vmatmul.mubr.bf16.gmra.mxu0 %v3888
        %v4540 = vpop.f32.mrf.mxu0
        %v4541 = vadd.f32 %v3999, %v4540
        %v4542 = vpop.f32.mrf.mxu0
        %v4543 = vadd.f32 %v4003, %v4542
        %v4544 = vpop.f32.mrf.mxu0
        %v4545 = vadd.f32 %v3999, %v4544
        %v4546 = vpop.f32.mrf.mxu0
        %v4547 = vadd.f32 %v4003, %v4546
        %4548 = vmatprep.mubr.bf16.mxu0 %v3893
        %4549 = vmatmul.mubr.bf16.gmra.mxu0 %v3892
        %v4550 = vpop.f32.mrf.mxu0
        %v4551 = vadd.f32 %v3999, %v4550
        %v4552 = vpop.f32.mrf.mxu0
        %v4553 = vadd.f32 %v4003, %v4552
        %v4554 = vpop.f32.mrf.mxu0
        %v4555 = vadd.f32 %v3999, %v4554
        %v4556 = vpop.f32.mrf.mxu0
        %v4557 = vadd.f32 %v4003, %v4556
        %4558 = vdwg.mxu0
        %4559 = vmatprep.subr.bf16.mxu0 %v4341
        %4560 = vmatpush1.bf16.msra.mxu0 %v4340
        %4561 = vmatprep.subr.bf16.mxu0 %v4339
        %4562 = vmatpush1.bf16.msra.mxu0 %v4338
        %4563 = vmatprep.subr.bf16.mxu0 %v4337
        %4564 = vmatpush1.bf16.msra.mxu0 %v4336
        %4565 = vmatprep.subr.bf16.mxu0 %v4335
        %4566 = vmatpush1.bf16.msra.mxu0 %v4334
        %4567 = vmatprep.subr.bf16.mxu0 %v4333
        %4568 = vmatpush1.bf16.msra.mxu0 %v4332
        %4569 = vmatprep.subr.bf16.mxu0 %v4331
        %4570 = vmatpush1.bf16.msra.mxu0 %v4330
        %4571 = vmatprep.subr.bf16.mxu0 %v4329
        %4572 = vmatpush1.bf16.msra.mxu0 %v4328
        %4573 = vmatprep.subr.bf16.mxu0 %v4327
        %4574 = vmatpush1.bf16.msra.mxu0 %v4326
        %4575 = vmatprep.subr.bf16.mxu0 %v4357
        %4576 = vmatpush2.bf16.msra.mxu0 %v4356
        %4577 = vmatprep.subr.bf16.mxu0 %v4355
        %4578 = vmatpush2.bf16.msra.mxu0 %v4354
        %4579 = vmatprep.subr.bf16.mxu0 %v4353
        %4580 = vmatpush2.bf16.msra.mxu0 %v4352
        %4581 = vmatprep.subr.bf16.mxu0 %v4351
        %4582 = vmatpush2.bf16.msra.mxu0 %v4350
        %4583 = vmatprep.subr.bf16.mxu0 %v4349
        %4584 = vmatpush2.bf16.msra.mxu0 %v4348
        %4585 = vmatprep.subr.bf16.mxu0 %v4347
        %4586 = vmatpush2.bf16.msra.mxu0 %v4346
        %4587 = vmatprep.subr.bf16.mxu0 %v4345
        %4588 = vmatpush2.bf16.msra.mxu0 %v4344
        %4589 = vmatprep.subr.bf16.mxu0 %v4343
        %4590 = vmatpush2.bf16.msra.mxu0 %v4342
        %4591 = vmatprep.mubr.bf16.mxu0 %v3883
        %4592 = vmatmul.mubr.bf16.gmra.mxu0 %v3882
        %v4593 = vpop.f32.mrf.mxu0
        %v4594 = vadd.f32 %v4521, %v4593
        %v4595 = vpop.f32.mrf.mxu0
        %v4596 = vadd.f32 %v4523, %v4595
        %v4597 = vpop.f32.mrf.mxu0
        %v4598 = vadd.f32 %v4525, %v4597
        %v4599 = vpop.f32.mrf.mxu0
        %v4600 = vadd.f32 %v4527, %v4599
        %4601 = vmatprep.mubr.bf16.mxu0 %v3887
        %4602 = vmatmul.mubr.bf16.gmra.mxu0 %v3886
        %v4603 = vpop.f32.mrf.mxu0
        %v4604 = vadd.f32 %v4531, %v4603
        %v4605 = vpop.f32.mrf.mxu0
        %v4606 = vadd.f32 %v4533, %v4605
        %v4607 = vpop.f32.mrf.mxu0
        %v4608 = vadd.f32 %v4535, %v4607
        %v4609 = vpop.f32.mrf.mxu0
        %v4610 = vadd.f32 %v4537, %v4609
        %4611 = vmatprep.mubr.bf16.mxu0 %v3891
        %4612 = vmatmul.mubr.bf16.gmra.mxu0 %v3890
        %v4613 = vpop.f32.mrf.mxu0
        %v4614 = vadd.f32 %v4541, %v4613
        %v4615 = vpop.f32.mrf.mxu0
        %v4616 = vadd.f32 %v4543, %v4615
        %v4617 = vpop.f32.mrf.mxu0
        %v4618 = vadd.f32 %v4545, %v4617
        %v4619 = vpop.f32.mrf.mxu0
        %v4620 = vadd.f32 %v4547, %v4619
        %4621 = vmatprep.mubr.bf16.mxu0 %v3895
        %4622 = vmatmul.mubr.bf16.gmra.mxu0 %v3894
        %v4623 = vpop.f32.mrf.mxu0
        %v4624 = vadd.f32 %v4551, %v4623
        %v4625 = vpop.f32.mrf.mxu0
        %v4626 = vadd.f32 %v4553, %v4625
        %v4627 = vpop.f32.mrf.mxu0
        %v4628 = vadd.f32 %v4555, %v4627
        %v4629 = vpop.f32.mrf.mxu0
        %v4630 = vadd.f32 %v4557, %v4629
        %4631 = vdwg.mxu0
        %4632 = vmatprep.subr.bf16.mxu0 %v4373
        %4633 = vmatpush1.bf16.msra.mxu0 %v4372
        %4634 = vmatprep.subr.bf16.mxu0 %v4371
        %4635 = vmatpush1.bf16.msra.mxu0 %v4370
        %4636 = vmatprep.subr.bf16.mxu0 %v4369
        %4637 = vmatpush1.bf16.msra.mxu0 %v4368
        %4638 = vmatprep.subr.bf16.mxu0 %v4367
        %4639 = vmatpush1.bf16.msra.mxu0 %v4366
        %4640 = vmatprep.subr.bf16.mxu0 %v4365
        %4641 = vmatpush1.bf16.msra.mxu0 %v4364
        %4642 = vmatprep.subr.bf16.mxu0 %v4363
        %4643 = vmatpush1.bf16.msra.mxu0 %v4362
        %4644 = vmatprep.subr.bf16.mxu0 %v4361
        %4645 = vmatpush1.bf16.msra.mxu0 %v4360
        %4646 = vmatprep.subr.bf16.mxu0 %v4359
        %4647 = vmatpush1.bf16.msra.mxu0 %v4358
        %4648 = vmatprep.subr.bf16.mxu0 %v4389
        %4649 = vmatpush2.bf16.msra.mxu0 %v4388
        %4650 = vmatprep.subr.bf16.mxu0 %v4387
        %4651 = vmatpush2.bf16.msra.mxu0 %v4386
        %4652 = vmatprep.subr.bf16.mxu0 %v4385
        %4653 = vmatpush2.bf16.msra.mxu0 %v4384
        %4654 = vmatprep.subr.bf16.mxu0 %v4383
        %4655 = vmatpush2.bf16.msra.mxu0 %v4382
        %4656 = vmatprep.subr.bf16.mxu0 %v4381
        %4657 = vmatpush2.bf16.msra.mxu0 %v4380
        %4658 = vmatprep.subr.bf16.mxu0 %v4379
        %4659 = vmatpush2.bf16.msra.mxu0 %v4378
        %4660 = vmatprep.subr.bf16.mxu0 %v4377
        %4661 = vmatpush2.bf16.msra.mxu0 %v4376
        %4662 = vmatprep.subr.bf16.mxu0 %v4375
        %4663 = vmatpush2.bf16.msra.mxu0 %v4374
        %4664 = vmatprep.mubr.bf16.mxu0 %v3885
        %4665 = vmatmul.mubr.bf16.gmra.mxu0 %v3884
        %v4666 = vpop.f32.mrf.mxu0
        %v4667 = vadd.f32 %v4594, %v4666
        %v4668 = vpop.f32.mrf.mxu0
        %v4669 = vadd.f32 %v4596, %v4668
        %v4670 = vpop.f32.mrf.mxu0
        %v4671 = vadd.f32 %v4598, %v4670
        %v4672 = vpop.f32.mrf.mxu0
        %v4673 = vadd.f32 %v4600, %v4672
        %4674 = vmatprep.mubr.bf16.mxu0 %v3889
        %4675 = vmatmul.mubr.bf16.gmra.mxu0 %v3888
        %v4676 = vpop.f32.mrf.mxu0
        %v4677 = vadd.f32 %v4604, %v4676
        %v4678 = vpop.f32.mrf.mxu0
        %v4679 = vadd.f32 %v4606, %v4678
        %v4680 = vpop.f32.mrf.mxu0
        %v4681 = vadd.f32 %v4608, %v4680
        %v4682 = vpop.f32.mrf.mxu0
        %v4683 = vadd.f32 %v4610, %v4682
        %4684 = vmatprep.mubr.bf16.mxu0 %v3893
        %4685 = vmatmul.mubr.bf16.gmra.mxu0 %v3892
        %v4686 = vpop.f32.mrf.mxu0
        %v4687 = vadd.f32 %v4614, %v4686
        %v4688 = vpop.f32.mrf.mxu0
        %v4689 = vadd.f32 %v4616, %v4688
        %v4690 = vpop.f32.mrf.mxu0
        %v4691 = vadd.f32 %v4618, %v4690
        %v4692 = vpop.f32.mrf.mxu0
        %v4693 = vadd.f32 %v4620, %v4692
        %4694 = vmatprep.mubr.bf16.mxu0 %v3897
        %4695 = vmatmul.mubr.bf16.gmra.mxu0 %v3896
        %v4696 = vpop.f32.mrf.mxu0
        %v4697 = vadd.f32 %v4624, %v4696
        %v4698 = vpop.f32.mrf.mxu0
        %v4699 = vadd.f32 %v4626, %v4698
        %v4700 = vpop.f32.mrf.mxu0
        %v4701 = vadd.f32 %v4628, %v4700
        %v4702 = vpop.f32.mrf.mxu0
        %v4703 = vadd.f32 %v4630, %v4702
        %4704 = vdwg.mxu0
        %v4705 = vmax.f32 %v4667, 0.0
        %v4706 = vmax.f32 %v4669, 0.0
        %v4707 = vmax.f32 %v4671, 0.0
        %v4708 = vmax.f32 %v4673, 0.0
        %v4709 = vmax.f32 %v4677, 0.0
        %v4710 = vmax.f32 %v4679, 0.0
        %v4711 = vmax.f32 %v4681, 0.0
        %v4712 = vmax.f32 %v4683, 0.0
        %v4713 = vmax.f32 %v4687, 0.0
        %v4714 = vmax.f32 %v4689, 0.0
        %v4715 = vmax.f32 %v4691, 0.0
        %v4716 = vmax.f32 %v4693, 0.0
        %v4717 = vmax.f32 %v4697, 0.0
        %v4718 = vmax.f32 %v4699, 0.0
        %v4719 = vmax.f32 %v4701, 0.0
        %v4720 = vmax.f32 %v4703, 0.0
        %v4721 = vld [vmem:[#allocation13] sm:$0xff]
        %v4722 = vld [vmem:[#allocation13 + $0x8] sm:$0xff]
        %v4723 = vld [vmem:[#allocation13 + $0x10] sm:$0xff]
        %v4724 = vld [vmem:[#allocation13 + $0x18] sm:$0xff]
        %v4725 = vld [vmem:[#allocation13 + $0x20] sm:$0xff]
        %v4726 = vld [vmem:[#allocation13 + $0x28] sm:$0xff]
        %v4727 = vld [vmem:[#allocation13 + $0x30] sm:$0xff]
        %v4728 = vld [vmem:[#allocation13 + $0x38] sm:$0xff]
        %v4729 = vld [vmem:[#allocation13 + $0x40] sm:$0xff]
        %v4730 = vld [vmem:[#allocation13 + $0x48] sm:$0xff]
        %v4731 = vld [vmem:[#allocation13 + $0x50] sm:$0xff]
        %v4732 = vld [vmem:[#allocation13 + $0x58] sm:$0xff]
        %v4733 = vld [vmem:[#allocation13 + $0x60] sm:$0xff]
        %v4734 = vld [vmem:[#allocation13 + $0x68] sm:$0xff]
        %v4735 = vld [vmem:[#allocation13 + $0x70] sm:$0xff]
        %v4736 = vld [vmem:[#allocation13 + $0x78] sm:$0xff]
        %v4737 = vld [vmem:[#allocation13 + $0x80] sm:$0xff]
        %v4738 = vld [vmem:[#allocation13 + $0x88] sm:$0xff]
        %v4739 = vld [vmem:[#allocation13 + $0x90] sm:$0xff]
        %v4740 = vld [vmem:[#allocation13 + $0x98] sm:$0xff]
        %v4741 = vld [vmem:[#allocation13 + $0xa0] sm:$0xff]
        %v4742 = vld [vmem:[#allocation13 + $0xa8] sm:$0xff]
        %v4743 = vld [vmem:[#allocation13 + $0xb0] sm:$0xff]
        %v4744 = vld [vmem:[#allocation13 + $0xb8] sm:$0xff]
        %v4745 = vld [vmem:[#allocation13 + $0xc0] sm:$0xff]
        %v4746 = vld [vmem:[#allocation13 + $0xc8] sm:$0xff]
        %v4747 = vld [vmem:[#allocation13 + $0xd0] sm:$0xff]
        %v4748 = vld [vmem:[#allocation13 + $0xd8] sm:$0xff]
        %v4749 = vld [vmem:[#allocation13 + $0xe0] sm:$0xff]
        %v4750 = vld [vmem:[#allocation13 + $0xe8] sm:$0xff]
        %v4751 = vld [vmem:[#allocation13 + $0xf0] sm:$0xff]
        %v4752 = vld [vmem:[#allocation13 + $0xf8] sm:$0xff]
        %v4753 = vld [vmem:[#allocation13 + $0x100] sm:$0xff]
        %v4754 = vld [vmem:[#allocation13 + $0x108] sm:$0xff]
        %v4755 = vld [vmem:[#allocation13 + $0x110] sm:$0xff]
        %v4756 = vld [vmem:[#allocation13 + $0x118] sm:$0xff]
        %v4757 = vld [vmem:[#allocation13 + $0x120] sm:$0xff]
        %v4758 = vld [vmem:[#allocation13 + $0x128] sm:$0xff]
        %v4759 = vld [vmem:[#allocation13 + $0x130] sm:$0xff]
        %v4760 = vld [vmem:[#allocation13 + $0x138] sm:$0xff]
        %v4761 = vld [vmem:[#allocation13 + $0x140] sm:$0xff]
        %v4762 = vld [vmem:[#allocation13 + $0x148] sm:$0xff]
        %v4763 = vld [vmem:[#allocation13 + $0x150] sm:$0xff]
        %v4764 = vld [vmem:[#allocation13 + $0x158] sm:$0xff]
        %v4765 = vld [vmem:[#allocation13 + $0x160] sm:$0xff]
        %v4766 = vld [vmem:[#allocation13 + $0x168] sm:$0xff]
        %v4767 = vld [vmem:[#allocation13 + $0x170] sm:$0xff]
        %v4768 = vld [vmem:[#allocation13 + $0x178] sm:$0xff]
        %v4769 = vld [vmem:[#allocation13 + $0x180] sm:$0xff]
        %v4770 = vld [vmem:[#allocation13 + $0x188] sm:$0xff]
        %v4771 = vld [vmem:[#allocation13 + $0x190] sm:$0xff]
        %v4772 = vld [vmem:[#allocation13 + $0x198] sm:$0xff]
        %v4773 = vld [vmem:[#allocation13 + $0x1a0] sm:$0xff]
        %v4774 = vld [vmem:[#allocation13 + $0x1a8] sm:$0xff]
        %v4775 = vld [vmem:[#allocation13 + $0x1b0] sm:$0xff]
        %v4776 = vld [vmem:[#allocation13 + $0x1b8] sm:$0xff]
        %v4777 = vld [vmem:[#allocation13 + $0x1c0] sm:$0xff]
        %v4778 = vld [vmem:[#allocation13 + $0x1c8] sm:$0xff]
        %v4779 = vld [vmem:[#allocation13 + $0x1d0] sm:$0xff]
        %v4780 = vld [vmem:[#allocation13 + $0x1d8] sm:$0xff]
        %v4781 = vld [vmem:[#allocation13 + $0x1e0] sm:$0xff]
        %v4782 = vld [vmem:[#allocation13 + $0x1e8] sm:$0xff]
        %v4783 = vld [vmem:[#allocation13 + $0x1f0] sm:$0xff]
        %v4784 = vld [vmem:[#allocation13 + $0x1f8] sm:$0xff]
        %v4785 = vld [vmem:[#allocation13 + $0x200] sm:$0xff]
        %v4786 = vld [vmem:[#allocation13 + $0x208] sm:$0xff]
        %v4787 = vld [vmem:[#allocation13 + $0x210] sm:$0xff]
        %v4788 = vld [vmem:[#allocation13 + $0x218] sm:$0xff]
        %v4789 = vld [vmem:[#allocation13 + $0x220] sm:$0xff]
        %v4790 = vld [vmem:[#allocation13 + $0x228] sm:$0xff]
        %v4791 = vld [vmem:[#allocation13 + $0x230] sm:$0xff]
        %v4792 = vld [vmem:[#allocation13 + $0x238] sm:$0xff]
        %v4793 = vld [vmem:[#allocation13 + $0x240] sm:$0xff]
        %v4794 = vld [vmem:[#allocation13 + $0x248] sm:$0xff]
        %v4795 = vld [vmem:[#allocation13 + $0x250] sm:$0xff]
        %v4796 = vld [vmem:[#allocation13 + $0x258] sm:$0xff]
        %v4797 = vld [vmem:[#allocation13 + $0x260] sm:$0xff]
        %v4798 = vld [vmem:[#allocation13 + $0x268] sm:$0xff]
        %v4799 = vld [vmem:[#allocation13 + $0x270] sm:$0xff]
        %v4800 = vld [vmem:[#allocation13 + $0x278] sm:$0xff]
        %v4801 = vld [vmem:[#allocation13 + $0x280] sm:$0xff]
        %v4802 = vld [vmem:[#allocation13 + $0x288] sm:$0xff]
        %v4803 = vld [vmem:[#allocation13 + $0x290] sm:$0xff]
        %v4804 = vld [vmem:[#allocation13 + $0x298] sm:$0xff]
        %v4805 = vld [vmem:[#allocation13 + $0x2a0] sm:$0xff]
        %v4806 = vld [vmem:[#allocation13 + $0x2a8] sm:$0xff]
        %v4807 = vld [vmem:[#allocation13 + $0x2b0] sm:$0xff]
        %v4808 = vld [vmem:[#allocation13 + $0x2b8] sm:$0xff]
        %v4809 = vld [vmem:[#allocation13 + $0x2c0] sm:$0xff]
        %v4810 = vld [vmem:[#allocation13 + $0x2c8] sm:$0xff]
        %v4811 = vld [vmem:[#allocation13 + $0x2d0] sm:$0xff]
        %v4812 = vld [vmem:[#allocation13 + $0x2d8] sm:$0xff]
        %v4813 = vld [vmem:[#allocation13 + $0x2e0] sm:$0xff]
        %v4814 = vld [vmem:[#allocation13 + $0x2e8] sm:$0xff]
        %v4815 = vld [vmem:[#allocation13 + $0x2f0] sm:$0xff]
        %v4816 = vld [vmem:[#allocation13 + $0x2f8] sm:$0xff]
        %v4817 = vld [vmem:[#allocation13 + $0x300] sm:$0xff]
        %v4818 = vld [vmem:[#allocation13 + $0x308] sm:$0xff]
        %v4819 = vld [vmem:[#allocation13 + $0x310] sm:$0xff]
        %v4820 = vld [vmem:[#allocation13 + $0x318] sm:$0xff]
        %v4821 = vld [vmem:[#allocation13 + $0x320] sm:$0xff]
        %v4822 = vld [vmem:[#allocation13 + $0x328] sm:$0xff]
        %v4823 = vld [vmem:[#allocation13 + $0x330] sm:$0xff]
        %v4824 = vld [vmem:[#allocation13 + $0x338] sm:$0xff]
        %v4825 = vld [vmem:[#allocation13 + $0x340] sm:$0xff]
        %v4826 = vld [vmem:[#allocation13 + $0x348] sm:$0xff]
        %v4827 = vld [vmem:[#allocation13 + $0x350] sm:$0xff]
        %v4828 = vld [vmem:[#allocation13 + $0x358] sm:$0xff]
        %v4829 = vld [vmem:[#allocation13 + $0x360] sm:$0xff]
        %v4830 = vld [vmem:[#allocation13 + $0x368] sm:$0xff]
        %v4831 = vld [vmem:[#allocation13 + $0x370] sm:$0xff]
        %v4832 = vld [vmem:[#allocation13 + $0x378] sm:$0xff]
        %v4833 = vld [vmem:[#allocation13 + $0x380] sm:$0xff]
        %v4834 = vld [vmem:[#allocation13 + $0x388] sm:$0xff]
        %v4835 = vld [vmem:[#allocation13 + $0x390] sm:$0xff]
        %v4836 = vld [vmem:[#allocation13 + $0x398] sm:$0xff]
        %v4837 = vld [vmem:[#allocation13 + $0x3a0] sm:$0xff]
        %v4838 = vld [vmem:[#allocation13 + $0x3a8] sm:$0xff]
        %v4839 = vld [vmem:[#allocation13 + $0x3b0] sm:$0xff]
        %v4840 = vld [vmem:[#allocation13 + $0x3b8] sm:$0xff]
        %v4841 = vld [vmem:[#allocation13 + $0x3c0] sm:$0xff]
        %v4842 = vld [vmem:[#allocation13 + $0x3c8] sm:$0xff]
        %v4843 = vld [vmem:[#allocation13 + $0x3d0] sm:$0xff]
        %v4844 = vld [vmem:[#allocation13 + $0x3d8] sm:$0xff]
        %v4845 = vld [vmem:[#allocation13 + $0x3e0] sm:$0xff]
        %v4846 = vld [vmem:[#allocation13 + $0x3e8] sm:$0xff]
        %v4847 = vld [vmem:[#allocation13 + $0x3f0] sm:$0xff]
        %v4848 = vld [vmem:[#allocation13 + $0x3f8] sm:$0xff]
        %v4849 = vld [vmem:[#allocation13 + $0x400] sm:$0xff]
        %v4850 = vld [vmem:[#allocation13 + $0x408] sm:$0xff]
        %v4851 = vld [vmem:[#allocation13 + $0x410] sm:$0xff]
        %v4852 = vld [vmem:[#allocation13 + $0x418] sm:$0xff]
        %v4853 = vld [vmem:[#allocation13 + $0x420] sm:$0xff]
        %v4854 = vld [vmem:[#allocation13 + $0x428] sm:$0xff]
        %v4855 = vld [vmem:[#allocation13 + $0x430] sm:$0xff]
        %v4856 = vld [vmem:[#allocation13 + $0x438] sm:$0xff]
        %v4857 = vld [vmem:[#allocation13 + $0x440] sm:$0xff]
        %v4858 = vld [vmem:[#allocation13 + $0x448] sm:$0xff]
        %v4859 = vld [vmem:[#allocation13 + $0x450] sm:$0xff]
        %v4860 = vld [vmem:[#allocation13 + $0x458] sm:$0xff]
        %v4861 = vld [vmem:[#allocation13 + $0x460] sm:$0xff]
        %v4862 = vld [vmem:[#allocation13 + $0x468] sm:$0xff]
        %v4863 = vld [vmem:[#allocation13 + $0x470] sm:$0xff]
        %v4864 = vld [vmem:[#allocation13 + $0x478] sm:$0xff]
        %v4865 = vld [vmem:[#allocation13 + $0x480] sm:$0xff]
        %v4866 = vld [vmem:[#allocation13 + $0x488] sm:$0xff]
        %v4867 = vld [vmem:[#allocation13 + $0x490] sm:$0xff]
        %v4868 = vld [vmem:[#allocation13 + $0x498] sm:$0xff]
        %v4869 = vld [vmem:[#allocation13 + $0x4a0] sm:$0xff]
        %v4870 = vld [vmem:[#allocation13 + $0x4a8] sm:$0xff]
        %v4871 = vld [vmem:[#allocation13 + $0x4b0] sm:$0xff]
        %v4872 = vld [vmem:[#allocation13 + $0x4b8] sm:$0xff]
        %v4873 = vld [vmem:[#allocation13 + $0x4c0] sm:$0xff]
        %v4874 = vld [vmem:[#allocation13 + $0x4c8] sm:$0xff]
        %v4875 = vld [vmem:[#allocation13 + $0x4d0] sm:$0xff]
        %v4876 = vld [vmem:[#allocation13 + $0x4d8] sm:$0xff]
        %v4877 = vld [vmem:[#allocation13 + $0x4e0] sm:$0xff]
        %v4878 = vld [vmem:[#allocation13 + $0x4e8] sm:$0xff]
        %v4879 = vld [vmem:[#allocation13 + $0x4f0] sm:$0xff]
        %v4880 = vld [vmem:[#allocation13 + $0x4f8] sm:$0xff]
        %v4881 = vld [vmem:[#allocation13 + $0x500] sm:$0xff]
        %v4882 = vld [vmem:[#allocation13 + $0x508] sm:$0xff]
        %v4883 = vld [vmem:[#allocation13 + $0x510] sm:$0xff]
        %v4884 = vld [vmem:[#allocation13 + $0x518] sm:$0xff]
        %v4885 = vld [vmem:[#allocation13 + $0x520] sm:$0xff]
        %v4886 = vld [vmem:[#allocation13 + $0x528] sm:$0xff]
        %v4887 = vld [vmem:[#allocation13 + $0x530] sm:$0xff]
        %v4888 = vld [vmem:[#allocation13 + $0x538] sm:$0xff]
        %v4889 = vld [vmem:[#allocation13 + $0x540] sm:$0xff]
        %v4890 = vld [vmem:[#allocation13 + $0x548] sm:$0xff]
        %v4891 = vld [vmem:[#allocation13 + $0x550] sm:$0xff]
        %v4892 = vld [vmem:[#allocation13 + $0x558] sm:$0xff]
        %v4893 = vld [vmem:[#allocation13 + $0x560] sm:$0xff]
        %v4894 = vld [vmem:[#allocation13 + $0x568] sm:$0xff]
        %v4895 = vld [vmem:[#allocation13 + $0x570] sm:$0xff]
        %v4896 = vld [vmem:[#allocation13 + $0x578] sm:$0xff]
        %v4897 = vld [vmem:[#allocation13 + $0x580] sm:$0xff]
        %v4898 = vld [vmem:[#allocation13 + $0x588] sm:$0xff]
        %v4899 = vld [vmem:[#allocation13 + $0x590] sm:$0xff]
        %v4900 = vld [vmem:[#allocation13 + $0x598] sm:$0xff]
        %v4901 = vld [vmem:[#allocation13 + $0x5a0] sm:$0xff]
        %v4902 = vld [vmem:[#allocation13 + $0x5a8] sm:$0xff]
        %v4903 = vld [vmem:[#allocation13 + $0x5b0] sm:$0xff]
        %v4904 = vld [vmem:[#allocation13 + $0x5b8] sm:$0xff]
        %v4905 = vld [vmem:[#allocation13 + $0x5c0] sm:$0xff]
        %v4906 = vld [vmem:[#allocation13 + $0x5c8] sm:$0xff]
        %v4907 = vld [vmem:[#allocation13 + $0x5d0] sm:$0xff]
        %v4908 = vld [vmem:[#allocation13 + $0x5d8] sm:$0xff]
        %v4909 = vld [vmem:[#allocation13 + $0x5e0] sm:$0xff]
        %v4910 = vld [vmem:[#allocation13 + $0x5e8] sm:$0xff]
        %v4911 = vld [vmem:[#allocation13 + $0x5f0] sm:$0xff]
        %v4912 = vld [vmem:[#allocation13 + $0x5f8] sm:$0xff]
        %v4913 = vld [vmem:[#allocation13 + $0x600] sm:$0xff]
        %v4914 = vld [vmem:[#allocation13 + $0x608] sm:$0xff]
        %v4915 = vld [vmem:[#allocation13 + $0x610] sm:$0xff]
        %v4916 = vld [vmem:[#allocation13 + $0x618] sm:$0xff]
        %v4917 = vld [vmem:[#allocation13 + $0x620] sm:$0xff]
        %v4918 = vld [vmem:[#allocation13 + $0x628] sm:$0xff]
        %v4919 = vld [vmem:[#allocation13 + $0x630] sm:$0xff]
        %v4920 = vld [vmem:[#allocation13 + $0x638] sm:$0xff]
        %v4921 = vld [vmem:[#allocation13 + $0x640] sm:$0xff]
        %v4922 = vld [vmem:[#allocation13 + $0x648] sm:$0xff]
        %v4923 = vld [vmem:[#allocation13 + $0x650] sm:$0xff]
        %v4924 = vld [vmem:[#allocation13 + $0x658] sm:$0xff]
        %v4925 = vld [vmem:[#allocation13 + $0x660] sm:$0xff]
        %v4926 = vld [vmem:[#allocation13 + $0x668] sm:$0xff]
        %v4927 = vld [vmem:[#allocation13 + $0x670] sm:$0xff]
        %v4928 = vld [vmem:[#allocation13 + $0x678] sm:$0xff]
        %v4929 = vld [vmem:[#allocation13 + $0x680] sm:$0xff]
        %v4930 = vld [vmem:[#allocation13 + $0x688] sm:$0xff]
        %v4931 = vld [vmem:[#allocation13 + $0x690] sm:$0xff]
        %v4932 = vld [vmem:[#allocation13 + $0x698] sm:$0xff]
        %v4933 = vld [vmem:[#allocation13 + $0x6a0] sm:$0xff]
        %v4934 = vld [vmem:[#allocation13 + $0x6a8] sm:$0xff]
        %v4935 = vld [vmem:[#allocation13 + $0x6b0] sm:$0xff]
        %v4936 = vld [vmem:[#allocation13 + $0x6b8] sm:$0xff]
        %v4937 = vld [vmem:[#allocation13 + $0x6c0] sm:$0xff]
        %v4938 = vld [vmem:[#allocation13 + $0x6c8] sm:$0xff]
        %v4939 = vld [vmem:[#allocation13 + $0x6d0] sm:$0xff]
        %v4940 = vld [vmem:[#allocation13 + $0x6d8] sm:$0xff]
        %v4941 = vld [vmem:[#allocation13 + $0x6e0] sm:$0xff]
        %v4942 = vld [vmem:[#allocation13 + $0x6e8] sm:$0xff]
        %v4943 = vld [vmem:[#allocation13 + $0x6f0] sm:$0xff]
        %v4944 = vld [vmem:[#allocation13 + $0x6f8] sm:$0xff]
        %v4945 = vpack.c.bf16 %v4707, %v4705
        %v4946 = vpack.c.bf16 %v4708, %v4706
        %v4947 = vpack.c.bf16 %v4711, %v4709
        %v4948 = vpack.c.bf16 %v4712, %v4710
        %v4949 = vpack.c.bf16 %v4715, %v4713
        %v4950 = vpack.c.bf16 %v4716, %v4714
        %v4951 = vpack.c.bf16 %v4719, %v4717
        %v4952 = vpack.c.bf16 %v4720, %v4718
        %v4953 = vld [vmem:[#allocation14] sm:$0xff]
        %v4954 = vld [vmem:[#allocation14 + $0x8] sm:$0xff]
        %v4955 = vld [vmem:[#allocation14 + $0x10] sm:$0xff]
        %v4956 = vld [vmem:[#allocation14 + $0x18] sm:$0xff]
        %v4957 = vld [vmem:[#allocation14 + $0x20] sm:$0xff]
        %v4958 = vld [vmem:[#allocation14 + $0x28] sm:$0xff]
        %v4959 = vld [vmem:[#allocation14 + $0x30] sm:$0xff]
        %v4960 = vld [vmem:[#allocation14 + $0x38] sm:$0xff]
        %v4961 = vld [vmem:[#allocation14 + $0x40] sm:$0xff]
        %v4962 = vld [vmem:[#allocation14 + $0x48] sm:$0xff]
        %v4963 = vld [vmem:[#allocation14 + $0x50] sm:$0xff]
        %v4964 = vld [vmem:[#allocation14 + $0x58] sm:$0xff]
        %v4965 = vld [vmem:[#allocation14 + $0x60] sm:$0xff]
        %v4966 = vld [vmem:[#allocation14 + $0x68] sm:$0xff]
        %v4967 = vld [vmem:[#allocation14 + $0x70] sm:$0xff]
        %v4968 = vld [vmem:[#allocation14 + $0x78] sm:$0xff]
        %v4969 = vld [vmem:[#allocation14 + $0x80] sm:$0xff]
        %v4970 = vld [vmem:[#allocation14 + $0x88] sm:$0xff]
        %v4971 = vld [vmem:[#allocation14 + $0x90] sm:$0xff]
        %v4972 = vld [vmem:[#allocation14 + $0x98] sm:$0xff]
        %v4973 = vld [vmem:[#allocation14 + $0xa0] sm:$0xff]
        %v4974 = vld [vmem:[#allocation14 + $0xa8] sm:$0xff]
        %v4975 = vld [vmem:[#allocation14 + $0xb0] sm:$0xff]
        %v4976 = vld [vmem:[#allocation14 + $0xb8] sm:$0xff]
        %v4977 = vld [vmem:[#allocation14 + $0xc0] sm:$0xff]
        %v4978 = vld [vmem:[#allocation14 + $0xc8] sm:$0xff]
        %v4979 = vld [vmem:[#allocation14 + $0xd0] sm:$0xff]
        %v4980 = vld [vmem:[#allocation14 + $0xd8] sm:$0xff]
        %v4981 = vld [vmem:[#allocation14 + $0xe0] sm:$0xff]
        %v4982 = vld [vmem:[#allocation14 + $0xe8] sm:$0xff]
        %v4983 = vld [vmem:[#allocation14 + $0xf0] sm:$0xff]
        %v4984 = vld [vmem:[#allocation14 + $0xf8] sm:$0xff]
        %v4985 = vld [vmem:[#allocation14 + $0x100] sm:$0xff]
        %v4986 = vld [vmem:[#allocation14 + $0x108] sm:$0xff]
        %v4987 = vld [vmem:[#allocation14 + $0x110] sm:$0xff]
        %v4988 = vld [vmem:[#allocation14 + $0x118] sm:$0xff]
        %v4989 = vld [vmem:[#allocation14 + $0x120] sm:$0xff]
        %v4990 = vld [vmem:[#allocation14 + $0x128] sm:$0xff]
        %v4991 = vld [vmem:[#allocation14 + $0x130] sm:$0xff]
        %v4992 = vld [vmem:[#allocation14 + $0x138] sm:$0xff]
        %v4993 = vld [vmem:[#allocation14 + $0x140] sm:$0xff]
        %v4994 = vld [vmem:[#allocation14 + $0x148] sm:$0xff]
        %v4995 = vld [vmem:[#allocation14 + $0x150] sm:$0xff]
        %v4996 = vld [vmem:[#allocation14 + $0x158] sm:$0xff]
        %v4997 = vld [vmem:[#allocation14 + $0x160] sm:$0xff]
        %v4998 = vld [vmem:[#allocation14 + $0x168] sm:$0xff]
        %v4999 = vld [vmem:[#allocation14 + $0x170] sm:$0xff]
        %v5000 = vld [vmem:[#allocation14 + $0x178] sm:$0xff]
        %v5001 = vld [vmem:[#allocation14 + $0x180] sm:$0xff]
        %v5002 = vld [vmem:[#allocation14 + $0x188] sm:$0xff]
        %v5003 = vld [vmem:[#allocation14 + $0x190] sm:$0xff]
        %v5004 = vld [vmem:[#allocation14 + $0x198] sm:$0xff]
        %v5005 = vld [vmem:[#allocation14 + $0x1a0] sm:$0xff]
        %v5006 = vld [vmem:[#allocation14 + $0x1a8] sm:$0xff]
        %v5007 = vld [vmem:[#allocation14 + $0x1b0] sm:$0xff]
        %v5008 = vld [vmem:[#allocation14 + $0x1b8] sm:$0xff]
        %v5009 = vld [vmem:[#allocation14 + $0x1c0] sm:$0xff]
        %v5010 = vld [vmem:[#allocation14 + $0x1c8] sm:$0xff]
        %v5011 = vld [vmem:[#allocation14 + $0x1d0] sm:$0xff]
        %v5012 = vld [vmem:[#allocation14 + $0x1d8] sm:$0xff]
        %v5013 = vld [vmem:[#allocation14 + $0x1e0] sm:$0xff]
        %v5014 = vld [vmem:[#allocation14 + $0x1e8] sm:$0xff]
        %v5015 = vld [vmem:[#allocation14 + $0x1f0] sm:$0xff]
        %v5016 = vld [vmem:[#allocation14 + $0x1f8] sm:$0xff]
        %v5017 = vld [vmem:[#allocation14 + $0x200] sm:$0xff]
        %v5018 = vld [vmem:[#allocation14 + $0x208] sm:$0xff]
        %v5019 = vld [vmem:[#allocation14 + $0x210] sm:$0xff]
        %v5020 = vld [vmem:[#allocation14 + $0x218] sm:$0xff]
        %v5021 = vld [vmem:[#allocation14 + $0x220] sm:$0xff]
        %v5022 = vld [vmem:[#allocation14 + $0x228] sm:$0xff]
        %v5023 = vld [vmem:[#allocation14 + $0x230] sm:$0xff]
        %v5024 = vld [vmem:[#allocation14 + $0x238] sm:$0xff]
        %v5025 = vld [vmem:[#allocation14 + $0x240] sm:$0xff]
        %v5026 = vld [vmem:[#allocation14 + $0x248] sm:$0xff]
        %v5027 = vld [vmem:[#allocation14 + $0x250] sm:$0xff]
        %v5028 = vld [vmem:[#allocation14 + $0x258] sm:$0xff]
        %v5029 = vld [vmem:[#allocation14 + $0x260] sm:$0xff]
        %v5030 = vld [vmem:[#allocation14 + $0x268] sm:$0xff]
        %v5031 = vld [vmem:[#allocation14 + $0x270] sm:$0xff]
        %v5032 = vld [vmem:[#allocation14 + $0x278] sm:$0xff]
        %v5033 = vld [vmem:[#allocation14 + $0x280] sm:$0xff]
        %v5034 = vld [vmem:[#allocation14 + $0x288] sm:$0xff]
        %v5035 = vld [vmem:[#allocation14 + $0x290] sm:$0xff]
        %v5036 = vld [vmem:[#allocation14 + $0x298] sm:$0xff]
        %v5037 = vld [vmem:[#allocation14 + $0x2a0] sm:$0xff]
        %v5038 = vld [vmem:[#allocation14 + $0x2a8] sm:$0xff]
        %v5039 = vld [vmem:[#allocation14 + $0x2b0] sm:$0xff]
        %v5040 = vld [vmem:[#allocation14 + $0x2b8] sm:$0xff]
        %v5041 = vld [vmem:[#allocation14 + $0x2c0] sm:$0xff]
        %v5042 = vld [vmem:[#allocation14 + $0x2c8] sm:$0xff]
        %v5043 = vld [vmem:[#allocation14 + $0x2d0] sm:$0xff]
        %v5044 = vld [vmem:[#allocation14 + $0x2d8] sm:$0xff]
        %v5045 = vld [vmem:[#allocation14 + $0x2e0] sm:$0xff]
        %v5046 = vld [vmem:[#allocation14 + $0x2e8] sm:$0xff]
        %v5047 = vld [vmem:[#allocation14 + $0x2f0] sm:$0xff]
        %v5048 = vld [vmem:[#allocation14 + $0x2f8] sm:$0xff]
        %v5049 = vld [vmem:[#allocation14 + $0x300] sm:$0xff]
        %v5050 = vld [vmem:[#allocation14 + $0x308] sm:$0xff]
        %v5051 = vld [vmem:[#allocation14 + $0x310] sm:$0xff]
        %v5052 = vld [vmem:[#allocation14 + $0x318] sm:$0xff]
        %v5053 = vld [vmem:[#allocation14 + $0x320] sm:$0xff]
        %v5054 = vld [vmem:[#allocation14 + $0x328] sm:$0xff]
        %v5055 = vld [vmem:[#allocation14 + $0x330] sm:$0xff]
        %v5056 = vld [vmem:[#allocation14 + $0x338] sm:$0xff]
        %v5057 = vld [vmem:[#allocation14 + $0x340] sm:$0xff]
        %v5058 = vld [vmem:[#allocation14 + $0x348] sm:$0xff]
        %v5059 = vld [vmem:[#allocation14 + $0x350] sm:$0xff]
        %v5060 = vld [vmem:[#allocation14 + $0x358] sm:$0xff]
        %v5061 = vld [vmem:[#allocation14 + $0x360] sm:$0xff]
        %v5062 = vld [vmem:[#allocation14 + $0x368] sm:$0xff]
        %v5063 = vld [vmem:[#allocation14 + $0x370] sm:$0xff]
        %v5064 = vld [vmem:[#allocation14 + $0x378] sm:$0xff]
        %v5065 = vld [vmem:[#allocation14 + $0x380] sm:$0xff]
        %v5066 = vld [vmem:[#allocation14 + $0x388] sm:$0xff]
        %v5067 = vld [vmem:[#allocation14 + $0x390] sm:$0xff]
        %v5068 = vld [vmem:[#allocation14 + $0x398] sm:$0xff]
        %v5069 = vld [vmem:[#allocation14 + $0x3a0] sm:$0xff]
        %v5070 = vld [vmem:[#allocation14 + $0x3a8] sm:$0xff]
        %v5071 = vld [vmem:[#allocation14 + $0x3b0] sm:$0xff]
        %v5072 = vld [vmem:[#allocation14 + $0x3b8] sm:$0xff]
        %v5073 = vld [vmem:[#allocation14 + $0x3c0] sm:$0xff]
        %v5074 = vld [vmem:[#allocation14 + $0x3c8] sm:$0xff]
        %v5075 = vld [vmem:[#allocation14 + $0x3d0] sm:$0xff]
        %v5076 = vld [vmem:[#allocation14 + $0x3d8] sm:$0xff]
        %v5077 = vld [vmem:[#allocation14 + $0x3e0] sm:$0xff]
        %v5078 = vld [vmem:[#allocation14 + $0x3e8] sm:$0xff]
        %v5079 = vld [vmem:[#allocation14 + $0x3f0] sm:$0xff]
        %v5080 = vld [vmem:[#allocation14 + $0x3f8] sm:$0xff]
        %v5081 = vld [vmem:[#allocation14 + $0x400] sm:$0xff]
        %v5082 = vld [vmem:[#allocation14 + $0x408] sm:$0xff]
        %v5083 = vld [vmem:[#allocation14 + $0x410] sm:$0xff]
        %v5084 = vld [vmem:[#allocation14 + $0x418] sm:$0xff]
        %v5085 = vld [vmem:[#allocation14 + $0x420] sm:$0xff]
        %v5086 = vld [vmem:[#allocation14 + $0x428] sm:$0xff]
        %v5087 = vld [vmem:[#allocation14 + $0x430] sm:$0xff]
        %v5088 = vld [vmem:[#allocation14 + $0x438] sm:$0xff]
        %v5089 = vld [vmem:[#allocation14 + $0x440] sm:$0xff]
        %v5090 = vld [vmem:[#allocation14 + $0x448] sm:$0xff]
        %v5091 = vld [vmem:[#allocation14 + $0x450] sm:$0xff]
        %v5092 = vld [vmem:[#allocation14 + $0x458] sm:$0xff]
        %v5093 = vld [vmem:[#allocation14 + $0x460] sm:$0xff]
        %v5094 = vld [vmem:[#allocation14 + $0x468] sm:$0xff]
        %v5095 = vld [vmem:[#allocation14 + $0x470] sm:$0xff]
        %v5096 = vld [vmem:[#allocation14 + $0x478] sm:$0xff]
        %v5097 = vld [vmem:[#allocation14 + $0x480] sm:$0xff]
        %v5098 = vld [vmem:[#allocation14 + $0x488] sm:$0xff]
        %v5099 = vld [vmem:[#allocation14 + $0x490] sm:$0xff]
        %v5100 = vld [vmem:[#allocation14 + $0x498] sm:$0xff]
        %v5101 = vld [vmem:[#allocation14 + $0x4a0] sm:$0xff]
        %v5102 = vld [vmem:[#allocation14 + $0x4a8] sm:$0xff]
        %v5103 = vld [vmem:[#allocation14 + $0x4b0] sm:$0xff]
        %v5104 = vld [vmem:[#allocation14 + $0x4b8] sm:$0xff]
        %v5105 = vld [vmem:[#allocation14 + $0x4c0] sm:$0xff]
        %v5106 = vld [vmem:[#allocation14 + $0x4c8] sm:$0xff]
        %v5107 = vld [vmem:[#allocation14 + $0x4d0] sm:$0xff]
        %v5108 = vld [vmem:[#allocation14 + $0x4d8] sm:$0xff]
        %v5109 = vld [vmem:[#allocation14 + $0x4e0] sm:$0xff]
        %v5110 = vld [vmem:[#allocation14 + $0x4e8] sm:$0xff]
        %v5111 = vld [vmem:[#allocation14 + $0x4f0] sm:$0xff]
        %v5112 = vld [vmem:[#allocation14 + $0x4f8] sm:$0xff]
        %v5113 = vld [vmem:[#allocation14 + $0x500] sm:$0xff]
        %v5114 = vld [vmem:[#allocation14 + $0x508] sm:$0xff]
        %v5115 = vld [vmem:[#allocation14 + $0x510] sm:$0xff]
        %v5116 = vld [vmem:[#allocation14 + $0x518] sm:$0xff]
        %v5117 = vld [vmem:[#allocation14 + $0x520] sm:$0xff]
        %v5118 = vld [vmem:[#allocation14 + $0x528] sm:$0xff]
        %v5119 = vld [vmem:[#allocation14 + $0x530] sm:$0xff]
        %v5120 = vld [vmem:[#allocation14 + $0x538] sm:$0xff]
        %v5121 = vld [vmem:[#allocation14 + $0x540] sm:$0xff]
        %v5122 = vld [vmem:[#allocation14 + $0x548] sm:$0xff]
        %v5123 = vld [vmem:[#allocation14 + $0x550] sm:$0xff]
        %v5124 = vld [vmem:[#allocation14 + $0x558] sm:$0xff]
        %v5125 = vld [vmem:[#allocation14 + $0x560] sm:$0xff]
        %v5126 = vld [vmem:[#allocation14 + $0x568] sm:$0xff]
        %v5127 = vld [vmem:[#allocation14 + $0x570] sm:$0xff]
        %v5128 = vld [vmem:[#allocation14 + $0x578] sm:$0xff]
        %v5129 = vld [vmem:[#allocation14 + $0x580] sm:$0xff]
        %v5130 = vld [vmem:[#allocation14 + $0x588] sm:$0xff]
        %v5131 = vld [vmem:[#allocation14 + $0x590] sm:$0xff]
        %v5132 = vld [vmem:[#allocation14 + $0x598] sm:$0xff]
        %v5133 = vld [vmem:[#allocation14 + $0x5a0] sm:$0xff]
        %v5134 = vld [vmem:[#allocation14 + $0x5a8] sm:$0xff]
        %v5135 = vld [vmem:[#allocation14 + $0x5b0] sm:$0xff]
        %v5136 = vld [vmem:[#allocation14 + $0x5b8] sm:$0xff]
        %v5137 = vld [vmem:[#allocation14 + $0x5c0] sm:$0xff]
        %v5138 = vld [vmem:[#allocation14 + $0x5c8] sm:$0xff]
        %v5139 = vld [vmem:[#allocation14 + $0x5d0] sm:$0xff]
        %v5140 = vld [vmem:[#allocation14 + $0x5d8] sm:$0xff]
        %v5141 = vld [vmem:[#allocation14 + $0x5e0] sm:$0xff]
        %v5142 = vld [vmem:[#allocation14 + $0x5e8] sm:$0xff]
        %v5143 = vld [vmem:[#allocation14 + $0x5f0] sm:$0xff]
        %v5144 = vld [vmem:[#allocation14 + $0x5f8] sm:$0xff]
        %v5145 = vld [vmem:[#allocation14 + $0x600] sm:$0xff]
        %v5146 = vld [vmem:[#allocation14 + $0x608] sm:$0xff]
        %v5147 = vld [vmem:[#allocation14 + $0x610] sm:$0xff]
        %v5148 = vld [vmem:[#allocation14 + $0x618] sm:$0xff]
        %v5149 = vld [vmem:[#allocation14 + $0x620] sm:$0xff]
        %v5150 = vld [vmem:[#allocation14 + $0x628] sm:$0xff]
        %v5151 = vld [vmem:[#allocation14 + $0x630] sm:$0xff]
        %v5152 = vld [vmem:[#allocation14 + $0x638] sm:$0xff]
        %v5153 = vld [vmem:[#allocation14 + $0x640] sm:$0xff]
        %v5154 = vld [vmem:[#allocation14 + $0x648] sm:$0xff]
        %v5155 = vld [vmem:[#allocation14 + $0x650] sm:$0xff]
        %v5156 = vld [vmem:[#allocation14 + $0x658] sm:$0xff]
        %v5157 = vld [vmem:[#allocation14 + $0x660] sm:$0xff]
        %v5158 = vld [vmem:[#allocation14 + $0x668] sm:$0xff]
        %v5159 = vld [vmem:[#allocation14 + $0x670] sm:$0xff]
        %v5160 = vld [vmem:[#allocation14 + $0x678] sm:$0xff]
        %v5161 = vld [vmem:[#allocation14 + $0x680] sm:$0xff]
        %v5162 = vld [vmem:[#allocation14 + $0x688] sm:$0xff]
        %v5163 = vld [vmem:[#allocation14 + $0x690] sm:$0xff]
        %v5164 = vld [vmem:[#allocation14 + $0x698] sm:$0xff]
        %v5165 = vld [vmem:[#allocation14 + $0x6a0] sm:$0xff]
        %v5166 = vld [vmem:[#allocation14 + $0x6a8] sm:$0xff]
        %v5167 = vld [vmem:[#allocation14 + $0x6b0] sm:$0xff]
        %v5168 = vld [vmem:[#allocation14 + $0x6b8] sm:$0xff]
        %v5169 = vld [vmem:[#allocation14 + $0x6c0] sm:$0xff]
        %v5170 = vld [vmem:[#allocation14 + $0x6c8] sm:$0xff]
        %v5171 = vld [vmem:[#allocation14 + $0x6d0] sm:$0xff]
        %v5172 = vld [vmem:[#allocation14 + $0x6d8] sm:$0xff]
        %v5173 = vld [vmem:[#allocation14 + $0x6e0] sm:$0xff]
        %v5174 = vld [vmem:[#allocation14 + $0x6e8] sm:$0xff]
        %v5175 = vld [vmem:[#allocation14 + $0x6f0] sm:$0xff]
        %v5176 = vld [vmem:[#allocation14 + $0x6f8] sm:$0xff]
        %v5401 = vunpack.c.l.b16 %v4953
        %v5402 = vunpack.c.h.b16 %v4953
        %v5403 = vunpack.c.l.b16 %v4954
        %v5404 = vunpack.c.h.b16 %v4954
        %v5405 = vunpack.c.l.b16 %v4955
        %v5406 = vunpack.c.h.b16 %v4955
        %v5407 = vunpack.c.l.b16 %v4956
        %v5408 = vunpack.c.h.b16 %v4956
        %v5409 = vunpack.c.l.b16 %v4957
        %v5410 = vunpack.c.h.b16 %v4957
        %v5411 = vunpack.c.l.b16 %v4958
        %v5412 = vunpack.c.h.b16 %v4958
        %v5413 = vunpack.c.l.b16 %v4959
        %v5414 = vunpack.c.h.b16 %v4959
        %v5415 = vunpack.c.l.b16 %v4960
        %v5416 = vunpack.c.h.b16 %v4960
        %v5417 = vunpack.c.l.b16 %v4961
        %v5418 = vunpack.c.h.b16 %v4961
        %v5419 = vunpack.c.l.b16 %v4962
        %v5420 = vunpack.c.h.b16 %v4962
        %v5421 = vunpack.c.l.b16 %v4963
        %v5422 = vunpack.c.h.b16 %v4963
        %v5423 = vunpack.c.l.b16 %v4964
        %v5424 = vunpack.c.h.b16 %v4964
        %v5425 = vunpack.c.l.b16 %v4965
        %v5426 = vunpack.c.h.b16 %v4965
        %v5427 = vunpack.c.l.b16 %v4966
        %v5428 = vunpack.c.h.b16 %v4966
        %v5429 = vunpack.c.l.b16 %v4967
        %v5430 = vunpack.c.h.b16 %v4967
        %v5431 = vunpack.c.l.b16 %v4968
        %v5432 = vunpack.c.h.b16 %v4968
        %v5433 = vunpack.c.l.b16 %v4969
        %v5434 = vunpack.c.h.b16 %v4969
        %v5435 = vunpack.c.l.b16 %v4970
        %v5436 = vunpack.c.h.b16 %v4970
        %v5437 = vunpack.c.l.b16 %v4971
        %v5438 = vunpack.c.h.b16 %v4971
        %v5439 = vunpack.c.l.b16 %v4972
        %v5440 = vunpack.c.h.b16 %v4972
        %v5441 = vunpack.c.l.b16 %v4973
        %v5442 = vunpack.c.h.b16 %v4973
        %v5443 = vunpack.c.l.b16 %v4974
        %v5444 = vunpack.c.h.b16 %v4974
        %v5445 = vunpack.c.l.b16 %v4975
        %v5446 = vunpack.c.h.b16 %v4975
        %v5447 = vunpack.c.l.b16 %v4976
        %v5448 = vunpack.c.h.b16 %v4976
        %v5449 = vunpack.c.l.b16 %v4977
        %v5450 = vunpack.c.h.b16 %v4977
        %v5451 = vunpack.c.l.b16 %v4978
        %v5452 = vunpack.c.h.b16 %v4978
        %v5453 = vunpack.c.l.b16 %v4979
        %v5454 = vunpack.c.h.b16 %v4979
        %v5455 = vunpack.c.l.b16 %v4980
        %v5456 = vunpack.c.h.b16 %v4980
        %v5457 = vunpack.c.l.b16 %v4981
        %v5458 = vunpack.c.h.b16 %v4981
        %v5459 = vunpack.c.l.b16 %v4982
        %v5460 = vunpack.c.h.b16 %v4982
        %v5461 = vunpack.c.l.b16 %v4983
        %v5462 = vunpack.c.h.b16 %v4983
        %v5463 = vunpack.c.l.b16 %v4984
        %v5464 = vunpack.c.h.b16 %v4984
        %v5465 = vunpack.c.l.b16 %v4985
        %v5466 = vunpack.c.h.b16 %v4985
        %v5467 = vunpack.c.l.b16 %v4986
        %v5468 = vunpack.c.h.b16 %v4986
        %v5469 = vunpack.c.l.b16 %v4987
        %v5470 = vunpack.c.h.b16 %v4987
        %v5471 = vunpack.c.l.b16 %v4988
        %v5472 = vunpack.c.h.b16 %v4988
        %v5473 = vunpack.c.l.b16 %v4989
        %v5474 = vunpack.c.h.b16 %v4989
        %v5475 = vunpack.c.l.b16 %v4990
        %v5476 = vunpack.c.h.b16 %v4990
        %v5477 = vunpack.c.l.b16 %v4991
        %v5478 = vunpack.c.h.b16 %v4991
        %v5479 = vunpack.c.l.b16 %v4992
        %v5480 = vunpack.c.h.b16 %v4992
        %v5481 = vunpack.c.l.b16 %v4993
        %v5482 = vunpack.c.h.b16 %v4993
        %v5483 = vunpack.c.l.b16 %v4994
        %v5484 = vunpack.c.h.b16 %v4994
        %v5485 = vunpack.c.l.b16 %v4995
        %v5486 = vunpack.c.h.b16 %v4995
        %v5487 = vunpack.c.l.b16 %v4996
        %v5488 = vunpack.c.h.b16 %v4996
        %v5489 = vunpack.c.l.b16 %v4997
        %v5490 = vunpack.c.h.b16 %v4997
        %v5491 = vunpack.c.l.b16 %v4998
        %v5492 = vunpack.c.h.b16 %v4998
        %v5493 = vunpack.c.l.b16 %v4999
        %v5494 = vunpack.c.h.b16 %v4999
        %v5495 = vunpack.c.l.b16 %v5000
        %v5496 = vunpack.c.h.b16 %v5000
        %v5497 = vunpack.c.l.b16 %v5001
        %v5498 = vunpack.c.h.b16 %v5001
        %v5499 = vunpack.c.l.b16 %v5002
        %v5500 = vunpack.c.h.b16 %v5002
        %v5501 = vunpack.c.l.b16 %v5003
        %v5502 = vunpack.c.h.b16 %v5003
        %v5503 = vunpack.c.l.b16 %v5004
        %v5504 = vunpack.c.h.b16 %v5004
        %v5505 = vunpack.c.l.b16 %v5005
        %v5506 = vunpack.c.h.b16 %v5005
        %v5507 = vunpack.c.l.b16 %v5006
        %v5508 = vunpack.c.h.b16 %v5006
        %v5509 = vunpack.c.l.b16 %v5007
        %v5510 = vunpack.c.h.b16 %v5007
        %v5511 = vunpack.c.l.b16 %v5008
        %v5512 = vunpack.c.h.b16 %v5008
        %v5513 = vunpack.c.l.b16 %v5009
        %v5514 = vunpack.c.h.b16 %v5009
        %v5515 = vunpack.c.l.b16 %v5010
        %v5516 = vunpack.c.h.b16 %v5010
        %v5517 = vunpack.c.l.b16 %v5011
        %v5518 = vunpack.c.h.b16 %v5011
        %v5519 = vunpack.c.l.b16 %v5012
        %v5520 = vunpack.c.h.b16 %v5012
        %v5521 = vunpack.c.l.b16 %v5013
        %v5522 = vunpack.c.h.b16 %v5013
        %v5523 = vunpack.c.l.b16 %v5014
        %v5524 = vunpack.c.h.b16 %v5014
        %v5525 = vunpack.c.l.b16 %v5015
        %v5526 = vunpack.c.h.b16 %v5015
        %v5527 = vunpack.c.l.b16 %v5016
        %v5528 = vunpack.c.h.b16 %v5016
        %v5529 = vunpack.c.l.b16 %v5017
        %v5530 = vunpack.c.h.b16 %v5017
        %v5531 = vunpack.c.l.b16 %v5018
        %v5532 = vunpack.c.h.b16 %v5018
        %v5533 = vunpack.c.l.b16 %v5019
        %v5534 = vunpack.c.h.b16 %v5019
        %v5535 = vunpack.c.l.b16 %v5020
        %v5536 = vunpack.c.h.b16 %v5020
        %v5537 = vunpack.c.l.b16 %v5021
        %v5538 = vunpack.c.h.b16 %v5021
        %v5539 = vunpack.c.l.b16 %v5022
        %v5540 = vunpack.c.h.b16 %v5022
        %v5541 = vunpack.c.l.b16 %v5023
        %v5542 = vunpack.c.h.b16 %v5023
        %v5543 = vunpack.c.l.b16 %v5024
        %v5544 = vunpack.c.h.b16 %v5024
        %v5545 = vunpack.c.l.b16 %v5025
        %v5546 = vunpack.c.h.b16 %v5025
        %v5547 = vunpack.c.l.b16 %v5026
        %v5548 = vunpack.c.h.b16 %v5026
        %v5549 = vunpack.c.l.b16 %v5027
        %v5550 = vunpack.c.h.b16 %v5027
        %v5551 = vunpack.c.l.b16 %v5028
        %v5552 = vunpack.c.h.b16 %v5028
        %v5553 = vunpack.c.l.b16 %v5029
        %v5554 = vunpack.c.h.b16 %v5029
        %v5555 = vunpack.c.l.b16 %v5030
        %v5556 = vunpack.c.h.b16 %v5030
        %v5557 = vunpack.c.l.b16 %v5031
        %v5558 = vunpack.c.h.b16 %v5031
        %v5559 = vunpack.c.l.b16 %v5032
        %v5560 = vunpack.c.h.b16 %v5032
        %v5561 = vunpack.c.l.b16 %v5033
        %v5562 = vunpack.c.h.b16 %v5033
        %v5563 = vunpack.c.l.b16 %v5034
        %v5564 = vunpack.c.h.b16 %v5034
        %v5565 = vunpack.c.l.b16 %v5035
        %v5566 = vunpack.c.h.b16 %v5035
        %v5567 = vunpack.c.l.b16 %v5036
        %v5568 = vunpack.c.h.b16 %v5036
        %v5569 = vunpack.c.l.b16 %v5037
        %v5570 = vunpack.c.h.b16 %v5037
        %v5571 = vunpack.c.l.b16 %v5038
        %v5572 = vunpack.c.h.b16 %v5038
        %v5573 = vunpack.c.l.b16 %v5039
        %v5574 = vunpack.c.h.b16 %v5039
        %v5575 = vunpack.c.l.b16 %v5040
        %v5576 = vunpack.c.h.b16 %v5040
        %v5577 = vunpack.c.l.b16 %v5041
        %v5578 = vunpack.c.h.b16 %v5041
        %v5579 = vunpack.c.l.b16 %v5042
        %v5580 = vunpack.c.h.b16 %v5042
        %v5581 = vunpack.c.l.b16 %v5043
        %v5582 = vunpack.c.h.b16 %v5043
        %v5583 = vunpack.c.l.b16 %v5044
        %v5584 = vunpack.c.h.b16 %v5044
        %v5585 = vunpack.c.l.b16 %v5045
        %v5586 = vunpack.c.h.b16 %v5045
        %v5587 = vunpack.c.l.b16 %v5046
        %v5588 = vunpack.c.h.b16 %v5046
        %v5589 = vunpack.c.l.b16 %v5047
        %v5590 = vunpack.c.h.b16 %v5047
        %v5591 = vunpack.c.l.b16 %v5048
        %v5592 = vunpack.c.h.b16 %v5048
        %v5593 = vunpack.c.l.b16 %v5049
        %v5594 = vunpack.c.h.b16 %v5049
        %v5595 = vunpack.c.l.b16 %v5050
        %v5596 = vunpack.c.h.b16 %v5050
        %v5597 = vunpack.c.l.b16 %v5051
        %v5598 = vunpack.c.h.b16 %v5051
        %v5599 = vunpack.c.l.b16 %v5052
        %v5600 = vunpack.c.h.b16 %v5052
        %v5601 = vunpack.c.l.b16 %v5053
        %v5602 = vunpack.c.h.b16 %v5053
        %v5603 = vunpack.c.l.b16 %v5054
        %v5604 = vunpack.c.h.b16 %v5054
        %v5605 = vunpack.c.l.b16 %v5055
        %v5606 = vunpack.c.h.b16 %v5055
        %v5607 = vunpack.c.l.b16 %v5056
        %v5608 = vunpack.c.h.b16 %v5056
        %v5609 = vunpack.c.l.b16 %v5057
        %v5610 = vunpack.c.h.b16 %v5057
        %v5611 = vunpack.c.l.b16 %v5058
        %v5612 = vunpack.c.h.b16 %v5058
        %v5613 = vunpack.c.l.b16 %v5059
        %v5614 = vunpack.c.h.b16 %v5059
        %v5615 = vunpack.c.l.b16 %v5060
        %v5616 = vunpack.c.h.b16 %v5060
        %v5617 = vunpack.c.l.b16 %v5061
        %v5618 = vunpack.c.h.b16 %v5061
        %v5619 = vunpack.c.l.b16 %v5062
        %v5620 = vunpack.c.h.b16 %v5062
        %v5621 = vunpack.c.l.b16 %v5063
        %v5622 = vunpack.c.h.b16 %v5063
        %v5623 = vunpack.c.l.b16 %v5064
        %v5624 = vunpack.c.h.b16 %v5064
        %v5625 = vunpack.c.l.b16 %v5065
        %v5626 = vunpack.c.h.b16 %v5065
        %v5627 = vunpack.c.l.b16 %v5066
        %v5628 = vunpack.c.h.b16 %v5066
        %v5629 = vunpack.c.l.b16 %v5067
        %v5630 = vunpack.c.h.b16 %v5067
        %v5631 = vunpack.c.l.b16 %v5068
        %v5632 = vunpack.c.h.b16 %v5068
        %v5633 = vunpack.c.l.b16 %v5069
        %v5634 = vunpack.c.h.b16 %v5069
        %v5635 = vunpack.c.l.b16 %v5070
        %v5636 = vunpack.c.h.b16 %v5070
        %v5637 = vunpack.c.l.b16 %v5071
        %v5638 = vunpack.c.h.b16 %v5071
        %v5639 = vunpack.c.l.b16 %v5072
        %v5640 = vunpack.c.h.b16 %v5072
        %v5641 = vunpack.c.l.b16 %v5073
        %v5642 = vunpack.c.h.b16 %v5073
        %v5643 = vunpack.c.l.b16 %v5074
        %v5644 = vunpack.c.h.b16 %v5074
        %v5645 = vunpack.c.l.b16 %v5075
        %v5646 = vunpack.c.h.b16 %v5075
        %v5647 = vunpack.c.l.b16 %v5076
        %v5648 = vunpack.c.h.b16 %v5076
        %v5649 = vunpack.c.l.b16 %v5077
        %v5650 = vunpack.c.h.b16 %v5077
        %v5651 = vunpack.c.l.b16 %v5078
        %v5652 = vunpack.c.h.b16 %v5078
        %v5653 = vunpack.c.l.b16 %v5079
        %v5654 = vunpack.c.h.b16 %v5079
        %v5655 = vunpack.c.l.b16 %v5080
        %v5656 = vunpack.c.h.b16 %v5080
        %v5657 = vunpack.c.l.b16 %v5081
        %v5658 = vunpack.c.h.b16 %v5081
        %v5659 = vunpack.c.l.b16 %v5082
        %v5660 = vunpack.c.h.b16 %v5082
        %v5661 = vunpack.c.l.b16 %v5083
        %v5662 = vunpack.c.h.b16 %v5083
        %v5663 = vunpack.c.l.b16 %v5084
        %v5664 = vunpack.c.h.b16 %v5084
        %v5665 = vunpack.c.l.b16 %v5085
        %v5666 = vunpack.c.h.b16 %v5085
        %v5667 = vunpack.c.l.b16 %v5086
        %v5668 = vunpack.c.h.b16 %v5086
        %v5669 = vunpack.c.l.b16 %v5087
        %v5670 = vunpack.c.h.b16 %v5087
        %v5671 = vunpack.c.l.b16 %v5088
        %v5672 = vunpack.c.h.b16 %v5088
        %v5673 = vunpack.c.l.b16 %v5089
        %v5674 = vunpack.c.h.b16 %v5089
        %v5675 = vunpack.c.l.b16 %v5090
        %v5676 = vunpack.c.h.b16 %v5090
        %v5677 = vunpack.c.l.b16 %v5091
        %v5678 = vunpack.c.h.b16 %v5091
        %v5679 = vunpack.c.l.b16 %v5092
        %v5680 = vunpack.c.h.b16 %v5092
        %v5681 = vunpack.c.l.b16 %v5093
        %v5682 = vunpack.c.h.b16 %v5093
        %v5683 = vunpack.c.l.b16 %v5094
        %v5684 = vunpack.c.h.b16 %v5094
        %v5685 = vunpack.c.l.b16 %v5095
        %v5686 = vunpack.c.h.b16 %v5095
        %v5687 = vunpack.c.l.b16 %v5096
        %v5688 = vunpack.c.h.b16 %v5096
        %v5689 = vunpack.c.l.b16 %v5097
        %v5690 = vunpack.c.h.b16 %v5097
        %v5691 = vunpack.c.l.b16 %v5098
        %v5692 = vunpack.c.h.b16 %v5098
        %v5693 = vunpack.c.l.b16 %v5099
        %v5694 = vunpack.c.h.b16 %v5099
        %v5695 = vunpack.c.l.b16 %v5100
        %v5696 = vunpack.c.h.b16 %v5100
        %v5697 = vunpack.c.l.b16 %v5101
        %v5698 = vunpack.c.h.b16 %v5101
        %v5699 = vunpack.c.l.b16 %v5102
        %v5700 = vunpack.c.h.b16 %v5102
        %v5701 = vunpack.c.l.b16 %v5103
        %v5702 = vunpack.c.h.b16 %v5103
        %v5703 = vunpack.c.l.b16 %v5104
        %v5704 = vunpack.c.h.b16 %v5104
        %v5705 = vunpack.c.l.b16 %v5105
        %v5706 = vunpack.c.h.b16 %v5105
        %v5707 = vunpack.c.l.b16 %v5106
        %v5708 = vunpack.c.h.b16 %v5106
        %v5709 = vunpack.c.l.b16 %v5107
        %v5710 = vunpack.c.h.b16 %v5107
        %v5711 = vunpack.c.l.b16 %v5108
        %v5712 = vunpack.c.h.b16 %v5108
        %v5713 = vunpack.c.l.b16 %v5109
        %v5714 = vunpack.c.h.b16 %v5109
        %v5715 = vunpack.c.l.b16 %v5110
        %v5716 = vunpack.c.h.b16 %v5110
        %v5717 = vunpack.c.l.b16 %v5111
        %v5718 = vunpack.c.h.b16 %v5111
        %v5719 = vunpack.c.l.b16 %v5112
        %v5720 = vunpack.c.h.b16 %v5112
        %v5721 = vunpack.c.l.b16 %v5113
        %v5722 = vunpack.c.h.b16 %v5113
        %v5723 = vunpack.c.l.b16 %v5114
        %v5724 = vunpack.c.h.b16 %v5114
        %v5725 = vunpack.c.l.b16 %v5115
        %v5726 = vunpack.c.h.b16 %v5115
        %v5727 = vunpack.c.l.b16 %v5116
        %v5728 = vunpack.c.h.b16 %v5116
        %v5729 = vunpack.c.l.b16 %v5117
        %v5730 = vunpack.c.h.b16 %v5117
        %v5731 = vunpack.c.l.b16 %v5118
        %v5732 = vunpack.c.h.b16 %v5118
        %v5733 = vunpack.c.l.b16 %v5119
        %v5734 = vunpack.c.h.b16 %v5119
        %v5735 = vunpack.c.l.b16 %v5120
        %v5736 = vunpack.c.h.b16 %v5120
        %v5737 = vunpack.c.l.b16 %v5121
        %v5738 = vunpack.c.h.b16 %v5121
        %v5739 = vunpack.c.l.b16 %v5122
        %v5740 = vunpack.c.h.b16 %v5122
        %v5741 = vunpack.c.l.b16 %v5123
        %v5742 = vunpack.c.h.b16 %v5123
        %v5743 = vunpack.c.l.b16 %v5124
        %v5744 = vunpack.c.h.b16 %v5124
        %v5745 = vunpack.c.l.b16 %v5125
        %v5746 = vunpack.c.h.b16 %v5125
        %v5747 = vunpack.c.l.b16 %v5126
        %v5748 = vunpack.c.h.b16 %v5126
        %v5749 = vunpack.c.l.b16 %v5127
        %v5750 = vunpack.c.h.b16 %v5127
        %v5751 = vunpack.c.l.b16 %v5128
        %v5752 = vunpack.c.h.b16 %v5128
        %v5753 = vunpack.c.l.b16 %v5129
        %v5754 = vunpack.c.h.b16 %v5129
        %v5755 = vunpack.c.l.b16 %v5130
        %v5756 = vunpack.c.h.b16 %v5130
        %v5757 = vunpack.c.l.b16 %v5131
        %v5758 = vunpack.c.h.b16 %v5131
        %v5759 = vunpack.c.l.b16 %v5132
        %v5760 = vunpack.c.h.b16 %v5132
        %v5761 = vunpack.c.l.b16 %v5133
        %v5762 = vunpack.c.h.b16 %v5133
        %v5763 = vunpack.c.l.b16 %v5134
        %v5764 = vunpack.c.h.b16 %v5134
        %v5765 = vunpack.c.l.b16 %v5135
        %v5766 = vunpack.c.h.b16 %v5135
        %v5767 = vunpack.c.l.b16 %v5136
        %v5768 = vunpack.c.h.b16 %v5136
        %v5769 = vunpack.c.l.b16 %v5137
        %v5770 = vunpack.c.h.b16 %v5137
        %v5771 = vunpack.c.l.b16 %v5138
        %v5772 = vunpack.c.h.b16 %v5138
        %v5773 = vunpack.c.l.b16 %v5139
        %v5774 = vunpack.c.h.b16 %v5139
        %v5775 = vunpack.c.l.b16 %v5140
        %v5776 = vunpack.c.h.b16 %v5140
        %v5777 = vunpack.c.l.b16 %v5141
        %v5778 = vunpack.c.h.b16 %v5141
        %v5779 = vunpack.c.l.b16 %v5142
        %v5780 = vunpack.c.h.b16 %v5142
        %v5781 = vunpack.c.l.b16 %v5143
        %v5782 = vunpack.c.h.b16 %v5143
        %v5783 = vunpack.c.l.b16 %v5144
        %v5784 = vunpack.c.h.b16 %v5144
        %v5785 = vunpack.c.l.b16 %v5145
        %v5786 = vunpack.c.h.b16 %v5145
        %v5787 = vunpack.c.l.b16 %v5146
        %v5788 = vunpack.c.h.b16 %v5146
        %v5789 = vunpack.c.l.b16 %v5147
        %v5790 = vunpack.c.h.b16 %v5147
        %v5791 = vunpack.c.l.b16 %v5148
        %v5792 = vunpack.c.h.b16 %v5148
        %v5793 = vunpack.c.l.b16 %v5149
        %v5794 = vunpack.c.h.b16 %v5149
        %v5795 = vunpack.c.l.b16 %v5150
        %v5796 = vunpack.c.h.b16 %v5150
        %v5797 = vunpack.c.l.b16 %v5151
        %v5798 = vunpack.c.h.b16 %v5151
        %v5799 = vunpack.c.l.b16 %v5152
        %v5800 = vunpack.c.h.b16 %v5152
        %v5801 = vunpack.c.l.b16 %v5153
        %v5802 = vunpack.c.h.b16 %v5153
        %v5803 = vunpack.c.l.b16 %v5154
        %v5804 = vunpack.c.h.b16 %v5154
        %v5805 = vunpack.c.l.b16 %v5155
        %v5806 = vunpack.c.h.b16 %v5155
        %v5807 = vunpack.c.l.b16 %v5156
        %v5808 = vunpack.c.h.b16 %v5156
        %v5809 = vunpack.c.l.b16 %v5157
        %v5810 = vunpack.c.h.b16 %v5157
        %v5811 = vunpack.c.l.b16 %v5158
        %v5812 = vunpack.c.h.b16 %v5158
        %v5813 = vunpack.c.l.b16 %v5159
        %v5814 = vunpack.c.h.b16 %v5159
        %v5815 = vunpack.c.l.b16 %v5160
        %v5816 = vunpack.c.h.b16 %v5160
        %v5817 = vunpack.c.l.b16 %v5161
        %v5818 = vunpack.c.h.b16 %v5161
        %v5819 = vunpack.c.l.b16 %v5162
        %v5820 = vunpack.c.h.b16 %v5162
        %v5821 = vunpack.c.l.b16 %v5163
        %v5822 = vunpack.c.h.b16 %v5163
        %v5823 = vunpack.c.l.b16 %v5164
        %v5824 = vunpack.c.h.b16 %v5164
        %v5825 = vunpack.c.l.b16 %v5165
        %v5826 = vunpack.c.h.b16 %v5165
        %v5827 = vunpack.c.l.b16 %v5166
        %v5828 = vunpack.c.h.b16 %v5166
        %v5829 = vunpack.c.l.b16 %v5167
        %v5830 = vunpack.c.h.b16 %v5167
        %v5831 = vunpack.c.l.b16 %v5168
        %v5832 = vunpack.c.h.b16 %v5168
        %v5833 = vunpack.c.l.b16 %v5169
        %v5834 = vunpack.c.h.b16 %v5169
        %v5835 = vunpack.c.l.b16 %v5170
        %v5836 = vunpack.c.h.b16 %v5170
        %v5837 = vunpack.c.l.b16 %v5171
        %v5838 = vunpack.c.h.b16 %v5171
        %v5839 = vunpack.c.l.b16 %v5172
        %v5840 = vunpack.c.h.b16 %v5172
        %v5841 = vunpack.c.l.b16 %v5173
        %v5842 = vunpack.c.h.b16 %v5173
        %v5843 = vunpack.c.l.b16 %v5174
        %v5844 = vunpack.c.h.b16 %v5174
        %v5845 = vunpack.c.l.b16 %v5175
        %v5846 = vunpack.c.h.b16 %v5175
        %v5847 = vunpack.c.l.b16 %v5176
        %v5848 = vunpack.c.h.b16 %v5176
        %v5849 = vpack.c.b16 %v5415, %v5401
        %v5850 = vpack.c.b16 %v5416, %v5402
        %v5851 = vpack.c.b16 %v5417, %v5403
        %v5852 = vpack.c.b16 %v5418, %v5404
        %v5853 = vpack.c.b16 %v5419, %v5405
        %v5854 = vpack.c.b16 %v5420, %v5406
        %v5855 = vpack.c.b16 %v5421, %v5407
        %v5856 = vpack.c.b16 %v5422, %v5408
        %v5857 = vpack.c.b16 %v5423, %v5409
        %v5858 = vpack.c.b16 %v5424, %v5410
        %v5859 = vpack.c.b16 %v5425, %v5411
        %v5860 = vpack.c.b16 %v5426, %v5412
        %v5861 = vpack.c.b16 %v5427, %v5413
        %v5862 = vpack.c.b16 %v5428, %v5414
        %v5863 = vpack.c.b16 %v5443, %v5429
        %v5864 = vpack.c.b16 %v5444, %v5430
        %v5865 = vpack.c.b16 %v5445, %v5431
        %v5866 = vpack.c.b16 %v5446, %v5432
        %v5867 = vpack.c.b16 %v5447, %v5433
        %v5868 = vpack.c.b16 %v5448, %v5434
        %v5869 = vpack.c.b16 %v5449, %v5435
        %v5870 = vpack.c.b16 %v5450, %v5436
        %v5871 = vpack.c.b16 %v5451, %v5437
        %v5872 = vpack.c.b16 %v5452, %v5438
        %v5873 = vpack.c.b16 %v5453, %v5439
        %v5874 = vpack.c.b16 %v5454, %v5440
        %v5875 = vpack.c.b16 %v5455, %v5441
        %v5876 = vpack.c.b16 %v5456, %v5442
        %v5877 = vpack.c.b16 %v5471, %v5457
        %v5878 = vpack.c.b16 %v5472, %v5458
        %v5879 = vpack.c.b16 %v5473, %v5459
        %v5880 = vpack.c.b16 %v5474, %v5460
        %v5881 = vpack.c.b16 %v5475, %v5461
        %v5882 = vpack.c.b16 %v5476, %v5462
        %v5883 = vpack.c.b16 %v5477, %v5463
        %v5884 = vpack.c.b16 %v5478, %v5464
        %v5885 = vpack.c.b16 %v5479, %v5465
        %v5886 = vpack.c.b16 %v5480, %v5466
        %v5887 = vpack.c.b16 %v5481, %v5467
        %v5888 = vpack.c.b16 %v5482, %v5468
        %v5889 = vpack.c.b16 %v5483, %v5469
        %v5890 = vpack.c.b16 %v5484, %v5470
        %v5891 = vpack.c.b16 %v5499, %v5485
        %v5892 = vpack.c.b16 %v5500, %v5486
        %v5893 = vpack.c.b16 %v5501, %v5487
        %v5894 = vpack.c.b16 %v5502, %v5488
        %v5895 = vpack.c.b16 %v5503, %v5489
        %v5896 = vpack.c.b16 %v5504, %v5490
        %v5897 = vpack.c.b16 %v5505, %v5491
        %v5898 = vpack.c.b16 %v5506, %v5492
        %v5899 = vpack.c.b16 %v5507, %v5493
        %v5900 = vpack.c.b16 %v5508, %v5494
        %v5901 = vpack.c.b16 %v5509, %v5495
        %v5902 = vpack.c.b16 %v5510, %v5496
        %v5903 = vpack.c.b16 %v5511, %v5497
        %v5904 = vpack.c.b16 %v5512, %v5498
        %v5905 = vpack.c.b16 %v5527, %v5513
        %v5906 = vpack.c.b16 %v5528, %v5514
        %v5907 = vpack.c.b16 %v5529, %v5515
        %v5908 = vpack.c.b16 %v5530, %v5516
        %v5909 = vpack.c.b16 %v5531, %v5517
        %v5910 = vpack.c.b16 %v5532, %v5518
        %v5911 = vpack.c.b16 %v5533, %v5519
        %v5912 = vpack.c.b16 %v5534, %v5520
        %v5913 = vpack.c.b16 %v5535, %v5521
        %v5914 = vpack.c.b16 %v5536, %v5522
        %v5915 = vpack.c.b16 %v5537, %v5523
        %v5916 = vpack.c.b16 %v5538, %v5524
        %v5917 = vpack.c.b16 %v5539, %v5525
        %v5918 = vpack.c.b16 %v5540, %v5526
        %v5919 = vpack.c.b16 %v5555, %v5541
        %v5920 = vpack.c.b16 %v5556, %v5542
        %v5921 = vpack.c.b16 %v5557, %v5543
        %v5922 = vpack.c.b16 %v5558, %v5544
        %v5923 = vpack.c.b16 %v5559, %v5545
        %v5924 = vpack.c.b16 %v5560, %v5546
        %v5925 = vpack.c.b16 %v5561, %v5547
        %v5926 = vpack.c.b16 %v5562, %v5548
        %v5927 = vpack.c.b16 %v5563, %v5549
        %v5928 = vpack.c.b16 %v5564, %v5550
        %v5929 = vpack.c.b16 %v5565, %v5551
        %v5930 = vpack.c.b16 %v5566, %v5552
        %v5931 = vpack.c.b16 %v5567, %v5553
        %v5932 = vpack.c.b16 %v5568, %v5554
        %v5933 = vpack.c.b16 %v5583, %v5569
        %v5934 = vpack.c.b16 %v5584, %v5570
        %v5935 = vpack.c.b16 %v5585, %v5571
        %v5936 = vpack.c.b16 %v5586, %v5572
        %v5937 = vpack.c.b16 %v5587, %v5573
        %v5938 = vpack.c.b16 %v5588, %v5574
        %v5939 = vpack.c.b16 %v5589, %v5575
        %v5940 = vpack.c.b16 %v5590, %v5576
        %v5941 = vpack.c.b16 %v5591, %v5577
        %v5942 = vpack.c.b16 %v5592, %v5578
        %v5943 = vpack.c.b16 %v5593, %v5579
        %v5944 = vpack.c.b16 %v5594, %v5580
        %v5945 = vpack.c.b16 %v5595, %v5581
        %v5946 = vpack.c.b16 %v5596, %v5582
        %v5947 = vpack.c.b16 %v5611, %v5597
        %v5948 = vpack.c.b16 %v5612, %v5598
        %v5949 = vpack.c.b16 %v5613, %v5599
        %v5950 = vpack.c.b16 %v5614, %v5600
        %v5951 = vpack.c.b16 %v5615, %v5601
        %v5952 = vpack.c.b16 %v5616, %v5602
        %v5953 = vpack.c.b16 %v5617, %v5603
        %v5954 = vpack.c.b16 %v5618, %v5604
        %v5955 = vpack.c.b16 %v5619, %v5605
        %v5956 = vpack.c.b16 %v5620, %v5606
        %v5957 = vpack.c.b16 %v5621, %v5607
        %v5958 = vpack.c.b16 %v5622, %v5608
        %v5959 = vpack.c.b16 %v5623, %v5609
        %v5960 = vpack.c.b16 %v5624, %v5610
        %v5961 = vpack.c.b16 %v5639, %v5625
        %v5962 = vpack.c.b16 %v5640, %v5626
        %v5963 = vpack.c.b16 %v5641, %v5627
        %v5964 = vpack.c.b16 %v5642, %v5628
        %v5965 = vpack.c.b16 %v5643, %v5629
        %v5966 = vpack.c.b16 %v5644, %v5630
        %v5967 = vpack.c.b16 %v5645, %v5631
        %v5968 = vpack.c.b16 %v5646, %v5632
        %v5969 = vpack.c.b16 %v5647, %v5633
        %v5970 = vpack.c.b16 %v5648, %v5634
        %v5971 = vpack.c.b16 %v5649, %v5635
        %v5972 = vpack.c.b16 %v5650, %v5636
        %v5973 = vpack.c.b16 %v5651, %v5637
        %v5974 = vpack.c.b16 %v5652, %v5638
        %v5975 = vpack.c.b16 %v5667, %v5653
        %v5976 = vpack.c.b16 %v5668, %v5654
        %v5977 = vpack.c.b16 %v5669, %v5655
        %v5978 = vpack.c.b16 %v5670, %v5656
        %v5979 = vpack.c.b16 %v5671, %v5657
        %v5980 = vpack.c.b16 %v5672, %v5658
        %v5981 = vpack.c.b16 %v5673, %v5659
        %v5982 = vpack.c.b16 %v5674, %v5660
        %v5983 = vpack.c.b16 %v5675, %v5661
        %v5984 = vpack.c.b16 %v5676, %v5662
        %v5985 = vpack.c.b16 %v5677, %v5663
        %v5986 = vpack.c.b16 %v5678, %v5664
        %v5987 = vpack.c.b16 %v5679, %v5665
        %v5988 = vpack.c.b16 %v5680, %v5666
        %v5989 = vpack.c.b16 %v5695, %v5681
        %v5990 = vpack.c.b16 %v5696, %v5682
        %v5991 = vpack.c.b16 %v5697, %v5683
        %v5992 = vpack.c.b16 %v5698, %v5684
        %v5993 = vpack.c.b16 %v5699, %v5685
        %v5994 = vpack.c.b16 %v5700, %v5686
        %v5995 = vpack.c.b16 %v5701, %v5687
        %v5996 = vpack.c.b16 %v5702, %v5688
        %v5997 = vpack.c.b16 %v5703, %v5689
        %v5998 = vpack.c.b16 %v5704, %v5690
        %v5999 = vpack.c.b16 %v5705, %v5691
        %v6000 = vpack.c.b16 %v5706, %v5692
        %v6001 = vpack.c.b16 %v5707, %v5693
        %v6002 = vpack.c.b16 %v5708, %v5694
        %v6003 = vpack.c.b16 %v5723, %v5709
        %v6004 = vpack.c.b16 %v5724, %v5710
        %v6005 = vpack.c.b16 %v5725, %v5711
        %v6006 = vpack.c.b16 %v5726, %v5712
        %v6007 = vpack.c.b16 %v5727, %v5713
        %v6008 = vpack.c.b16 %v5728, %v5714
        %v6009 = vpack.c.b16 %v5729, %v5715
        %v6010 = vpack.c.b16 %v5730, %v5716
        %v6011 = vpack.c.b16 %v5731, %v5717
        %v6012 = vpack.c.b16 %v5732, %v5718
        %v6013 = vpack.c.b16 %v5733, %v5719
        %v6014 = vpack.c.b16 %v5734, %v5720
        %v6015 = vpack.c.b16 %v5735, %v5721
        %v6016 = vpack.c.b16 %v5736, %v5722
        %v6017 = vpack.c.b16 %v5751, %v5737
        %v6018 = vpack.c.b16 %v5752, %v5738
        %v6019 = vpack.c.b16 %v5753, %v5739
        %v6020 = vpack.c.b16 %v5754, %v5740
        %v6021 = vpack.c.b16 %v5755, %v5741
        %v6022 = vpack.c.b16 %v5756, %v5742
        %v6023 = vpack.c.b16 %v5757, %v5743
        %v6024 = vpack.c.b16 %v5758, %v5744
        %v6025 = vpack.c.b16 %v5759, %v5745
        %v6026 = vpack.c.b16 %v5760, %v5746
        %v6027 = vpack.c.b16 %v5761, %v5747
        %v6028 = vpack.c.b16 %v5762, %v5748
        %v6029 = vpack.c.b16 %v5763, %v5749
        %v6030 = vpack.c.b16 %v5764, %v5750
        %v6031 = vpack.c.b16 %v5779, %v5765
        %v6032 = vpack.c.b16 %v5780, %v5766
        %v6033 = vpack.c.b16 %v5781, %v5767
        %v6034 = vpack.c.b16 %v5782, %v5768
        %v6035 = vpack.c.b16 %v5783, %v5769
        %v6036 = vpack.c.b16 %v5784, %v5770
        %v6037 = vpack.c.b16 %v5785, %v5771
        %v6038 = vpack.c.b16 %v5786, %v5772
        %v6039 = vpack.c.b16 %v5787, %v5773
        %v6040 = vpack.c.b16 %v5788, %v5774
        %v6041 = vpack.c.b16 %v5789, %v5775
        %v6042 = vpack.c.b16 %v5790, %v5776
        %v6043 = vpack.c.b16 %v5791, %v5777
        %v6044 = vpack.c.b16 %v5792, %v5778
        %v6045 = vpack.c.b16 %v5807, %v5793
        %v6046 = vpack.c.b16 %v5808, %v5794
        %v6047 = vpack.c.b16 %v5809, %v5795
        %v6048 = vpack.c.b16 %v5810, %v5796
        %v6049 = vpack.c.b16 %v5811, %v5797
        %v6050 = vpack.c.b16 %v5812, %v5798
        %v6051 = vpack.c.b16 %v5813, %v5799
        %v6052 = vpack.c.b16 %v5814, %v5800
        %v6053 = vpack.c.b16 %v5815, %v5801
        %v6054 = vpack.c.b16 %v5816, %v5802
        %v6055 = vpack.c.b16 %v5817, %v5803
        %v6056 = vpack.c.b16 %v5818, %v5804
        %v6057 = vpack.c.b16 %v5819, %v5805
        %v6058 = vpack.c.b16 %v5820, %v5806
        %v6059 = vpack.c.b16 %v5835, %v5821
        %v6060 = vpack.c.b16 %v5836, %v5822
        %v6061 = vpack.c.b16 %v5837, %v5823
        %v6062 = vpack.c.b16 %v5838, %v5824
        %v6063 = vpack.c.b16 %v5839, %v5825
        %v6064 = vpack.c.b16 %v5840, %v5826
        %v6065 = vpack.c.b16 %v5841, %v5827
        %v6066 = vpack.c.b16 %v5842, %v5828
        %v6067 = vpack.c.b16 %v5843, %v5829
        %v6068 = vpack.c.b16 %v5844, %v5830
        %v6069 = vpack.c.b16 %v5845, %v5831
        %v6070 = vpack.c.b16 %v5846, %v5832
        %v6071 = vpack.c.b16 %v5847, %v5833
        %v6072 = vpack.c.b16 %v5848, %v5834
        %6297 = vmatprep.subr.bf16.mxu0 %v5948
        %6298 = vmatpush1.bf16.msra.mxu0 %v5947
        %6299 = vmatprep.subr.bf16.mxu0 %v5934
        %6300 = vmatpush1.bf16.msra.mxu0 %v5933
        %6301 = vmatprep.subr.bf16.mxu0 %v5920
        %6302 = vmatpush1.bf16.msra.mxu0 %v5919
        %6303 = vmatprep.subr.bf16.mxu0 %v5906
        %6304 = vmatpush1.bf16.msra.mxu0 %v5905
        %6305 = vmatprep.subr.bf16.mxu0 %v5892
        %6306 = vmatpush1.bf16.msra.mxu0 %v5891
        %6307 = vmatprep.subr.bf16.mxu0 %v5878
        %6308 = vmatpush1.bf16.msra.mxu0 %v5877
        %6309 = vmatprep.subr.bf16.mxu0 %v5864
        %6310 = vmatpush1.bf16.msra.mxu0 %v5863
        %6311 = vmatprep.subr.bf16.mxu0 %v5850
        %6312 = vmatpush1.bf16.msra.mxu0 %v5849
        %6313 = vmatprep.subr.bf16.mxu0 %v6060
        %6314 = vmatpush2.bf16.msra.mxu0 %v6059
        %6315 = vmatprep.subr.bf16.mxu0 %v6046
        %6316 = vmatpush2.bf16.msra.mxu0 %v6045
        %6317 = vmatprep.subr.bf16.mxu0 %v6032
        %6318 = vmatpush2.bf16.msra.mxu0 %v6031
        %6319 = vmatprep.subr.bf16.mxu0 %v6018
        %6320 = vmatpush2.bf16.msra.mxu0 %v6017
        %6321 = vmatprep.subr.bf16.mxu0 %v6004
        %6322 = vmatpush2.bf16.msra.mxu0 %v6003
        %6323 = vmatprep.subr.bf16.mxu0 %v5990
        %6324 = vmatpush2.bf16.msra.mxu0 %v5989
        %6325 = vmatprep.subr.bf16.mxu0 %v5976
        %6326 = vmatpush2.bf16.msra.mxu0 %v5975
        %6327 = vmatprep.subr.bf16.mxu0 %v5962
        %6328 = vmatpush2.bf16.msra.mxu0 %v5961
        %6329 = vmatprep.mubr.bf16.mxu0 %v4946
        %6330 = vmatmul.mubr.bf16.gmra.mxu0 %v4945
        %v6331 = vpop.f32.mrf.mxu0
        %v6332 = vadd.f32 0.0, %v6331
        %v6333 = vpop.f32.mrf.mxu0
        %v6334 = vadd.f32 0.0, %v6333
        %v6335 = vpop.f32.mrf.mxu0
        %v6336 = vadd.f32 0.0, %v6335
        %v6337 = vpop.f32.mrf.mxu0
        %v6338 = vadd.f32 0.0, %v6337
        %6339 = vmatprep.mubr.bf16.mxu0 %v4948
        %6340 = vmatmul.mubr.bf16.gmra.mxu0 %v4947
        %v6341 = vpop.f32.mrf.mxu0
        %v6342 = vadd.f32 0.0, %v6341
        %v6343 = vpop.f32.mrf.mxu0
        %v6344 = vadd.f32 0.0, %v6343
        %v6345 = vpop.f32.mrf.mxu0
        %v6346 = vadd.f32 0.0, %v6345
        %v6347 = vpop.f32.mrf.mxu0
        %v6348 = vadd.f32 0.0, %v6347
        %6349 = vmatprep.mubr.bf16.mxu0 %v4950
        %6350 = vmatmul.mubr.bf16.gmra.mxu0 %v4949
        %v6351 = vpop.f32.mrf.mxu0
        %v6352 = vadd.f32 0.0, %v6351
        %v6353 = vpop.f32.mrf.mxu0
        %v6354 = vadd.f32 0.0, %v6353
        %v6355 = vpop.f32.mrf.mxu0
        %v6356 = vadd.f32 0.0, %v6355
        %v6357 = vpop.f32.mrf.mxu0
        %v6358 = vadd.f32 0.0, %v6357
        %6359 = vmatprep.mubr.bf16.mxu0 %v4952
        %6360 = vmatmul.mubr.bf16.gmra.mxu0 %v4951
        %v6361 = vpop.f32.mrf.mxu0
        %v6362 = vadd.f32 0.0, %v6361
        %v6363 = vpop.f32.mrf.mxu0
        %v6364 = vadd.f32 0.0, %v6363
        %v6365 = vpop.f32.mrf.mxu0
        %v6366 = vadd.f32 0.0, %v6365
        %v6367 = vpop.f32.mrf.mxu0
        %v6368 = vadd.f32 0.0, %v6367
        %6369 = vdwg.mxu0
        %6370 = vmatprep.subr.bf16.mxu0 %v5950
        %6371 = vmatpush1.bf16.msra.mxu0 %v5949
        %6372 = vmatprep.subr.bf16.mxu0 %v5936
        %6373 = vmatpush1.bf16.msra.mxu0 %v5935
        %6374 = vmatprep.subr.bf16.mxu0 %v5922
        %6375 = vmatpush1.bf16.msra.mxu0 %v5921
        %6376 = vmatprep.subr.bf16.mxu0 %v5908
        %6377 = vmatpush1.bf16.msra.mxu0 %v5907
        %6378 = vmatprep.subr.bf16.mxu0 %v5894
        %6379 = vmatpush1.bf16.msra.mxu0 %v5893
        %6380 = vmatprep.subr.bf16.mxu0 %v5880
        %6381 = vmatpush1.bf16.msra.mxu0 %v5879
        %6382 = vmatprep.subr.bf16.mxu0 %v5866
        %6383 = vmatpush1.bf16.msra.mxu0 %v5865
        %6384 = vmatprep.subr.bf16.mxu0 %v5852
        %6385 = vmatpush1.bf16.msra.mxu0 %v5851
        %6386 = vmatprep.subr.bf16.mxu0 %v6062
        %6387 = vmatpush2.bf16.msra.mxu0 %v6061
        %6388 = vmatprep.subr.bf16.mxu0 %v6048
        %6389 = vmatpush2.bf16.msra.mxu0 %v6047
        %6390 = vmatprep.subr.bf16.mxu0 %v6034
        %6391 = vmatpush2.bf16.msra.mxu0 %v6033
        %6392 = vmatprep.subr.bf16.mxu0 %v6020
        %6393 = vmatpush2.bf16.msra.mxu0 %v6019
        %6394 = vmatprep.subr.bf16.mxu0 %v6006
        %6395 = vmatpush2.bf16.msra.mxu0 %v6005
        %6396 = vmatprep.subr.bf16.mxu0 %v5992
        %6397 = vmatpush2.bf16.msra.mxu0 %v5991
        %6398 = vmatprep.subr.bf16.mxu0 %v5978
        %6399 = vmatpush2.bf16.msra.mxu0 %v5977
        %6400 = vmatprep.subr.bf16.mxu0 %v5964
        %6401 = vmatpush2.bf16.msra.mxu0 %v5963
        %6402 = vmatprep.mubr.bf16.mxu0 %v4946
        %6403 = vmatmul.mubr.bf16.gmra.mxu0 %v4945
        %v6404 = vpop.f32.mrf.mxu0
        %v6405 = vadd.f32 0.0, %v6404
        %v6406 = vpop.f32.mrf.mxu0
        %v6407 = vadd.f32 0.0, %v6406
        %v6408 = vpop.f32.mrf.mxu0
        %v6409 = vadd.f32 0.0, %v6408
        %v6410 = vpop.f32.mrf.mxu0
        %v6411 = vadd.f32 0.0, %v6410
        %6412 = vmatprep.mubr.bf16.mxu0 %v4948
        %6413 = vmatmul.mubr.bf16.gmra.mxu0 %v4947
        %v6414 = vpop.f32.mrf.mxu0
        %v6415 = vadd.f32 0.0, %v6414
        %v6416 = vpop.f32.mrf.mxu0
        %v6417 = vadd.f32 0.0, %v6416
        %v6418 = vpop.f32.mrf.mxu0
        %v6419 = vadd.f32 0.0, %v6418
        %v6420 = vpop.f32.mrf.mxu0
        %v6421 = vadd.f32 0.0, %v6420
        %6422 = vmatprep.mubr.bf16.mxu0 %v4950
        %6423 = vmatmul.mubr.bf16.gmra.mxu0 %v4949
        %v6424 = vpop.f32.mrf.mxu0
        %v6425 = vadd.f32 0.0, %v6424
        %v6426 = vpop.f32.mrf.mxu0
        %v6427 = vadd.f32 0.0, %v6426
        %v6428 = vpop.f32.mrf.mxu0
        %v6429 = vadd.f32 0.0, %v6428
        %v6430 = vpop.f32.mrf.mxu0
        %v6431 = vadd.f32 0.0, %v6430
        %6432 = vmatprep.mubr.bf16.mxu0 %v4952
        %6433 = vmatmul.mubr.bf16.gmra.mxu0 %v4951
        %v6434 = vpop.f32.mrf.mxu0
        %v6435 = vadd.f32 0.0, %v6434
        %v6436 = vpop.f32.mrf.mxu0
        %v6437 = vadd.f32 0.0, %v6436
        %v6438 = vpop.f32.mrf.mxu0
        %v6439 = vadd.f32 0.0, %v6438
        %v6440 = vpop.f32.mrf.mxu0
        %v6441 = vadd.f32 0.0, %v6440
        %6442 = vdwg.mxu0
        %6443 = vmatprep.subr.bf16.mxu0 %v5952
        %6444 = vmatpush1.bf16.msra.mxu0 %v5951
        %6445 = vmatprep.subr.bf16.mxu0 %v5938
        %6446 = vmatpush1.bf16.msra.mxu0 %v5937
        %6447 = vmatprep.subr.bf16.mxu0 %v5924
        %6448 = vmatpush1.bf16.msra.mxu0 %v5923
        %6449 = vmatprep.subr.bf16.mxu0 %v5910
        %6450 = vmatpush1.bf16.msra.mxu0 %v5909
        %6451 = vmatprep.subr.bf16.mxu0 %v5896
        %6452 = vmatpush1.bf16.msra.mxu0 %v5895
        %6453 = vmatprep.subr.bf16.mxu0 %v5882
        %6454 = vmatpush1.bf16.msra.mxu0 %v5881
        %6455 = vmatprep.subr.bf16.mxu0 %v5868
        %6456 = vmatpush1.bf16.msra.mxu0 %v5867
        %6457 = vmatprep.subr.bf16.mxu0 %v5854
        %6458 = vmatpush1.bf16.msra.mxu0 %v5853
        %6459 = vmatprep.subr.bf16.mxu0 %v6064
        %6460 = vmatpush2.bf16.msra.mxu0 %v6063
        %6461 = vmatprep.subr.bf16.mxu0 %v6050
        %6462 = vmatpush2.bf16.msra.mxu0 %v6049
        %6463 = vmatprep.subr.bf16.mxu0 %v6036
        %6464 = vmatpush2.bf16.msra.mxu0 %v6035
        %6465 = vmatprep.subr.bf16.mxu0 %v6022
        %6466 = vmatpush2.bf16.msra.mxu0 %v6021
        %6467 = vmatprep.subr.bf16.mxu0 %v6008
        %6468 = vmatpush2.bf16.msra.mxu0 %v6007
        %6469 = vmatprep.subr.bf16.mxu0 %v5994
        %6470 = vmatpush2.bf16.msra.mxu0 %v5993
        %6471 = vmatprep.subr.bf16.mxu0 %v5980
        %6472 = vmatpush2.bf16.msra.mxu0 %v5979
        %6473 = vmatprep.subr.bf16.mxu0 %v5966
        %6474 = vmatpush2.bf16.msra.mxu0 %v5965
        %6475 = vmatprep.mubr.bf16.mxu0 %v4946
        %6476 = vmatmul.mubr.bf16.gmra.mxu0 %v4945
        %v6477 = vpop.f32.mrf.mxu0
        %v6478 = vadd.f32 0.0, %v6477
        %v6479 = vpop.f32.mrf.mxu0
        %v6480 = vadd.f32 0.0, %v6479
        %v6481 = vpop.f32.mrf.mxu0
        %v6482 = vadd.f32 0.0, %v6481
        %v6483 = vpop.f32.mrf.mxu0
        %v6484 = vadd.f32 0.0, %v6483
        %6485 = vmatprep.mubr.bf16.mxu0 %v4948
        %6486 = vmatmul.mubr.bf16.gmra.mxu0 %v4947
        %v6487 = vpop.f32.mrf.mxu0
        %v6488 = vadd.f32 0.0, %v6487
        %v6489 = vpop.f32.mrf.mxu0
        %v6490 = vadd.f32 0.0, %v6489
        %v6491 = vpop.f32.mrf.mxu0
        %v6492 = vadd.f32 0.0, %v6491
        %v6493 = vpop.f32.mrf.mxu0
        %v6494 = vadd.f32 0.0, %v6493
        %6495 = vmatprep.mubr.bf16.mxu0 %v4950
        %6496 = vmatmul.mubr.bf16.gmra.mxu0 %v4949
        %v6497 = vpop.f32.mrf.mxu0
        %v6498 = vadd.f32 0.0, %v6497
        %v6499 = vpop.f32.mrf.mxu0
        %v6500 = vadd.f32 0.0, %v6499
        %v6501 = vpop.f32.mrf.mxu0
        %v6502 = vadd.f32 0.0, %v6501
        %v6503 = vpop.f32.mrf.mxu0
        %v6504 = vadd.f32 0.0, %v6503
        %6505 = vmatprep.mubr.bf16.mxu0 %v4952
        %6506 = vmatmul.mubr.bf16.gmra.mxu0 %v4951
        %v6507 = vpop.f32.mrf.mxu0
        %v6508 = vadd.f32 0.0, %v6507
        %v6509 = vpop.f32.mrf.mxu0
        %v6510 = vadd.f32 0.0, %v6509
        %v6511 = vpop.f32.mrf.mxu0
        %v6512 = vadd.f32 0.0, %v6511
        %v6513 = vpop.f32.mrf.mxu0
        %v6514 = vadd.f32 0.0, %v6513
        %6515 = vdwg.mxu0
        %6516 = vmatprep.subr.bf16.mxu0 %v5954
        %6517 = vmatpush1.bf16.msra.mxu0 %v5953
        %6518 = vmatprep.subr.bf16.mxu0 %v5940
        %6519 = vmatpush1.bf16.msra.mxu0 %v5939
        %6520 = vmatprep.subr.bf16.mxu0 %v5926
        %6521 = vmatpush1.bf16.msra.mxu0 %v5925
        %6522 = vmatprep.subr.bf16.mxu0 %v5912
        %6523 = vmatpush1.bf16.msra.mxu0 %v5911
        %6524 = vmatprep.subr.bf16.mxu0 %v5898
        %6525 = vmatpush1.bf16.msra.mxu0 %v5897
        %6526 = vmatprep.subr.bf16.mxu0 %v5884
        %6527 = vmatpush1.bf16.msra.mxu0 %v5883
        %6528 = vmatprep.subr.bf16.mxu0 %v5870
        %6529 = vmatpush1.bf16.msra.mxu0 %v5869
        %6530 = vmatprep.subr.bf16.mxu0 %v5856
        %6531 = vmatpush1.bf16.msra.mxu0 %v5855
        %6532 = vmatprep.subr.bf16.mxu0 %v6066
        %6533 = vmatpush2.bf16.msra.mxu0 %v6065
        %6534 = vmatprep.subr.bf16.mxu0 %v6052
        %6535 = vmatpush2.bf16.msra.mxu0 %v6051
        %6536 = vmatprep.subr.bf16.mxu0 %v6038
        %6537 = vmatpush2.bf16.msra.mxu0 %v6037
        %6538 = vmatprep.subr.bf16.mxu0 %v6024
        %6539 = vmatpush2.bf16.msra.mxu0 %v6023
        %6540 = vmatprep.subr.bf16.mxu0 %v6010
        %6541 = vmatpush2.bf16.msra.mxu0 %v6009
        %6542 = vmatprep.subr.bf16.mxu0 %v5996
        %6543 = vmatpush2.bf16.msra.mxu0 %v5995
        %6544 = vmatprep.subr.bf16.mxu0 %v5982
        %6545 = vmatpush2.bf16.msra.mxu0 %v5981
        %6546 = vmatprep.subr.bf16.mxu0 %v5968
        %6547 = vmatpush2.bf16.msra.mxu0 %v5967
        %6548 = vmatprep.mubr.bf16.mxu0 %v4946
        %6549 = vmatmul.mubr.bf16.gmra.mxu0 %v4945
        %v6550 = vpop.f32.mrf.mxu0
        %v6551 = vadd.f32 0.0, %v6550
        %v6552 = vpop.f32.mrf.mxu0
        %v6553 = vadd.f32 0.0, %v6552
        %v6554 = vpop.f32.mrf.mxu0
        %v6555 = vadd.f32 0.0, %v6554
        %v6556 = vpop.f32.mrf.mxu0
        %v6557 = vadd.f32 0.0, %v6556
        %6558 = vmatprep.mubr.bf16.mxu0 %v4948
        %6559 = vmatmul.mubr.bf16.gmra.mxu0 %v4947
        %v6560 = vpop.f32.mrf.mxu0
        %v6561 = vadd.f32 0.0, %v6560
        %v6562 = vpop.f32.mrf.mxu0
        %v6563 = vadd.f32 0.0, %v6562
        %v6564 = vpop.f32.mrf.mxu0
        %v6565 = vadd.f32 0.0, %v6564
        %v6566 = vpop.f32.mrf.mxu0
        %v6567 = vadd.f32 0.0, %v6566
        %6568 = vmatprep.mubr.bf16.mxu0 %v4950
        %6569 = vmatmul.mubr.bf16.gmra.mxu0 %v4949
        %v6570 = vpop.f32.mrf.mxu0
        %v6571 = vadd.f32 0.0, %v6570
        %v6572 = vpop.f32.mrf.mxu0
        %v6573 = vadd.f32 0.0, %v6572
        %v6574 = vpop.f32.mrf.mxu0
        %v6575 = vadd.f32 0.0, %v6574
        %v6576 = vpop.f32.mrf.mxu0
        %v6577 = vadd.f32 0.0, %v6576
        %6578 = vmatprep.mubr.bf16.mxu0 %v4952
        %6579 = vmatmul.mubr.bf16.gmra.mxu0 %v4951
        %v6580 = vpop.f32.mrf.mxu0
        %v6581 = vadd.f32 0.0, %v6580
        %v6582 = vpop.f32.mrf.mxu0
        %v6583 = vadd.f32 0.0, %v6582
        %v6584 = vpop.f32.mrf.mxu0
        %v6585 = vadd.f32 0.0, %v6584
        %v6586 = vpop.f32.mrf.mxu0
        %v6587 = vadd.f32 0.0, %v6586
        %6588 = vdwg.mxu0
        %6589 = vmatprep.subr.bf16.mxu0 %v5956
        %6590 = vmatpush1.bf16.msra.mxu0 %v5955
        %6591 = vmatprep.subr.bf16.mxu0 %v5942
        %6592 = vmatpush1.bf16.msra.mxu0 %v5941
        %6593 = vmatprep.subr.bf16.mxu0 %v5928
        %6594 = vmatpush1.bf16.msra.mxu0 %v5927
        %6595 = vmatprep.subr.bf16.mxu0 %v5914
        %6596 = vmatpush1.bf16.msra.mxu0 %v5913
        %6597 = vmatprep.subr.bf16.mxu0 %v5900
        %6598 = vmatpush1.bf16.msra.mxu0 %v5899
        %6599 = vmatprep.subr.bf16.mxu0 %v5886
        %6600 = vmatpush1.bf16.msra.mxu0 %v5885
        %6601 = vmatprep.subr.bf16.mxu0 %v5872
        %6602 = vmatpush1.bf16.msra.mxu0 %v5871
        %6603 = vmatprep.subr.bf16.mxu0 %v5858
        %6604 = vmatpush1.bf16.msra.mxu0 %v5857
        %6605 = vmatprep.subr.bf16.mxu0 %v6068
        %6606 = vmatpush2.bf16.msra.mxu0 %v6067
        %6607 = vmatprep.subr.bf16.mxu0 %v6054
        %6608 = vmatpush2.bf16.msra.mxu0 %v6053
        %6609 = vmatprep.subr.bf16.mxu0 %v6040
        %6610 = vmatpush2.bf16.msra.mxu0 %v6039
        %6611 = vmatprep.subr.bf16.mxu0 %v6026
        %6612 = vmatpush2.bf16.msra.mxu0 %v6025
        %6613 = vmatprep.subr.bf16.mxu0 %v6012
        %6614 = vmatpush2.bf16.msra.mxu0 %v6011
        %6615 = vmatprep.subr.bf16.mxu0 %v5998
        %6616 = vmatpush2.bf16.msra.mxu0 %v5997
        %6617 = vmatprep.subr.bf16.mxu0 %v5984
        %6618 = vmatpush2.bf16.msra.mxu0 %v5983
        %6619 = vmatprep.subr.bf16.mxu0 %v5970
        %6620 = vmatpush2.bf16.msra.mxu0 %v5969
        %6621 = vmatprep.mubr.bf16.mxu0 %v4946
        %6622 = vmatmul.mubr.bf16.gmra.mxu0 %v4945
        %v6623 = vpop.f32.mrf.mxu0
        %v6624 = vadd.f32 0.0, %v6623
        %v6625 = vpop.f32.mrf.mxu0
        %v6626 = vadd.f32 0.0, %v6625
        %v6627 = vpop.f32.mrf.mxu0
        %v6628 = vadd.f32 0.0, %v6627
        %v6629 = vpop.f32.mrf.mxu0
        %v6630 = vadd.f32 0.0, %v6629
        %6631 = vmatprep.mubr.bf16.mxu0 %v4948
        %6632 = vmatmul.mubr.bf16.gmra.mxu0 %v4947
        %v6633 = vpop.f32.mrf.mxu0
        %v6634 = vadd.f32 0.0, %v6633
        %v6635 = vpop.f32.mrf.mxu0
        %v6636 = vadd.f32 0.0, %v6635
        %v6637 = vpop.f32.mrf.mxu0
        %v6638 = vadd.f32 0.0, %v6637
        %v6639 = vpop.f32.mrf.mxu0
        %v6640 = vadd.f32 0.0, %v6639
        %6641 = vmatprep.mubr.bf16.mxu0 %v4950
        %6642 = vmatmul.mubr.bf16.gmra.mxu0 %v4949
        %v6643 = vpop.f32.mrf.mxu0
        %v6644 = vadd.f32 0.0, %v6643
        %v6645 = vpop.f32.mrf.mxu0
        %v6646 = vadd.f32 0.0, %v6645
        %v6647 = vpop.f32.mrf.mxu0
        %v6648 = vadd.f32 0.0, %v6647
        %v6649 = vpop.f32.mrf.mxu0
        %v6650 = vadd.f32 0.0, %v6649
        %6651 = vmatprep.mubr.bf16.mxu0 %v4952
        %6652 = vmatmul.mubr.bf16.gmra.mxu0 %v4951
        %v6653 = vpop.f32.mrf.mxu0
        %v6654 = vadd.f32 0.0, %v6653
        %v6655 = vpop.f32.mrf.mxu0
        %v6656 = vadd.f32 0.0, %v6655
        %v6657 = vpop.f32.mrf.mxu0
        %v6658 = vadd.f32 0.0, %v6657
        %v6659 = vpop.f32.mrf.mxu0
        %v6660 = vadd.f32 0.0, %v6659
        %6661 = vdwg.mxu0
        %6662 = vmatprep.subr.bf16.mxu0 %v5958
        %6663 = vmatpush1.bf16.msra.mxu0 %v5957
        %6664 = vmatprep.subr.bf16.mxu0 %v5944
        %6665 = vmatpush1.bf16.msra.mxu0 %v5943
        %6666 = vmatprep.subr.bf16.mxu0 %v5930
        %6667 = vmatpush1.bf16.msra.mxu0 %v5929
        %6668 = vmatprep.subr.bf16.mxu0 %v5916
        %6669 = vmatpush1.bf16.msra.mxu0 %v5915
        %6670 = vmatprep.subr.bf16.mxu0 %v5902
        %6671 = vmatpush1.bf16.msra.mxu0 %v5901
        %6672 = vmatprep.subr.bf16.mxu0 %v5888
        %6673 = vmatpush1.bf16.msra.mxu0 %v5887
        %6674 = vmatprep.subr.bf16.mxu0 %v5874
        %6675 = vmatpush1.bf16.msra.mxu0 %v5873
        %6676 = vmatprep.subr.bf16.mxu0 %v5860
        %6677 = vmatpush1.bf16.msra.mxu0 %v5859
        %6678 = vmatprep.subr.bf16.mxu0 %v6070
        %6679 = vmatpush2.bf16.msra.mxu0 %v6069
        %6680 = vmatprep.subr.bf16.mxu0 %v6056
        %6681 = vmatpush2.bf16.msra.mxu0 %v6055
        %6682 = vmatprep.subr.bf16.mxu0 %v6042
        %6683 = vmatpush2.bf16.msra.mxu0 %v6041
        %6684 = vmatprep.subr.bf16.mxu0 %v6028
        %6685 = vmatpush2.bf16.msra.mxu0 %v6027
        %6686 = vmatprep.subr.bf16.mxu0 %v6014
        %6687 = vmatpush2.bf16.msra.mxu0 %v6013
        %6688 = vmatprep.subr.bf16.mxu0 %v6000
        %6689 = vmatpush2.bf16.msra.mxu0 %v5999
        %6690 = vmatprep.subr.bf16.mxu0 %v5986
        %6691 = vmatpush2.bf16.msra.mxu0 %v5985
        %6692 = vmatprep.subr.bf16.mxu0 %v5972
        %6693 = vmatpush2.bf16.msra.mxu0 %v5971
        %6694 = vmatprep.mubr.bf16.mxu0 %v4946
        %6695 = vmatmul.mubr.bf16.gmra.mxu0 %v4945
        %v6696 = vpop.f32.mrf.mxu0
        %v6697 = vadd.f32 0.0, %v6696
        %v6698 = vpop.f32.mrf.mxu0
        %v6699 = vadd.f32 0.0, %v6698
        %v6700 = vpop.f32.mrf.mxu0
        %v6701 = vadd.f32 0.0, %v6700
        %v6702 = vpop.f32.mrf.mxu0
        %v6703 = vadd.f32 0.0, %v6702
        %6704 = vmatprep.mubr.bf16.mxu0 %v4948
        %6705 = vmatmul.mubr.bf16.gmra.mxu0 %v4947
        %v6706 = vpop.f32.mrf.mxu0
        %v6707 = vadd.f32 0.0, %v6706
        %v6708 = vpop.f32.mrf.mxu0
        %v6709 = vadd.f32 0.0, %v6708
        %v6710 = vpop.f32.mrf.mxu0
        %v6711 = vadd.f32 0.0, %v6710
        %v6712 = vpop.f32.mrf.mxu0
        %v6713 = vadd.f32 0.0, %v6712
        %6714 = vmatprep.mubr.bf16.mxu0 %v4950
        %6715 = vmatmul.mubr.bf16.gmra.mxu0 %v4949
        %v6716 = vpop.f32.mrf.mxu0
        %v6717 = vadd.f32 0.0, %v6716
        %v6718 = vpop.f32.mrf.mxu0
        %v6719 = vadd.f32 0.0, %v6718
        %v6720 = vpop.f32.mrf.mxu0
        %v6721 = vadd.f32 0.0, %v6720
        %v6722 = vpop.f32.mrf.mxu0
        %v6723 = vadd.f32 0.0, %v6722
        %6724 = vmatprep.mubr.bf16.mxu0 %v4952
        %6725 = vmatmul.mubr.bf16.gmra.mxu0 %v4951
        %v6726 = vpop.f32.mrf.mxu0
        %v6727 = vadd.f32 0.0, %v6726
        %v6728 = vpop.f32.mrf.mxu0
        %v6729 = vadd.f32 0.0, %v6728
        %v6730 = vpop.f32.mrf.mxu0
        %v6731 = vadd.f32 0.0, %v6730
        %v6732 = vpop.f32.mrf.mxu0
        %v6733 = vadd.f32 0.0, %v6732
        %6734 = vdwg.mxu0
        %6735 = vmatprep.subr.bf16.mxu0 %v5960
        %6736 = vmatpush1.bf16.msra.mxu0 %v5959
        %6737 = vmatprep.subr.bf16.mxu0 %v5946
        %6738 = vmatpush1.bf16.msra.mxu0 %v5945
        %6739 = vmatprep.subr.bf16.mxu0 %v5932
        %6740 = vmatpush1.bf16.msra.mxu0 %v5931
        %6741 = vmatprep.subr.bf16.mxu0 %v5918
        %6742 = vmatpush1.bf16.msra.mxu0 %v5917
        %6743 = vmatprep.subr.bf16.mxu0 %v5904
        %6744 = vmatpush1.bf16.msra.mxu0 %v5903
        %6745 = vmatprep.subr.bf16.mxu0 %v5890
        %6746 = vmatpush1.bf16.msra.mxu0 %v5889
        %6747 = vmatprep.subr.bf16.mxu0 %v5876
        %6748 = vmatpush1.bf16.msra.mxu0 %v5875
        %6749 = vmatprep.subr.bf16.mxu0 %v5862
        %6750 = vmatpush1.bf16.msra.mxu0 %v5861
        %6751 = vmatprep.subr.bf16.mxu0 %v6072
        %6752 = vmatpush2.bf16.msra.mxu0 %v6071
        %6753 = vmatprep.subr.bf16.mxu0 %v6058
        %6754 = vmatpush2.bf16.msra.mxu0 %v6057
        %6755 = vmatprep.subr.bf16.mxu0 %v6044
        %6756 = vmatpush2.bf16.msra.mxu0 %v6043
        %6757 = vmatprep.subr.bf16.mxu0 %v6030
        %6758 = vmatpush2.bf16.msra.mxu0 %v6029
        %6759 = vmatprep.subr.bf16.mxu0 %v6016
        %6760 = vmatpush2.bf16.msra.mxu0 %v6015
        %6761 = vmatprep.subr.bf16.mxu0 %v6002
        %6762 = vmatpush2.bf16.msra.mxu0 %v6001
        %6763 = vmatprep.subr.bf16.mxu0 %v5988
        %6764 = vmatpush2.bf16.msra.mxu0 %v5987
        %6765 = vmatprep.subr.bf16.mxu0 %v5974
        %6766 = vmatpush2.bf16.msra.mxu0 %v5973
        %6767 = vmatprep.mubr.bf16.mxu0 %v4946
        %6768 = vmatmul.mubr.bf16.gmra.mxu0 %v4945
        %v6769 = vpop.f32.mrf.mxu0
        %v6770 = vadd.f32 0.0, %v6769
        %v6771 = vpop.f32.mrf.mxu0
        %v6772 = vadd.f32 0.0, %v6771
        %v6773 = vpop.f32.mrf.mxu0
        %v6774 = vadd.f32 0.0, %v6773
        %v6775 = vpop.f32.mrf.mxu0
        %v6776 = vadd.f32 0.0, %v6775
        %6777 = vmatprep.mubr.bf16.mxu0 %v4948
        %6778 = vmatmul.mubr.bf16.gmra.mxu0 %v4947
        %v6779 = vpop.f32.mrf.mxu0
        %v6780 = vadd.f32 0.0, %v6779
        %v6781 = vpop.f32.mrf.mxu0
        %v6782 = vadd.f32 0.0, %v6781
        %v6783 = vpop.f32.mrf.mxu0
        %v6784 = vadd.f32 0.0, %v6783
        %v6785 = vpop.f32.mrf.mxu0
        %v6786 = vadd.f32 0.0, %v6785
        %6787 = vmatprep.mubr.bf16.mxu0 %v4950
        %6788 = vmatmul.mubr.bf16.gmra.mxu0 %v4949
        %v6789 = vpop.f32.mrf.mxu0
        %v6790 = vadd.f32 0.0, %v6789
        %v6791 = vpop.f32.mrf.mxu0
        %v6792 = vadd.f32 0.0, %v6791
        %v6793 = vpop.f32.mrf.mxu0
        %v6794 = vadd.f32 0.0, %v6793
        %v6795 = vpop.f32.mrf.mxu0
        %v6796 = vadd.f32 0.0, %v6795
        %6797 = vmatprep.mubr.bf16.mxu0 %v4952
        %6798 = vmatmul.mubr.bf16.gmra.mxu0 %v4951
        %v6799 = vpop.f32.mrf.mxu0
        %v6800 = vadd.f32 0.0, %v6799
        %v6801 = vpop.f32.mrf.mxu0
        %v6802 = vadd.f32 0.0, %v6801
        %v6803 = vpop.f32.mrf.mxu0
        %v6804 = vadd.f32 0.0, %v6803
        %v6805 = vpop.f32.mrf.mxu0
        %v6806 = vadd.f32 0.0, %v6805
        %6807 = vdwg.mxu0
        %v7032 = vunpack.c.l.b16 %v4721
        %v7033 = vunpack.c.h.b16 %v4721
        %v7034 = vunpack.c.l.b16 %v4722
        %v7035 = vunpack.c.h.b16 %v4722
        %v7036 = vunpack.c.l.b16 %v4723
        %v7037 = vunpack.c.h.b16 %v4723
        %v7038 = vunpack.c.l.b16 %v4724
        %v7039 = vunpack.c.h.b16 %v4724
        %v7040 = vunpack.c.l.b16 %v4725
        %v7041 = vunpack.c.h.b16 %v4725
        %v7042 = vunpack.c.l.b16 %v4726
        %v7043 = vunpack.c.h.b16 %v4726
        %v7044 = vunpack.c.l.b16 %v4727
        %v7045 = vunpack.c.h.b16 %v4727
        %v7046 = vunpack.c.l.b16 %v4728
        %v7047 = vunpack.c.h.b16 %v4728
        %v7048 = vunpack.c.l.b16 %v4729
        %v7049 = vunpack.c.h.b16 %v4729
        %v7050 = vunpack.c.l.b16 %v4730
        %v7051 = vunpack.c.h.b16 %v4730
        %v7052 = vunpack.c.l.b16 %v4731
        %v7053 = vunpack.c.h.b16 %v4731
        %v7054 = vunpack.c.l.b16 %v4732
        %v7055 = vunpack.c.h.b16 %v4732
        %v7056 = vunpack.c.l.b16 %v4733
        %v7057 = vunpack.c.h.b16 %v4733
        %v7058 = vunpack.c.l.b16 %v4734
        %v7059 = vunpack.c.h.b16 %v4734
        %v7060 = vunpack.c.l.b16 %v4735
        %v7061 = vunpack.c.h.b16 %v4735
        %v7062 = vunpack.c.l.b16 %v4736
        %v7063 = vunpack.c.h.b16 %v4736
        %v7064 = vunpack.c.l.b16 %v4737
        %v7065 = vunpack.c.h.b16 %v4737
        %v7066 = vunpack.c.l.b16 %v4738
        %v7067 = vunpack.c.h.b16 %v4738
        %v7068 = vunpack.c.l.b16 %v4739
        %v7069 = vunpack.c.h.b16 %v4739
        %v7070 = vunpack.c.l.b16 %v4740
        %v7071 = vunpack.c.h.b16 %v4740
        %v7072 = vunpack.c.l.b16 %v4741
        %v7073 = vunpack.c.h.b16 %v4741
        %v7074 = vunpack.c.l.b16 %v4742
        %v7075 = vunpack.c.h.b16 %v4742
        %v7076 = vunpack.c.l.b16 %v4743
        %v7077 = vunpack.c.h.b16 %v4743
        %v7078 = vunpack.c.l.b16 %v4744
        %v7079 = vunpack.c.h.b16 %v4744
        %v7080 = vunpack.c.l.b16 %v4745
        %v7081 = vunpack.c.h.b16 %v4745
        %v7082 = vunpack.c.l.b16 %v4746
        %v7083 = vunpack.c.h.b16 %v4746
        %v7084 = vunpack.c.l.b16 %v4747
        %v7085 = vunpack.c.h.b16 %v4747
        %v7086 = vunpack.c.l.b16 %v4748
        %v7087 = vunpack.c.h.b16 %v4748
        %v7088 = vunpack.c.l.b16 %v4749
        %v7089 = vunpack.c.h.b16 %v4749
        %v7090 = vunpack.c.l.b16 %v4750
        %v7091 = vunpack.c.h.b16 %v4750
        %v7092 = vunpack.c.l.b16 %v4751
        %v7093 = vunpack.c.h.b16 %v4751
        %v7094 = vunpack.c.l.b16 %v4752
        %v7095 = vunpack.c.h.b16 %v4752
        %v7096 = vunpack.c.l.b16 %v4753
        %v7097 = vunpack.c.h.b16 %v4753
        %v7098 = vunpack.c.l.b16 %v4754
        %v7099 = vunpack.c.h.b16 %v4754
        %v7100 = vunpack.c.l.b16 %v4755
        %v7101 = vunpack.c.h.b16 %v4755
        %v7102 = vunpack.c.l.b16 %v4756
        %v7103 = vunpack.c.h.b16 %v4756
        %v7104 = vunpack.c.l.b16 %v4757
        %v7105 = vunpack.c.h.b16 %v4757
        %v7106 = vunpack.c.l.b16 %v4758
        %v7107 = vunpack.c.h.b16 %v4758
        %v7108 = vunpack.c.l.b16 %v4759
        %v7109 = vunpack.c.h.b16 %v4759
        %v7110 = vunpack.c.l.b16 %v4760
        %v7111 = vunpack.c.h.b16 %v4760
        %v7112 = vunpack.c.l.b16 %v4761
        %v7113 = vunpack.c.h.b16 %v4761
        %v7114 = vunpack.c.l.b16 %v4762
        %v7115 = vunpack.c.h.b16 %v4762
        %v7116 = vunpack.c.l.b16 %v4763
        %v7117 = vunpack.c.h.b16 %v4763
        %v7118 = vunpack.c.l.b16 %v4764
        %v7119 = vunpack.c.h.b16 %v4764
        %v7120 = vunpack.c.l.b16 %v4765
        %v7121 = vunpack.c.h.b16 %v4765
        %v7122 = vunpack.c.l.b16 %v4766
        %v7123 = vunpack.c.h.b16 %v4766
        %v7124 = vunpack.c.l.b16 %v4767
        %v7125 = vunpack.c.h.b16 %v4767
        %v7126 = vunpack.c.l.b16 %v4768
        %v7127 = vunpack.c.h.b16 %v4768
        %v7128 = vunpack.c.l.b16 %v4769
        %v7129 = vunpack.c.h.b16 %v4769
        %v7130 = vunpack.c.l.b16 %v4770
        %v7131 = vunpack.c.h.b16 %v4770
        %v7132 = vunpack.c.l.b16 %v4771
        %v7133 = vunpack.c.h.b16 %v4771
        %v7134 = vunpack.c.l.b16 %v4772
        %v7135 = vunpack.c.h.b16 %v4772
        %v7136 = vunpack.c.l.b16 %v4773
        %v7137 = vunpack.c.h.b16 %v4773
        %v7138 = vunpack.c.l.b16 %v4774
        %v7139 = vunpack.c.h.b16 %v4774
        %v7140 = vunpack.c.l.b16 %v4775
        %v7141 = vunpack.c.h.b16 %v4775
        %v7142 = vunpack.c.l.b16 %v4776
        %v7143 = vunpack.c.h.b16 %v4776
        %v7144 = vunpack.c.l.b16 %v4777
        %v7145 = vunpack.c.h.b16 %v4777
        %v7146 = vunpack.c.l.b16 %v4778
        %v7147 = vunpack.c.h.b16 %v4778
        %v7148 = vunpack.c.l.b16 %v4779
        %v7149 = vunpack.c.h.b16 %v4779
        %v7150 = vunpack.c.l.b16 %v4780
        %v7151 = vunpack.c.h.b16 %v4780
        %v7152 = vunpack.c.l.b16 %v4781
        %v7153 = vunpack.c.h.b16 %v4781
        %v7154 = vunpack.c.l.b16 %v4782
        %v7155 = vunpack.c.h.b16 %v4782
        %v7156 = vunpack.c.l.b16 %v4783
        %v7157 = vunpack.c.h.b16 %v4783
        %v7158 = vunpack.c.l.b16 %v4784
        %v7159 = vunpack.c.h.b16 %v4784
        %v7160 = vunpack.c.l.b16 %v4785
        %v7161 = vunpack.c.h.b16 %v4785
        %v7162 = vunpack.c.l.b16 %v4786
        %v7163 = vunpack.c.h.b16 %v4786
        %v7164 = vunpack.c.l.b16 %v4787
        %v7165 = vunpack.c.h.b16 %v4787
        %v7166 = vunpack.c.l.b16 %v4788
        %v7167 = vunpack.c.h.b16 %v4788
        %v7168 = vunpack.c.l.b16 %v4789
        %v7169 = vunpack.c.h.b16 %v4789
        %v7170 = vunpack.c.l.b16 %v4790
        %v7171 = vunpack.c.h.b16 %v4790
        %v7172 = vunpack.c.l.b16 %v4791
        %v7173 = vunpack.c.h.b16 %v4791
        %v7174 = vunpack.c.l.b16 %v4792
        %v7175 = vunpack.c.h.b16 %v4792
        %v7176 = vunpack.c.l.b16 %v4793
        %v7177 = vunpack.c.h.b16 %v4793
        %v7178 = vunpack.c.l.b16 %v4794
        %v7179 = vunpack.c.h.b16 %v4794
        %v7180 = vunpack.c.l.b16 %v4795
        %v7181 = vunpack.c.h.b16 %v4795
        %v7182 = vunpack.c.l.b16 %v4796
        %v7183 = vunpack.c.h.b16 %v4796
        %v7184 = vunpack.c.l.b16 %v4797
        %v7185 = vunpack.c.h.b16 %v4797
        %v7186 = vunpack.c.l.b16 %v4798
        %v7187 = vunpack.c.h.b16 %v4798
        %v7188 = vunpack.c.l.b16 %v4799
        %v7189 = vunpack.c.h.b16 %v4799
        %v7190 = vunpack.c.l.b16 %v4800
        %v7191 = vunpack.c.h.b16 %v4800
        %v7192 = vunpack.c.l.b16 %v4801
        %v7193 = vunpack.c.h.b16 %v4801
        %v7194 = vunpack.c.l.b16 %v4802
        %v7195 = vunpack.c.h.b16 %v4802
        %v7196 = vunpack.c.l.b16 %v4803
        %v7197 = vunpack.c.h.b16 %v4803
        %v7198 = vunpack.c.l.b16 %v4804
        %v7199 = vunpack.c.h.b16 %v4804
        %v7200 = vunpack.c.l.b16 %v4805
        %v7201 = vunpack.c.h.b16 %v4805
        %v7202 = vunpack.c.l.b16 %v4806
        %v7203 = vunpack.c.h.b16 %v4806
        %v7204 = vunpack.c.l.b16 %v4807
        %v7205 = vunpack.c.h.b16 %v4807
        %v7206 = vunpack.c.l.b16 %v4808
        %v7207 = vunpack.c.h.b16 %v4808
        %v7208 = vunpack.c.l.b16 %v4809
        %v7209 = vunpack.c.h.b16 %v4809
        %v7210 = vunpack.c.l.b16 %v4810
        %v7211 = vunpack.c.h.b16 %v4810
        %v7212 = vunpack.c.l.b16 %v4811
        %v7213 = vunpack.c.h.b16 %v4811
        %v7214 = vunpack.c.l.b16 %v4812
        %v7215 = vunpack.c.h.b16 %v4812
        %v7216 = vunpack.c.l.b16 %v4813
        %v7217 = vunpack.c.h.b16 %v4813
        %v7218 = vunpack.c.l.b16 %v4814
        %v7219 = vunpack.c.h.b16 %v4814
        %v7220 = vunpack.c.l.b16 %v4815
        %v7221 = vunpack.c.h.b16 %v4815
        %v7222 = vunpack.c.l.b16 %v4816
        %v7223 = vunpack.c.h.b16 %v4816
        %v7224 = vunpack.c.l.b16 %v4817
        %v7225 = vunpack.c.h.b16 %v4817
        %v7226 = vunpack.c.l.b16 %v4818
        %v7227 = vunpack.c.h.b16 %v4818
        %v7228 = vunpack.c.l.b16 %v4819
        %v7229 = vunpack.c.h.b16 %v4819
        %v7230 = vunpack.c.l.b16 %v4820
        %v7231 = vunpack.c.h.b16 %v4820
        %v7232 = vunpack.c.l.b16 %v4821
        %v7233 = vunpack.c.h.b16 %v4821
        %v7234 = vunpack.c.l.b16 %v4822
        %v7235 = vunpack.c.h.b16 %v4822
        %v7236 = vunpack.c.l.b16 %v4823
        %v7237 = vunpack.c.h.b16 %v4823
        %v7238 = vunpack.c.l.b16 %v4824
        %v7239 = vunpack.c.h.b16 %v4824
        %v7240 = vunpack.c.l.b16 %v4825
        %v7241 = vunpack.c.h.b16 %v4825
        %v7242 = vunpack.c.l.b16 %v4826
        %v7243 = vunpack.c.h.b16 %v4826
        %v7244 = vunpack.c.l.b16 %v4827
        %v7245 = vunpack.c.h.b16 %v4827
        %v7246 = vunpack.c.l.b16 %v4828
        %v7247 = vunpack.c.h.b16 %v4828
        %v7248 = vunpack.c.l.b16 %v4829
        %v7249 = vunpack.c.h.b16 %v4829
        %v7250 = vunpack.c.l.b16 %v4830
        %v7251 = vunpack.c.h.b16 %v4830
        %v7252 = vunpack.c.l.b16 %v4831
        %v7253 = vunpack.c.h.b16 %v4831
        %v7254 = vunpack.c.l.b16 %v4832
        %v7255 = vunpack.c.h.b16 %v4832
        %v7256 = vunpack.c.l.b16 %v4833
        %v7257 = vunpack.c.h.b16 %v4833
        %v7258 = vunpack.c.l.b16 %v4834
        %v7259 = vunpack.c.h.b16 %v4834
        %v7260 = vunpack.c.l.b16 %v4835
        %v7261 = vunpack.c.h.b16 %v4835
        %v7262 = vunpack.c.l.b16 %v4836
        %v7263 = vunpack.c.h.b16 %v4836
        %v7264 = vunpack.c.l.b16 %v4837
        %v7265 = vunpack.c.h.b16 %v4837
        %v7266 = vunpack.c.l.b16 %v4838
        %v7267 = vunpack.c.h.b16 %v4838
        %v7268 = vunpack.c.l.b16 %v4839
        %v7269 = vunpack.c.h.b16 %v4839
        %v7270 = vunpack.c.l.b16 %v4840
        %v7271 = vunpack.c.h.b16 %v4840
        %v7272 = vunpack.c.l.b16 %v4841
        %v7273 = vunpack.c.h.b16 %v4841
        %v7274 = vunpack.c.l.b16 %v4842
        %v7275 = vunpack.c.h.b16 %v4842
        %v7276 = vunpack.c.l.b16 %v4843
        %v7277 = vunpack.c.h.b16 %v4843
        %v7278 = vunpack.c.l.b16 %v4844
        %v7279 = vunpack.c.h.b16 %v4844
        %v7280 = vunpack.c.l.b16 %v4845
        %v7281 = vunpack.c.h.b16 %v4845
        %v7282 = vunpack.c.l.b16 %v4846
        %v7283 = vunpack.c.h.b16 %v4846
        %v7284 = vunpack.c.l.b16 %v4847
        %v7285 = vunpack.c.h.b16 %v4847
        %v7286 = vunpack.c.l.b16 %v4848
        %v7287 = vunpack.c.h.b16 %v4848
        %v7288 = vunpack.c.l.b16 %v4849
        %v7289 = vunpack.c.h.b16 %v4849
        %v7290 = vunpack.c.l.b16 %v4850
        %v7291 = vunpack.c.h.b16 %v4850
        %v7292 = vunpack.c.l.b16 %v4851
        %v7293 = vunpack.c.h.b16 %v4851
        %v7294 = vunpack.c.l.b16 %v4852
        %v7295 = vunpack.c.h.b16 %v4852
        %v7296 = vunpack.c.l.b16 %v4853
        %v7297 = vunpack.c.h.b16 %v4853
        %v7298 = vunpack.c.l.b16 %v4854
        %v7299 = vunpack.c.h.b16 %v4854
        %v7300 = vunpack.c.l.b16 %v4855
        %v7301 = vunpack.c.h.b16 %v4855
        %v7302 = vunpack.c.l.b16 %v4856
        %v7303 = vunpack.c.h.b16 %v4856
        %v7304 = vunpack.c.l.b16 %v4857
        %v7305 = vunpack.c.h.b16 %v4857
        %v7306 = vunpack.c.l.b16 %v4858
        %v7307 = vunpack.c.h.b16 %v4858
        %v7308 = vunpack.c.l.b16 %v4859
        %v7309 = vunpack.c.h.b16 %v4859
        %v7310 = vunpack.c.l.b16 %v4860
        %v7311 = vunpack.c.h.b16 %v4860
        %v7312 = vunpack.c.l.b16 %v4861
        %v7313 = vunpack.c.h.b16 %v4861
        %v7314 = vunpack.c.l.b16 %v4862
        %v7315 = vunpack.c.h.b16 %v4862
        %v7316 = vunpack.c.l.b16 %v4863
        %v7317 = vunpack.c.h.b16 %v4863
        %v7318 = vunpack.c.l.b16 %v4864
        %v7319 = vunpack.c.h.b16 %v4864
        %v7320 = vunpack.c.l.b16 %v4865
        %v7321 = vunpack.c.h.b16 %v4865
        %v7322 = vunpack.c.l.b16 %v4866
        %v7323 = vunpack.c.h.b16 %v4866
        %v7324 = vunpack.c.l.b16 %v4867
        %v7325 = vunpack.c.h.b16 %v4867
        %v7326 = vunpack.c.l.b16 %v4868
        %v7327 = vunpack.c.h.b16 %v4868
        %v7328 = vunpack.c.l.b16 %v4869
        %v7329 = vunpack.c.h.b16 %v4869
        %v7330 = vunpack.c.l.b16 %v4870
        %v7331 = vunpack.c.h.b16 %v4870
        %v7332 = vunpack.c.l.b16 %v4871
        %v7333 = vunpack.c.h.b16 %v4871
        %v7334 = vunpack.c.l.b16 %v4872
        %v7335 = vunpack.c.h.b16 %v4872
        %v7336 = vunpack.c.l.b16 %v4873
        %v7337 = vunpack.c.h.b16 %v4873
        %v7338 = vunpack.c.l.b16 %v4874
        %v7339 = vunpack.c.h.b16 %v4874
        %v7340 = vunpack.c.l.b16 %v4875
        %v7341 = vunpack.c.h.b16 %v4875
        %v7342 = vunpack.c.l.b16 %v4876
        %v7343 = vunpack.c.h.b16 %v4876
        %v7344 = vunpack.c.l.b16 %v4877
        %v7345 = vunpack.c.h.b16 %v4877
        %v7346 = vunpack.c.l.b16 %v4878
        %v7347 = vunpack.c.h.b16 %v4878
        %v7348 = vunpack.c.l.b16 %v4879
        %v7349 = vunpack.c.h.b16 %v4879
        %v7350 = vunpack.c.l.b16 %v4880
        %v7351 = vunpack.c.h.b16 %v4880
        %v7352 = vunpack.c.l.b16 %v4881
        %v7353 = vunpack.c.h.b16 %v4881
        %v7354 = vunpack.c.l.b16 %v4882
        %v7355 = vunpack.c.h.b16 %v4882
        %v7356 = vunpack.c.l.b16 %v4883
        %v7357 = vunpack.c.h.b16 %v4883
        %v7358 = vunpack.c.l.b16 %v4884
        %v7359 = vunpack.c.h.b16 %v4884
        %v7360 = vunpack.c.l.b16 %v4885
        %v7361 = vunpack.c.h.b16 %v4885
        %v7362 = vunpack.c.l.b16 %v4886
        %v7363 = vunpack.c.h.b16 %v4886
        %v7364 = vunpack.c.l.b16 %v4887
        %v7365 = vunpack.c.h.b16 %v4887
        %v7366 = vunpack.c.l.b16 %v4888
        %v7367 = vunpack.c.h.b16 %v4888
        %v7368 = vunpack.c.l.b16 %v4889
        %v7369 = vunpack.c.h.b16 %v4889
        %v7370 = vunpack.c.l.b16 %v4890
        %v7371 = vunpack.c.h.b16 %v4890
        %v7372 = vunpack.c.l.b16 %v4891
        %v7373 = vunpack.c.h.b16 %v4891
        %v7374 = vunpack.c.l.b16 %v4892
        %v7375 = vunpack.c.h.b16 %v4892
        %v7376 = vunpack.c.l.b16 %v4893
        %v7377 = vunpack.c.h.b16 %v4893
        %v7378 = vunpack.c.l.b16 %v4894
        %v7379 = vunpack.c.h.b16 %v4894
        %v7380 = vunpack.c.l.b16 %v4895
        %v7381 = vunpack.c.h.b16 %v4895
        %v7382 = vunpack.c.l.b16 %v4896
        %v7383 = vunpack.c.h.b16 %v4896
        %v7384 = vunpack.c.l.b16 %v4897
        %v7385 = vunpack.c.h.b16 %v4897
        %v7386 = vunpack.c.l.b16 %v4898
        %v7387 = vunpack.c.h.b16 %v4898
        %v7388 = vunpack.c.l.b16 %v4899
        %v7389 = vunpack.c.h.b16 %v4899
        %v7390 = vunpack.c.l.b16 %v4900
        %v7391 = vunpack.c.h.b16 %v4900
        %v7392 = vunpack.c.l.b16 %v4901
        %v7393 = vunpack.c.h.b16 %v4901
        %v7394 = vunpack.c.l.b16 %v4902
        %v7395 = vunpack.c.h.b16 %v4902
        %v7396 = vunpack.c.l.b16 %v4903
        %v7397 = vunpack.c.h.b16 %v4903
        %v7398 = vunpack.c.l.b16 %v4904
        %v7399 = vunpack.c.h.b16 %v4904
        %v7400 = vunpack.c.l.b16 %v4905
        %v7401 = vunpack.c.h.b16 %v4905
        %v7402 = vunpack.c.l.b16 %v4906
        %v7403 = vunpack.c.h.b16 %v4906
        %v7404 = vunpack.c.l.b16 %v4907
        %v7405 = vunpack.c.h.b16 %v4907
        %v7406 = vunpack.c.l.b16 %v4908
        %v7407 = vunpack.c.h.b16 %v4908
        %v7408 = vunpack.c.l.b16 %v4909
        %v7409 = vunpack.c.h.b16 %v4909
        %v7410 = vunpack.c.l.b16 %v4910
        %v7411 = vunpack.c.h.b16 %v4910
        %v7412 = vunpack.c.l.b16 %v4911
        %v7413 = vunpack.c.h.b16 %v4911
        %v7414 = vunpack.c.l.b16 %v4912
        %v7415 = vunpack.c.h.b16 %v4912
        %v7416 = vunpack.c.l.b16 %v4913
        %v7417 = vunpack.c.h.b16 %v4913
        %v7418 = vunpack.c.l.b16 %v4914
        %v7419 = vunpack.c.h.b16 %v4914
        %v7420 = vunpack.c.l.b16 %v4915
        %v7421 = vunpack.c.h.b16 %v4915
        %v7422 = vunpack.c.l.b16 %v4916
        %v7423 = vunpack.c.h.b16 %v4916
        %v7424 = vunpack.c.l.b16 %v4917
        %v7425 = vunpack.c.h.b16 %v4917
        %v7426 = vunpack.c.l.b16 %v4918
        %v7427 = vunpack.c.h.b16 %v4918
        %v7428 = vunpack.c.l.b16 %v4919
        %v7429 = vunpack.c.h.b16 %v4919
        %v7430 = vunpack.c.l.b16 %v4920
        %v7431 = vunpack.c.h.b16 %v4920
        %v7432 = vunpack.c.l.b16 %v4921
        %v7433 = vunpack.c.h.b16 %v4921
        %v7434 = vunpack.c.l.b16 %v4922
        %v7435 = vunpack.c.h.b16 %v4922
        %v7436 = vunpack.c.l.b16 %v4923
        %v7437 = vunpack.c.h.b16 %v4923
        %v7438 = vunpack.c.l.b16 %v4924
        %v7439 = vunpack.c.h.b16 %v4924
        %v7440 = vunpack.c.l.b16 %v4925
        %v7441 = vunpack.c.h.b16 %v4925
        %v7442 = vunpack.c.l.b16 %v4926
        %v7443 = vunpack.c.h.b16 %v4926
        %v7444 = vunpack.c.l.b16 %v4927
        %v7445 = vunpack.c.h.b16 %v4927
        %v7446 = vunpack.c.l.b16 %v4928
        %v7447 = vunpack.c.h.b16 %v4928
        %v7448 = vunpack.c.l.b16 %v4929
        %v7449 = vunpack.c.h.b16 %v4929
        %v7450 = vunpack.c.l.b16 %v4930
        %v7451 = vunpack.c.h.b16 %v4930
        %v7452 = vunpack.c.l.b16 %v4931
        %v7453 = vunpack.c.h.b16 %v4931
        %v7454 = vunpack.c.l.b16 %v4932
        %v7455 = vunpack.c.h.b16 %v4932
        %v7456 = vunpack.c.l.b16 %v4933
        %v7457 = vunpack.c.h.b16 %v4933
        %v7458 = vunpack.c.l.b16 %v4934
        %v7459 = vunpack.c.h.b16 %v4934
        %v7460 = vunpack.c.l.b16 %v4935
        %v7461 = vunpack.c.h.b16 %v4935
        %v7462 = vunpack.c.l.b16 %v4936
        %v7463 = vunpack.c.h.b16 %v4936
        %v7464 = vunpack.c.l.b16 %v4937
        %v7465 = vunpack.c.h.b16 %v4937
        %v7466 = vunpack.c.l.b16 %v4938
        %v7467 = vunpack.c.h.b16 %v4938
        %v7468 = vunpack.c.l.b16 %v4939
        %v7469 = vunpack.c.h.b16 %v4939
        %v7470 = vunpack.c.l.b16 %v4940
        %v7471 = vunpack.c.h.b16 %v4940
        %v7472 = vunpack.c.l.b16 %v4941
        %v7473 = vunpack.c.h.b16 %v4941
        %v7474 = vunpack.c.l.b16 %v4942
        %v7475 = vunpack.c.h.b16 %v4942
        %v7476 = vunpack.c.l.b16 %v4943
        %v7477 = vunpack.c.h.b16 %v4943
        %v7478 = vunpack.c.l.b16 %v4944
        %v7479 = vunpack.c.h.b16 %v4944
        %v7480 = vpack.c.b16 %v7046, %v7032
        %v7481 = vpack.c.b16 %v7047, %v7033
        %v7482 = vpack.c.b16 %v7048, %v7034
        %v7483 = vpack.c.b16 %v7049, %v7035
        %v7484 = vpack.c.b16 %v7050, %v7036
        %v7485 = vpack.c.b16 %v7051, %v7037
        %v7486 = vpack.c.b16 %v7052, %v7038
        %v7487 = vpack.c.b16 %v7053, %v7039
        %v7488 = vpack.c.b16 %v7054, %v7040
        %v7489 = vpack.c.b16 %v7055, %v7041
        %v7490 = vpack.c.b16 %v7056, %v7042
        %v7491 = vpack.c.b16 %v7057, %v7043
        %v7492 = vpack.c.b16 %v7058, %v7044
        %v7493 = vpack.c.b16 %v7059, %v7045
        %v7494 = vpack.c.b16 %v7074, %v7060
        %v7495 = vpack.c.b16 %v7075, %v7061
        %v7496 = vpack.c.b16 %v7076, %v7062
        %v7497 = vpack.c.b16 %v7077, %v7063
        %v7498 = vpack.c.b16 %v7078, %v7064
        %v7499 = vpack.c.b16 %v7079, %v7065
        %v7500 = vpack.c.b16 %v7080, %v7066
        %v7501 = vpack.c.b16 %v7081, %v7067
        %v7502 = vpack.c.b16 %v7082, %v7068
        %v7503 = vpack.c.b16 %v7083, %v7069
        %v7504 = vpack.c.b16 %v7084, %v7070
        %v7505 = vpack.c.b16 %v7085, %v7071
        %v7506 = vpack.c.b16 %v7086, %v7072
        %v7507 = vpack.c.b16 %v7087, %v7073
        %v7508 = vpack.c.b16 %v7102, %v7088
        %v7509 = vpack.c.b16 %v7103, %v7089
        %v7510 = vpack.c.b16 %v7104, %v7090
        %v7511 = vpack.c.b16 %v7105, %v7091
        %v7512 = vpack.c.b16 %v7106, %v7092
        %v7513 = vpack.c.b16 %v7107, %v7093
        %v7514 = vpack.c.b16 %v7108, %v7094
        %v7515 = vpack.c.b16 %v7109, %v7095
        %v7516 = vpack.c.b16 %v7110, %v7096
        %v7517 = vpack.c.b16 %v7111, %v7097
        %v7518 = vpack.c.b16 %v7112, %v7098
        %v7519 = vpack.c.b16 %v7113, %v7099
        %v7520 = vpack.c.b16 %v7114, %v7100
        %v7521 = vpack.c.b16 %v7115, %v7101
        %v7522 = vpack.c.b16 %v7130, %v7116
        %v7523 = vpack.c.b16 %v7131, %v7117
        %v7524 = vpack.c.b16 %v7132, %v7118
        %v7525 = vpack.c.b16 %v7133, %v7119
        %v7526 = vpack.c.b16 %v7134, %v7120
        %v7527 = vpack.c.b16 %v7135, %v7121
        %v7528 = vpack.c.b16 %v7136, %v7122
        %v7529 = vpack.c.b16 %v7137, %v7123
        %v7530 = vpack.c.b16 %v7138, %v7124
        %v7531 = vpack.c.b16 %v7139, %v7125
        %v7532 = vpack.c.b16 %v7140, %v7126
        %v7533 = vpack.c.b16 %v7141, %v7127
        %v7534 = vpack.c.b16 %v7142, %v7128
        %v7535 = vpack.c.b16 %v7143, %v7129
        %v7536 = vpack.c.b16 %v7158, %v7144
        %v7537 = vpack.c.b16 %v7159, %v7145
        %v7538 = vpack.c.b16 %v7160, %v7146
        %v7539 = vpack.c.b16 %v7161, %v7147
        %v7540 = vpack.c.b16 %v7162, %v7148
        %v7541 = vpack.c.b16 %v7163, %v7149
        %v7542 = vpack.c.b16 %v7164, %v7150
        %v7543 = vpack.c.b16 %v7165, %v7151
        %v7544 = vpack.c.b16 %v7166, %v7152
        %v7545 = vpack.c.b16 %v7167, %v7153
        %v7546 = vpack.c.b16 %v7168, %v7154
        %v7547 = vpack.c.b16 %v7169, %v7155
        %v7548 = vpack.c.b16 %v7170, %v7156
        %v7549 = vpack.c.b16 %v7171, %v7157
        %v7550 = vpack.c.b16 %v7186, %v7172
        %v7551 = vpack.c.b16 %v7187, %v7173
        %v7552 = vpack.c.b16 %v7188, %v7174
        %v7553 = vpack.c.b16 %v7189, %v7175
        %v7554 = vpack.c.b16 %v7190, %v7176
        %v7555 = vpack.c.b16 %v7191, %v7177
        %v7556 = vpack.c.b16 %v7192, %v7178
        %v7557 = vpack.c.b16 %v7193, %v7179
        %v7558 = vpack.c.b16 %v7194, %v7180
        %v7559 = vpack.c.b16 %v7195, %v7181
        %v7560 = vpack.c.b16 %v7196, %v7182
        %v7561 = vpack.c.b16 %v7197, %v7183
        %v7562 = vpack.c.b16 %v7198, %v7184
        %v7563 = vpack.c.b16 %v7199, %v7185
        %v7564 = vpack.c.b16 %v7214, %v7200
        %v7565 = vpack.c.b16 %v7215, %v7201
        %v7566 = vpack.c.b16 %v7216, %v7202
        %v7567 = vpack.c.b16 %v7217, %v7203
        %v7568 = vpack.c.b16 %v7218, %v7204
        %v7569 = vpack.c.b16 %v7219, %v7205
        %v7570 = vpack.c.b16 %v7220, %v7206
        %v7571 = vpack.c.b16 %v7221, %v7207
        %v7572 = vpack.c.b16 %v7222, %v7208
        %v7573 = vpack.c.b16 %v7223, %v7209
        %v7574 = vpack.c.b16 %v7224, %v7210
        %v7575 = vpack.c.b16 %v7225, %v7211
        %v7576 = vpack.c.b16 %v7226, %v7212
        %v7577 = vpack.c.b16 %v7227, %v7213
        %v7578 = vpack.c.b16 %v7242, %v7228
        %v7579 = vpack.c.b16 %v7243, %v7229
        %v7580 = vpack.c.b16 %v7244, %v7230
        %v7581 = vpack.c.b16 %v7245, %v7231
        %v7582 = vpack.c.b16 %v7246, %v7232
        %v7583 = vpack.c.b16 %v7247, %v7233
        %v7584 = vpack.c.b16 %v7248, %v7234
        %v7585 = vpack.c.b16 %v7249, %v7235
        %v7586 = vpack.c.b16 %v7250, %v7236
        %v7587 = vpack.c.b16 %v7251, %v7237
        %v7588 = vpack.c.b16 %v7252, %v7238
        %v7589 = vpack.c.b16 %v7253, %v7239
        %v7590 = vpack.c.b16 %v7254, %v7240
        %v7591 = vpack.c.b16 %v7255, %v7241
        %v7592 = vpack.c.b16 %v7270, %v7256
        %v7593 = vpack.c.b16 %v7271, %v7257
        %v7594 = vpack.c.b16 %v7272, %v7258
        %v7595 = vpack.c.b16 %v7273, %v7259
        %v7596 = vpack.c.b16 %v7274, %v7260
        %v7597 = vpack.c.b16 %v7275, %v7261
        %v7598 = vpack.c.b16 %v7276, %v7262
        %v7599 = vpack.c.b16 %v7277, %v7263
        %v7600 = vpack.c.b16 %v7278, %v7264
        %v7601 = vpack.c.b16 %v7279, %v7265
        %v7602 = vpack.c.b16 %v7280, %v7266
        %v7603 = vpack.c.b16 %v7281, %v7267
        %v7604 = vpack.c.b16 %v7282, %v7268
        %v7605 = vpack.c.b16 %v7283, %v7269
        %v7606 = vpack.c.b16 %v7298, %v7284
        %v7607 = vpack.c.b16 %v7299, %v7285
        %v7608 = vpack.c.b16 %v7300, %v7286
        %v7609 = vpack.c.b16 %v7301, %v7287
        %v7610 = vpack.c.b16 %v7302, %v7288
        %v7611 = vpack.c.b16 %v7303, %v7289
        %v7612 = vpack.c.b16 %v7304, %v7290
        %v7613 = vpack.c.b16 %v7305, %v7291
        %v7614 = vpack.c.b16 %v7306, %v7292
        %v7615 = vpack.c.b16 %v7307, %v7293
        %v7616 = vpack.c.b16 %v7308, %v7294
        %v7617 = vpack.c.b16 %v7309, %v7295
        %v7618 = vpack.c.b16 %v7310, %v7296
        %v7619 = vpack.c.b16 %v7311, %v7297
        %v7620 = vpack.c.b16 %v7326, %v7312
        %v7621 = vpack.c.b16 %v7327, %v7313
        %v7622 = vpack.c.b16 %v7328, %v7314
        %v7623 = vpack.c.b16 %v7329, %v7315
        %v7624 = vpack.c.b16 %v7330, %v7316
        %v7625 = vpack.c.b16 %v7331, %v7317
        %v7626 = vpack.c.b16 %v7332, %v7318
        %v7627 = vpack.c.b16 %v7333, %v7319
        %v7628 = vpack.c.b16 %v7334, %v7320
        %v7629 = vpack.c.b16 %v7335, %v7321
        %v7630 = vpack.c.b16 %v7336, %v7322
        %v7631 = vpack.c.b16 %v7337, %v7323
        %v7632 = vpack.c.b16 %v7338, %v7324
        %v7633 = vpack.c.b16 %v7339, %v7325
        %v7634 = vpack.c.b16 %v7354, %v7340
        %v7635 = vpack.c.b16 %v7355, %v7341
        %v7636 = vpack.c.b16 %v7356, %v7342
        %v7637 = vpack.c.b16 %v7357, %v7343
        %v7638 = vpack.c.b16 %v7358, %v7344
        %v7639 = vpack.c.b16 %v7359, %v7345
        %v7640 = vpack.c.b16 %v7360, %v7346
        %v7641 = vpack.c.b16 %v7361, %v7347
        %v7642 = vpack.c.b16 %v7362, %v7348
        %v7643 = vpack.c.b16 %v7363, %v7349
        %v7644 = vpack.c.b16 %v7364, %v7350
        %v7645 = vpack.c.b16 %v7365, %v7351
        %v7646 = vpack.c.b16 %v7366, %v7352
        %v7647 = vpack.c.b16 %v7367, %v7353
        %v7648 = vpack.c.b16 %v7382, %v7368
        %v7649 = vpack.c.b16 %v7383, %v7369
        %v7650 = vpack.c.b16 %v7384, %v7370
        %v7651 = vpack.c.b16 %v7385, %v7371
        %v7652 = vpack.c.b16 %v7386, %v7372
        %v7653 = vpack.c.b16 %v7387, %v7373
        %v7654 = vpack.c.b16 %v7388, %v7374
        %v7655 = vpack.c.b16 %v7389, %v7375
        %v7656 = vpack.c.b16 %v7390, %v7376
        %v7657 = vpack.c.b16 %v7391, %v7377
        %v7658 = vpack.c.b16 %v7392, %v7378
        %v7659 = vpack.c.b16 %v7393, %v7379
        %v7660 = vpack.c.b16 %v7394, %v7380
        %v7661 = vpack.c.b16 %v7395, %v7381
        %v7662 = vpack.c.b16 %v7410, %v7396
        %v7663 = vpack.c.b16 %v7411, %v7397
        %v7664 = vpack.c.b16 %v7412, %v7398
        %v7665 = vpack.c.b16 %v7413, %v7399
        %v7666 = vpack.c.b16 %v7414, %v7400
        %v7667 = vpack.c.b16 %v7415, %v7401
        %v7668 = vpack.c.b16 %v7416, %v7402
        %v7669 = vpack.c.b16 %v7417, %v7403
        %v7670 = vpack.c.b16 %v7418, %v7404
        %v7671 = vpack.c.b16 %v7419, %v7405
        %v7672 = vpack.c.b16 %v7420, %v7406
        %v7673 = vpack.c.b16 %v7421, %v7407
        %v7674 = vpack.c.b16 %v7422, %v7408
        %v7675 = vpack.c.b16 %v7423, %v7409
        %v7676 = vpack.c.b16 %v7438, %v7424
        %v7677 = vpack.c.b16 %v7439, %v7425
        %v7678 = vpack.c.b16 %v7440, %v7426
        %v7679 = vpack.c.b16 %v7441, %v7427
        %v7680 = vpack.c.b16 %v7442, %v7428
        %v7681 = vpack.c.b16 %v7443, %v7429
        %v7682 = vpack.c.b16 %v7444, %v7430
        %v7683 = vpack.c.b16 %v7445, %v7431
        %v7684 = vpack.c.b16 %v7446, %v7432
        %v7685 = vpack.c.b16 %v7447, %v7433
        %v7686 = vpack.c.b16 %v7448, %v7434
        %v7687 = vpack.c.b16 %v7449, %v7435
        %v7688 = vpack.c.b16 %v7450, %v7436
        %v7689 = vpack.c.b16 %v7451, %v7437
        %v7690 = vpack.c.b16 %v7466, %v7452
        %v7691 = vpack.c.b16 %v7467, %v7453
        %v7692 = vpack.c.b16 %v7468, %v7454
        %v7693 = vpack.c.b16 %v7469, %v7455
        %v7694 = vpack.c.b16 %v7470, %v7456
        %v7695 = vpack.c.b16 %v7471, %v7457
        %v7696 = vpack.c.b16 %v7472, %v7458
        %v7697 = vpack.c.b16 %v7473, %v7459
        %v7698 = vpack.c.b16 %v7474, %v7460
        %v7699 = vpack.c.b16 %v7475, %v7461
        %v7700 = vpack.c.b16 %v7476, %v7462
        %v7701 = vpack.c.b16 %v7477, %v7463
        %v7702 = vpack.c.b16 %v7478, %v7464
        %v7703 = vpack.c.b16 %v7479, %v7465
        %7928 = vmatprep.subr.bf16.mxu0 %v7579
        %7929 = vmatpush1.bf16.msra.mxu0 %v7578
        %7930 = vmatprep.subr.bf16.mxu0 %v7565
        %7931 = vmatpush1.bf16.msra.mxu0 %v7564
        %7932 = vmatprep.subr.bf16.mxu0 %v7551
        %7933 = vmatpush1.bf16.msra.mxu0 %v7550
        %7934 = vmatprep.subr.bf16.mxu0 %v7537
        %7935 = vmatpush1.bf16.msra.mxu0 %v7536
        %7936 = vmatprep.subr.bf16.mxu0 %v7523
        %7937 = vmatpush1.bf16.msra.mxu0 %v7522
        %7938 = vmatprep.subr.bf16.mxu0 %v7509
        %7939 = vmatpush1.bf16.msra.mxu0 %v7508
        %7940 = vmatprep.subr.bf16.mxu0 %v7495
        %7941 = vmatpush1.bf16.msra.mxu0 %v7494
        %7942 = vmatprep.subr.bf16.mxu0 %v7481
        %7943 = vmatpush1.bf16.msra.mxu0 %v7480
        %7944 = vmatprep.subr.bf16.mxu0 %v7691
        %7945 = vmatpush2.bf16.msra.mxu0 %v7690
        %7946 = vmatprep.subr.bf16.mxu0 %v7677
        %7947 = vmatpush2.bf16.msra.mxu0 %v7676
        %7948 = vmatprep.subr.bf16.mxu0 %v7663
        %7949 = vmatpush2.bf16.msra.mxu0 %v7662
        %7950 = vmatprep.subr.bf16.mxu0 %v7649
        %7951 = vmatpush2.bf16.msra.mxu0 %v7648
        %7952 = vmatprep.subr.bf16.mxu0 %v7635
        %7953 = vmatpush2.bf16.msra.mxu0 %v7634
        %7954 = vmatprep.subr.bf16.mxu0 %v7621
        %7955 = vmatpush2.bf16.msra.mxu0 %v7620
        %7956 = vmatprep.subr.bf16.mxu0 %v7607
        %7957 = vmatpush2.bf16.msra.mxu0 %v7606
        %7958 = vmatprep.subr.bf16.mxu0 %v7593
        %7959 = vmatpush2.bf16.msra.mxu0 %v7592
        %7960 = vmatprep.mubr.bf16.mxu0 %v2920
        %7961 = vmatmul.mubr.bf16.gmra.mxu0 %v2919
        %v7962 = vpop.f32.mrf.mxu0
        %v7963 = vadd.f32 %v6332, %v7962
        %v7964 = vpop.f32.mrf.mxu0
        %v7965 = vadd.f32 %v6334, %v7964
        %v7966 = vpop.f32.mrf.mxu0
        %v7967 = vadd.f32 %v6336, %v7966
        %v7968 = vpop.f32.mrf.mxu0
        %v7969 = vadd.f32 %v6338, %v7968
        %7970 = vmatprep.mubr.bf16.mxu0 %v2922
        %7971 = vmatmul.mubr.bf16.gmra.mxu0 %v2921
        %v7972 = vpop.f32.mrf.mxu0
        %v7973 = vadd.f32 %v6342, %v7972
        %v7974 = vpop.f32.mrf.mxu0
        %v7975 = vadd.f32 %v6344, %v7974
        %v7976 = vpop.f32.mrf.mxu0
        %v7977 = vadd.f32 %v6346, %v7976
        %v7978 = vpop.f32.mrf.mxu0
        %v7979 = vadd.f32 %v6348, %v7978
        %7980 = vmatprep.mubr.bf16.mxu0 %v2924
        %7981 = vmatmul.mubr.bf16.gmra.mxu0 %v2923
        %v7982 = vpop.f32.mrf.mxu0
        %v7983 = vadd.f32 %v6352, %v7982
        %v7984 = vpop.f32.mrf.mxu0
        %v7985 = vadd.f32 %v6354, %v7984
        %v7986 = vpop.f32.mrf.mxu0
        %v7987 = vadd.f32 %v6356, %v7986
        %v7988 = vpop.f32.mrf.mxu0
        %v7989 = vadd.f32 %v6358, %v7988
        %7990 = vmatprep.mubr.bf16.mxu0 %v2926
        %7991 = vmatmul.mubr.bf16.gmra.mxu0 %v2925
        %v7992 = vpop.f32.mrf.mxu0
        %v7993 = vadd.f32 %v6362, %v7992
        %v7994 = vpop.f32.mrf.mxu0
        %v7995 = vadd.f32 %v6364, %v7994
        %v7996 = vpop.f32.mrf.mxu0
        %v7997 = vadd.f32 %v6366, %v7996
        %v7998 = vpop.f32.mrf.mxu0
        %v7999 = vadd.f32 %v6368, %v7998
        %8000 = vdwg.mxu0
        %8001 = vmatprep.subr.bf16.mxu0 %v7581
        %8002 = vmatpush1.bf16.msra.mxu0 %v7580
        %8003 = vmatprep.subr.bf16.mxu0 %v7567
        %8004 = vmatpush1.bf16.msra.mxu0 %v7566
        %8005 = vmatprep.subr.bf16.mxu0 %v7553
        %8006 = vmatpush1.bf16.msra.mxu0 %v7552
        %8007 = vmatprep.subr.bf16.mxu0 %v7539
        %8008 = vmatpush1.bf16.msra.mxu0 %v7538
        %8009 = vmatprep.subr.bf16.mxu0 %v7525
        %8010 = vmatpush1.bf16.msra.mxu0 %v7524
        %8011 = vmatprep.subr.bf16.mxu0 %v7511
        %8012 = vmatpush1.bf16.msra.mxu0 %v7510
        %8013 = vmatprep.subr.bf16.mxu0 %v7497
        %8014 = vmatpush1.bf16.msra.mxu0 %v7496
        %8015 = vmatprep.subr.bf16.mxu0 %v7483
        %8016 = vmatpush1.bf16.msra.mxu0 %v7482
        %8017 = vmatprep.subr.bf16.mxu0 %v7693
        %8018 = vmatpush2.bf16.msra.mxu0 %v7692
        %8019 = vmatprep.subr.bf16.mxu0 %v7679
        %8020 = vmatpush2.bf16.msra.mxu0 %v7678
        %8021 = vmatprep.subr.bf16.mxu0 %v7665
        %8022 = vmatpush2.bf16.msra.mxu0 %v7664
        %8023 = vmatprep.subr.bf16.mxu0 %v7651
        %8024 = vmatpush2.bf16.msra.mxu0 %v7650
        %8025 = vmatprep.subr.bf16.mxu0 %v7637
        %8026 = vmatpush2.bf16.msra.mxu0 %v7636
        %8027 = vmatprep.subr.bf16.mxu0 %v7623
        %8028 = vmatpush2.bf16.msra.mxu0 %v7622
        %8029 = vmatprep.subr.bf16.mxu0 %v7609
        %8030 = vmatpush2.bf16.msra.mxu0 %v7608
        %8031 = vmatprep.subr.bf16.mxu0 %v7595
        %8032 = vmatpush2.bf16.msra.mxu0 %v7594
        %8033 = vmatprep.mubr.bf16.mxu0 %v2920
        %8034 = vmatmul.mubr.bf16.gmra.mxu0 %v2919
        %v8035 = vpop.f32.mrf.mxu0
        %v8036 = vadd.f32 %v6405, %v8035
        %v8037 = vpop.f32.mrf.mxu0
        %v8038 = vadd.f32 %v6407, %v8037
        %v8039 = vpop.f32.mrf.mxu0
        %v8040 = vadd.f32 %v6409, %v8039
        %v8041 = vpop.f32.mrf.mxu0
        %v8042 = vadd.f32 %v6411, %v8041
        %8043 = vmatprep.mubr.bf16.mxu0 %v2922
        %8044 = vmatmul.mubr.bf16.gmra.mxu0 %v2921
        %v8045 = vpop.f32.mrf.mxu0
        %v8046 = vadd.f32 %v6415, %v8045
        %v8047 = vpop.f32.mrf.mxu0
        %v8048 = vadd.f32 %v6417, %v8047
        %v8049 = vpop.f32.mrf.mxu0
        %v8050 = vadd.f32 %v6419, %v8049
        %v8051 = vpop.f32.mrf.mxu0
        %v8052 = vadd.f32 %v6421, %v8051
        %8053 = vmatprep.mubr.bf16.mxu0 %v2924
        %8054 = vmatmul.mubr.bf16.gmra.mxu0 %v2923
        %v8055 = vpop.f32.mrf.mxu0
        %v8056 = vadd.f32 %v6425, %v8055
        %v8057 = vpop.f32.mrf.mxu0
        %v8058 = vadd.f32 %v6427, %v8057
        %v8059 = vpop.f32.mrf.mxu0
        %v8060 = vadd.f32 %v6429, %v8059
        %v8061 = vpop.f32.mrf.mxu0
        %v8062 = vadd.f32 %v6431, %v8061
        %8063 = vmatprep.mubr.bf16.mxu0 %v2926
        %8064 = vmatmul.mubr.bf16.gmra.mxu0 %v2925
        %v8065 = vpop.f32.mrf.mxu0
        %v8066 = vadd.f32 %v6435, %v8065
        %v8067 = vpop.f32.mrf.mxu0
        %v8068 = vadd.f32 %v6437, %v8067
        %v8069 = vpop.f32.mrf.mxu0
        %v8070 = vadd.f32 %v6439, %v8069
        %v8071 = vpop.f32.mrf.mxu0
        %v8072 = vadd.f32 %v6441, %v8071
        %8073 = vdwg.mxu0
        %8074 = vmatprep.subr.bf16.mxu0 %v7583
        %8075 = vmatpush1.bf16.msra.mxu0 %v7582
        %8076 = vmatprep.subr.bf16.mxu0 %v7569
        %8077 = vmatpush1.bf16.msra.mxu0 %v7568
        %8078 = vmatprep.subr.bf16.mxu0 %v7555
        %8079 = vmatpush1.bf16.msra.mxu0 %v7554
        %8080 = vmatprep.subr.bf16.mxu0 %v7541
        %8081 = vmatpush1.bf16.msra.mxu0 %v7540
        %8082 = vmatprep.subr.bf16.mxu0 %v7527
        %8083 = vmatpush1.bf16.msra.mxu0 %v7526
        %8084 = vmatprep.subr.bf16.mxu0 %v7513
        %8085 = vmatpush1.bf16.msra.mxu0 %v7512
        %8086 = vmatprep.subr.bf16.mxu0 %v7499
        %8087 = vmatpush1.bf16.msra.mxu0 %v7498
        %8088 = vmatprep.subr.bf16.mxu0 %v7485
        %8089 = vmatpush1.bf16.msra.mxu0 %v7484
        %8090 = vmatprep.subr.bf16.mxu0 %v7695
        %8091 = vmatpush2.bf16.msra.mxu0 %v7694
        %8092 = vmatprep.subr.bf16.mxu0 %v7681
        %8093 = vmatpush2.bf16.msra.mxu0 %v7680
        %8094 = vmatprep.subr.bf16.mxu0 %v7667
        %8095 = vmatpush2.bf16.msra.mxu0 %v7666
        %8096 = vmatprep.subr.bf16.mxu0 %v7653
        %8097 = vmatpush2.bf16.msra.mxu0 %v7652
        %8098 = vmatprep.subr.bf16.mxu0 %v7639
        %8099 = vmatpush2.bf16.msra.mxu0 %v7638
        %8100 = vmatprep.subr.bf16.mxu0 %v7625
        %8101 = vmatpush2.bf16.msra.mxu0 %v7624
        %8102 = vmatprep.subr.bf16.mxu0 %v7611
        %8103 = vmatpush2.bf16.msra.mxu0 %v7610
        %8104 = vmatprep.subr.bf16.mxu0 %v7597
        %8105 = vmatpush2.bf16.msra.mxu0 %v7596
        %8106 = vmatprep.mubr.bf16.mxu0 %v2920
        %8107 = vmatmul.mubr.bf16.gmra.mxu0 %v2919
        %v8108 = vpop.f32.mrf.mxu0
        %v8109 = vadd.f32 %v6478, %v8108
        %v8110 = vpop.f32.mrf.mxu0
        %v8111 = vadd.f32 %v6480, %v8110
        %v8112 = vpop.f32.mrf.mxu0
        %v8113 = vadd.f32 %v6482, %v8112
        %v8114 = vpop.f32.mrf.mxu0
        %v8115 = vadd.f32 %v6484, %v8114
        %8116 = vmatprep.mubr.bf16.mxu0 %v2922
        %8117 = vmatmul.mubr.bf16.gmra.mxu0 %v2921
        %v8118 = vpop.f32.mrf.mxu0
        %v8119 = vadd.f32 %v6488, %v8118
        %v8120 = vpop.f32.mrf.mxu0
        %v8121 = vadd.f32 %v6490, %v8120
        %v8122 = vpop.f32.mrf.mxu0
        %v8123 = vadd.f32 %v6492, %v8122
        %v8124 = vpop.f32.mrf.mxu0
        %v8125 = vadd.f32 %v6494, %v8124
        %8126 = vmatprep.mubr.bf16.mxu0 %v2924
        %8127 = vmatmul.mubr.bf16.gmra.mxu0 %v2923
        %v8128 = vpop.f32.mrf.mxu0
        %v8129 = vadd.f32 %v6498, %v8128
        %v8130 = vpop.f32.mrf.mxu0
        %v8131 = vadd.f32 %v6500, %v8130
        %v8132 = vpop.f32.mrf.mxu0
        %v8133 = vadd.f32 %v6502, %v8132
        %v8134 = vpop.f32.mrf.mxu0
        %v8135 = vadd.f32 %v6504, %v8134
        %8136 = vmatprep.mubr.bf16.mxu0 %v2926
        %8137 = vmatmul.mubr.bf16.gmra.mxu0 %v2925
        %v8138 = vpop.f32.mrf.mxu0
        %v8139 = vadd.f32 %v6508, %v8138
        %v8140 = vpop.f32.mrf.mxu0
        %v8141 = vadd.f32 %v6510, %v8140
        %v8142 = vpop.f32.mrf.mxu0
        %v8143 = vadd.f32 %v6512, %v8142
        %v8144 = vpop.f32.mrf.mxu0
        %v8145 = vadd.f32 %v6514, %v8144
        %8146 = vdwg.mxu0
        %8147 = vmatprep.subr.bf16.mxu0 %v7585
        %8148 = vmatpush1.bf16.msra.mxu0 %v7584
        %8149 = vmatprep.subr.bf16.mxu0 %v7571
        %8150 = vmatpush1.bf16.msra.mxu0 %v7570
        %8151 = vmatprep.subr.bf16.mxu0 %v7557
        %8152 = vmatpush1.bf16.msra.mxu0 %v7556
        %8153 = vmatprep.subr.bf16.mxu0 %v7543
        %8154 = vmatpush1.bf16.msra.mxu0 %v7542
        %8155 = vmatprep.subr.bf16.mxu0 %v7529
        %8156 = vmatpush1.bf16.msra.mxu0 %v7528
        %8157 = vmatprep.subr.bf16.mxu0 %v7515
        %8158 = vmatpush1.bf16.msra.mxu0 %v7514
        %8159 = vmatprep.subr.bf16.mxu0 %v7501
        %8160 = vmatpush1.bf16.msra.mxu0 %v7500
        %8161 = vmatprep.subr.bf16.mxu0 %v7487
        %8162 = vmatpush1.bf16.msra.mxu0 %v7486
        %8163 = vmatprep.subr.bf16.mxu0 %v7697
        %8164 = vmatpush2.bf16.msra.mxu0 %v7696
        %8165 = vmatprep.subr.bf16.mxu0 %v7683
        %8166 = vmatpush2.bf16.msra.mxu0 %v7682
        %8167 = vmatprep.subr.bf16.mxu0 %v7669
        %8168 = vmatpush2.bf16.msra.mxu0 %v7668
        %8169 = vmatprep.subr.bf16.mxu0 %v7655
        %8170 = vmatpush2.bf16.msra.mxu0 %v7654
        %8171 = vmatprep.subr.bf16.mxu0 %v7641
        %8172 = vmatpush2.bf16.msra.mxu0 %v7640
        %8173 = vmatprep.subr.bf16.mxu0 %v7627
        %8174 = vmatpush2.bf16.msra.mxu0 %v7626
        %8175 = vmatprep.subr.bf16.mxu0 %v7613
        %8176 = vmatpush2.bf16.msra.mxu0 %v7612
        %8177 = vmatprep.subr.bf16.mxu0 %v7599
        %8178 = vmatpush2.bf16.msra.mxu0 %v7598
        %8179 = vmatprep.mubr.bf16.mxu0 %v2920
        %8180 = vmatmul.mubr.bf16.gmra.mxu0 %v2919
        %v8181 = vpop.f32.mrf.mxu0
        %v8182 = vadd.f32 %v6551, %v8181
        %v8183 = vpop.f32.mrf.mxu0
        %v8184 = vadd.f32 %v6553, %v8183
        %v8185 = vpop.f32.mrf.mxu0
        %v8186 = vadd.f32 %v6555, %v8185
        %v8187 = vpop.f32.mrf.mxu0
        %v8188 = vadd.f32 %v6557, %v8187
        %8189 = vmatprep.mubr.bf16.mxu0 %v2922
        %8190 = vmatmul.mubr.bf16.gmra.mxu0 %v2921
        %v8191 = vpop.f32.mrf.mxu0
        %v8192 = vadd.f32 %v6561, %v8191
        %v8193 = vpop.f32.mrf.mxu0
        %v8194 = vadd.f32 %v6563, %v8193
        %v8195 = vpop.f32.mrf.mxu0
        %v8196 = vadd.f32 %v6565, %v8195
        %v8197 = vpop.f32.mrf.mxu0
        %v8198 = vadd.f32 %v6567, %v8197
        %8199 = vmatprep.mubr.bf16.mxu0 %v2924
        %8200 = vmatmul.mubr.bf16.gmra.mxu0 %v2923
        %v8201 = vpop.f32.mrf.mxu0
        %v8202 = vadd.f32 %v6571, %v8201
        %v8203 = vpop.f32.mrf.mxu0
        %v8204 = vadd.f32 %v6573, %v8203
        %v8205 = vpop.f32.mrf.mxu0
        %v8206 = vadd.f32 %v6575, %v8205
        %v8207 = vpop.f32.mrf.mxu0
        %v8208 = vadd.f32 %v6577, %v8207
        %8209 = vmatprep.mubr.bf16.mxu0 %v2926
        %8210 = vmatmul.mubr.bf16.gmra.mxu0 %v2925
        %v8211 = vpop.f32.mrf.mxu0
        %v8212 = vadd.f32 %v6581, %v8211
        %v8213 = vpop.f32.mrf.mxu0
        %v8214 = vadd.f32 %v6583, %v8213
        %v8215 = vpop.f32.mrf.mxu0
        %v8216 = vadd.f32 %v6585, %v8215
        %v8217 = vpop.f32.mrf.mxu0
        %v8218 = vadd.f32 %v6587, %v8217
        %8219 = vdwg.mxu0
        %8220 = vmatprep.subr.bf16.mxu0 %v7587
        %8221 = vmatpush1.bf16.msra.mxu0 %v7586
        %8222 = vmatprep.subr.bf16.mxu0 %v7573
        %8223 = vmatpush1.bf16.msra.mxu0 %v7572
        %8224 = vmatprep.subr.bf16.mxu0 %v7559
        %8225 = vmatpush1.bf16.msra.mxu0 %v7558
        %8226 = vmatprep.subr.bf16.mxu0 %v7545
        %8227 = vmatpush1.bf16.msra.mxu0 %v7544
        %8228 = vmatprep.subr.bf16.mxu0 %v7531
        %8229 = vmatpush1.bf16.msra.mxu0 %v7530
        %8230 = vmatprep.subr.bf16.mxu0 %v7517
        %8231 = vmatpush1.bf16.msra.mxu0 %v7516
        %8232 = vmatprep.subr.bf16.mxu0 %v7503
        %8233 = vmatpush1.bf16.msra.mxu0 %v7502
        %8234 = vmatprep.subr.bf16.mxu0 %v7489
        %8235 = vmatpush1.bf16.msra.mxu0 %v7488
        %8236 = vmatprep.subr.bf16.mxu0 %v7699
        %8237 = vmatpush2.bf16.msra.mxu0 %v7698
        %8238 = vmatprep.subr.bf16.mxu0 %v7685
        %8239 = vmatpush2.bf16.msra.mxu0 %v7684
        %8240 = vmatprep.subr.bf16.mxu0 %v7671
        %8241 = vmatpush2.bf16.msra.mxu0 %v7670
        %8242 = vmatprep.subr.bf16.mxu0 %v7657
        %8243 = vmatpush2.bf16.msra.mxu0 %v7656
        %8244 = vmatprep.subr.bf16.mxu0 %v7643
        %8245 = vmatpush2.bf16.msra.mxu0 %v7642
        %8246 = vmatprep.subr.bf16.mxu0 %v7629
        %8247 = vmatpush2.bf16.msra.mxu0 %v7628
        %8248 = vmatprep.subr.bf16.mxu0 %v7615
        %8249 = vmatpush2.bf16.msra.mxu0 %v7614
        %8250 = vmatprep.subr.bf16.mxu0 %v7601
        %8251 = vmatpush2.bf16.msra.mxu0 %v7600
        %8252 = vmatprep.mubr.bf16.mxu0 %v2920
        %8253 = vmatmul.mubr.bf16.gmra.mxu0 %v2919
        %v8254 = vpop.f32.mrf.mxu0
        %v8255 = vadd.f32 %v6624, %v8254
        %v8256 = vpop.f32.mrf.mxu0
        %v8257 = vadd.f32 %v6626, %v8256
        %v8258 = vpop.f32.mrf.mxu0
        %v8259 = vadd.f32 %v6628, %v8258
        %v8260 = vpop.f32.mrf.mxu0
        %v8261 = vadd.f32 %v6630, %v8260
        %8262 = vmatprep.mubr.bf16.mxu0 %v2922
        %8263 = vmatmul.mubr.bf16.gmra.mxu0 %v2921
        %v8264 = vpop.f32.mrf.mxu0
        %v8265 = vadd.f32 %v6634, %v8264
        %v8266 = vpop.f32.mrf.mxu0
        %v8267 = vadd.f32 %v6636, %v8266
        %v8268 = vpop.f32.mrf.mxu0
        %v8269 = vadd.f32 %v6638, %v8268
        %v8270 = vpop.f32.mrf.mxu0
        %v8271 = vadd.f32 %v6640, %v8270
        %8272 = vmatprep.mubr.bf16.mxu0 %v2924
        %8273 = vmatmul.mubr.bf16.gmra.mxu0 %v2923
        %v8274 = vpop.f32.mrf.mxu0
        %v8275 = vadd.f32 %v6644, %v8274
        %v8276 = vpop.f32.mrf.mxu0
        %v8277 = vadd.f32 %v6646, %v8276
        %v8278 = vpop.f32.mrf.mxu0
        %v8279 = vadd.f32 %v6648, %v8278
        %v8280 = vpop.f32.mrf.mxu0
        %v8281 = vadd.f32 %v6650, %v8280
        %8282 = vmatprep.mubr.bf16.mxu0 %v2926
        %8283 = vmatmul.mubr.bf16.gmra.mxu0 %v2925
        %v8284 = vpop.f32.mrf.mxu0
        %v8285 = vadd.f32 %v6654, %v8284
        %v8286 = vpop.f32.mrf.mxu0
        %v8287 = vadd.f32 %v6656, %v8286
        %v8288 = vpop.f32.mrf.mxu0
        %v8289 = vadd.f32 %v6658, %v8288
        %v8290 = vpop.f32.mrf.mxu0
        %v8291 = vadd.f32 %v6660, %v8290
        %8292 = vdwg.mxu0
        %8293 = vmatprep.subr.bf16.mxu0 %v7589
        %8294 = vmatpush1.bf16.msra.mxu0 %v7588
        %8295 = vmatprep.subr.bf16.mxu0 %v7575
        %8296 = vmatpush1.bf16.msra.mxu0 %v7574
        %8297 = vmatprep.subr.bf16.mxu0 %v7561
        %8298 = vmatpush1.bf16.msra.mxu0 %v7560
        %8299 = vmatprep.subr.bf16.mxu0 %v7547
        %8300 = vmatpush1.bf16.msra.mxu0 %v7546
        %8301 = vmatprep.subr.bf16.mxu0 %v7533
        %8302 = vmatpush1.bf16.msra.mxu0 %v7532
        %8303 = vmatprep.subr.bf16.mxu0 %v7519
        %8304 = vmatpush1.bf16.msra.mxu0 %v7518
        %8305 = vmatprep.subr.bf16.mxu0 %v7505
        %8306 = vmatpush1.bf16.msra.mxu0 %v7504
        %8307 = vmatprep.subr.bf16.mxu0 %v7491
        %8308 = vmatpush1.bf16.msra.mxu0 %v7490
        %8309 = vmatprep.subr.bf16.mxu0 %v7701
        %8310 = vmatpush2.bf16.msra.mxu0 %v7700
        %8311 = vmatprep.subr.bf16.mxu0 %v7687
        %8312 = vmatpush2.bf16.msra.mxu0 %v7686
        %8313 = vmatprep.subr.bf16.mxu0 %v7673
        %8314 = vmatpush2.bf16.msra.mxu0 %v7672
        %8315 = vmatprep.subr.bf16.mxu0 %v7659
        %8316 = vmatpush2.bf16.msra.mxu0 %v7658
        %8317 = vmatprep.subr.bf16.mxu0 %v7645
        %8318 = vmatpush2.bf16.msra.mxu0 %v7644
        %8319 = vmatprep.subr.bf16.mxu0 %v7631
        %8320 = vmatpush2.bf16.msra.mxu0 %v7630
        %8321 = vmatprep.subr.bf16.mxu0 %v7617
        %8322 = vmatpush2.bf16.msra.mxu0 %v7616
        %8323 = vmatprep.subr.bf16.mxu0 %v7603
        %8324 = vmatpush2.bf16.msra.mxu0 %v7602
        %8325 = vmatprep.mubr.bf16.mxu0 %v2920
        %8326 = vmatmul.mubr.bf16.gmra.mxu0 %v2919
        %v8327 = vpop.f32.mrf.mxu0
        %v8328 = vadd.f32 %v6697, %v8327
        %v8329 = vpop.f32.mrf.mxu0
        %v8330 = vadd.f32 %v6699, %v8329
        %v8331 = vpop.f32.mrf.mxu0
        %v8332 = vadd.f32 %v6701, %v8331
        %v8333 = vpop.f32.mrf.mxu0
        %v8334 = vadd.f32 %v6703, %v8333
        %8335 = vmatprep.mubr.bf16.mxu0 %v2922
        %8336 = vmatmul.mubr.bf16.gmra.mxu0 %v2921
        %v8337 = vpop.f32.mrf.mxu0
        %v8338 = vadd.f32 %v6707, %v8337
        %v8339 = vpop.f32.mrf.mxu0
        %v8340 = vadd.f32 %v6709, %v8339
        %v8341 = vpop.f32.mrf.mxu0
        %v8342 = vadd.f32 %v6711, %v8341
        %v8343 = vpop.f32.mrf.mxu0
        %v8344 = vadd.f32 %v6713, %v8343
        %8345 = vmatprep.mubr.bf16.mxu0 %v2924
        %8346 = vmatmul.mubr.bf16.gmra.mxu0 %v2923
        %v8347 = vpop.f32.mrf.mxu0
        %v8348 = vadd.f32 %v6717, %v8347
        %v8349 = vpop.f32.mrf.mxu0
        %v8350 = vadd.f32 %v6719, %v8349
        %v8351 = vpop.f32.mrf.mxu0
        %v8352 = vadd.f32 %v6721, %v8351
        %v8353 = vpop.f32.mrf.mxu0
        %v8354 = vadd.f32 %v6723, %v8353
        %8355 = vmatprep.mubr.bf16.mxu0 %v2926
        %8356 = vmatmul.mubr.bf16.gmra.mxu0 %v2925
        %v8357 = vpop.f32.mrf.mxu0
        %v8358 = vadd.f32 %v6727, %v8357
        %v8359 = vpop.f32.mrf.mxu0
        %v8360 = vadd.f32 %v6729, %v8359
        %v8361 = vpop.f32.mrf.mxu0
        %v8362 = vadd.f32 %v6731, %v8361
        %v8363 = vpop.f32.mrf.mxu0
        %v8364 = vadd.f32 %v6733, %v8363
        %8365 = vdwg.mxu0
        %8366 = vmatprep.subr.bf16.mxu0 %v7591
        %8367 = vmatpush1.bf16.msra.mxu0 %v7590
        %8368 = vmatprep.subr.bf16.mxu0 %v7577
        %8369 = vmatpush1.bf16.msra.mxu0 %v7576
        %8370 = vmatprep.subr.bf16.mxu0 %v7563
        %8371 = vmatpush1.bf16.msra.mxu0 %v7562
        %8372 = vmatprep.subr.bf16.mxu0 %v7549
        %8373 = vmatpush1.bf16.msra.mxu0 %v7548
        %8374 = vmatprep.subr.bf16.mxu0 %v7535
        %8375 = vmatpush1.bf16.msra.mxu0 %v7534
        %8376 = vmatprep.subr.bf16.mxu0 %v7521
        %8377 = vmatpush1.bf16.msra.mxu0 %v7520
        %8378 = vmatprep.subr.bf16.mxu0 %v7507
        %8379 = vmatpush1.bf16.msra.mxu0 %v7506
        %8380 = vmatprep.subr.bf16.mxu0 %v7493
        %8381 = vmatpush1.bf16.msra.mxu0 %v7492
        %8382 = vmatprep.subr.bf16.mxu0 %v7703
        %8383 = vmatpush2.bf16.msra.mxu0 %v7702
        %8384 = vmatprep.subr.bf16.mxu0 %v7689
        %8385 = vmatpush2.bf16.msra.mxu0 %v7688
        %8386 = vmatprep.subr.bf16.mxu0 %v7675
        %8387 = vmatpush2.bf16.msra.mxu0 %v7674
        %8388 = vmatprep.subr.bf16.mxu0 %v7661
        %8389 = vmatpush2.bf16.msra.mxu0 %v7660
        %8390 = vmatprep.subr.bf16.mxu0 %v7647
        %8391 = vmatpush2.bf16.msra.mxu0 %v7646
        %8392 = vmatprep.subr.bf16.mxu0 %v7633
        %8393 = vmatpush2.bf16.msra.mxu0 %v7632
        %8394 = vmatprep.subr.bf16.mxu0 %v7619
        %8395 = vmatpush2.bf16.msra.mxu0 %v7618
        %8396 = vmatprep.subr.bf16.mxu0 %v7605
        %8397 = vmatpush2.bf16.msra.mxu0 %v7604
        %8398 = vmatprep.mubr.bf16.mxu0 %v2920
        %8399 = vmatmul.mubr.bf16.gmra.mxu0 %v2919
        %v8400 = vpop.f32.mrf.mxu0
        %v8401 = vadd.f32 %v6770, %v8400
        %v8402 = vpop.f32.mrf.mxu0
        %v8403 = vadd.f32 %v6772, %v8402
        %v8404 = vpop.f32.mrf.mxu0
        %v8405 = vadd.f32 %v6774, %v8404
        %v8406 = vpop.f32.mrf.mxu0
        %v8407 = vadd.f32 %v6776, %v8406
        %8408 = vmatprep.mubr.bf16.mxu0 %v2922
        %8409 = vmatmul.mubr.bf16.gmra.mxu0 %v2921
        %v8410 = vpop.f32.mrf.mxu0
        %v8411 = vadd.f32 %v6780, %v8410
        %v8412 = vpop.f32.mrf.mxu0
        %v8413 = vadd.f32 %v6782, %v8412
        %v8414 = vpop.f32.mrf.mxu0
        %v8415 = vadd.f32 %v6784, %v8414
        %v8416 = vpop.f32.mrf.mxu0
        %v8417 = vadd.f32 %v6786, %v8416
        %8418 = vmatprep.mubr.bf16.mxu0 %v2924
        %8419 = vmatmul.mubr.bf16.gmra.mxu0 %v2923
        %v8420 = vpop.f32.mrf.mxu0
        %v8421 = vadd.f32 %v6790, %v8420
        %v8422 = vpop.f32.mrf.mxu0
        %v8423 = vadd.f32 %v6792, %v8422
        %v8424 = vpop.f32.mrf.mxu0
        %v8425 = vadd.f32 %v6794, %v8424
        %v8426 = vpop.f32.mrf.mxu0
        %v8427 = vadd.f32 %v6796, %v8426
        %8428 = vmatprep.mubr.bf16.mxu0 %v2926
        %8429 = vmatmul.mubr.bf16.gmra.mxu0 %v2925
        %v8430 = vpop.f32.mrf.mxu0
        %v8431 = vadd.f32 %v6800, %v8430
        %v8432 = vpop.f32.mrf.mxu0
        %v8433 = vadd.f32 %v6802, %v8432
        %v8434 = vpop.f32.mrf.mxu0
        %v8435 = vadd.f32 %v6804, %v8434
        %v8436 = vpop.f32.mrf.mxu0
        %v8437 = vadd.f32 %v6806, %v8436
        %8438 = vdwg.mxu0
        %v8439 = vld [vmem:[%s9] sm:$0xff]
        %v8440 = vld [vmem:[%s9 + $0x8] sm:$0x3f]
        %v8443 = vlaneseq
        %v8444 = vshrl.u32 %v8443, 7
        %v8445 = vsub.s32 0, %v8444
        %v8446 = vrot.slane %v8439, %v8445
        %v8447 = vlaneseq
        %v8448 = vshrl.u32 %v8447, 7
        %v8449 = vsub.s32 1, %v8448
        %v8450 = vrot.slane %v8439, %v8449
        %v8451 = vlaneseq
        %v8452 = vshrl.u32 %v8451, 7
        %v8453 = vsub.s32 2, %v8452
        %v8454 = vrot.slane %v8439, %v8453
        %v8455 = vlaneseq
        %v8456 = vshrl.u32 %v8455, 7
        %v8457 = vsub.s32 3, %v8456
        %v8458 = vrot.slane %v8439, %v8457
        %v8459 = vlaneseq
        %v8460 = vshrl.u32 %v8459, 7
        %v8461 = vsub.s32 4, %v8460
        %v8462 = vrot.slane %v8439, %v8461
        %v8463 = vlaneseq
        %v8464 = vshrl.u32 %v8463, 7
        %v8465 = vsub.s32 5, %v8464
        %v8466 = vrot.slane %v8439, %v8465
        %v8467 = vlaneseq
        %v8468 = vshrl.u32 %v8467, 7
        %v8469 = vsub.s32 6, %v8468
        %v8470 = vrot.slane %v8439, %v8469
        %v8471 = vlaneseq
        %v8472 = vshrl.u32 %v8471, 7
        %v8473 = vsub.s32 7, %v8472
        %v8474 = vrot.slane %v8439, %v8473
        %v8475 = vlaneseq
        %v8476 = vshrl.u32 %v8475, 7
        %v8477 = vsub.s32 0, %v8476
        %v8478 = vrot.slane %v8440, %v8477
        %v8479 = vlaneseq
        %v8480 = vshrl.u32 %v8479, 7
        %v8481 = vsub.s32 1, %v8480
        %v8482 = vrot.slane %v8440, %v8481
        %v8483 = vlaneseq
        %v8484 = vshrl.u32 %v8483, 7
        %v8485 = vsub.s32 2, %v8484
        %v8486 = vrot.slane %v8440, %v8485
        %v8487 = vlaneseq
        %v8488 = vshrl.u32 %v8487, 7
        %v8489 = vsub.s32 3, %v8488
        %v8490 = vrot.slane %v8440, %v8489
        %v8491 = vlaneseq
        %v8492 = vshrl.u32 %v8491, 7
        %v8493 = vsub.s32 4, %v8492
        %v8494 = vrot.slane %v8440, %v8493
        %v8495 = vlaneseq
        %v8496 = vshrl.u32 %v8495, 7
        %v8497 = vsub.s32 5, %v8496
        %v8498 = vrot.slane %v8440, %v8497
        %v8513 = vadd.f32 %v7963, %v8446
        %v8514 = vadd.f32 %v7965, %v8450
        %v8515 = vadd.f32 %v8036, %v8454
        %v8516 = vadd.f32 %v8038, %v8458
        %v8517 = vadd.f32 %v8109, %v8462
        %v8518 = vadd.f32 %v8111, %v8466
        %v8519 = vadd.f32 %v8182, %v8470
        %v8520 = vadd.f32 %v8184, %v8474
        %v8521 = vadd.f32 %v8255, %v8478
        %v8522 = vadd.f32 %v8257, %v8482
        %v8523 = vadd.f32 %v8328, %v8486
        %v8524 = vadd.f32 %v8330, %v8490
        %v8525 = vadd.f32 %v8401, %v8494
        %v8526 = vadd.f32 %v8403, %v8498
        %v8527 = vadd.f32 %v7967, %v8446
        %v8528 = vadd.f32 %v7969, %v8450
        %v8529 = vadd.f32 %v8040, %v8454
        %v8530 = vadd.f32 %v8042, %v8458
        %v8531 = vadd.f32 %v8113, %v8462
        %v8532 = vadd.f32 %v8115, %v8466
        %v8533 = vadd.f32 %v8186, %v8470
        %v8534 = vadd.f32 %v8188, %v8474
        %v8535 = vadd.f32 %v8259, %v8478
        %v8536 = vadd.f32 %v8261, %v8482
        %v8537 = vadd.f32 %v8332, %v8486
        %v8538 = vadd.f32 %v8334, %v8490
        %v8539 = vadd.f32 %v8405, %v8494
        %v8540 = vadd.f32 %v8407, %v8498
        %v8541 = vadd.f32 %v7973, %v8446
        %v8542 = vadd.f32 %v7975, %v8450
        %v8543 = vadd.f32 %v8046, %v8454
        %v8544 = vadd.f32 %v8048, %v8458
        %v8545 = vadd.f32 %v8119, %v8462
        %v8546 = vadd.f32 %v8121, %v8466
        %v8547 = vadd.f32 %v8192, %v8470
        %v8548 = vadd.f32 %v8194, %v8474
        %v8549 = vadd.f32 %v8265, %v8478
        %v8550 = vadd.f32 %v8267, %v8482
        %v8551 = vadd.f32 %v8338, %v8486
        %v8552 = vadd.f32 %v8340, %v8490
        %v8553 = vadd.f32 %v8411, %v8494
        %v8554 = vadd.f32 %v8413, %v8498
        %v8555 = vadd.f32 %v7977, %v8446
        %v8556 = vadd.f32 %v7979, %v8450
        %v8557 = vadd.f32 %v8050, %v8454
        %v8558 = vadd.f32 %v8052, %v8458
        %v8559 = vadd.f32 %v8123, %v8462
        %v8560 = vadd.f32 %v8125, %v8466
        %v8561 = vadd.f32 %v8196, %v8470
        %v8562 = vadd.f32 %v8198, %v8474
        %v8563 = vadd.f32 %v8269, %v8478
        %v8564 = vadd.f32 %v8271, %v8482
        %v8565 = vadd.f32 %v8342, %v8486
        %v8566 = vadd.f32 %v8344, %v8490
        %v8567 = vadd.f32 %v8415, %v8494
        %v8568 = vadd.f32 %v8417, %v8498
        %v8569 = vadd.f32 %v7983, %v8446
        %v8570 = vadd.f32 %v7985, %v8450
        %v8571 = vadd.f32 %v8056, %v8454
        %v8572 = vadd.f32 %v8058, %v8458
        %v8573 = vadd.f32 %v8129, %v8462
        %v8574 = vadd.f32 %v8131, %v8466
        %v8575 = vadd.f32 %v8202, %v8470
        %v8576 = vadd.f32 %v8204, %v8474
        %v8577 = vadd.f32 %v8275, %v8478
        %v8578 = vadd.f32 %v8277, %v8482
        %v8579 = vadd.f32 %v8348, %v8486
        %v8580 = vadd.f32 %v8350, %v8490
        %v8581 = vadd.f32 %v8421, %v8494
        %v8582 = vadd.f32 %v8423, %v8498
        %v8583 = vadd.f32 %v7987, %v8446
        %v8584 = vadd.f32 %v7989, %v8450
        %v8585 = vadd.f32 %v8060, %v8454
        %v8586 = vadd.f32 %v8062, %v8458
        %v8587 = vadd.f32 %v8133, %v8462
        %v8588 = vadd.f32 %v8135, %v8466
        %v8589 = vadd.f32 %v8206, %v8470
        %v8590 = vadd.f32 %v8208, %v8474
        %v8591 = vadd.f32 %v8279, %v8478
        %v8592 = vadd.f32 %v8281, %v8482
        %v8593 = vadd.f32 %v8352, %v8486
        %v8594 = vadd.f32 %v8354, %v8490
        %v8595 = vadd.f32 %v8425, %v8494
        %v8596 = vadd.f32 %v8427, %v8498
        %v8597 = vadd.f32 %v7993, %v8446
        %v8598 = vadd.f32 %v7995, %v8450
        %v8599 = vadd.f32 %v8066, %v8454
        %v8600 = vadd.f32 %v8068, %v8458
        %v8601 = vadd.f32 %v8139, %v8462
        %v8602 = vadd.f32 %v8141, %v8466
        %v8603 = vadd.f32 %v8212, %v8470
        %v8604 = vadd.f32 %v8214, %v8474
        %v8605 = vadd.f32 %v8285, %v8478
        %v8606 = vadd.f32 %v8287, %v8482
        %v8607 = vadd.f32 %v8358, %v8486
        %v8608 = vadd.f32 %v8360, %v8490
        %v8609 = vadd.f32 %v8431, %v8494
        %v8610 = vadd.f32 %v8433, %v8498
        %v8611 = vadd.f32 %v7997, %v8446
        %v8612 = vadd.f32 %v7999, %v8450
        %v8613 = vadd.f32 %v8070, %v8454
        %v8614 = vadd.f32 %v8072, %v8458
        %v8615 = vadd.f32 %v8143, %v8462
        %v8616 = vadd.f32 %v8145, %v8466
        %v8617 = vadd.f32 %v8216, %v8470
        %v8618 = vadd.f32 %v8218, %v8474
        %v8619 = vadd.f32 %v8289, %v8478
        %v8620 = vadd.f32 %v8291, %v8482
        %v8621 = vadd.f32 %v8362, %v8486
        %v8622 = vadd.f32 %v8364, %v8490
        %v8623 = vadd.f32 %v8435, %v8494
        %v8624 = vadd.f32 %v8437, %v8498
        %v8625 = vadd.f32 %v476, %v8513
        %v8626 = vadd.f32 %v477, %v8514
        %v8627 = vadd.f32 %v478, %v8515
        %v8628 = vadd.f32 %v479, %v8516
        %v8629 = vadd.f32 %v480, %v8517
        %v8630 = vadd.f32 %v481, %v8518
        %v8631 = vadd.f32 %v482, %v8519
        %v8632 = vadd.f32 %v483, %v8520
        %v8633 = vadd.f32 %v484, %v8521
        %v8634 = vadd.f32 %v485, %v8522
        %v8635 = vadd.f32 %v486, %v8523
        %v8636 = vadd.f32 %v487, %v8524
        %v8637 = vadd.f32 %v488, %v8525
        %v8638 = vadd.f32 %v489, %v8526
        %v8639 = vadd.f32 %v490, %v8527
        %v8640 = vadd.f32 %v491, %v8528
        %v8641 = vadd.f32 %v492, %v8529
        %v8642 = vadd.f32 %v493, %v8530
        %v8643 = vadd.f32 %v494, %v8531
        %v8644 = vadd.f32 %v495, %v8532
        %v8645 = vadd.f32 %v496, %v8533
        %v8646 = vadd.f32 %v497, %v8534
        %v8647 = vadd.f32 %v498, %v8535
        %v8648 = vadd.f32 %v499, %v8536
        %v8649 = vadd.f32 %v500, %v8537
        %v8650 = vadd.f32 %v501, %v8538
        %v8651 = vadd.f32 %v502, %v8539
        %v8652 = vadd.f32 %v503, %v8540
        %v8653 = vadd.f32 %v504, %v8541
        %v8654 = vadd.f32 %v505, %v8542
        %v8655 = vadd.f32 %v506, %v8543
        %v8656 = vadd.f32 %v507, %v8544
        %v8657 = vadd.f32 %v508, %v8545
        %v8658 = vadd.f32 %v509, %v8546
        %v8659 = vadd.f32 %v510, %v8547
        %v8660 = vadd.f32 %v511, %v8548
        %v8661 = vadd.f32 %v512, %v8549
        %v8662 = vadd.f32 %v513, %v8550
        %v8663 = vadd.f32 %v514, %v8551
        %v8664 = vadd.f32 %v515, %v8552
        %v8665 = vadd.f32 %v516, %v8553
        %v8666 = vadd.f32 %v517, %v8554
        %v8667 = vadd.f32 %v518, %v8555
        %v8668 = vadd.f32 %v519, %v8556
        %v8669 = vadd.f32 %v520, %v8557
        %v8670 = vadd.f32 %v521, %v8558
        %v8671 = vadd.f32 %v522, %v8559
        %v8672 = vadd.f32 %v523, %v8560
        %v8673 = vadd.f32 %v524, %v8561
        %v8674 = vadd.f32 %v525, %v8562
        %v8675 = vadd.f32 %v526, %v8563
        %v8676 = vadd.f32 %v527, %v8564
        %v8677 = vadd.f32 %v528, %v8565
        %v8678 = vadd.f32 %v529, %v8566
        %v8679 = vadd.f32 %v530, %v8567
        %v8680 = vadd.f32 %v531, %v8568
        %v8681 = vadd.f32 %v532, %v8569
        %v8682 = vadd.f32 %v533, %v8570
        %v8683 = vadd.f32 %v534, %v8571
        %v8684 = vadd.f32 %v535, %v8572
        %v8685 = vadd.f32 %v536, %v8573
        %v8686 = vadd.f32 %v537, %v8574
        %v8687 = vadd.f32 %v538, %v8575
        %v8688 = vadd.f32 %v539, %v8576
        %v8689 = vadd.f32 %v540, %v8577
        %v8690 = vadd.f32 %v541, %v8578
        %v8691 = vadd.f32 %v542, %v8579
        %v8692 = vadd.f32 %v543, %v8580
        %v8693 = vadd.f32 %v544, %v8581
        %v8694 = vadd.f32 %v545, %v8582
        %v8695 = vadd.f32 %v546, %v8583
        %v8696 = vadd.f32 %v547, %v8584
        %v8697 = vadd.f32 %v548, %v8585
        %v8698 = vadd.f32 %v549, %v8586
        %v8699 = vadd.f32 %v550, %v8587
        %v8700 = vadd.f32 %v551, %v8588
        %v8701 = vadd.f32 %v552, %v8589
        %v8702 = vadd.f32 %v553, %v8590
        %v8703 = vadd.f32 %v554, %v8591
        %v8704 = vadd.f32 %v555, %v8592
        %v8705 = vadd.f32 %v556, %v8593
        %v8706 = vadd.f32 %v557, %v8594
        %v8707 = vadd.f32 %v558, %v8595
        %v8708 = vadd.f32 %v559, %v8596
        %v8709 = vadd.f32 %v560, %v8597
        %v8710 = vadd.f32 %v561, %v8598
        %v8711 = vadd.f32 %v562, %v8599
        %v8712 = vadd.f32 %v563, %v8600
        %v8713 = vadd.f32 %v564, %v8601
        %v8714 = vadd.f32 %v565, %v8602
        %v8715 = vadd.f32 %v566, %v8603
        %v8716 = vadd.f32 %v567, %v8604
        %v8717 = vadd.f32 %v568, %v8605
        %v8718 = vadd.f32 %v569, %v8606
        %v8719 = vadd.f32 %v570, %v8607
        %v8720 = vadd.f32 %v571, %v8608
        %v8721 = vadd.f32 %v572, %v8609
        %v8722 = vadd.f32 %v573, %v8610
        %v8723 = vadd.f32 %v574, %v8611
        %v8724 = vadd.f32 %v575, %v8612
        %v8725 = vadd.f32 %v576, %v8613
        %v8726 = vadd.f32 %v577, %v8614
        %v8727 = vadd.f32 %v578, %v8615
        %v8728 = vadd.f32 %v579, %v8616
        %v8729 = vadd.f32 %v580, %v8617
        %v8730 = vadd.f32 %v581, %v8618
        %v8731 = vadd.f32 %v582, %v8619
        %v8732 = vadd.f32 %v583, %v8620
        %v8733 = vadd.f32 %v584, %v8621
        %v8734 = vadd.f32 %v585, %v8622
        %v8735 = vadd.f32 %v586, %v8623
        %v8736 = vadd.f32 %v587, %v8624
        %v8737 = vmax.f32 %v8625, 0.0
        %v8738 = vmax.f32 %v8626, 0.0
        %v8739 = vmax.f32 %v8627, 0.0
        %v8740 = vmax.f32 %v8628, 0.0
        %v8741 = vmax.f32 %v8629, 0.0
        %v8742 = vmax.f32 %v8630, 0.0
        %v8743 = vmax.f32 %v8631, 0.0
        %v8744 = vmax.f32 %v8632, 0.0
        %v8745 = vmax.f32 %v8633, 0.0
        %v8746 = vmax.f32 %v8634, 0.0
        %v8747 = vmax.f32 %v8635, 0.0
        %v8748 = vmax.f32 %v8636, 0.0
        %v8749 = vmax.f32 %v8637, 0.0
        %v8750 = vmax.f32 %v8638, 0.0
        %v8751 = vmax.f32 %v8639, 0.0
        %v8752 = vmax.f32 %v8640, 0.0
        %v8753 = vmax.f32 %v8641, 0.0
        %v8754 = vmax.f32 %v8642, 0.0
        %v8755 = vmax.f32 %v8643, 0.0
        %v8756 = vmax.f32 %v8644, 0.0
        %v8757 = vmax.f32 %v8645, 0.0
        %v8758 = vmax.f32 %v8646, 0.0
        %v8759 = vmax.f32 %v8647, 0.0
        %v8760 = vmax.f32 %v8648, 0.0
        %v8761 = vmax.f32 %v8649, 0.0
        %v8762 = vmax.f32 %v8650, 0.0
        %v8763 = vmax.f32 %v8651, 0.0
        %v8764 = vmax.f32 %v8652, 0.0
        %v8765 = vmax.f32 %v8653, 0.0
        %v8766 = vmax.f32 %v8654, 0.0
        %v8767 = vmax.f32 %v8655, 0.0
        %v8768 = vmax.f32 %v8656, 0.0
        %v8769 = vmax.f32 %v8657, 0.0
        %v8770 = vmax.f32 %v8658, 0.0
        %v8771 = vmax.f32 %v8659, 0.0
        %v8772 = vmax.f32 %v8660, 0.0
        %v8773 = vmax.f32 %v8661, 0.0
        %v8774 = vmax.f32 %v8662, 0.0
        %v8775 = vmax.f32 %v8663, 0.0
        %v8776 = vmax.f32 %v8664, 0.0
        %v8777 = vmax.f32 %v8665, 0.0
        %v8778 = vmax.f32 %v8666, 0.0
        %v8779 = vmax.f32 %v8667, 0.0
        %v8780 = vmax.f32 %v8668, 0.0
        %v8781 = vmax.f32 %v8669, 0.0
        %v8782 = vmax.f32 %v8670, 0.0
        %v8783 = vmax.f32 %v8671, 0.0
        %v8784 = vmax.f32 %v8672, 0.0
        %v8785 = vmax.f32 %v8673, 0.0
        %v8786 = vmax.f32 %v8674, 0.0
        %v8787 = vmax.f32 %v8675, 0.0
        %v8788 = vmax.f32 %v8676, 0.0
        %v8789 = vmax.f32 %v8677, 0.0
        %v8790 = vmax.f32 %v8678, 0.0
        %v8791 = vmax.f32 %v8679, 0.0
        %v8792 = vmax.f32 %v8680, 0.0
        %v8793 = vmax.f32 %v8681, 0.0
        %v8794 = vmax.f32 %v8682, 0.0
        %v8795 = vmax.f32 %v8683, 0.0
        %v8796 = vmax.f32 %v8684, 0.0
        %v8797 = vmax.f32 %v8685, 0.0
        %v8798 = vmax.f32 %v8686, 0.0
        %v8799 = vmax.f32 %v8687, 0.0
        %v8800 = vmax.f32 %v8688, 0.0
        %v8801 = vmax.f32 %v8689, 0.0
        %v8802 = vmax.f32 %v8690, 0.0
        %v8803 = vmax.f32 %v8691, 0.0
        %v8804 = vmax.f32 %v8692, 0.0
        %v8805 = vmax.f32 %v8693, 0.0
        %v8806 = vmax.f32 %v8694, 0.0
        %v8807 = vmax.f32 %v8695, 0.0
        %v8808 = vmax.f32 %v8696, 0.0
        %v8809 = vmax.f32 %v8697, 0.0
        %v8810 = vmax.f32 %v8698, 0.0
        %v8811 = vmax.f32 %v8699, 0.0
        %v8812 = vmax.f32 %v8700, 0.0
        %v8813 = vmax.f32 %v8701, 0.0
        %v8814 = vmax.f32 %v8702, 0.0
        %v8815 = vmax.f32 %v8703, 0.0
        %v8816 = vmax.f32 %v8704, 0.0
        %v8817 = vmax.f32 %v8705, 0.0
        %v8818 = vmax.f32 %v8706, 0.0
        %v8819 = vmax.f32 %v8707, 0.0
        %v8820 = vmax.f32 %v8708, 0.0
        %v8821 = vmax.f32 %v8709, 0.0
        %v8822 = vmax.f32 %v8710, 0.0
        %v8823 = vmax.f32 %v8711, 0.0
        %v8824 = vmax.f32 %v8712, 0.0
        %v8825 = vmax.f32 %v8713, 0.0
        %v8826 = vmax.f32 %v8714, 0.0
        %v8827 = vmax.f32 %v8715, 0.0
        %v8828 = vmax.f32 %v8716, 0.0
        %v8829 = vmax.f32 %v8717, 0.0
        %v8830 = vmax.f32 %v8718, 0.0
        %v8831 = vmax.f32 %v8719, 0.0
        %v8832 = vmax.f32 %v8720, 0.0
        %v8833 = vmax.f32 %v8721, 0.0
        %v8834 = vmax.f32 %v8722, 0.0
        %v8835 = vmax.f32 %v8723, 0.0
        %v8836 = vmax.f32 %v8724, 0.0
        %v8837 = vmax.f32 %v8725, 0.0
        %v8838 = vmax.f32 %v8726, 0.0
        %v8839 = vmax.f32 %v8727, 0.0
        %v8840 = vmax.f32 %v8728, 0.0
        %v8841 = vmax.f32 %v8729, 0.0
        %v8842 = vmax.f32 %v8730, 0.0
        %v8843 = vmax.f32 %v8731, 0.0
        %v8844 = vmax.f32 %v8732, 0.0
        %v8845 = vmax.f32 %v8733, 0.0
        %v8846 = vmax.f32 %v8734, 0.0
        %v8847 = vmax.f32 %v8735, 0.0
        %v8848 = vmax.f32 %v8736, 0.0
        %8849 = vst [vmem:[%s475] sm:$0xff] %v8737
        %8850 = vst [vmem:[%s475 + $0x8] sm:$0xff] %v8738
        %8851 = vst [vmem:[%s475 + $0x10] sm:$0xff] %v8739
        %8852 = vst [vmem:[%s475 + $0x18] sm:$0xff] %v8740
        %8853 = vst [vmem:[%s475 + $0x20] sm:$0xff] %v8741
        %8854 = vst [vmem:[%s475 + $0x28] sm:$0xff] %v8742
        %8855 = vst [vmem:[%s475 + $0x30] sm:$0xff] %v8743
        %8856 = vst [vmem:[%s475 + $0x38] sm:$0xff] %v8744
        %8857 = vst [vmem:[%s475 + $0x40] sm:$0xff] %v8745
        %8858 = vst [vmem:[%s475 + $0x48] sm:$0xff] %v8746
        %8859 = vst [vmem:[%s475 + $0x50] sm:$0xff] %v8747
        %8860 = vst [vmem:[%s475 + $0x58] sm:$0xff] %v8748
        %8861 = vst [vmem:[%s475 + $0x60] sm:$0xff] %v8749
        %8862 = vst [vmem:[%s475 + $0x68] sm:$0xff] %v8750
        %8863 = vst [vmem:[%s475 + $0x70] sm:$0xff] %v8751
        %8864 = vst [vmem:[%s475 + $0x78] sm:$0xff] %v8752
        %8865 = vst [vmem:[%s475 + $0x80] sm:$0xff] %v8753
        %8866 = vst [vmem:[%s475 + $0x88] sm:$0xff] %v8754
        %8867 = vst [vmem:[%s475 + $0x90] sm:$0xff] %v8755
        %8868 = vst [vmem:[%s475 + $0x98] sm:$0xff] %v8756
        %8869 = vst [vmem:[%s475 + $0xa0] sm:$0xff] %v8757
        %8870 = vst [vmem:[%s475 + $0xa8] sm:$0xff] %v8758
        %8871 = vst [vmem:[%s475 + $0xb0] sm:$0xff] %v8759
        %8872 = vst [vmem:[%s475 + $0xb8] sm:$0xff] %v8760
        %8873 = vst [vmem:[%s475 + $0xc0] sm:$0xff] %v8761
        %8874 = vst [vmem:[%s475 + $0xc8] sm:$0xff] %v8762
        %8875 = vst [vmem:[%s475 + $0xd0] sm:$0xff] %v8763
        %8876 = vst [vmem:[%s475 + $0xd8] sm:$0xff] %v8764
        %8877 = vst [vmem:[%s475 + $0xe0] sm:$0xff] %v8765
        %8878 = vst [vmem:[%s475 + $0xe8] sm:$0xff] %v8766
        %8879 = vst [vmem:[%s475 + $0xf0] sm:$0xff] %v8767
        %8880 = vst [vmem:[%s475 + $0xf8] sm:$0xff] %v8768
        %8881 = vst [vmem:[%s475 + $0x100] sm:$0xff] %v8769
        %8882 = vst [vmem:[%s475 + $0x108] sm:$0xff] %v8770
        %8883 = vst [vmem:[%s475 + $0x110] sm:$0xff] %v8771
        %8884 = vst [vmem:[%s475 + $0x118] sm:$0xff] %v8772
        %8885 = vst [vmem:[%s475 + $0x120] sm:$0xff] %v8773
        %8886 = vst [vmem:[%s475 + $0x128] sm:$0xff] %v8774
        %8887 = vst [vmem:[%s475 + $0x130] sm:$0xff] %v8775
        %8888 = vst [vmem:[%s475 + $0x138] sm:$0xff] %v8776
        %8889 = vst [vmem:[%s475 + $0x140] sm:$0xff] %v8777
        %8890 = vst [vmem:[%s475 + $0x148] sm:$0xff] %v8778
        %8891 = vst [vmem:[%s475 + $0x150] sm:$0xff] %v8779
        %8892 = vst [vmem:[%s475 + $0x158] sm:$0xff] %v8780
        %8893 = vst [vmem:[%s475 + $0x160] sm:$0xff] %v8781
        %8894 = vst [vmem:[%s475 + $0x168] sm:$0xff] %v8782
        %8895 = vst [vmem:[%s475 + $0x170] sm:$0xff] %v8783
        %8896 = vst [vmem:[%s475 + $0x178] sm:$0xff] %v8784
        %8897 = vst [vmem:[%s475 + $0x180] sm:$0xff] %v8785
        %8898 = vst [vmem:[%s475 + $0x188] sm:$0xff] %v8786
        %8899 = vst [vmem:[%s475 + $0x190] sm:$0xff] %v8787
        %8900 = vst [vmem:[%s475 + $0x198] sm:$0xff] %v8788
        %8901 = vst [vmem:[%s475 + $0x1a0] sm:$0xff] %v8789
        %8902 = vst [vmem:[%s475 + $0x1a8] sm:$0xff] %v8790
        %8903 = vst [vmem:[%s475 + $0x1b0] sm:$0xff] %v8791
        %8904 = vst [vmem:[%s475 + $0x1b8] sm:$0xff] %v8792
        %8905 = vst [vmem:[%s475 + $0x1c0] sm:$0xff] %v8793
        %8906 = vst [vmem:[%s475 + $0x1c8] sm:$0xff] %v8794
        %8907 = vst [vmem:[%s475 + $0x1d0] sm:$0xff] %v8795
        %8908 = vst [vmem:[%s475 + $0x1d8] sm:$0xff] %v8796
        %8909 = vst [vmem:[%s475 + $0x1e0] sm:$0xff] %v8797
        %8910 = vst [vmem:[%s475 + $0x1e8] sm:$0xff] %v8798
        %8911 = vst [vmem:[%s475 + $0x1f0] sm:$0xff] %v8799
        %8912 = vst [vmem:[%s475 + $0x1f8] sm:$0xff] %v8800
        %8913 = vst [vmem:[%s475 + $0x200] sm:$0xff] %v8801
        %8914 = vst [vmem:[%s475 + $0x208] sm:$0xff] %v8802
        %8915 = vst [vmem:[%s475 + $0x210] sm:$0xff] %v8803
        %8916 = vst [vmem:[%s475 + $0x218] sm:$0xff] %v8804
        %8917 = vst [vmem:[%s475 + $0x220] sm:$0xff] %v8805
        %8918 = vst [vmem:[%s475 + $0x228] sm:$0xff] %v8806
        %8919 = vst [vmem:[%s475 + $0x230] sm:$0xff] %v8807
        %8920 = vst [vmem:[%s475 + $0x238] sm:$0xff] %v8808
        %8921 = vst [vmem:[%s475 + $0x240] sm:$0xff] %v8809
        %8922 = vst [vmem:[%s475 + $0x248] sm:$0xff] %v8810
        %8923 = vst [vmem:[%s475 + $0x250] sm:$0xff] %v8811
        %8924 = vst [vmem:[%s475 + $0x258] sm:$0xff] %v8812
        %8925 = vst [vmem:[%s475 + $0x260] sm:$0xff] %v8813
        %8926 = vst [vmem:[%s475 + $0x268] sm:$0xff] %v8814
        %8927 = vst [vmem:[%s475 + $0x270] sm:$0xff] %v8815
        %8928 = vst [vmem:[%s475 + $0x278] sm:$0xff] %v8816
        %8929 = vst [vmem:[%s475 + $0x280] sm:$0xff] %v8817
        %8930 = vst [vmem:[%s475 + $0x288] sm:$0xff] %v8818
        %8931 = vst [vmem:[%s475 + $0x290] sm:$0xff] %v8819
        %8932 = vst [vmem:[%s475 + $0x298] sm:$0xff] %v8820
        %8933 = vst [vmem:[%s475 + $0x2a0] sm:$0xff] %v8821
        %8934 = vst [vmem:[%s475 + $0x2a8] sm:$0xff] %v8822
        %8935 = vst [vmem:[%s475 + $0x2b0] sm:$0xff] %v8823
        %8936 = vst [vmem:[%s475 + $0x2b8] sm:$0xff] %v8824
        %8937 = vst [vmem:[%s475 + $0x2c0] sm:$0xff] %v8825
        %8938 = vst [vmem:[%s475 + $0x2c8] sm:$0xff] %v8826
        %8939 = vst [vmem:[%s475 + $0x2d0] sm:$0xff] %v8827
        %8940 = vst [vmem:[%s475 + $0x2d8] sm:$0xff] %v8828
        %8941 = vst [vmem:[%s475 + $0x2e0] sm:$0xff] %v8829
        %8942 = vst [vmem:[%s475 + $0x2e8] sm:$0xff] %v8830
        %8943 = vst [vmem:[%s475 + $0x2f0] sm:$0xff] %v8831
        %8944 = vst [vmem:[%s475 + $0x2f8] sm:$0xff] %v8832
        %8945 = vst [vmem:[%s475 + $0x300] sm:$0xff] %v8833
        %8946 = vst [vmem:[%s475 + $0x308] sm:$0xff] %v8834
        %8947 = vst [vmem:[%s475 + $0x310] sm:$0xff] %v8835
        %8948 = vst [vmem:[%s475 + $0x318] sm:$0xff] %v8836
        %8949 = vst [vmem:[%s475 + $0x320] sm:$0xff] %v8837
        %8950 = vst [vmem:[%s475 + $0x328] sm:$0xff] %v8838
        %8951 = vst [vmem:[%s475 + $0x330] sm:$0xff] %v8839
        %8952 = vst [vmem:[%s475 + $0x338] sm:$0xff] %v8840
        %8953 = vst [vmem:[%s475 + $0x340] sm:$0xff] %v8841
        %8954 = vst [vmem:[%s475 + $0x348] sm:$0xff] %v8842
        %8955 = vst [vmem:[%s475 + $0x350] sm:$0xff] %v8843
        %8956 = vst [vmem:[%s475 + $0x358] sm:$0xff] %v8844
        %8957 = vst [vmem:[%s475 + $0x360] sm:$0xff] %v8845
        %8958 = vst [vmem:[%s475 + $0x368] sm:$0xff] %v8846
        %8959 = vst [vmem:[%s475 + $0x370] sm:$0xff] %v8847
        %8960 = vst [vmem:[%s475 + $0x378] sm:$0xff] %v8848
        %s8961 = sand.u32 %s254, 1
        %s8962 = scalar_lea.sflag [#allocation4], %s8961
        %s8963 = sand.u32 %s254, 1
        %s8964 = smul.addr %s8963, 896
        %s8965 = scalar_lea.vmem [#allocation16], %s8964
        // Predicated region
        $region93: #{tpu_custom_call.1} parent=59 // pred_check
          %p8966 = pneg %p264
        $region94: #{tpu_custom_call.1} parent=59 // pred_check_branch
          %8968 = sbr.rel (%p8966) target = $region96
        $region95: #{tpu_custom_call.1} parent=59 // pred_region
          %s8970 = ssub.s32 14336, 14336
          %8971 = vsyncadd %s8962, %s8970
          %s8972 = smul.addr %s31, 112
          %s8973 = smul.addr %s8972, 128
          %s8974 = scalar_lea.hbm %s10, %s8973
          %s8975 = sshll.u32 %s8965, 4
          %s8976 = int_to_ptr.vmem [resolvable:$true] %s8975
          %8981 = dma.vmem_to_hbm [thread:$0]  %s8976, 14336, %s8974, %s8962, 1792, 1792, 112
        $region96: #{tpu_custom_call.1} parent=59 // pred_fallthru
          _
      $region60: #{tpu_custom_call.1} parent=5 // pred_fallthru
        _
      %p8982 = scmp.le.s32.totalorder 2, %s26
      // Predicated region
      $region97: #{tpu_custom_call.1} parent=5 // pred_check
        %p8983 = pneg %p8982
      $region98: #{tpu_custom_call.1} parent=5 // pred_check_branch
        %8985 = sbr.rel (%p8983) target = $region100
      $region99: #{tpu_custom_call.1} parent=5 // pred_region
        %s8986 = ssub.s32 %s26, 2
        // Predicated region
        $region101: #{tpu_custom_call.1} parent=99 // pred_check
          %p8987 = pneg %p270
        $region102: #{tpu_custom_call.1} parent=99 // pred_check_branch
          %8989 = sbr.rel (%p8987) target = $region104
        $region103: #{tpu_custom_call.1} parent=99 // pred_region
          %s8990 = sand.u32 %s255, 1
          %s8991 = scalar_lea.sflag [#allocation4], %s8990
          %s8992 = sand.u32 %s255, 1
          %s8993 = smul.addr %s8992, 896
          %s8994 = scalar_lea.vmem [#allocation16], %s8993
          %8995 = dma.done %s8991, 14336
        $region104: #{tpu_custom_call.1} parent=99 // pred_fallthru
          _
      $region100: #{tpu_custom_call.1} parent=5 // pred_fallthru
        _
    $region6: #{tpu_custom_call.1} parent=1 // loop_footer
      %s30 = sadd.s32 1, %s26
    $region7: #{tpu_custom_call.1} parent=1 // loop_footer_branch
      %25 = sbr.rel target = $region3
    $region8: #{tpu_custom_call.1} parent=1 // loop_exit
      _
    %8996 = vsyncpa [#allocation3], 1
    %s8997 = scalar_lea.sflag [#allocation3], 1
    %8998 = vsyncpa %s8997, 1
    %8999 = vsyncpa [#allocation6], 1
    %9000 = vsyncpa [#allocation9], 1
    %9001 = vsyncpa [#allocation12], 1
    %9002 = vsyncpa [#allocation15], 1
    %9003 = vsyncpa [#allocation4], 1
    %s9004 = scalar_lea.sflag [#allocation4], 1
    %9005 = vsyncpa %s9004, 1

</llo_original>
